<compile_context>
chip_gen: v6e
topology: v6e:2x2x1
jax: 0.10.0
libtpu: 0.0.40
codegen_flags: <defaults>
</compile_context>

<pallas_src>
import functools

import jax
import jax.numpy as jnp
from jax.experimental import pallas as pl
from jax.experimental.pallas import tpu as pltpu


def _round_up(x, m):
    return ((x + m - 1) // m) * m


# ----------------------------------------------------------------------------
# Pallas kernel: fused (patches @ weight) + bias + activation
# ----------------------------------------------------------------------------
def _mm_bias_act_kernel(a_ref, w_ref, bias_ref, o_ref, *, activation):
    # w_ref holds ALL phase slabs (VMEM-resident, constant index_map); select
    # the slab belonging to this grid step's phase.
    w = w_ref[pl.program_id(0)]
    acc = jnp.dot(a_ref[...], w, preferred_element_type=jnp.float32)
    acc = acc + bias_ref[...]
    if activation == "relu":
        acc = jnp.maximum(acc, 0.0)
    elif activation == "tanh":
        acc = jnp.tanh(acc)
    o_ref[...] = acc.astype(o_ref.dtype)


def _pick_m_tiling(M, Np, P):
    """Pick (m_pad, tm).

    Small or multi-phase work -> one full-extent M block: no XLA pad / slice
    (beyond bf16 sublane rounding to 16) and no extra serial grid steps on
    single-TC chips (v5e/v6e).  Only genuinely large single-phase M (real
    image sizes) is tiled, with the f32 accumulator tile capped so the
    bias/activation epilogue does not spill vregs.
    """
    if P > 1 or M <= 512:
        m_pad = _round_up(M, 16)            # bf16 sublane pack; no-op for M>=16 pow2
        return m_pad, m_pad
    tm_cap = 512 if Np <= 128 else 256      # f32 acc tile = tm * 128 * 4B
    for tm in (tm_cap, tm_cap // 2, tm_cap // 4):
        if M % tm == 0:
            return M, tm
    return _round_up(M, tm_cap), tm_cap


def fused_matmul_bias_act(a, w, bias, activation, out_dtype):
    """a: [P, M, K] float, w: [P, K, Np] bf16, bias: [1, Np] f32 -> [P, M, Np].

    Np must be a multiple of 128 (guaranteed by param prep).
    """
    P, M, K = a.shape
    Pw, Kw, Np = w.shape
    assert Pw == P and Kw == K and Np % 128 == 0

    tn = 128                                # lane-dense; splits Np=256 (enc3)
    m_pad, tm = _pick_m_tiling(M, Np, P)

    a = a.astype(jnp.bfloat16)
    if m_pad != M:
        a = jnp.pad(a, ((0, 0), (0, m_pad - M), (0, 0)))

    grid = (P, m_pad // tm, Np // tn)
    out = pl.pallas_call(
        functools.partial(_mm_bias_act_kernel, activation=activation),
        out_shape=jax.ShapeDtypeStruct((P, m_pad, Np), out_dtype),
        grid_spec=pltpu.PrefetchScalarGridSpec(
            num_scalar_prefetch=0,
            grid=grid,
            in_specs=[
                pl.BlockSpec((None, tm, K), lambda p, i, n: (p, i, 0)),
                # All P phase slabs resident in VMEM (constant block index).
                pl.BlockSpec((P, K, tn), lambda p, i, n: (0, 0, n)),
                pl.BlockSpec((1, tn), lambda p, i, n: (0, n)),
            ],
            out_specs=pl.BlockSpec((None, tm, tn), lambda p, i, n: (p, i, n)),
        ),
        compiler_params=pltpu.CompilerParams(
            dimension_semantics=("parallel", "parallel", "parallel"),
        ),
    )(a, w, bias)
    if m_pad != M:
        out = out[:, :M, :]
    return out


# ----------------------------------------------------------------------------
# Conv2d(k=4, s=2, p=1) via NHWC im2col + fused Pallas matmul
# ----------------------------------------------------------------------------
def conv2d_nhwc(x, w_mat, bias, c_out, activation, out_dtype,
                k=4, stride=2, pad=1):
    """x: [B,H,W,C] NHWC bf16; w_mat: [1, k*k*C, Np] bf16; bias: [1, Np] f32."""
    B, H, W, C = x.shape
    xp = jnp.pad(x, ((0, 0), (pad, pad), (pad, pad), (0, 0)))
    Ho = (H + 2 * pad - k) // stride + 1
    Wo = (W + 2 * pad - k) // stride + 1
    # TODO(synk): fuse this 16-tap im2col into the kernel for large activations.
    taps = []
    for i in range(k):
        for j in range(k):
            taps.append(xp[:, i:i + stride * (Ho - 1) + 1:stride,
                            j:j + stride * (Wo - 1) + 1:stride, :])
    patches = jnp.concatenate(taps, axis=-1).reshape(1, B * Ho * Wo, k * k * C)
    out = fused_matmul_bias_act(patches, w_mat, bias, activation, out_dtype)
    return out[0, :, :c_out].reshape(B, Ho, Wo, c_out)


# ----------------------------------------------------------------------------
# ConvTranspose2d(k=4, s=2, p=1) via sub-pixel phase decomposition
# ----------------------------------------------------------------------------
# For output parity pr = oh % 2 (and pc = ow % 2) only two of the four kernel
# rows (cols) ever touch a non-zero input sample:
#   pr = 0 -> taps kh = (3, 1) at padded-input rows (r, r+1)
#   pr = 1 -> taps kh = (2, 0) at padded-input rows (r+1, r+2)
_KTAB = ((3, 1), (2, 0))


def conv_transpose2d_nhwc(x, w_ph, bias, c_out, activation, out_dtype):
    """x: [B,H,W,C] bf16; w_ph: [4, 4*C, Np] bf16 (phase = 2*(oh%2)+(ow%2));
    bias: [1, Np] f32 -> [B, 2H, 2W, c_out]."""
    B, H, W, C = x.shape
    xp = jnp.pad(x, ((0, 0), (1, 1), (1, 1), (0, 0)))
    # TODO(synk): fuse this phase-tap extraction into the kernel for large inputs.
    shift = {(i, j): xp[:, i:i + H, j:j + W, :]
             for i in range(3) for j in range(3)}
    phases = []
    for pr in range(2):
        for pc in range(2):
            taps = [shift[(pr + a, pc + b)] for a in range(2) for b in range(2)]
            phases.append(jnp.concatenate(taps, axis=-1).reshape(B * H * W, 4 * C))
    a = jnp.stack(phases, axis=0)                                   # [4, B*H*W, 4*C]
    out = fused_matmul_bias_act(a, w_ph, bias, activation, out_dtype)  # [4, M, Np]
    out = out[:, :, :c_out].reshape(2, 2, B, H, W, c_out)           # slice BEFORE transpose
    # interleave phases: y[b, 2r+pr, 2c+pc, :] = out[pr, pc, b, r, c, :]
    return jnp.transpose(out, (2, 3, 0, 4, 1, 5)).reshape(B, 2 * H, 2 * W, c_out)


# ----------------------------------------------------------------------------
# Parameter init (PyTorch layouts) and kernel-ready prep (bf16 matrices)
# ----------------------------------------------------------------------------
def init_params(key):
    def p(key, shape, scale=0.05):
        return (scale * jax.random.normal(key, shape)).astype(jnp.float32)

    ks = jax.random.split(key, 12)
    return {
        # Conv2d weights: [C_out, C_in, k, k]
        "enc1_w": p(ks[0], (64, 4, 4, 4)),    "enc1_b": p(ks[1], (64,)),
        "enc2_w": p(ks[2], (128, 64, 4, 4)),  "enc2_b": p(ks[3], (128,)),
        "enc3_w": p(ks[4], (256, 128, 4, 4)), "enc3_b": p(ks[5], (256,)),
        # ConvTranspose2d weights: [C_in, C_out, k, k]
        "dec1_w": p(ks[6], (256, 128, 4, 4)), "dec1_b": p(ks[7], (128,)),
        "dec2_w": p(ks[8], (128, 64, 4, 4)),  "dec2_b": p(ks[9], (64,)),
        "dec3_w": p(ks[10], (64, 3, 4, 4)),   "dec3_b": p(ks[11], (3,)),
    }


def _prep_conv(w, b, c_in_pad=None):
    """Conv2d weight [C_out, C_in, k, k] -> ([1, k*k*C_in_pad, Np] bf16, [1, Np] f32)."""
    c_out, c_in, k, _ = w.shape
    if c_in_pad is not None and c_in_pad > c_in:
        w = jnp.pad(w, ((0, 0), (0, c_in_pad - c_in), (0, 0), (0, 0)))
        c_in = c_in_pad
    n_pad = _round_up(c_out, 128)
    w_mat = jnp.transpose(w, (2, 3, 1, 0)).reshape(k * k * c_in, c_out)
    w_mat = jnp.pad(w_mat, ((0, 0), (0, n_pad - c_out)))
    bias = jnp.pad(b, (0, n_pad - c_out)).astype(jnp.float32)[None, :]
    return w_mat[None].astype(jnp.bfloat16), bias


def _prep_deconv(w, b):
    """ConvTranspose2d weight [C_in, C_out, 4, 4] -> phase weights
    ([4, 4*C_in, Np] bf16, [1, Np] f32) for the sub-pixel decomposition."""
    c_in, c_out, k, _ = w.shape
    assert k == 4
    n_pad = _round_up(c_out, 128)
    mats = []
    for pr in range(2):
        for pc in range(2):
            taps = []
            for a in range(2):
                for bb in range(2):
                    taps.append(w[:, :, _KTAB[pr][a], _KTAB[pc][bb]])  # [C_in, C_out]
            m = jnp.concatenate(taps, axis=0)                          # [4*C_in, C_out]
            mats.append(jnp.pad(m, ((0, 0), (0, n_pad - c_out))))
    w_ph = jnp.stack(mats, axis=0).astype(jnp.bfloat16)
    bias = jnp.pad(b, (0, n_pad - c_out)).astype(jnp.float32)[None, :]
    return w_ph, bias


def prepare_params(params):
    prep = {}
    prep["enc1_w"], prep["enc1_b"] = _prep_conv(params["enc1_w"], params["enc1_b"],
                                                c_in_pad=8)  # K = 16*8 = 128
    prep["enc2_w"], prep["enc2_b"] = _prep_conv(params["enc2_w"], params["enc2_b"])
    prep["enc3_w"], prep["enc3_b"] = _prep_conv(params["enc3_w"], params["enc3_b"])
    prep["dec1_w"], prep["dec1_b"] = _prep_deconv(params["dec1_w"], params["dec1_b"])
    prep["dec2_w"], prep["dec2_b"] = _prep_deconv(params["dec2_w"], params["dec2_b"])
    prep["dec3_w"], prep["dec3_b"] = _prep_deconv(params["dec3_w"], params["dec3_b"])
    return prep


# ----------------------------------------------------------------------------
# Generator forward (matches the PyTorch module's forward)
# ----------------------------------------------------------------------------
def generator_forward(prep, x, condition):
    """x: [B, 3, H, W] NCHW, condition: [B] -> [B, 3, H, W] NCHW f32 (tanh range)."""
    B, _, H, W = x.shape
    bf16 = jnp.bfloat16
    x = jnp.transpose(x, (0, 2, 3, 1)).astype(bf16)                      # NHWC once
    cond = jnp.broadcast_to(condition.astype(bf16).reshape(B, 1, 1, 1),
                            (B, H, W, 1))
    x = jnp.concatenate([x, cond], axis=-1)                              # [B,H,W,4]
    x = jnp.pad(x, ((0, 0), (0, 0), (0, 0), (0, 4)))                     # C 4 -> 8

    # Hidden activations stay bf16 end-to-end; only the final tanh layer is f32.
    e1 = conv2d_nhwc(x,  prep["enc1_w"], prep["enc1_b"], 64,  "relu", bf16)
    e2 = conv2d_nhwc(e1, prep["enc2_w"], prep["enc2_b"], 128, "relu", bf16)
    e3 = conv2d_nhwc(e2, prep["enc3_w"], prep["enc3_b"], 256, "relu", bf16)
    d1 = conv_transpose2d_nhwc(e3, prep["dec1_w"], prep["dec1_b"], 128, "relu", bf16)
    d2 = conv_transpose2d_nhwc(d1, prep["dec2_w"], prep["dec2_b"], 64,  "relu", bf16)
    out = conv_transpose2d_nhwc(d2, prep["dec3_w"], prep["dec3_b"], 3,   "tanh",
                                jnp.float32)
    return jnp.transpose(out, (0, 3, 1, 2))                              # NCHW once


if __name__ == "__main__":
    key = jax.random.PRNGKey(0)
    kx, kc, kp = jax.random.split(key, 3)

    B, H, W = 2, 16, 16
    x = jax.random.normal(kx, (B, 3, H, W), dtype=jnp.float32)     # NCHW
    condition = jax.random.uniform(kc, (B,), dtype=jnp.float32)

    params = init_params(kp)
    prep = prepare_params(params)

    fwd = jax.jit(generator_forward)
    out = jax.block_until_ready(fwd(prep, x, condition))

    assert out.shape == (B, 3, H, W), out.shape
    assert out.dtype == jnp.float32, out.dtype
    assert bool(jnp.all(jnp.isfinite(out)))
    assert bool(jnp.all(jnp.abs(out) <= 1.0))  # tanh range
    print("KERNEL_OK")
</pallas_src>

<mosaic_0001>
module attributes {stable_mosaic.version = 11 : i64} {
  func.func @_mm_bias_act_kernel(%arg0: i32, %arg1: i32, %arg2: i32, %arg3: memref<1x128x128xbf16, #tpu.memory_space<vmem>>, %arg4: memref<1x128x128xbf16, #tpu.memory_space<vmem>>, %arg5: memref<1x128xf32, #tpu.memory_space<vmem>>, %arg6: memref<1x128x128xbf16, #tpu.memory_space<vmem>>) attributes {dimension_semantics = [#tpu.dimension_semantics<parallel>, #tpu.dimension_semantics<parallel>, #tpu.dimension_semantics<parallel>], iteration_bounds = array<i64: 1, 1, 1>, scalar_prefetch = 0 : i64, scratch_operands = 0 : i64, tpu.core_type = #tpu.core_type<tc>, window_params = [{transform_indices = @transform_0, window_bounds = array<i64: 1, 128, 128>}, {transform_indices = @transform_1, window_bounds = array<i64: 1, 128, 128>}, {transform_indices = @transform_2, window_bounds = array<i64: 1, 128>}, {transform_indices = @transform_3, window_bounds = array<i64: 1, 128, 128>}]} {
    %0 = arith.index_cast %arg0 : i32 to index
    %c0 = arith.constant 0 : index
    %c0_0 = arith.constant 0 : index
    %1 = vector.load %arg4[%0, %c0, %c0_0] : memref<1x128x128xbf16, #tpu.memory_space<vmem>>, vector<1x128x128xbf16>
    %2 = vector.shape_cast %1 : vector<1x128x128xbf16> to vector<128x128xbf16>
    %c0_1 = arith.constant 0 : index
    %c0_2 = arith.constant 0 : index
    %c0_3 = arith.constant 0 : index
    %3 = vector.load %arg3[%c0_1, %c0_2, %c0_3] : memref<1x128x128xbf16, #tpu.memory_space<vmem>>, vector<1x128x128xbf16>
    %4 = vector.shape_cast %3 : vector<1x128x128xbf16> to vector<128x128xbf16>
    %cst = arith.constant dense<0.000000e+00> : vector<128x128xf32>
    %5 = tpu.matmul %4, %2, %cst {dimension_numbers = #tpu.dot_dimension_numbers<[1], [0], [0], [1], [0, 0, 1, 1], [], []>} : vector<128x128xbf16>, vector<128x128xbf16>, vector<128x128xf32> -> vector<128x128xf32>
    %c0_4 = arith.constant 0 : index
    %c0_5 = arith.constant 0 : index
    %6 = vector.load %arg5[%c0_4, %c0_5] : memref<1x128xf32, #tpu.memory_space<vmem>>, vector<1x128xf32>
    %7 = vector.broadcast %6 : vector<1x128xf32> to vector<128x128xf32>
    %8 = arith.addf %5, %7 : vector<128x128xf32>
    %cst_6 = arith.constant 0.000000e+00 : f32
    %9 = vector.broadcast %cst_6 : f32 to vector<128x128xf32>
    %10 = arith.maximumf %8, %9 : vector<128x128xf32>
    %11 = arith.truncf %10 : vector<128x128xf32> to vector<128x128xbf16>
    %c0_7 = arith.constant 0 : index
    %c0_8 = arith.constant 0 : index
    %c0_9 = arith.constant 0 : index
    %12 = vector.load %arg6[%c0_7, %c0_8, %c0_9] : memref<1x128x128xbf16, #tpu.memory_space<vmem>>, vector<1x128x128xbf16>
    %13 = vector.shape_cast %12 : vector<1x128x128xbf16> to vector<128x128xbf16>
    %14 = vector.shape_cast %11 : vector<128x128xbf16> to vector<1x128x128xbf16>
    tpu.vector_store %arg6[%c0_7, %c0_8, %c0_9], %14 {strides = array<i32>} : memref<1x128x128xbf16, #tpu.memory_space<vmem>>, vector<1x128x128xbf16>,
    return
  }
  func.func @transform_0(%arg0: i32, %arg1: i32, %arg2: i32) -> (i32, i32, i32) {
    %c0_i32 = arith.constant 0 : i32
    %c0_i32_0 = arith.constant 0 : i32
    return %arg0, %arg1, %c0_i32 : i32, i32, i32
  }
  func.func @transform_1(%arg0: i32, %arg1: i32, %arg2: i32) -> (i32, i32, i32) {
    %c0_i32 = arith.constant 0 : i32
    %c0_i32_0 = arith.constant 0 : i32
    %c0_i32_1 = arith.constant 0 : i32
    return %c0_i32, %c0_i32_0, %arg2 : i32, i32, i32
  }
  func.func @transform_2(%arg0: i32, %arg1: i32, %arg2: i32) -> (i32, i32) {
    %c0_i32 = arith.constant 0 : i32
    %c0_i32_0 = arith.constant 0 : i32
    return %c0_i32, %arg2 : i32, i32
  }
  func.func @transform_3(%arg0: i32, %arg1: i32, %arg2: i32) -> (i32, i32, i32) {
    %c0_i32 = arith.constant 0 : i32
    return %arg0, %arg1, %arg2 : i32, i32, i32
  }
}

module attributes {stable_mosaic.version = 11 : i64} {
  func.func @_mm_bias_act_kernel(%arg0: i32, %arg1: i32, %arg2: i32, %arg3: memref<1x32x1024xbf16, #tpu.memory_space<vmem>>, %arg4: memref<1x1024x128xbf16, #tpu.memory_space<vmem>>, %arg5: memref<1x128xf32, #tpu.memory_space<vmem>>, %arg6: memref<1x32x128xbf16, #tpu.memory_space<vmem>>) attributes {dimension_semantics = [#tpu.dimension_semantics<parallel>, #tpu.dimension_semantics<parallel>, #tpu.dimension_semantics<parallel>], iteration_bounds = array<i64: 1, 1, 1>, scalar_prefetch = 0 : i64, scratch_operands = 0 : i64, tpu.core_type = #tpu.core_type<tc>, window_params = [{transform_indices = @transform_0, window_bounds = array<i64: 1, 32, 1024>}, {transform_indices = @transform_1, window_bounds = array<i64: 1, 1024, 128>}, {transform_indices = @transform_2, window_bounds = array<i64: 1, 128>}, {transform_indices = @transform_3, window_bounds = array<i64: 1, 32, 128>}]} {
    %0 = arith.index_cast %arg0 : i32 to index
    %c0 = arith.constant 0 : index
    %c0_0 = arith.constant 0 : index
    %1 = vector.load %arg4[%0, %c0, %c0_0] : memref<1x1024x128xbf16, #tpu.memory_space<vmem>>, vector<1x1024x128xbf16>
    %2 = vector.shape_cast %1 : vector<1x1024x128xbf16> to vector<1024x128xbf16>
    %c0_1 = arith.constant 0 : index
    %c0_2 = arith.constant 0 : index
    %c0_3 = arith.constant 0 : index
    %3 = vector.load %arg3[%c0_1, %c0_2, %c0_3] : memref<1x32x1024xbf16, #tpu.memory_space<vmem>>, vector<1x32x1024xbf16>
    %4 = vector.shape_cast %3 : vector<1x32x1024xbf16> to vector<32x1024xbf16>
    %cst = arith.constant dense<0.000000e+00> : vector<32x128xf32>
    %5 = tpu.matmul %4, %2, %cst {dimension_numbers = #tpu.dot_dimension_numbers<[1], [0], [0], [1], [0, 0, 1, 1], [], []>} : vector<32x1024xbf16>, vector<1024x128xbf16>, vector<32x128xf32> -> vector<32x128xf32>
    %c0_4 = arith.constant 0 : index
    %c0_5 = arith.constant 0 : index
    %6 = vector.load %arg5[%c0_4, %c0_5] : memref<1x128xf32, #tpu.memory_space<vmem>>, vector<1x128xf32>
    %7 = vector.broadcast %6 : vector<1x128xf32> to vector<32x128xf32>
    %8 = arith.addf %5, %7 : vector<32x128xf32>
    %cst_6 = arith.constant 0.000000e+00 : f32
    %9 = vector.broadcast %cst_6 : f32 to vector<32x128xf32>
    %10 = arith.maximumf %8, %9 : vector<32x128xf32>
    %11 = arith.truncf %10 : vector<32x128xf32> to vector<32x128xbf16>
    %c0_7 = arith.constant 0 : index
    %c0_8 = arith.constant 0 : index
    %c0_9 = arith.constant 0 : index
    %12 = vector.load %arg6[%c0_7, %c0_8, %c0_9] : memref<1x32x128xbf16, #tpu.memory_space<vmem>>, vector<1x32x128xbf16>
    %13 = vector.shape_cast %12 : vector<1x32x128xbf16> to vector<32x128xbf16>
    %14 = vector.shape_cast %11 : vector<32x128xbf16> to vector<1x32x128xbf16>
    tpu.vector_store %arg6[%c0_7, %c0_8, %c0_9], %14 {strides = array<i32>} : memref<1x32x128xbf16, #tpu.memory_space<vmem>>, vector<1x32x128xbf16>,
    return
  }
  func.func @transform_0(%arg0: i32, %arg1: i32, %arg2: i32) -> (i32, i32, i32) {
    %c0_i32 = arith.constant 0 : i32
    %c0_i32_0 = arith.constant 0 : i32
    return %arg0, %arg1, %c0_i32 : i32, i32, i32
  }
  func.func @transform_1(%arg0: i32, %arg1: i32, %arg2: i32) -> (i32, i32, i32) {
    %c0_i32 = arith.constant 0 : i32
    %c0_i32_0 = arith.constant 0 : i32
    %c0_i32_1 = arith.constant 0 : i32
    return %c0_i32, %c0_i32_0, %arg2 : i32, i32, i32
  }
  func.func @transform_2(%arg0: i32, %arg1: i32, %arg2: i32) -> (i32, i32) {
    %c0_i32 = arith.constant 0 : i32
    %c0_i32_0 = arith.constant 0 : i32
    return %c0_i32, %arg2 : i32, i32
  }
  func.func @transform_3(%arg0: i32, %arg1: i32, %arg2: i32) -> (i32, i32, i32) {
    %c0_i32 = arith.constant 0 : i32
    return %arg0, %arg1, %arg2 : i32, i32, i32
  }
}

module attributes {stable_mosaic.version = 11 : i64} {
  func.func @_mm_bias_act_kernel(%arg0: i32, %arg1: i32, %arg2: i32, %arg3: memref<1x16x1024xbf16, #tpu.memory_space<vmem>>, %arg4: memref<4x1024x128xbf16, #tpu.memory_space<vmem>>, %arg5: memref<1x128xf32, #tpu.memory_space<vmem>>, %arg6: memref<1x16x128xbf16, #tpu.memory_space<vmem>>) attributes {dimension_semantics = [#tpu.dimension_semantics<parallel>, #tpu.dimension_semantics<parallel>, #tpu.dimension_semantics<parallel>], iteration_bounds = array<i64: 4, 1, 1>, scalar_prefetch = 0 : i64, scratch_operands = 0 : i64, tpu.core_type = #tpu.core_type<tc>, window_params = [{transform_indices = @transform_0, window_bounds = array<i64: 1, 16, 1024>}, {transform_indices = @transform_1, window_bounds = array<i64: 4, 1024, 128>}, {transform_indices = @transform_2, window_bounds = array<i64: 1, 128>}, {transform_indices = @transform_3, window_bounds = array<i64: 1, 16, 128>}]} {
    %0 = arith.index_cast %arg0 : i32 to index
    %c0 = arith.constant 0 : index
    %c0_0 = arith.constant 0 : index
    %1 = vector.load %arg4[%0, %c0, %c0_0] : memref<4x1024x128xbf16, #tpu.memory_space<vmem>>, vector<1x1024x128xbf16>
    %2 = vector.shape_cast %1 : vector<1x1024x128xbf16> to vector<1024x128xbf16>
    %c0_1 = arith.constant 0 : index
    %c0_2 = arith.constant 0 : index
    %c0_3 = arith.constant 0 : index
    %3 = vector.load %arg3[%c0_1, %c0_2, %c0_3] : memref<1x16x1024xbf16, #tpu.memory_space<vmem>>, vector<1x16x1024xbf16>
    %4 = vector.shape_cast %3 : vector<1x16x1024xbf16> to vector<16x1024xbf16>
    %cst = arith.constant dense<0.000000e+00> : vector<16x128xf32>
    %5 = tpu.matmul %4, %2, %cst {dimension_numbers = #tpu.dot_dimension_numbers<[1], [0], [0], [1], [0, 0, 1, 1], [], []>} : vector<16x1024xbf16>, vector<1024x128xbf16>, vector<16x128xf32> -> vector<16x128xf32>
    %c0_4 = arith.constant 0 : index
    %c0_5 = arith.constant 0 : index
    %6 = vector.load %arg5[%c0_4, %c0_5] : memref<1x128xf32, #tpu.memory_space<vmem>>, vector<1x128xf32>
    %7 = vector.broadcast %6 : vector<1x128xf32> to vector<16x128xf32>
    %8 = arith.addf %5, %7 : vector<16x128xf32>
    %cst_6 = arith.constant 0.000000e+00 : f32
    %9 = vector.broadcast %cst_6 : f32 to vector<16x128xf32>
    %10 = arith.maximumf %8, %9 : vector<16x128xf32>
    %11 = arith.truncf %10 : vector<16x128xf32> to vector<16x128xbf16>
    %c0_7 = arith.constant 0 : index
    %c0_8 = arith.constant 0 : index
    %c0_9 = arith.constant 0 : index
    %12 = vector.load %arg6[%c0_7, %c0_8, %c0_9] : memref<1x16x128xbf16, #tpu.memory_space<vmem>>, vector<1x16x128xbf16>
    %13 = vector.shape_cast %12 : vector<1x16x128xbf16> to vector<16x128xbf16>
    %14 = vector.shape_cast %11 : vector<16x128xbf16> to vector<1x16x128xbf16>
    tpu.vector_store %arg6[%c0_7, %c0_8, %c0_9], %14 {strides = array<i32>} : memref<1x16x128xbf16, #tpu.memory_space<vmem>>, vector<1x16x128xbf16>,
    return
  }
  func.func @transform_0(%arg0: i32, %arg1: i32, %arg2: i32) -> (i32, i32, i32) {
    %c0_i32 = arith.constant 0 : i32
    %c0_i32_0 = arith.constant 0 : i32
    return %arg0, %arg1, %c0_i32 : i32, i32, i32
  }
  func.func @transform_1(%arg0: i32, %arg1: i32, %arg2: i32) -> (i32, i32, i32) {
    %c0_i32 = arith.constant 0 : i32
    %c0_i32_0 = arith.constant 0 : i32
    %c0_i32_1 = arith.constant 0 : i32
    return %c0_i32, %c0_i32_0, %arg2 : i32, i32, i32
  }
  func.func @transform_2(%arg0: i32, %arg1: i32, %arg2: i32) -> (i32, i32) {
    %c0_i32 = arith.constant 0 : i32
    %c0_i32_0 = arith.constant 0 : i32
    return %c0_i32, %arg2 : i32, i32
  }
  func.func @transform_3(%arg0: i32, %arg1: i32, %arg2: i32) -> (i32, i32, i32) {
    %c0_i32 = arith.constant 0 : i32
    return %arg0, %arg1, %arg2 : i32, i32, i32
  }
}

module attributes {stable_mosaic.version = 11 : i64} {
  func.func @_mm_bias_act_kernel(%arg0: i32, %arg1: i32, %arg2: i32, %arg3: memref<1x16x2048xbf16, #tpu.memory_space<vmem>>, %arg4: memref<1x2048x128xbf16, #tpu.memory_space<vmem>>, %arg5: memref<1x128xf32, #tpu.memory_space<vmem>>, %arg6: memref<1x16x128xbf16, #tpu.memory_space<vmem>>) attributes {dimension_semantics = [#tpu.dimension_semantics<parallel>, #tpu.dimension_semantics<parallel>, #tpu.dimension_semantics<parallel>], iteration_bounds = array<i64: 1, 1, 2>, scalar_prefetch = 0 : i64, scratch_operands = 0 : i64, tpu.core_type = #tpu.core_type<tc>, window_params = [{transform_indices = @transform_0, window_bounds = array<i64: 1, 16, 2048>}, {transform_indices = @transform_1, window_bounds = array<i64: 1, 2048, 128>}, {transform_indices = @transform_2, window_bounds = array<i64: 1, 128>}, {transform_indices = @transform_3, window_bounds = array<i64: 1, 16, 128>}]} {
    %0 = arith.index_cast %arg0 : i32 to index
    %c0 = arith.constant 0 : index
    %c0_0 = arith.constant 0 : index
    %1 = vector.load %arg4[%0, %c0, %c0_0] : memref<1x2048x128xbf16, #tpu.memory_space<vmem>>, vector<1x2048x128xbf16>
    %2 = vector.shape_cast %1 : vector<1x2048x128xbf16> to vector<2048x128xbf16>
    %c0_1 = arith.constant 0 : index
    %c0_2 = arith.constant 0 : index
    %c0_3 = arith.constant 0 : index
    %3 = vector.load %arg3[%c0_1, %c0_2, %c0_3] : memref<1x16x2048xbf16, #tpu.memory_space<vmem>>, vector<1x16x2048xbf16>
    %4 = vector.shape_cast %3 : vector<1x16x2048xbf16> to vector<16x2048xbf16>
    %cst = arith.constant dense<0.000000e+00> : vector<16x128xf32>
    %5 = tpu.matmul %4, %2, %cst {dimension_numbers = #tpu.dot_dimension_numbers<[1], [0], [0], [1], [0, 0, 1, 1], [], []>} : vector<16x2048xbf16>, vector<2048x128xbf16>, vector<16x128xf32> -> vector<16x128xf32>
    %c0_4 = arith.constant 0 : index
    %c0_5 = arith.constant 0 : index
    %6 = vector.load %arg5[%c0_4, %c0_5] : memref<1x128xf32, #tpu.memory_space<vmem>>, vector<1x128xf32>
    %7 = vector.broadcast %6 : vector<1x128xf32> to vector<16x128xf32>
    %8 = arith.addf %5, %7 : vector<16x128xf32>
    %cst_6 = arith.constant 0.000000e+00 : f32
    %9 = vector.broadcast %cst_6 : f32 to vector<16x128xf32>
    %10 = arith.maximumf %8, %9 : vector<16x128xf32>
    %11 = arith.truncf %10 : vector<16x128xf32> to vector<16x128xbf16>
    %c0_7 = arith.constant 0 : index
    %c0_8 = arith.constant 0 : index
    %c0_9 = arith.constant 0 : index
    %12 = vector.load %arg6[%c0_7, %c0_8, %c0_9] : memref<1x16x128xbf16, #tpu.memory_space<vmem>>, vector<1x16x128xbf16>
    %13 = vector.shape_cast %12 : vector<1x16x128xbf16> to vector<16x128xbf16>
    %14 = vector.shape_cast %11 : vector<16x128xbf16> to vector<1x16x128xbf16>
    tpu.vector_store %arg6[%c0_7, %c0_8, %c0_9], %14 {strides = array<i32>} : memref<1x16x128xbf16, #tpu.memory_space<vmem>>, vector<1x16x128xbf16>,
    return
  }
  func.func @transform_0(%arg0: i32, %arg1: i32, %arg2: i32) -> (i32, i32, i32) {
    %c0_i32 = arith.constant 0 : i32
    %c0_i32_0 = arith.constant 0 : i32
    return %arg0, %arg1, %c0_i32 : i32, i32, i32
  }
  func.func @transform_1(%arg0: i32, %arg1: i32, %arg2: i32) -> (i32, i32, i32) {
    %c0_i32 = arith.constant 0 : i32
    %c0_i32_0 = arith.constant 0 : i32
    %c0_i32_1 = arith.constant 0 : i32
    return %c0_i32, %c0_i32_0, %arg2 : i32, i32, i32
  }
  func.func @transform_2(%arg0: i32, %arg1: i32, %arg2: i32) -> (i32, i32) {
    %c0_i32 = arith.constant 0 : i32
    %c0_i32_0 = arith.constant 0 : i32
    return %c0_i32, %arg2 : i32, i32
  }
  func.func @transform_3(%arg0: i32, %arg1: i32, %arg2: i32) -> (i32, i32, i32) {
    %c0_i32 = arith.constant 0 : i32
    return %arg0, %arg1, %arg2 : i32, i32, i32
  }
}

module attributes {stable_mosaic.version = 11 : i64} {
  func.func @_mm_bias_act_kernel(%arg0: i32, %arg1: i32, %arg2: i32, %arg3: memref<1x32x512xbf16, #tpu.memory_space<vmem>>, %arg4: memref<4x512x128xbf16, #tpu.memory_space<vmem>>, %arg5: memref<1x128xf32, #tpu.memory_space<vmem>>, %arg6: memref<1x32x128xbf16, #tpu.memory_space<vmem>>) attributes {dimension_semantics = [#tpu.dimension_semantics<parallel>, #tpu.dimension_semantics<parallel>, #tpu.dimension_semantics<parallel>], iteration_bounds = array<i64: 4, 1, 1>, scalar_prefetch = 0 : i64, scratch_operands = 0 : i64, tpu.core_type = #tpu.core_type<tc>, window_params = [{transform_indices = @transform_0, window_bounds = array<i64: 1, 32, 512>}, {transform_indices = @transform_1, window_bounds = array<i64: 4, 512, 128>}, {transform_indices = @transform_2, window_bounds = array<i64: 1, 128>}, {transform_indices = @transform_3, window_bounds = array<i64: 1, 32, 128>}]} {
    %0 = arith.index_cast %arg0 : i32 to index
    %c0 = arith.constant 0 : index
    %c0_0 = arith.constant 0 : index
    %1 = vector.load %arg4[%0, %c0, %c0_0] : memref<4x512x128xbf16, #tpu.memory_space<vmem>>, vector<1x512x128xbf16>
    %2 = vector.shape_cast %1 : vector<1x512x128xbf16> to vector<512x128xbf16>
    %c0_1 = arith.constant 0 : index
    %c0_2 = arith.constant 0 : index
    %c0_3 = arith.constant 0 : index
    %3 = vector.load %arg3[%c0_1, %c0_2, %c0_3] : memref<1x32x512xbf16, #tpu.memory_space<vmem>>, vector<1x32x512xbf16>
    %4 = vector.shape_cast %3 : vector<1x32x512xbf16> to vector<32x512xbf16>
    %cst = arith.constant dense<0.000000e+00> : vector<32x128xf32>
    %5 = tpu.matmul %4, %2, %cst {dimension_numbers = #tpu.dot_dimension_numbers<[1], [0], [0], [1], [0, 0, 1, 1], [], []>} : vector<32x512xbf16>, vector<512x128xbf16>, vector<32x128xf32> -> vector<32x128xf32>
    %c0_4 = arith.constant 0 : index
    %c0_5 = arith.constant 0 : index
    %6 = vector.load %arg5[%c0_4, %c0_5] : memref<1x128xf32, #tpu.memory_space<vmem>>, vector<1x128xf32>
    %7 = vector.broadcast %6 : vector<1x128xf32> to vector<32x128xf32>
    %8 = arith.addf %5, %7 : vector<32x128xf32>
    %cst_6 = arith.constant 0.000000e+00 : f32
    %9 = vector.broadcast %cst_6 : f32 to vector<32x128xf32>
    %10 = arith.maximumf %8, %9 : vector<32x128xf32>
    %11 = arith.truncf %10 : vector<32x128xf32> to vector<32x128xbf16>
    %c0_7 = arith.constant 0 : index
    %c0_8 = arith.constant 0 : index
    %c0_9 = arith.constant 0 : index
    %12 = vector.load %arg6[%c0_7, %c0_8, %c0_9] : memref<1x32x128xbf16, #tpu.memory_space<vmem>>, vector<1x32x128xbf16>
    %13 = vector.shape_cast %12 : vector<1x32x128xbf16> to vector<32x128xbf16>
    %14 = vector.shape_cast %11 : vector<32x128xbf16> to vector<1x32x128xbf16>
    tpu.vector_store %arg6[%c0_7, %c0_8, %c0_9], %14 {strides = array<i32>} : memref<1x32x128xbf16, #tpu.memory_space<vmem>>, vector<1x32x128xbf16>,
    return
  }
  func.func @transform_0(%arg0: i32, %arg1: i32, %arg2: i32) -> (i32, i32, i32) {
    %c0_i32 = arith.constant 0 : i32
    %c0_i32_0 = arith.constant 0 : i32
    return %arg0, %arg1, %c0_i32 : i32, i32, i32
  }
  func.func @transform_1(%arg0: i32, %arg1: i32, %arg2: i32) -> (i32, i32, i32) {
    %c0_i32 = arith.constant 0 : i32
    %c0_i32_0 = arith.constant 0 : i32
    %c0_i32_1 = arith.constant 0 : i32
    return %c0_i32, %c0_i32_0, %arg2 : i32, i32, i32
  }
  func.func @transform_2(%arg0: i32, %arg1: i32, %arg2: i32) -> (i32, i32) {
    %c0_i32 = arith.constant 0 : i32
    %c0_i32_0 = arith.constant 0 : i32
    return %c0_i32, %arg2 : i32, i32
  }
  func.func @transform_3(%arg0: i32, %arg1: i32, %arg2: i32) -> (i32, i32, i32) {
    %c0_i32 = arith.constant 0 : i32
    return %arg0, %arg1, %arg2 : i32, i32, i32
  }
}

module attributes {stable_mosaic.version = 11 : i64} {
  func.func @_mm_bias_act_kernel(%arg0: i32, %arg1: i32, %arg2: i32, %arg3: memref<1x128x256xbf16, #tpu.memory_space<vmem>>, %arg4: memref<4x256x128xbf16, #tpu.memory_space<vmem>>, %arg5: memref<1x128xf32, #tpu.memory_space<vmem>>, %arg6: memref<1x128x128xf32, #tpu.memory_space<vmem>>) attributes {dimension_semantics = [#tpu.dimension_semantics<parallel>, #tpu.dimension_semantics<parallel>, #tpu.dimension_semantics<parallel>], iteration_bounds = array<i64: 4, 1, 1>, scalar_prefetch = 0 : i64, scratch_operands = 0 : i64, tpu.core_type = #tpu.core_type<tc>, window_params = [{transform_indices = @transform_0, window_bounds = array<i64: 1, 128, 256>}, {transform_indices = @transform_1, window_bounds = array<i64: 4, 256, 128>}, {transform_indices = @transform_2, window_bounds = array<i64: 1, 128>}, {transform_indices = @transform_3, window_bounds = array<i64: 1, 128, 128>}]} {
    %0 = arith.index_cast %arg0 : i32 to index
    %c0 = arith.constant 0 : index
    %c0_0 = arith.constant 0 : index
    %1 = vector.load %arg4[%0, %c0, %c0_0] : memref<4x256x128xbf16, #tpu.memory_space<vmem>>, vector<1x256x128xbf16>
    %2 = vector.shape_cast %1 : vector<1x256x128xbf16> to vector<256x128xbf16>
    %c0_1 = arith.constant 0 : index
    %c0_2 = arith.constant 0 : index
    %c0_3 = arith.constant 0 : index
    %3 = vector.load %arg3[%c0_1, %c0_2, %c0_3] : memref<1x128x256xbf16, #tpu.memory_space<vmem>>, vector<1x128x256xbf16>
    %4 = vector.shape_cast %3 : vector<1x128x256xbf16> to vector<128x256xbf16>
    %cst = arith.constant dense<0.000000e+00> : vector<128x128xf32>
    %5 = tpu.matmul %4, %2, %cst {dimension_numbers = #tpu.dot_dimension_numbers<[1], [0], [0], [1], [0, 0, 1, 1], [], []>} : vector<128x256xbf16>, vector<256x128xbf16>, vector<128x128xf32> -> vector<128x128xf32>
    %c0_4 = arith.constant 0 : index
    %c0_5 = arith.constant 0 : index
    %6 = vector.load %arg5[%c0_4, %c0_5] : memref<1x128xf32, #tpu.memory_space<vmem>>, vector<1x128xf32>
    %7 = vector.broadcast %6 : vector<1x128xf32> to vector<128x128xf32>
    %8 = arith.addf %5, %7 : vector<128x128xf32>
    %9 = math.tanh %8 : vector<128x128xf32>
    %c0_6 = arith.constant 0 : index
    %c0_7 = arith.constant 0 : index
    %c0_8 = arith.constant 0 : index
    %10 = vector.load %arg6[%c0_6, %c0_7, %c0_8] : memref<1x128x128xf32, #tpu.memory_space<vmem>>, vector<1x128x128xf32>
    %11 = vector.shape_cast %10 : vector<1x128x128xf32> to vector<128x128xf32>
    %12 = vector.shape_cast %9 : vector<128x128xf32> to vector<1x128x128xf32>
    tpu.vector_store %arg6[%c0_6, %c0_7, %c0_8], %12 {strides = array<i32>} : memref<1x128x128xf32, #tpu.memory_space<vmem>>, vector<1x128x128xf32>,
    return
  }
  func.func @transform_0(%arg0: i32, %arg1: i32, %arg2: i32) -> (i32, i32, i32) {
    %c0_i32 = arith.constant 0 : i32
    %c0_i32_0 = arith.constant 0 : i32
    return %arg0, %arg1, %c0_i32 : i32, i32, i32
  }
  func.func @transform_1(%arg0: i32, %arg1: i32, %arg2: i32) -> (i32, i32, i32) {
    %c0_i32 = arith.constant 0 : i32
    %c0_i32_0 = arith.constant 0 : i32
    %c0_i32_1 = arith.constant 0 : i32
    return %c0_i32, %c0_i32_0, %arg2 : i32, i32, i32
  }
  func.func @transform_2(%arg0: i32, %arg1: i32, %arg2: i32) -> (i32, i32) {
    %c0_i32 = arith.constant 0 : i32
    %c0_i32_0 = arith.constant 0 : i32
    return %c0_i32, %arg2 : i32, i32
  }
  func.func @transform_3(%arg0: i32, %arg1: i32, %arg2: i32) -> (i32, i32, i32) {
    %c0_i32 = arith.constant 0 : i32
    return %arg0, %arg1, %arg2 : i32, i32, i32
  }
}

</mosaic_0001>

<llo_original>
// kernel: generator_forward.6
$region0: #{generator_forward.6}
  #allocation0 [shape = 'u32[]', space=smem, size = 0x4, offset = 0x4, fixed_abs, tag = 'smem constant byte address 0x4 - core index']
  #allocation1 [shape = 'u32[144,128]{1,0:T(1,128)}', space=vmem, size = 0x12000, scoped, tag = 'internal scratch']
  %s0 = inlined_call_operand.vmem [shape: bf16[1,128,128], index: 0, kind: input, shape index: {}]
  %s1 = inlined_call_operand.vmem [shape: bf16[1,128,128], index: 1, kind: input, shape index: {}]
  %s2 = inlined_call_operand.vmem [shape: f32[1,128], index: 2, kind: input, shape index: {}]
  %s3 = inlined_call_operand.vmem [shape: bf16[1,128,128], index: 3, kind: output, shape index: {}]
  %s4 = sld [smem:[#allocation0]]
  $region22: #{generator_forward.6} parent=0
    _
  %s6 = ssub.s32 1, %s4
  %s7 = scalar_select 0, %s6, %s4
  // Predicated region
  $region2: #{generator_forward.6} parent=0 // pred_check
    _
  $region3: #{generator_forward.6} parent=0 // pred_check_branch
    %9 = sbr.rel (0) target = $region5
  $region4: #{generator_forward.6} parent=0 // pred_region
    _
  $region5: #{generator_forward.6} parent=0 // pred_fallthru
    _
  // Predicated region
  $region6: #{generator_forward.6} parent=0 // pred_check
    _
  $region7: #{generator_forward.6} parent=0 // pred_check_branch
    %11 = sbr.rel (0) target = $region9
  $region8: #{generator_forward.6} parent=0 // pred_region
    _
  $region9: #{generator_forward.6} parent=0 // pred_fallthru
    _
  // Predicated region
  $region10: #{generator_forward.6} parent=0 // pred_check
    _
  $region11: #{generator_forward.6} parent=0 // pred_check_branch
    %13 = sbr.rel (0) target = $region13
  $region12: #{generator_forward.6} parent=0 // pred_region
    _
  $region13: #{generator_forward.6} parent=0 // pred_fallthru
    _
  %s15 = smul.u32 0, 16
  %s16 = smul.addr %s15, 4
  %s17 = scalar_lea.vmem %s1, %s16
  %v18 = vld [vmem:[%s17] sm:$0xf]
  %v19 = vld [vmem:[%s17 + $0x4] sm:$0xf]
  %v20 = vld [vmem:[%s17 + $0x8] sm:$0xf]
  %v21 = vld [vmem:[%s17 + $0xc] sm:$0xf]
  %v22 = vld [vmem:[%s17 + $0x10] sm:$0xf]
  %v23 = vld [vmem:[%s17 + $0x14] sm:$0xf]
  %v24 = vld [vmem:[%s17 + $0x18] sm:$0xf]
  %v25 = vld [vmem:[%s17 + $0x1c] sm:$0xf]
  %v26 = vld [vmem:[%s17 + $0x20] sm:$0xf]
  %v27 = vld [vmem:[%s17 + $0x24] sm:$0xf]
  %v28 = vld [vmem:[%s17 + $0x28] sm:$0xf]
  %v29 = vld [vmem:[%s17 + $0x2c] sm:$0xf]
  %v30 = vld [vmem:[%s17 + $0x30] sm:$0xf]
  %v31 = vld [vmem:[%s17 + $0x34] sm:$0xf]
  %v32 = vld [vmem:[%s17 + $0x38] sm:$0xf]
  %v33 = vld [vmem:[%s17 + $0x3c] sm:$0xf]
  %v34 = vld [vmem:[%s0] sm:$0xf]
  %v35 = vld [vmem:[%s0 + $0x4] sm:$0xf]
  %v36 = vld [vmem:[%s0 + $0x8] sm:$0xf]
  %v37 = vld [vmem:[%s0 + $0xc] sm:$0xf]
  %v38 = vld [vmem:[%s0 + $0x10] sm:$0xf]
  %v39 = vld [vmem:[%s0 + $0x14] sm:$0xf]
  %v40 = vld [vmem:[%s0 + $0x18] sm:$0xf]
  %v41 = vld [vmem:[%s0 + $0x1c] sm:$0xf]
  %v42 = vld [vmem:[%s0 + $0x20] sm:$0xf]
  %v43 = vld [vmem:[%s0 + $0x24] sm:$0xf]
  %v44 = vld [vmem:[%s0 + $0x28] sm:$0xf]
  %v45 = vld [vmem:[%s0 + $0x2c] sm:$0xf]
  %v46 = vld [vmem:[%s0 + $0x30] sm:$0xf]
  %v47 = vld [vmem:[%s0 + $0x34] sm:$0xf]
  %v48 = vld [vmem:[%s0 + $0x38] sm:$0xf]
  %v49 = vld [vmem:[%s0 + $0x3c] sm:$0xf]
  %v50 = vld [vmem:[%s2] sm:$0x1]
  %v52 = vlaneseq
  %v53 = vshrl.u32 %v52, 7
  %v54 = vsub.s32 0, %v53
  %v55 = vrot.slane %v50, %v54
  %v73 = vunpack.c.l.b16 %v34
  %v74 = vunpack.c.l.b16 %v35
  %v75 = vunpack.c.l.b16 %v36
  %v76 = vunpack.c.l.b16 %v37
  %v77 = vunpack.c.l.b16 %v38
  %v78 = vunpack.c.l.b16 %v39
  %v79 = vunpack.c.l.b16 %v40
  %v80 = vunpack.c.l.b16 %v41
  %v81 = vunpack.c.l.b16 %v42
  %v82 = vunpack.c.l.b16 %v43
  %v83 = vunpack.c.l.b16 %v44
  %v84 = vunpack.c.l.b16 %v45
  %v85 = vunpack.c.l.b16 %v46
  %v86 = vunpack.c.l.b16 %v47
  %v87 = vunpack.c.l.b16 %v48
  %v88 = vunpack.c.l.b16 %v49
  %v89 = vpack.c.b16 %v74, %v73
  %v90 = vpack.c.b16 %v76, %v75
  %v91 = vpack.c.b16 %v78, %v77
  %v92 = vpack.c.b16 %v80, %v79
  %v93 = vpack.c.b16 %v82, %v81
  %v94 = vpack.c.b16 %v84, %v83
  %v95 = vpack.c.b16 %v86, %v85
  %v96 = vpack.c.b16 %v88, %v87
  %v121 = vunpack.c.l.b16 %v18
  %v122 = vunpack.c.l.b16 %v19
  %v123 = vunpack.c.l.b16 %v20
  %v124 = vunpack.c.l.b16 %v21
  %v125 = vunpack.c.l.b16 %v22
  %v126 = vunpack.c.l.b16 %v23
  %v127 = vunpack.c.l.b16 %v24
  %v128 = vunpack.c.l.b16 %v25
  %v129 = vunpack.c.l.b16 %v26
  %v130 = vunpack.c.l.b16 %v27
  %v131 = vunpack.c.l.b16 %v28
  %v132 = vunpack.c.l.b16 %v29
  %v133 = vunpack.c.l.b16 %v30
  %v134 = vunpack.c.l.b16 %v31
  %v135 = vunpack.c.l.b16 %v32
  %v136 = vunpack.c.l.b16 %v33
  %v137 = vpack.c.b16 %v122, %v121
  %v138 = vpack.c.b16 %v124, %v123
  %v139 = vpack.c.b16 %v126, %v125
  %v140 = vpack.c.b16 %v128, %v127
  %v141 = vpack.c.b16 %v130, %v129
  %v142 = vpack.c.b16 %v132, %v131
  %v143 = vpack.c.b16 %v134, %v133
  %v144 = vpack.c.b16 %v136, %v135
  %153 = vmatprep.subr.bf16.mxu0 0
  %154 = vmatpush1.bf16.msra.mxu0 %v144
  %155 = vmatprep.subr.bf16.mxu0 0
  %156 = vmatpush1.bf16.msra.mxu0 %v143
  %157 = vmatprep.subr.bf16.mxu0 0
  %158 = vmatpush1.bf16.msra.mxu0 %v142
  %159 = vmatprep.subr.bf16.mxu0 0
  %160 = vmatpush1.bf16.msra.mxu0 %v141
  %161 = vmatprep.subr.bf16.mxu0 0
  %162 = vmatpush1.bf16.msra.mxu0 %v140
  %163 = vmatprep.subr.bf16.mxu0 0
  %164 = vmatpush1.bf16.msra.mxu0 %v139
  %165 = vmatprep.subr.bf16.mxu0 0
  %166 = vmatpush1.bf16.msra.mxu0 %v138
  %167 = vmatprep.subr.bf16.mxu0 0
  %168 = vmatpush1.bf16.msra.mxu0 %v137
  %169 = vmatprep.subr.bf16.mxu0 0
  %170 = vmatpush2.bf16.msra.mxu0 0
  %171 = vmatprep.subr.bf16.mxu0 0
  %172 = vmatpush2.bf16.msra.mxu0 0
  %173 = vmatprep.subr.bf16.mxu0 0
  %174 = vmatpush2.bf16.msra.mxu0 0
  %175 = vmatprep.subr.bf16.mxu0 0
  %176 = vmatpush2.bf16.msra.mxu0 0
  %177 = vmatprep.subr.bf16.mxu0 0
  %178 = vmatpush2.bf16.msra.mxu0 0
  %179 = vmatprep.subr.bf16.mxu0 0
  %180 = vmatpush2.bf16.msra.mxu0 0
  %181 = vmatprep.subr.bf16.mxu0 0
  %182 = vmatpush2.bf16.msra.mxu0 0
  %183 = vmatprep.subr.bf16.mxu0 0
  %184 = vmatpush2.bf16.msra.mxu0 0
  %185 = vmatprep.mubr.bf16.mxu0 0
  %186 = vmatmul.mubr.bf16.gmra.mxu0 %v89
  %v187 = vpop.f32.mrf.mxu0
  %v188 = vadd.f32 %v55, %v187
  %v189 = vpop.f32.mrf.mxu0
  %v190 = vpop.f32.mrf.mxu0
  %v191 = vadd.f32 %v55, %v190
  %v192 = vpop.f32.mrf.mxu0
  %193 = vmatprep.mubr.bf16.mxu0 0
  %194 = vmatmul.mubr.bf16.gmra.mxu0 %v90
  %v195 = vpop.f32.mrf.mxu0
  %v196 = vadd.f32 %v55, %v195
  %v197 = vpop.f32.mrf.mxu0
  %v198 = vpop.f32.mrf.mxu0
  %v199 = vadd.f32 %v55, %v198
  %v200 = vpop.f32.mrf.mxu0
  %201 = vmatprep.mubr.bf16.mxu0 0
  %202 = vmatmul.mubr.bf16.gmra.mxu0 %v91
  %v203 = vpop.f32.mrf.mxu0
  %v204 = vadd.f32 %v55, %v203
  %v205 = vpop.f32.mrf.mxu0
  %v206 = vpop.f32.mrf.mxu0
  %v207 = vadd.f32 %v55, %v206
  %v208 = vpop.f32.mrf.mxu0
  %209 = vmatprep.mubr.bf16.mxu0 0
  %210 = vmatmul.mubr.bf16.gmra.mxu0 %v92
  %v211 = vpop.f32.mrf.mxu0
  %v212 = vadd.f32 %v55, %v211
  %v213 = vpop.f32.mrf.mxu0
  %v214 = vpop.f32.mrf.mxu0
  %v215 = vadd.f32 %v55, %v214
  %v216 = vpop.f32.mrf.mxu0
  %217 = vmatprep.mubr.bf16.mxu0 0
  %218 = vmatmul.mubr.bf16.gmra.mxu0 %v93
  %v219 = vpop.f32.mrf.mxu0
  %v220 = vadd.f32 %v55, %v219
  %v221 = vpop.f32.mrf.mxu0
  %v222 = vpop.f32.mrf.mxu0
  %v223 = vadd.f32 %v55, %v222
  %v224 = vpop.f32.mrf.mxu0
  %225 = vmatprep.mubr.bf16.mxu0 0
  %226 = vmatmul.mubr.bf16.gmra.mxu0 %v94
  %v227 = vpop.f32.mrf.mxu0
  %v228 = vadd.f32 %v55, %v227
  %v229 = vpop.f32.mrf.mxu0
  %v230 = vpop.f32.mrf.mxu0
  %v231 = vadd.f32 %v55, %v230
  %v232 = vpop.f32.mrf.mxu0
  %233 = vmatprep.mubr.bf16.mxu0 0
  %234 = vmatmul.mubr.bf16.gmra.mxu0 %v95
  %v235 = vpop.f32.mrf.mxu0
  %v236 = vadd.f32 %v55, %v235
  %v237 = vpop.f32.mrf.mxu0
  %v238 = vpop.f32.mrf.mxu0
  %v239 = vadd.f32 %v55, %v238
  %v240 = vpop.f32.mrf.mxu0
  %241 = vmatprep.mubr.bf16.mxu0 0
  %242 = vmatmul.mubr.bf16.gmra.mxu0 %v96
  %v243 = vpop.f32.mrf.mxu0
  %v244 = vadd.f32 %v55, %v243
  %v245 = vpop.f32.mrf.mxu0
  %v246 = vpop.f32.mrf.mxu0
  %v247 = vadd.f32 %v55, %v246
  %v248 = vpop.f32.mrf.mxu0
  %249 = vdwg.mxu0
  %v250 = vmax.f32 %v188, 0.0
  %v251 = vmax.f32 %v191, 0.0
  %v252 = vmax.f32 %v196, 0.0
  %v253 = vmax.f32 %v199, 0.0
  %v254 = vmax.f32 %v204, 0.0
  %v255 = vmax.f32 %v207, 0.0
  %v256 = vmax.f32 %v212, 0.0
  %v257 = vmax.f32 %v215, 0.0
  %v258 = vmax.f32 %v220, 0.0
  %v259 = vmax.f32 %v223, 0.0
  %v260 = vmax.f32 %v228, 0.0
  %v261 = vmax.f32 %v231, 0.0
  %v262 = vmax.f32 %v236, 0.0
  %v263 = vmax.f32 %v239, 0.0
  %v264 = vmax.f32 %v244, 0.0
  %v265 = vmax.f32 %v247, 0.0
  %v266 = vpack.c.bf16 %v251, %v250
  %v267 = vpack.c.bf16 %v253, %v252
  %v268 = vpack.c.bf16 %v255, %v254
  %v269 = vpack.c.bf16 %v257, %v256
  %v270 = vpack.c.bf16 %v259, %v258
  %v271 = vpack.c.bf16 %v261, %v260
  %v272 = vpack.c.bf16 %v263, %v262
  %v273 = vpack.c.bf16 %v265, %v264
  %v282 = vunpack.c.l.b16 %v266
  %v283 = vunpack.c.h.b16 %v266
  %v284 = vunpack.c.l.b16 %v267
  %v285 = vunpack.c.h.b16 %v267
  %v286 = vunpack.c.l.b16 %v268
  %v287 = vunpack.c.h.b16 %v268
  %v288 = vunpack.c.l.b16 %v269
  %v289 = vunpack.c.h.b16 %v269
  %v290 = vunpack.c.l.b16 %v270
  %v291 = vunpack.c.h.b16 %v270
  %v292 = vunpack.c.l.b16 %v271
  %v293 = vunpack.c.h.b16 %v271
  %v294 = vunpack.c.l.b16 %v272
  %v295 = vunpack.c.h.b16 %v272
  %v296 = vunpack.c.l.b16 %v273
  %v297 = vunpack.c.h.b16 %v273
  %v298 = vpack.c.b16 %v282, %v282
  %v299 = vpack.c.b16 %v283, %v283
  %v300 = vpack.c.b16 %v284, %v284
  %v301 = vpack.c.b16 %v285, %v285
  %v302 = vpack.c.b16 %v286, %v286
  %v303 = vpack.c.b16 %v287, %v287
  %v304 = vpack.c.b16 %v288, %v288
  %v305 = vpack.c.b16 %v289, %v289
  %v306 = vpack.c.b16 %v290, %v290
  %v307 = vpack.c.b16 %v291, %v291
  %v308 = vpack.c.b16 %v292, %v292
  %v309 = vpack.c.b16 %v293, %v293
  %v310 = vpack.c.b16 %v294, %v294
  %v311 = vpack.c.b16 %v295, %v295
  %v312 = vpack.c.b16 %v296, %v296
  %v313 = vpack.c.b16 %v297, %v297
  %330 = vst [vmem:[%s3] sm:$0xf] %v298
  %331 = vst [vmem:[%s3 + $0x4] sm:$0xf] %v299
  %332 = vst [vmem:[%s3 + $0x8] sm:$0xf] %v300
  %333 = vst [vmem:[%s3 + $0xc] sm:$0xf] %v301
  %334 = vst [vmem:[%s3 + $0x10] sm:$0xf] %v302
  %335 = vst [vmem:[%s3 + $0x14] sm:$0xf] %v303
  %336 = vst [vmem:[%s3 + $0x18] sm:$0xf] %v304
  %337 = vst [vmem:[%s3 + $0x1c] sm:$0xf] %v305
  %338 = vst [vmem:[%s3 + $0x20] sm:$0xf] %v306
  %339 = vst [vmem:[%s3 + $0x24] sm:$0xf] %v307
  %340 = vst [vmem:[%s3 + $0x28] sm:$0xf] %v308
  %341 = vst [vmem:[%s3 + $0x2c] sm:$0xf] %v309
  %342 = vst [vmem:[%s3 + $0x30] sm:$0xf] %v310
  %343 = vst [vmem:[%s3 + $0x34] sm:$0xf] %v311
  %344 = vst [vmem:[%s3 + $0x38] sm:$0xf] %v312
  %345 = vst [vmem:[%s3 + $0x3c] sm:$0xf] %v313
  // Predicated region
  $region14: #{generator_forward.6} parent=0 // pred_check
    _
  $region15: #{generator_forward.6} parent=0 // pred_check_branch
    %347 = sbr.rel (0) target = $region17
  $region16: #{generator_forward.6} parent=0 // pred_region
    _
  $region17: #{generator_forward.6} parent=0 // pred_fallthru
    _
  // Predicated region
  $region18: #{generator_forward.6} parent=0 // pred_check
    _
  $region19: #{generator_forward.6} parent=0 // pred_check_branch
    %349 = sbr.rel (0) target = $region21
  $region20: #{generator_forward.6} parent=0 // pred_region
    _
  $region21: #{generator_forward.6} parent=0 // pred_fallthru
    _

// kernel: generator_forward.7
$region0: #{generator_forward.7}
  #allocation0 [shape = 'u32[]', space=smem, size = 0x4, offset = 0x4, fixed_abs, tag = 'smem constant byte address 0x4 - core index']
  #allocation1 [shape = 'u32[144,128]{1,0:T(1,128)}', space=vmem, size = 0x12000, scoped, tag = 'internal scratch']
  %s0 = inlined_call_operand.vmem [shape: bf16[1,32,1024], index: 0, kind: input, shape index: {}]
  %s1 = inlined_call_operand.vmem [shape: bf16[1,1024,128], index: 1, kind: input, shape index: {}]
  %s2 = inlined_call_operand.vmem [shape: f32[1,128], index: 2, kind: input, shape index: {}]
  %s3 = inlined_call_operand.vmem [shape: bf16[1,32,128], index: 3, kind: output, shape index: {}]
  %s4 = sld [smem:[#allocation0]]
  $region22: #{generator_forward.7} parent=0
    _
  %s6 = ssub.s32 1, %s4
  %s7 = scalar_select 0, %s6, %s4
  // Predicated region
  $region2: #{generator_forward.7} parent=0 // pred_check
    _
  $region3: #{generator_forward.7} parent=0 // pred_check_branch
    %9 = sbr.rel (0) target = $region5
  $region4: #{generator_forward.7} parent=0 // pred_region
    _
  $region5: #{generator_forward.7} parent=0 // pred_fallthru
    _
  // Predicated region
  $region6: #{generator_forward.7} parent=0 // pred_check
    _
  $region7: #{generator_forward.7} parent=0 // pred_check_branch
    %11 = sbr.rel (0) target = $region9
  $region8: #{generator_forward.7} parent=0 // pred_region
    _
  $region9: #{generator_forward.7} parent=0 // pred_fallthru
    _
  // Predicated region
  $region10: #{generator_forward.7} parent=0 // pred_check
    _
  $region11: #{generator_forward.7} parent=0 // pred_check_branch
    %13 = sbr.rel (0) target = $region13
  $region12: #{generator_forward.7} parent=0 // pred_region
    _
  $region13: #{generator_forward.7} parent=0 // pred_fallthru
    _
  %s15 = smul.u32 0, 128
  %s16 = smul.addr %s15, 4
  %s17 = scalar_lea.vmem %s1, %s16
  %v18 = vld [vmem:[%s17] sm:$0xf]
  %v19 = vld [vmem:[%s17 + $0x4] sm:$0xf]
  %v20 = vld [vmem:[%s17 + $0x8] sm:$0xf]
  %v21 = vld [vmem:[%s17 + $0xc] sm:$0xf]
  %v22 = vld [vmem:[%s17 + $0x10] sm:$0xf]
  %v23 = vld [vmem:[%s17 + $0x14] sm:$0xf]
  %v24 = vld [vmem:[%s17 + $0x18] sm:$0xf]
  %v25 = vld [vmem:[%s17 + $0x1c] sm:$0xf]
  %v26 = vld [vmem:[%s17 + $0x20] sm:$0xf]
  %v27 = vld [vmem:[%s17 + $0x24] sm:$0xf]
  %v28 = vld [vmem:[%s17 + $0x28] sm:$0xf]
  %v29 = vld [vmem:[%s17 + $0x2c] sm:$0xf]
  %v30 = vld [vmem:[%s17 + $0x30] sm:$0xf]
  %v31 = vld [vmem:[%s17 + $0x34] sm:$0xf]
  %v32 = vld [vmem:[%s17 + $0x38] sm:$0xf]
  %v33 = vld [vmem:[%s17 + $0x3c] sm:$0xf]
  %v34 = vld [vmem:[%s17 + $0x40] sm:$0xf]
  %v35 = vld [vmem:[%s17 + $0x44] sm:$0xf]
  %v36 = vld [vmem:[%s17 + $0x48] sm:$0xf]
  %v37 = vld [vmem:[%s17 + $0x4c] sm:$0xf]
  %v38 = vld [vmem:[%s17 + $0x50] sm:$0xf]
  %v39 = vld [vmem:[%s17 + $0x54] sm:$0xf]
  %v40 = vld [vmem:[%s17 + $0x58] sm:$0xf]
  %v41 = vld [vmem:[%s17 + $0x5c] sm:$0xf]
  %v42 = vld [vmem:[%s17 + $0x60] sm:$0xf]
  %v43 = vld [vmem:[%s17 + $0x64] sm:$0xf]
  %v44 = vld [vmem:[%s17 + $0x68] sm:$0xf]
  %v45 = vld [vmem:[%s17 + $0x6c] sm:$0xf]
  %v46 = vld [vmem:[%s17 + $0x70] sm:$0xf]
  %v47 = vld [vmem:[%s17 + $0x74] sm:$0xf]
  %v48 = vld [vmem:[%s17 + $0x78] sm:$0xf]
  %v49 = vld [vmem:[%s17 + $0x7c] sm:$0xf]
  %v50 = vld [vmem:[%s17 + $0x80] sm:$0xf]
  %v51 = vld [vmem:[%s17 + $0x84] sm:$0xf]
  %v52 = vld [vmem:[%s17 + $0x88] sm:$0xf]
  %v53 = vld [vmem:[%s17 + $0x8c] sm:$0xf]
  %v54 = vld [vmem:[%s17 + $0x90] sm:$0xf]
  %v55 = vld [vmem:[%s17 + $0x94] sm:$0xf]
  %v56 = vld [vmem:[%s17 + $0x98] sm:$0xf]
  %v57 = vld [vmem:[%s17 + $0x9c] sm:$0xf]
  %v58 = vld [vmem:[%s17 + $0xa0] sm:$0xf]
  %v59 = vld [vmem:[%s17 + $0xa4] sm:$0xf]
  %v60 = vld [vmem:[%s17 + $0xa8] sm:$0xf]
  %v61 = vld [vmem:[%s17 + $0xac] sm:$0xf]
  %v62 = vld [vmem:[%s17 + $0xb0] sm:$0xf]
  %v63 = vld [vmem:[%s17 + $0xb4] sm:$0xf]
  %v64 = vld [vmem:[%s17 + $0xb8] sm:$0xf]
  %v65 = vld [vmem:[%s17 + $0xbc] sm:$0xf]
  %v66 = vld [vmem:[%s17 + $0xc0] sm:$0xf]
  %v67 = vld [vmem:[%s17 + $0xc4] sm:$0xf]
  %v68 = vld [vmem:[%s17 + $0xc8] sm:$0xf]
  %v69 = vld [vmem:[%s17 + $0xcc] sm:$0xf]
  %v70 = vld [vmem:[%s17 + $0xd0] sm:$0xf]
  %v71 = vld [vmem:[%s17 + $0xd4] sm:$0xf]
  %v72 = vld [vmem:[%s17 + $0xd8] sm:$0xf]
  %v73 = vld [vmem:[%s17 + $0xdc] sm:$0xf]
  %v74 = vld [vmem:[%s17 + $0xe0] sm:$0xf]
  %v75 = vld [vmem:[%s17 + $0xe4] sm:$0xf]
  %v76 = vld [vmem:[%s17 + $0xe8] sm:$0xf]
  %v77 = vld [vmem:[%s17 + $0xec] sm:$0xf]
  %v78 = vld [vmem:[%s17 + $0xf0] sm:$0xf]
  %v79 = vld [vmem:[%s17 + $0xf4] sm:$0xf]
  %v80 = vld [vmem:[%s17 + $0xf8] sm:$0xf]
  %v81 = vld [vmem:[%s17 + $0xfc] sm:$0xf]
  %v82 = vld [vmem:[%s17 + $0x100] sm:$0xf]
  %v83 = vld [vmem:[%s17 + $0x104] sm:$0xf]
  %v84 = vld [vmem:[%s17 + $0x108] sm:$0xf]
  %v85 = vld [vmem:[%s17 + $0x10c] sm:$0xf]
  %v86 = vld [vmem:[%s17 + $0x110] sm:$0xf]
  %v87 = vld [vmem:[%s17 + $0x114] sm:$0xf]
  %v88 = vld [vmem:[%s17 + $0x118] sm:$0xf]
  %v89 = vld [vmem:[%s17 + $0x11c] sm:$0xf]
  %v90 = vld [vmem:[%s17 + $0x120] sm:$0xf]
  %v91 = vld [vmem:[%s17 + $0x124] sm:$0xf]
  %v92 = vld [vmem:[%s17 + $0x128] sm:$0xf]
  %v93 = vld [vmem:[%s17 + $0x12c] sm:$0xf]
  %v94 = vld [vmem:[%s17 + $0x130] sm:$0xf]
  %v95 = vld [vmem:[%s17 + $0x134] sm:$0xf]
  %v96 = vld [vmem:[%s17 + $0x138] sm:$0xf]
  %v97 = vld [vmem:[%s17 + $0x13c] sm:$0xf]
  %v98 = vld [vmem:[%s17 + $0x140] sm:$0xf]
  %v99 = vld [vmem:[%s17 + $0x144] sm:$0xf]
  %v100 = vld [vmem:[%s17 + $0x148] sm:$0xf]
  %v101 = vld [vmem:[%s17 + $0x14c] sm:$0xf]
  %v102 = vld [vmem:[%s17 + $0x150] sm:$0xf]
  %v103 = vld [vmem:[%s17 + $0x154] sm:$0xf]
  %v104 = vld [vmem:[%s17 + $0x158] sm:$0xf]
  %v105 = vld [vmem:[%s17 + $0x15c] sm:$0xf]
  %v106 = vld [vmem:[%s17 + $0x160] sm:$0xf]
  %v107 = vld [vmem:[%s17 + $0x164] sm:$0xf]
  %v108 = vld [vmem:[%s17 + $0x168] sm:$0xf]
  %v109 = vld [vmem:[%s17 + $0x16c] sm:$0xf]
  %v110 = vld [vmem:[%s17 + $0x170] sm:$0xf]
  %v111 = vld [vmem:[%s17 + $0x174] sm:$0xf]
  %v112 = vld [vmem:[%s17 + $0x178] sm:$0xf]
  %v113 = vld [vmem:[%s17 + $0x17c] sm:$0xf]
  %v114 = vld [vmem:[%s17 + $0x180] sm:$0xf]
  %v115 = vld [vmem:[%s17 + $0x184] sm:$0xf]
  %v116 = vld [vmem:[%s17 + $0x188] sm:$0xf]
  %v117 = vld [vmem:[%s17 + $0x18c] sm:$0xf]
  %v118 = vld [vmem:[%s17 + $0x190] sm:$0xf]
  %v119 = vld [vmem:[%s17 + $0x194] sm:$0xf]
  %v120 = vld [vmem:[%s17 + $0x198] sm:$0xf]
  %v121 = vld [vmem:[%s17 + $0x19c] sm:$0xf]
  %v122 = vld [vmem:[%s17 + $0x1a0] sm:$0xf]
  %v123 = vld [vmem:[%s17 + $0x1a4] sm:$0xf]
  %v124 = vld [vmem:[%s17 + $0x1a8] sm:$0xf]
  %v125 = vld [vmem:[%s17 + $0x1ac] sm:$0xf]
  %v126 = vld [vmem:[%s17 + $0x1b0] sm:$0xf]
  %v127 = vld [vmem:[%s17 + $0x1b4] sm:$0xf]
  %v128 = vld [vmem:[%s17 + $0x1b8] sm:$0xf]
  %v129 = vld [vmem:[%s17 + $0x1bc] sm:$0xf]
  %v130 = vld [vmem:[%s17 + $0x1c0] sm:$0xf]
  %v131 = vld [vmem:[%s17 + $0x1c4] sm:$0xf]
  %v132 = vld [vmem:[%s17 + $0x1c8] sm:$0xf]
  %v133 = vld [vmem:[%s17 + $0x1cc] sm:$0xf]
  %v134 = vld [vmem:[%s17 + $0x1d0] sm:$0xf]
  %v135 = vld [vmem:[%s17 + $0x1d4] sm:$0xf]
  %v136 = vld [vmem:[%s17 + $0x1d8] sm:$0xf]
  %v137 = vld [vmem:[%s17 + $0x1dc] sm:$0xf]
  %v138 = vld [vmem:[%s17 + $0x1e0] sm:$0xf]
  %v139 = vld [vmem:[%s17 + $0x1e4] sm:$0xf]
  %v140 = vld [vmem:[%s17 + $0x1e8] sm:$0xf]
  %v141 = vld [vmem:[%s17 + $0x1ec] sm:$0xf]
  %v142 = vld [vmem:[%s17 + $0x1f0] sm:$0xf]
  %v143 = vld [vmem:[%s17 + $0x1f4] sm:$0xf]
  %v144 = vld [vmem:[%s17 + $0x1f8] sm:$0xf]
  %v145 = vld [vmem:[%s17 + $0x1fc] sm:$0xf]
  %v146 = vld [vmem:[%s0] sm:$0xff]
  %v147 = vld [vmem:[%s0 + $0x8] sm:$0xff]
  %v148 = vld [vmem:[%s0 + $0x10] sm:$0xff]
  %v149 = vld [vmem:[%s0 + $0x18] sm:$0xff]
  %v150 = vld [vmem:[%s0 + $0x20] sm:$0xff]
  %v151 = vld [vmem:[%s0 + $0x28] sm:$0xff]
  %v152 = vld [vmem:[%s0 + $0x30] sm:$0xff]
  %v153 = vld [vmem:[%s0 + $0x38] sm:$0xff]
  %v154 = vld [vmem:[%s0 + $0x40] sm:$0xff]
  %v155 = vld [vmem:[%s0 + $0x48] sm:$0xff]
  %v156 = vld [vmem:[%s0 + $0x50] sm:$0xff]
  %v157 = vld [vmem:[%s0 + $0x58] sm:$0xff]
  %v158 = vld [vmem:[%s0 + $0x60] sm:$0xff]
  %v159 = vld [vmem:[%s0 + $0x68] sm:$0xff]
  %v160 = vld [vmem:[%s0 + $0x70] sm:$0xff]
  %v161 = vld [vmem:[%s0 + $0x78] sm:$0xff]
  %v162 = vld [vmem:[%s2] sm:$0x1]
  %v164 = vlaneseq
  %v165 = vshrl.u32 %v164, 7
  %v166 = vsub.s32 0, %v165
  %v167 = vrot.slane %v162, %v166
  %v185 = vunpack.c.l.b16 %v146
  %v186 = vunpack.c.h.b16 %v146
  %v187 = vunpack.c.l.b16 %v147
  %v188 = vunpack.c.h.b16 %v147
  %v189 = vunpack.c.l.b16 %v148
  %v190 = vunpack.c.h.b16 %v148
  %v191 = vunpack.c.l.b16 %v149
  %v192 = vunpack.c.h.b16 %v149
  %v193 = vunpack.c.l.b16 %v150
  %v194 = vunpack.c.h.b16 %v150
  %v195 = vunpack.c.l.b16 %v151
  %v196 = vunpack.c.h.b16 %v151
  %v197 = vunpack.c.l.b16 %v152
  %v198 = vunpack.c.h.b16 %v152
  %v199 = vunpack.c.l.b16 %v153
  %v200 = vunpack.c.h.b16 %v153
  %v201 = vunpack.c.l.b16 %v154
  %v202 = vunpack.c.h.b16 %v154
  %v203 = vunpack.c.l.b16 %v155
  %v204 = vunpack.c.h.b16 %v155
  %v205 = vunpack.c.l.b16 %v156
  %v206 = vunpack.c.h.b16 %v156
  %v207 = vunpack.c.l.b16 %v157
  %v208 = vunpack.c.h.b16 %v157
  %v209 = vunpack.c.l.b16 %v158
  %v210 = vunpack.c.h.b16 %v158
  %v211 = vunpack.c.l.b16 %v159
  %v212 = vunpack.c.h.b16 %v159
  %v213 = vunpack.c.l.b16 %v160
  %v214 = vunpack.c.h.b16 %v160
  %v215 = vunpack.c.l.b16 %v161
  %v216 = vunpack.c.h.b16 %v161
  %v217 = vpack.c.b16 %v193, %v185
  %v218 = vpack.c.b16 %v194, %v186
  %v219 = vpack.c.b16 %v195, %v187
  %v220 = vpack.c.b16 %v196, %v188
  %v221 = vpack.c.b16 %v197, %v189
  %v222 = vpack.c.b16 %v198, %v190
  %v223 = vpack.c.b16 %v199, %v191
  %v224 = vpack.c.b16 %v200, %v192
  %v225 = vpack.c.b16 %v209, %v201
  %v226 = vpack.c.b16 %v210, %v202
  %v227 = vpack.c.b16 %v211, %v203
  %v228 = vpack.c.b16 %v212, %v204
  %v229 = vpack.c.b16 %v213, %v205
  %v230 = vpack.c.b16 %v214, %v206
  %v231 = vpack.c.b16 %v215, %v207
  %v232 = vpack.c.b16 %v216, %v208
  %v377 = vunpack.c.l.b16 %v18
  %v378 = vunpack.c.l.b16 %v19
  %v379 = vunpack.c.l.b16 %v20
  %v380 = vunpack.c.l.b16 %v21
  %v381 = vunpack.c.l.b16 %v22
  %v382 = vunpack.c.l.b16 %v23
  %v383 = vunpack.c.l.b16 %v24
  %v384 = vunpack.c.l.b16 %v25
  %v385 = vunpack.c.l.b16 %v26
  %v386 = vunpack.c.l.b16 %v27
  %v387 = vunpack.c.l.b16 %v28
  %v388 = vunpack.c.l.b16 %v29
  %v389 = vunpack.c.l.b16 %v30
  %v390 = vunpack.c.l.b16 %v31
  %v391 = vunpack.c.l.b16 %v32
  %v392 = vunpack.c.l.b16 %v33
  %v393 = vunpack.c.l.b16 %v34
  %v394 = vunpack.c.l.b16 %v35
  %v395 = vunpack.c.l.b16 %v36
  %v396 = vunpack.c.l.b16 %v37
  %v397 = vunpack.c.l.b16 %v38
  %v398 = vunpack.c.l.b16 %v39
  %v399 = vunpack.c.l.b16 %v40
  %v400 = vunpack.c.l.b16 %v41
  %v401 = vunpack.c.l.b16 %v42
  %v402 = vunpack.c.l.b16 %v43
  %v403 = vunpack.c.l.b16 %v44
  %v404 = vunpack.c.l.b16 %v45
  %v405 = vunpack.c.l.b16 %v46
  %v406 = vunpack.c.l.b16 %v47
  %v407 = vunpack.c.l.b16 %v48
  %v408 = vunpack.c.l.b16 %v49
  %v409 = vunpack.c.l.b16 %v50
  %v410 = vunpack.c.l.b16 %v51
  %v411 = vunpack.c.l.b16 %v52
  %v412 = vunpack.c.l.b16 %v53
  %v413 = vunpack.c.l.b16 %v54
  %v414 = vunpack.c.l.b16 %v55
  %v415 = vunpack.c.l.b16 %v56
  %v416 = vunpack.c.l.b16 %v57
  %v417 = vunpack.c.l.b16 %v58
  %v418 = vunpack.c.l.b16 %v59
  %v419 = vunpack.c.l.b16 %v60
  %v420 = vunpack.c.l.b16 %v61
  %v421 = vunpack.c.l.b16 %v62
  %v422 = vunpack.c.l.b16 %v63
  %v423 = vunpack.c.l.b16 %v64
  %v424 = vunpack.c.l.b16 %v65
  %v425 = vunpack.c.l.b16 %v66
  %v426 = vunpack.c.l.b16 %v67
  %v427 = vunpack.c.l.b16 %v68
  %v428 = vunpack.c.l.b16 %v69
  %v429 = vunpack.c.l.b16 %v70
  %v430 = vunpack.c.l.b16 %v71
  %v431 = vunpack.c.l.b16 %v72
  %v432 = vunpack.c.l.b16 %v73
  %v433 = vunpack.c.l.b16 %v74
  %v434 = vunpack.c.l.b16 %v75
  %v435 = vunpack.c.l.b16 %v76
  %v436 = vunpack.c.l.b16 %v77
  %v437 = vunpack.c.l.b16 %v78
  %v438 = vunpack.c.l.b16 %v79
  %v439 = vunpack.c.l.b16 %v80
  %v440 = vunpack.c.l.b16 %v81
  %v441 = vunpack.c.l.b16 %v82
  %v442 = vunpack.c.l.b16 %v83
  %v443 = vunpack.c.l.b16 %v84
  %v444 = vunpack.c.l.b16 %v85
  %v445 = vunpack.c.l.b16 %v86
  %v446 = vunpack.c.l.b16 %v87
  %v447 = vunpack.c.l.b16 %v88
  %v448 = vunpack.c.l.b16 %v89
  %v449 = vunpack.c.l.b16 %v90
  %v450 = vunpack.c.l.b16 %v91
  %v451 = vunpack.c.l.b16 %v92
  %v452 = vunpack.c.l.b16 %v93
  %v453 = vunpack.c.l.b16 %v94
  %v454 = vunpack.c.l.b16 %v95
  %v455 = vunpack.c.l.b16 %v96
  %v456 = vunpack.c.l.b16 %v97
  %v457 = vunpack.c.l.b16 %v98
  %v458 = vunpack.c.l.b16 %v99
  %v459 = vunpack.c.l.b16 %v100
  %v460 = vunpack.c.l.b16 %v101
  %v461 = vunpack.c.l.b16 %v102
  %v462 = vunpack.c.l.b16 %v103
  %v463 = vunpack.c.l.b16 %v104
  %v464 = vunpack.c.l.b16 %v105
  %v465 = vunpack.c.l.b16 %v106
  %v466 = vunpack.c.l.b16 %v107
  %v467 = vunpack.c.l.b16 %v108
  %v468 = vunpack.c.l.b16 %v109
  %v469 = vunpack.c.l.b16 %v110
  %v470 = vunpack.c.l.b16 %v111
  %v471 = vunpack.c.l.b16 %v112
  %v472 = vunpack.c.l.b16 %v113
  %v473 = vunpack.c.l.b16 %v114
  %v474 = vunpack.c.l.b16 %v115
  %v475 = vunpack.c.l.b16 %v116
  %v476 = vunpack.c.l.b16 %v117
  %v477 = vunpack.c.l.b16 %v118
  %v478 = vunpack.c.l.b16 %v119
  %v479 = vunpack.c.l.b16 %v120
  %v480 = vunpack.c.l.b16 %v121
  %v481 = vunpack.c.l.b16 %v122
  %v482 = vunpack.c.l.b16 %v123
  %v483 = vunpack.c.l.b16 %v124
  %v484 = vunpack.c.l.b16 %v125
  %v485 = vunpack.c.l.b16 %v126
  %v486 = vunpack.c.l.b16 %v127
  %v487 = vunpack.c.l.b16 %v128
  %v488 = vunpack.c.l.b16 %v129
  %v489 = vunpack.c.l.b16 %v130
  %v490 = vunpack.c.l.b16 %v131
  %v491 = vunpack.c.l.b16 %v132
  %v492 = vunpack.c.l.b16 %v133
  %v493 = vunpack.c.l.b16 %v134
  %v494 = vunpack.c.l.b16 %v135
  %v495 = vunpack.c.l.b16 %v136
  %v496 = vunpack.c.l.b16 %v137
  %v497 = vunpack.c.l.b16 %v138
  %v498 = vunpack.c.l.b16 %v139
  %v499 = vunpack.c.l.b16 %v140
  %v500 = vunpack.c.l.b16 %v141
  %v501 = vunpack.c.l.b16 %v142
  %v502 = vunpack.c.l.b16 %v143
  %v503 = vunpack.c.l.b16 %v144
  %v504 = vunpack.c.l.b16 %v145
  %v505 = vpack.c.b16 %v378, %v377
  %v506 = vpack.c.b16 %v380, %v379
  %v507 = vpack.c.b16 %v382, %v381
  %v508 = vpack.c.b16 %v384, %v383
  %v509 = vpack.c.b16 %v386, %v385
  %v510 = vpack.c.b16 %v388, %v387
  %v511 = vpack.c.b16 %v390, %v389
  %v512 = vpack.c.b16 %v392, %v391
  %v513 = vpack.c.b16 %v394, %v393
  %v514 = vpack.c.b16 %v396, %v395
  %v515 = vpack.c.b16 %v398, %v397
  %v516 = vpack.c.b16 %v400, %v399
  %v517 = vpack.c.b16 %v402, %v401
  %v518 = vpack.c.b16 %v404, %v403
  %v519 = vpack.c.b16 %v406, %v405
  %v520 = vpack.c.b16 %v408, %v407
  %v521 = vpack.c.b16 %v410, %v409
  %v522 = vpack.c.b16 %v412, %v411
  %v523 = vpack.c.b16 %v414, %v413
  %v524 = vpack.c.b16 %v416, %v415
  %v525 = vpack.c.b16 %v418, %v417
  %v526 = vpack.c.b16 %v420, %v419
  %v527 = vpack.c.b16 %v422, %v421
  %v528 = vpack.c.b16 %v424, %v423
  %v529 = vpack.c.b16 %v426, %v425
  %v530 = vpack.c.b16 %v428, %v427
  %v531 = vpack.c.b16 %v430, %v429
  %v532 = vpack.c.b16 %v432, %v431
  %v533 = vpack.c.b16 %v434, %v433
  %v534 = vpack.c.b16 %v436, %v435
  %v535 = vpack.c.b16 %v438, %v437
  %v536 = vpack.c.b16 %v440, %v439
  %v537 = vpack.c.b16 %v442, %v441
  %v538 = vpack.c.b16 %v444, %v443
  %v539 = vpack.c.b16 %v446, %v445
  %v540 = vpack.c.b16 %v448, %v447
  %v541 = vpack.c.b16 %v450, %v449
  %v542 = vpack.c.b16 %v452, %v451
  %v543 = vpack.c.b16 %v454, %v453
  %v544 = vpack.c.b16 %v456, %v455
  %v545 = vpack.c.b16 %v458, %v457
  %v546 = vpack.c.b16 %v460, %v459
  %v547 = vpack.c.b16 %v462, %v461
  %v548 = vpack.c.b16 %v464, %v463
  %v549 = vpack.c.b16 %v466, %v465
  %v550 = vpack.c.b16 %v468, %v467
  %v551 = vpack.c.b16 %v470, %v469
  %v552 = vpack.c.b16 %v472, %v471
  %v553 = vpack.c.b16 %v474, %v473
  %v554 = vpack.c.b16 %v476, %v475
  %v555 = vpack.c.b16 %v478, %v477
  %v556 = vpack.c.b16 %v480, %v479
  %v557 = vpack.c.b16 %v482, %v481
  %v558 = vpack.c.b16 %v484, %v483
  %v559 = vpack.c.b16 %v486, %v485
  %v560 = vpack.c.b16 %v488, %v487
  %v561 = vpack.c.b16 %v490, %v489
  %v562 = vpack.c.b16 %v492, %v491
  %v563 = vpack.c.b16 %v494, %v493
  %v564 = vpack.c.b16 %v496, %v495
  %v565 = vpack.c.b16 %v498, %v497
  %v566 = vpack.c.b16 %v500, %v499
  %v567 = vpack.c.b16 %v502, %v501
  %v568 = vpack.c.b16 %v504, %v503
  %633 = vmatprep.subr.bf16.mxu0 0
  %634 = vmatpush1.bf16.msra.mxu0 %v512
  %635 = vmatprep.subr.bf16.mxu0 0
  %636 = vmatpush1.bf16.msra.mxu0 %v511
  %637 = vmatprep.subr.bf16.mxu0 0
  %638 = vmatpush1.bf16.msra.mxu0 %v510
  %639 = vmatprep.subr.bf16.mxu0 0
  %640 = vmatpush1.bf16.msra.mxu0 %v509
  %641 = vmatprep.subr.bf16.mxu0 0
  %642 = vmatpush1.bf16.msra.mxu0 %v508
  %643 = vmatprep.subr.bf16.mxu0 0
  %644 = vmatpush1.bf16.msra.mxu0 %v507
  %645 = vmatprep.subr.bf16.mxu0 0
  %646 = vmatpush1.bf16.msra.mxu0 %v506
  %647 = vmatprep.subr.bf16.mxu0 0
  %648 = vmatpush1.bf16.msra.mxu0 %v505
  %649 = vmatprep.subr.bf16.mxu0 0
  %650 = vmatpush2.bf16.msra.mxu0 %v520
  %651 = vmatprep.subr.bf16.mxu0 0
  %652 = vmatpush2.bf16.msra.mxu0 %v519
  %653 = vmatprep.subr.bf16.mxu0 0
  %654 = vmatpush2.bf16.msra.mxu0 %v518
  %655 = vmatprep.subr.bf16.mxu0 0
  %656 = vmatpush2.bf16.msra.mxu0 %v517
  %657 = vmatprep.subr.bf16.mxu0 0
  %658 = vmatpush2.bf16.msra.mxu0 %v516
  %659 = vmatprep.subr.bf16.mxu0 0
  %660 = vmatpush2.bf16.msra.mxu0 %v515
  %661 = vmatprep.subr.bf16.mxu0 0
  %662 = vmatpush2.bf16.msra.mxu0 %v514
  %663 = vmatprep.subr.bf16.mxu0 0
  %664 = vmatpush2.bf16.msra.mxu0 %v513
  %665 = vmatprep.mubr.bf16.mxu0 %v218
  %666 = vmatmul.mubr.bf16.gmra.mxu0 %v217
  %v667 = vpop.f32.mrf.mxu0
  %v668 = vadd.f32 %v167, %v667
  %v669 = vpop.f32.mrf.mxu0
  %v670 = vpop.f32.mrf.mxu0
  %v671 = vadd.f32 %v167, %v670
  %v672 = vpop.f32.mrf.mxu0
  %673 = vmatprep.mubr.bf16.mxu0 %v226
  %674 = vmatmul.mubr.bf16.gmra.mxu0 %v225
  %v675 = vpop.f32.mrf.mxu0
  %v676 = vadd.f32 %v167, %v675
  %v677 = vpop.f32.mrf.mxu0
  %v678 = vpop.f32.mrf.mxu0
  %v679 = vadd.f32 %v167, %v678
  %v680 = vpop.f32.mrf.mxu0
  %681 = vdwg.mxu0
  %682 = vmatprep.subr.bf16.mxu0 0
  %683 = vmatpush1.bf16.msra.mxu0 %v528
  %684 = vmatprep.subr.bf16.mxu0 0
  %685 = vmatpush1.bf16.msra.mxu0 %v527
  %686 = vmatprep.subr.bf16.mxu0 0
  %687 = vmatpush1.bf16.msra.mxu0 %v526
  %688 = vmatprep.subr.bf16.mxu0 0
  %689 = vmatpush1.bf16.msra.mxu0 %v525
  %690 = vmatprep.subr.bf16.mxu0 0
  %691 = vmatpush1.bf16.msra.mxu0 %v524
  %692 = vmatprep.subr.bf16.mxu0 0
  %693 = vmatpush1.bf16.msra.mxu0 %v523
  %694 = vmatprep.subr.bf16.mxu0 0
  %695 = vmatpush1.bf16.msra.mxu0 %v522
  %696 = vmatprep.subr.bf16.mxu0 0
  %697 = vmatpush1.bf16.msra.mxu0 %v521
  %698 = vmatprep.subr.bf16.mxu0 0
  %699 = vmatpush2.bf16.msra.mxu0 %v536
  %700 = vmatprep.subr.bf16.mxu0 0
  %701 = vmatpush2.bf16.msra.mxu0 %v535
  %702 = vmatprep.subr.bf16.mxu0 0
  %703 = vmatpush2.bf16.msra.mxu0 %v534
  %704 = vmatprep.subr.bf16.mxu0 0
  %705 = vmatpush2.bf16.msra.mxu0 %v533
  %706 = vmatprep.subr.bf16.mxu0 0
  %707 = vmatpush2.bf16.msra.mxu0 %v532
  %708 = vmatprep.subr.bf16.mxu0 0
  %709 = vmatpush2.bf16.msra.mxu0 %v531
  %710 = vmatprep.subr.bf16.mxu0 0
  %711 = vmatpush2.bf16.msra.mxu0 %v530
  %712 = vmatprep.subr.bf16.mxu0 0
  %713 = vmatpush2.bf16.msra.mxu0 %v529
  %714 = vmatprep.mubr.bf16.mxu0 %v220
  %715 = vmatmul.mubr.bf16.gmra.mxu0 %v219
  %v716 = vpop.f32.mrf.mxu0
  %v717 = vadd.f32 %v668, %v716
  %v718 = vpop.f32.mrf.mxu0
  %v719 = vpop.f32.mrf.mxu0
  %v720 = vadd.f32 %v671, %v719
  %v721 = vpop.f32.mrf.mxu0
  %722 = vmatprep.mubr.bf16.mxu0 %v228
  %723 = vmatmul.mubr.bf16.gmra.mxu0 %v227
  %v724 = vpop.f32.mrf.mxu0
  %v725 = vadd.f32 %v676, %v724
  %v726 = vpop.f32.mrf.mxu0
  %v727 = vpop.f32.mrf.mxu0
  %v728 = vadd.f32 %v679, %v727
  %v729 = vpop.f32.mrf.mxu0
  %730 = vdwg.mxu0
  %731 = vmatprep.subr.bf16.mxu0 0
  %732 = vmatpush1.bf16.msra.mxu0 %v544
  %733 = vmatprep.subr.bf16.mxu0 0
  %734 = vmatpush1.bf16.msra.mxu0 %v543
  %735 = vmatprep.subr.bf16.mxu0 0
  %736 = vmatpush1.bf16.msra.mxu0 %v542
  %737 = vmatprep.subr.bf16.mxu0 0
  %738 = vmatpush1.bf16.msra.mxu0 %v541
  %739 = vmatprep.subr.bf16.mxu0 0
  %740 = vmatpush1.bf16.msra.mxu0 %v540
  %741 = vmatprep.subr.bf16.mxu0 0
  %742 = vmatpush1.bf16.msra.mxu0 %v539
  %743 = vmatprep.subr.bf16.mxu0 0
  %744 = vmatpush1.bf16.msra.mxu0 %v538
  %745 = vmatprep.subr.bf16.mxu0 0
  %746 = vmatpush1.bf16.msra.mxu0 %v537
  %747 = vmatprep.subr.bf16.mxu0 0
  %748 = vmatpush2.bf16.msra.mxu0 %v552
  %749 = vmatprep.subr.bf16.mxu0 0
  %750 = vmatpush2.bf16.msra.mxu0 %v551
  %751 = vmatprep.subr.bf16.mxu0 0
  %752 = vmatpush2.bf16.msra.mxu0 %v550
  %753 = vmatprep.subr.bf16.mxu0 0
  %754 = vmatpush2.bf16.msra.mxu0 %v549
  %755 = vmatprep.subr.bf16.mxu0 0
  %756 = vmatpush2.bf16.msra.mxu0 %v548
  %757 = vmatprep.subr.bf16.mxu0 0
  %758 = vmatpush2.bf16.msra.mxu0 %v547
  %759 = vmatprep.subr.bf16.mxu0 0
  %760 = vmatpush2.bf16.msra.mxu0 %v546
  %761 = vmatprep.subr.bf16.mxu0 0
  %762 = vmatpush2.bf16.msra.mxu0 %v545
  %763 = vmatprep.mubr.bf16.mxu0 %v222
  %764 = vmatmul.mubr.bf16.gmra.mxu0 %v221
  %v765 = vpop.f32.mrf.mxu0
  %v766 = vadd.f32 %v717, %v765
  %v767 = vpop.f32.mrf.mxu0
  %v768 = vpop.f32.mrf.mxu0
  %v769 = vadd.f32 %v720, %v768
  %v770 = vpop.f32.mrf.mxu0
  %771 = vmatprep.mubr.bf16.mxu0 %v230
  %772 = vmatmul.mubr.bf16.gmra.mxu0 %v229
  %v773 = vpop.f32.mrf.mxu0
  %v774 = vadd.f32 %v725, %v773
  %v775 = vpop.f32.mrf.mxu0
  %v776 = vpop.f32.mrf.mxu0
  %v777 = vadd.f32 %v728, %v776
  %v778 = vpop.f32.mrf.mxu0
  %779 = vdwg.mxu0
  %780 = vmatprep.subr.bf16.mxu0 0
  %781 = vmatpush1.bf16.msra.mxu0 %v560
  %782 = vmatprep.subr.bf16.mxu0 0
  %783 = vmatpush1.bf16.msra.mxu0 %v559
  %784 = vmatprep.subr.bf16.mxu0 0
  %785 = vmatpush1.bf16.msra.mxu0 %v558
  %786 = vmatprep.subr.bf16.mxu0 0
  %787 = vmatpush1.bf16.msra.mxu0 %v557
  %788 = vmatprep.subr.bf16.mxu0 0
  %789 = vmatpush1.bf16.msra.mxu0 %v556
  %790 = vmatprep.subr.bf16.mxu0 0
  %791 = vmatpush1.bf16.msra.mxu0 %v555
  %792 = vmatprep.subr.bf16.mxu0 0
  %793 = vmatpush1.bf16.msra.mxu0 %v554
  %794 = vmatprep.subr.bf16.mxu0 0
  %795 = vmatpush1.bf16.msra.mxu0 %v553
  %796 = vmatprep.subr.bf16.mxu0 0
  %797 = vmatpush2.bf16.msra.mxu0 %v568
  %798 = vmatprep.subr.bf16.mxu0 0
  %799 = vmatpush2.bf16.msra.mxu0 %v567
  %800 = vmatprep.subr.bf16.mxu0 0
  %801 = vmatpush2.bf16.msra.mxu0 %v566
  %802 = vmatprep.subr.bf16.mxu0 0
  %803 = vmatpush2.bf16.msra.mxu0 %v565
  %804 = vmatprep.subr.bf16.mxu0 0
  %805 = vmatpush2.bf16.msra.mxu0 %v564
  %806 = vmatprep.subr.bf16.mxu0 0
  %807 = vmatpush2.bf16.msra.mxu0 %v563
  %808 = vmatprep.subr.bf16.mxu0 0
  %809 = vmatpush2.bf16.msra.mxu0 %v562
  %810 = vmatprep.subr.bf16.mxu0 0
  %811 = vmatpush2.bf16.msra.mxu0 %v561
  %812 = vmatprep.mubr.bf16.mxu0 %v224
  %813 = vmatmul.mubr.bf16.gmra.mxu0 %v223
  %v814 = vpop.f32.mrf.mxu0
  %v815 = vadd.f32 %v766, %v814
  %v816 = vpop.f32.mrf.mxu0
  %v817 = vpop.f32.mrf.mxu0
  %v818 = vadd.f32 %v769, %v817
  %v819 = vpop.f32.mrf.mxu0
  %820 = vmatprep.mubr.bf16.mxu0 %v232
  %821 = vmatmul.mubr.bf16.gmra.mxu0 %v231
  %v822 = vpop.f32.mrf.mxu0
  %v823 = vadd.f32 %v774, %v822
  %v824 = vpop.f32.mrf.mxu0
  %v825 = vpop.f32.mrf.mxu0
  %v826 = vadd.f32 %v777, %v825
  %v827 = vpop.f32.mrf.mxu0
  %828 = vdwg.mxu0
  %v829 = vmax.f32 %v815, 0.0
  %v830 = vmax.f32 %v818, 0.0
  %v831 = vmax.f32 %v823, 0.0
  %v832 = vmax.f32 %v826, 0.0
  %v833 = vpack.c.bf16 %v830, %v829
  %v834 = vpack.c.bf16 %v832, %v831
  %v837 = vunpack.c.l.b16 %v833
  %v838 = vunpack.c.h.b16 %v833
  %v839 = vunpack.c.l.b16 %v834
  %v840 = vunpack.c.h.b16 %v834
  %v841 = vpack.c.b16 %v837, %v837
  %v842 = vpack.c.b16 %v838, %v838
  %v843 = vpack.c.b16 %v839, %v839
  %v844 = vpack.c.b16 %v840, %v840
  %849 = vst [vmem:[%s3] sm:$0xf] %v841
  %850 = vst [vmem:[%s3 + $0x4] sm:$0xf] %v842
  %851 = vst [vmem:[%s3 + $0x8] sm:$0xf] %v843
  %852 = vst [vmem:[%s3 + $0xc] sm:$0xf] %v844
  // Predicated region
  $region14: #{generator_forward.7} parent=0 // pred_check
    _
  $region15: #{generator_forward.7} parent=0 // pred_check_branch
    %854 = sbr.rel (0) target = $region17
  $region16: #{generator_forward.7} parent=0 // pred_region
    _
  $region17: #{generator_forward.7} parent=0 // pred_fallthru
    _
  // Predicated region
  $region18: #{generator_forward.7} parent=0 // pred_check
    _
  $region19: #{generator_forward.7} parent=0 // pred_check_branch
    %856 = sbr.rel (0) target = $region21
  $region20: #{generator_forward.7} parent=0 // pred_region
    _
  $region21: #{generator_forward.7} parent=0 // pred_fallthru
    _

// kernel: squeeze.5
$region0: #{squeeze.5}
  %s0 = inlined_call_operand.vmem [shape: bf16[1,8,256], index: 0, kind: input, shape index: {}]
  %s1 = inlined_call_operand.vmem [shape: bf16[2,2,2,256], index: 1, kind: output, shape index: {}]
  $region1: #{squeeze.5} parent=0
    #allocation0 [shape = 'u8[32768]{0}', space=vmem, size = 0x8000, scoped, tag = 'scoped mem for output reshape']
    #allocation1 [shape = 'u8[8192]{0}', space=vmem, size = 0x2000, scoped, tag = 'scoped mem for input reshape']
    %s3 = smul.u32 4, 2
    %s4 = sshll.u32 1, %s3
    %s5 = ssub.s32 %s4, 1
    %s6 = scalar_lea.vmem %s0, 4
    %s7 = sshrl.u32 %s5, 1
    %s8 = sor.u32 %s5, %s7
    %s9 = sand.u32 %s8, 85
    %s10 = sshrl.u32 %s9, 1
    %s11 = sor.u32 %s9, %s10
    %s12 = sand.u32 51, %s11
    %s13 = sshrl.u32 %s12, 2
    %s14 = sor.u32 %s12, %s13
    %s15 = sand.u32 15, %s14
    %v16 = vld [vmem:[%s6] sm:%s15]
    %v17 = vunpack.c.l.bf16 %v16
    %v18 = vunpack.c.h.bf16 %v16
    %s19 = scalar_lea.vmem [#allocation1], 8
    %20 = vst [vmem:[%s19] sm:%s5] %v17
    %s21 = sshrl.u32 %s5, 1
    %s22 = sor.u32 %s5, %s21
    %s23 = sand.u32 %s22, 85
    %s24 = sshrl.u32 %s23, 1
    %s25 = sor.u32 %s23, %s24
    %s26 = sand.u32 51, %s25
    %s27 = sshrl.u32 %s26, 2
    %s28 = sor.u32 %s26, %s27
    %s29 = sand.u32 15, %s28
    %v30 = vld [vmem:[%s0] sm:%s29]
    %v31 = vunpack.c.l.bf16 %v30
    %v32 = vunpack.c.h.bf16 %v30
    %33 = vst [vmem:[#allocation1] sm:%s5] %v31
    %v34 = vld [vmem:[#allocation1] sm:$0xff]
    %35 = vst [vmem:[#allocation0] sm:$0x3] %v34
    %s36 = scalar_lea.vmem [#allocation0], 14
    %37 = vst [vmem:[%s36] sm:$0xc] %v34
    %s38 = scalar_lea.vmem [#allocation0], 28
    %39 = vst [vmem:[%s38] sm:$0x30] %v34
    %s40 = scalar_lea.vmem [#allocation0], 42
    %41 = vst [vmem:[%s40] sm:$0xc0] %v34
    %s42 = scalar_lea.vmem [#allocation1], 8
    %v43 = vld [vmem:[%s42] sm:$0xff]
    %s44 = scalar_lea.vmem [#allocation0], 8
    %45 = vst [vmem:[%s44] sm:$0x3] %v43
    %s46 = scalar_lea.vmem [#allocation0], 22
    %47 = vst [vmem:[%s46] sm:$0xc] %v43
    %s48 = scalar_lea.vmem [#allocation0], 36
    %49 = vst [vmem:[%s48] sm:$0x30] %v43
    %s50 = scalar_lea.vmem [#allocation0], 50
    %51 = vst [vmem:[%s50] sm:$0xc0] %v43
    %s53 = smul.u32 1, 2
    %s54 = sshll.u32 1, %s53
    %s55 = ssub.s32 %s54, 1
    %s56 = sshrl.u32 %s53, 1
    %v57 = vld [vmem:[#allocation0] sm:%s55]
    %v58 = vpack.c.bf16 0.0, %v57
    %s59 = sshll.u32 1, %s56
    %s60 = ssub.s32 %s59, 1
    %61 = vst [vmem:[%s1] sm:%s60] %v58
    %s62 = scalar_lea.vmem [#allocation0], 8
    %v63 = vld [vmem:[%s62] sm:%s55]
    %v64 = vpack.c.bf16 0.0, %v63
    %s65 = sshll.u32 1, %s56
    %s66 = ssub.s32 %s65, 1
    %s67 = scalar_lea.vmem %s1, 1
    %68 = vst [vmem:[%s67] sm:%s66] %v64
    %s69 = scalar_lea.vmem [#allocation0], 16
    %v70 = vld [vmem:[%s69] sm:%s55]
    %v71 = vpack.c.bf16 0.0, %v70
    %s72 = sshll.u32 1, %s56
    %s73 = ssub.s32 %s72, 1
    %s74 = smul.addr 1, 2
    %s75 = scalar_lea.vmem %s1, %s74
    %76 = vst [vmem:[%s75] sm:%s73] %v71
    %s77 = scalar_lea.vmem [#allocation0], 24
    %v78 = vld [vmem:[%s77] sm:%s55]
    %v79 = vpack.c.bf16 0.0, %v78
    %s80 = sshll.u32 1, %s56
    %s81 = ssub.s32 %s80, 1
    %s82 = smul.addr 1, 3
    %s83 = scalar_lea.vmem %s1, %s82
    %84 = vst [vmem:[%s83] sm:%s81] %v79
    %s85 = scalar_lea.vmem [#allocation0], 32
    %v86 = vld [vmem:[%s85] sm:%s55]
    %v87 = vpack.c.bf16 0.0, %v86
    %s88 = sshll.u32 1, %s56
    %s89 = ssub.s32 %s88, 1
    %s90 = smul.addr 1, 4
    %s91 = scalar_lea.vmem %s1, %s90
    %92 = vst [vmem:[%s91] sm:%s89] %v87
    %s93 = scalar_lea.vmem [#allocation0], 40
    %v94 = vld [vmem:[%s93] sm:%s55]
    %v95 = vpack.c.bf16 0.0, %v94
    %s96 = sshll.u32 1, %s56
    %s97 = ssub.s32 %s96, 1
    %s98 = smul.addr 1, 5
    %s99 = scalar_lea.vmem %s1, %s98
    %100 = vst [vmem:[%s99] sm:%s97] %v95
    %s101 = scalar_lea.vmem [#allocation0], 48
    %v102 = vld [vmem:[%s101] sm:%s55]
    %v103 = vpack.c.bf16 0.0, %v102
    %s104 = sshll.u32 1, %s56
    %s105 = ssub.s32 %s104, 1
    %s106 = smul.addr 1, 6
    %s107 = scalar_lea.vmem %s1, %s106
    %108 = vst [vmem:[%s107] sm:%s105] %v103
    %s109 = scalar_lea.vmem [#allocation0], 56
    %v110 = vld [vmem:[%s109] sm:%s55]
    %v111 = vpack.c.bf16 0.0, %v110
    %s112 = sshll.u32 1, %s56
    %s113 = ssub.s32 %s112, 1
    %s114 = smul.addr 1, 7
    %s115 = scalar_lea.vmem %s1, %s114
    %116 = vst [vmem:[%s115] sm:%s113] %v111

// kernel: generator_forward.9
$region0: #{generator_forward.9}
  #allocation0 [shape = 'u32[]', space=smem, size = 0x4, offset = 0x4, fixed_abs, tag = 'smem constant byte address 0x4 - core index']
  #allocation1 [shape = 'u32[144,128]{1,0:T(1,128)}', space=vmem, size = 0x12000, scoped, tag = 'internal scratch']
  %s0 = inlined_call_operand.vmem [shape: bf16[4,16,1024], index: 0, kind: input, shape index: {}]
  %s1 = inlined_call_operand.vmem [shape: bf16[4,1024,128], index: 1, kind: input, shape index: {}]
  %s2 = inlined_call_operand.vmem [shape: f32[1,128], index: 2, kind: input, shape index: {}]
  %s3 = inlined_call_operand.vmem [shape: bf16[4,16,128], index: 3, kind: output, shape index: {}]
  %s4 = sld [smem:[#allocation0]]
  $region45: #{generator_forward.9} parent=0
    _
  %s6 = ssub.s32 1, %s4
  %s7 = scalar_select 0, %s6, %s4
  loop: start=0, step=1, limit=6
  $region2: #{generator_forward.9} parent=0 // loop_pre_header
    _
  $region3: #{generator_forward.9} parent=0 // loop_header
    %s9 = sphi 0, %s13
    %p10 = scmp.ge.s32.totalorder %s9, 6
    %s16 = sphi 0, %s35
    %s17 = sphi 0, %s31
    %s18 = sphi 0, %s27
    %s19 = sphi 0, %s16
    %s20 = sphi 0, %s17
    %s21 = sphi 0, %s18
    %s22 = sphi 0, %s19
    %s23 = sphi 0, %s20
    %s24 = sphi 0, %s21
    %s40 = sphi 0, %s42
    %s43 = sphi 0, %s40
    %s44 = sphi 0, %s43
    %s60 = sphi 0, %s44
    %s66 = sphi 0, %s68
    %s69 = sphi 0, %s66
    %s70 = sphi 0, %s69
    %s86 = sphi 0, %s70
    %s92 = sphi 0, %s94
    %s95 = sphi 0, %s92
    %s96 = sphi 0, %s95
    %s112 = sphi 0, %s96
    %s122 = sphi 0, %s124
    %s125 = sphi 0, %s122
    %s126 = sphi 0, %s125
    %s142 = sphi 0, %s126
  $region4: #{generator_forward.9} parent=0 // loop_header_branch
    %12 = sbr.rel (%p10) target = $region8
  $region5: #{generator_forward.9} parent=0 // loop_body
    %s14 = ssub.s32 %s9, 1
    %s15 = ssub.s32 %s9, 2
    %s25 = sadd.s32 1, %s18
    %p26 = scmp.ge.s32.totalorder %s25, 1
    %s27 = scalar_select %p26, 0, %s25
    %s28 = sadd.s32 1, %s17
    %s29 = scalar_select %p26, %s28, %s17
    %p30 = scmp.ge.s32.totalorder %s29, 1
    %s31 = scalar_select %p30, 0, %s29
    %s32 = sadd.s32 1, %s16
    %s33 = scalar_select %p30, %s32, %s16
    %p34 = scmp.ge.s32.totalorder %s33, 4
    %s35 = scalar_select %p34, 0, %s33
    %s36 = ssub.s32 %s16, %s35
    %s37 = ssub.s32 %s17, %s31
    %s38 = sor.u32 %s36, %s37
    %p39 = scmp.eq.s32.totalorder %s38, 0
    %s41 = sadd.s32 %s40, 1
    %s42 = scalar_select %p39, %s40, %s41
    %p45 = pneg %p39
    %p46 = scmp.eq.s32.totalorder %s9, 3
    %p47 = por %p45, %p46
    %p48 = scmp.ne.s32.totalorder %s40, %s43
    %p49 = scmp.eq.s32.totalorder %s9, 0
    %p50 = por %p48, %p49
    %p51 = scmp.ne.s32.totalorder %s40, %s43
    %p52 = scmp.eq.s32.totalorder %s14, 3
    %p53 = por %p51, %p52
    %p54 = scmp.ne.s32.totalorder %s43, %s44
    %p55 = scmp.eq.s32.totalorder %s14, 0
    %p56 = por %p54, %p55
    %p57 = scmp.ne.s32.totalorder %s43, %s44
    %p58 = scmp.eq.s32.totalorder %s15, 3
    %p59 = por %p57, %p58
    %p61 = scmp.ne.s32.totalorder %s44, %s60
    %p62 = scmp.eq.s32.totalorder %s15, 0
    %p63 = por %p61, %p62
    %s64 = ssub.s32 %s18, %s27
    %p65 = scmp.eq.s32.totalorder %s64, 0
    %s67 = sadd.s32 %s66, 1
    %s68 = scalar_select %p65, %s66, %s67
    %p71 = pneg %p65
    %p72 = scmp.eq.s32.totalorder %s9, 3
    %p73 = por %p71, %p72
    %p74 = scmp.ne.s32.totalorder %s66, %s69
    %p75 = scmp.eq.s32.totalorder %s9, 0
    %p76 = por %p74, %p75
    %p77 = scmp.ne.s32.totalorder %s66, %s69
    %p78 = scmp.eq.s32.totalorder %s14, 3
    %p79 = por %p77, %p78
    %p80 = scmp.ne.s32.totalorder %s69, %s70
    %p81 = scmp.eq.s32.totalorder %s14, 0
    %p82 = por %p80, %p81
    %p83 = scmp.ne.s32.totalorder %s69, %s70
    %p84 = scmp.eq.s32.totalorder %s15, 3
    %p85 = por %p83, %p84
    %p87 = scmp.ne.s32.totalorder %s70, %s86
    %p88 = scmp.eq.s32.totalorder %s15, 0
    %p89 = por %p87, %p88
    %s90 = ssub.s32 %s18, %s27
    %p91 = scmp.eq.s32.totalorder %s90, 0
    %s93 = sadd.s32 %s92, 1
    %s94 = scalar_select %p91, %s92, %s93
    %p97 = pneg %p91
    %p98 = scmp.eq.s32.totalorder %s9, 3
    %p99 = por %p97, %p98
    %p100 = scmp.ne.s32.totalorder %s92, %s95
    %p101 = scmp.eq.s32.totalorder %s9, 0
    %p102 = por %p100, %p101
    %p103 = scmp.ne.s32.totalorder %s92, %s95
    %p104 = scmp.eq.s32.totalorder %s14, 3
    %p105 = por %p103, %p104
    %p106 = scmp.ne.s32.totalorder %s95, %s96
    %p107 = scmp.eq.s32.totalorder %s14, 0
    %p108 = por %p106, %p107
    %p109 = scmp.ne.s32.totalorder %s95, %s96
    %p110 = scmp.eq.s32.totalorder %s15, 3
    %p111 = por %p109, %p110
    %p113 = scmp.ne.s32.totalorder %s96, %s112
    %p114 = scmp.eq.s32.totalorder %s15, 0
    %p115 = por %p113, %p114
    %s116 = ssub.s32 %s16, %s35
    %s117 = ssub.s32 %s17, %s31
    %s118 = sor.u32 %s116, %s117
    %s119 = ssub.s32 %s18, %s27
    %s120 = sor.u32 %s118, %s119
    %p121 = scmp.eq.s32.totalorder %s120, 0
    %s123 = sadd.s32 %s122, 1
    %s124 = scalar_select %p121, %s122, %s123
    %p127 = pneg %p121
    %p128 = scmp.eq.s32.totalorder %s9, 3
    %p129 = por %p127, %p128
    %p130 = scmp.ne.s32.totalorder %s122, %s125
    %p131 = scmp.eq.s32.totalorder %s9, 0
    %p132 = por %p130, %p131
    %p133 = scmp.ne.s32.totalorder %s122, %s125
    %p134 = scmp.eq.s32.totalorder %s14, 3
    %p135 = por %p133, %p134
    %p136 = scmp.ne.s32.totalorder %s125, %s126
    %p137 = scmp.eq.s32.totalorder %s14, 0
    %p138 = por %p136, %p137
    %p139 = scmp.ne.s32.totalorder %s125, %s126
    %p140 = scmp.eq.s32.totalorder %s15, 3
    %p141 = por %p139, %p140
    %p143 = scmp.ne.s32.totalorder %s126, %s142
    %p144 = scmp.eq.s32.totalorder %s15, 0
    %p145 = por %p143, %p144
    %p146 = scmp.le.s32.totalorder 1, %s9
    %p147 = scmp.lt.s32.totalorder %s9, 5
    %p148 = pnand %p146, %p147
    %p149 = pneg %p148
    // Predicated region
    $region9: #{generator_forward.9} parent=5 // pred_check
      _
    $region10: #{generator_forward.9} parent=5 // pred_check_branch
      %151 = sbr.rel (%p148) target = $region12
    $region11: #{generator_forward.9} parent=5 // pred_region
      %s152 = ssub.s32 %s9, 1
      // Predicated region
      $region13: #{generator_forward.9} parent=11 // pred_check
        %p153 = pneg %p82
      $region14: #{generator_forward.9} parent=11 // pred_check_branch
        %155 = sbr.rel (%p153) target = $region16
      $region15: #{generator_forward.9} parent=11 // pred_region
        %p156 = scmp.lt.s32.totalorder %s21, 0
        %s157 = scalar_select %p156, %s21, 0
        %s158 = smul.addr %s157, 4
        %s159 = scalar_lea.vmem %s1, %s158
      $region16: #{generator_forward.9} parent=11 // pred_fallthru
        _
      // Predicated region
      $region17: #{generator_forward.9} parent=11 // pred_check
        %p160 = pneg %p108
      $region18: #{generator_forward.9} parent=11 // pred_check_branch
        %162 = sbr.rel (%p160) target = $region20
      $region19: #{generator_forward.9} parent=11 // pred_region
        %p163 = scmp.lt.s32.totalorder %s21, 0
        %s164 = scalar_select %p163, %s21, 0
        %s165 = scalar_lea.vmem %s2, %s164
      $region20: #{generator_forward.9} parent=11 // pred_fallthru
        _
    $region12: #{generator_forward.9} parent=5 // pred_fallthru
      _
    %p166 = scmp.lt.s32.totalorder %s9, 4
    // Predicated region
    $region21: #{generator_forward.9} parent=5 // pred_check
      %p167 = pneg %p166
    $region22: #{generator_forward.9} parent=5 // pred_check_branch
      %169 = sbr.rel (%p167) target = $region24
    $region23: #{generator_forward.9} parent=5 // pred_region
      // Predicated region
      $region25: #{generator_forward.9} parent=23 // pred_check
        %p170 = pneg %p50
      $region26: #{generator_forward.9} parent=23 // pred_check_branch
        %172 = sbr.rel (%p170) target = $region28
      $region27: #{generator_forward.9} parent=23 // pred_region
        %s173 = smul.u32 2, %s17
        %p174 = scmp.lt.s32.totalorder %s16, 3
        %s175 = scalar_select %p174, %s16, 3
        %p176 = scmp.lt.s32.totalorder %s173, 1
        %s177 = scalar_select %p176, %s173, 1
        %s178 = smul.addr %s177, 8
        %s179 = smul.addr %s175, 16
        %s180 = sadd.s32 %s178, %s179
        %s181 = smul.addr %s180, 4
        %s182 = scalar_lea.vmem %s0, %s181
        %s183 = smul.u32 2, %s17
      $region28: #{generator_forward.9} parent=23 // pred_fallthru
        _
    $region24: #{generator_forward.9} parent=5 // pred_fallthru
      _
    %p184 = scmp.le.s32.totalorder 1, %s9
    %p185 = scmp.lt.s32.totalorder %s9, 5
    %p186 = pnand %p184, %p185
    %p187 = pneg %p186
    // Predicated region
    $region29: #{generator_forward.9} parent=5 // pred_check
      _
    $region30: #{generator_forward.9} parent=5 // pred_check_branch
      %189 = sbr.rel (%p186) target = $region32
    $region31: #{generator_forward.9} parent=5 // pred_region
      %s190 = ssub.s32 %s9, 1
      %s191 = smul.u32 2, %s20
      %p192 = scmp.lt.s32.totalorder %s19, 3
      %s193 = scalar_select %p192, %s19, 3
      %p194 = scmp.lt.s32.totalorder %s191, 1
      %s195 = scalar_select %p194, %s191, 1
      %s196 = smul.addr %s195, 8
      %s197 = smul.addr %s193, 16
      %s198 = sadd.s32 %s196, %s197
      %s199 = smul.addr %s198, 4
      %s200 = scalar_lea.vmem %s0, %s199
      %p201 = pneg %p56
      %p202 = pneg %p53
      %p203 = scmp.lt.s32.totalorder %s21, 0
      %s204 = scalar_select %p203, %s21, 0
      %s205 = smul.addr %s204, 4
      %s206 = scalar_lea.vmem %s1, %s205
      %p207 = pneg %p82
      %p208 = pneg %p79
      %p209 = scmp.lt.s32.totalorder %s21, 0
      %s210 = scalar_select %p209, %s21, 0
      %s211 = scalar_lea.vmem %s2, %s210
      %p212 = pneg %p108
      %p213 = pneg %p105
      %p214 = pneg %p138
      %p215 = pneg %p135
      %s216 = smul.u32 2, %s20
      %p217 = scmp.lt.s32.totalorder %s19, 3
      %s218 = scalar_select %p217, %s19, 3
      %p219 = scmp.lt.s32.totalorder %s216, 1
      %s220 = scalar_select %p219, %s216, 1
      %p221 = scmp.lt.s32.totalorder %s21, 0
      %s222 = scalar_select %p221, %s21, 0
      %s223 = sadd.s32 %s222, %s220
      %s224 = smul.addr %s218, 2
      %s225 = sadd.s32 %s223, %s224
      %s226 = smul.addr %s225, 4
      %s227 = scalar_lea.vmem %s3, %s226
      %s228 = smul.u32 2, %s20
      %p229 = scmp.lt.s32.totalorder %s19, 3
      %s230 = scalar_select %p229, %s19, 3
      %p231 = scmp.lt.s32.totalorder %s228, 1
      %s232 = scalar_select %p231, %s228, 1
      %s233 = smul.addr %s232, 8
      %s234 = smul.addr %s230, 16
      %s235 = sadd.s32 %s233, %s234
      %s236 = smul.addr %s235, 4
      %s237 = scalar_lea.vmem %s0, %s236
      %s238 = smul.u32 2, %s20
      %p239 = scmp.lt.s32.totalorder %s21, 0
      %s240 = scalar_select %p239, %s21, 0
      %s241 = smul.addr %s240, 4
      %s242 = scalar_lea.vmem %s1, %s241
      %p243 = scmp.lt.s32.totalorder %s21, 0
      %s244 = scalar_select %p243, %s21, 0
      %s245 = scalar_lea.vmem %s2, %s244
      %s246 = smul.u32 2, %s20
      %p247 = scmp.lt.s32.totalorder %s19, 3
      %s248 = scalar_select %p247, %s19, 3
      %p249 = scmp.lt.s32.totalorder %s246, 1
      %s250 = scalar_select %p249, %s246, 1
      %p251 = scmp.lt.s32.totalorder %s21, 0
      %s252 = scalar_select %p251, %s21, 0
      %s253 = sadd.s32 %s252, %s250
      %s254 = smul.addr %s248, 2
      %s255 = sadd.s32 %s253, %s254
      %s256 = smul.addr %s255, 4
      %s257 = scalar_lea.vmem %s3, %s256
      %s258 = smul.u32 2, %s20
      %s260 = smul.u32 %s19, 128
      %s261 = smul.addr %s260, 4
      %s262 = scalar_lea.vmem %s242, %s261
      %v263 = vld [vmem:[%s262] sm:$0xf]
      %v264 = vld [vmem:[%s262 + $0x4] sm:$0xf]
      %v265 = vld [vmem:[%s262 + $0x8] sm:$0xf]
      %v266 = vld [vmem:[%s262 + $0xc] sm:$0xf]
      %v267 = vld [vmem:[%s262 + $0x10] sm:$0xf]
      %v268 = vld [vmem:[%s262 + $0x14] sm:$0xf]
      %v269 = vld [vmem:[%s262 + $0x18] sm:$0xf]
      %v270 = vld [vmem:[%s262 + $0x1c] sm:$0xf]
      %v271 = vld [vmem:[%s262 + $0x20] sm:$0xf]
      %v272 = vld [vmem:[%s262 + $0x24] sm:$0xf]
      %v273 = vld [vmem:[%s262 + $0x28] sm:$0xf]
      %v274 = vld [vmem:[%s262 + $0x2c] sm:$0xf]
      %v275 = vld [vmem:[%s262 + $0x30] sm:$0xf]
      %v276 = vld [vmem:[%s262 + $0x34] sm:$0xf]
      %v277 = vld [vmem:[%s262 + $0x38] sm:$0xf]
      %v278 = vld [vmem:[%s262 + $0x3c] sm:$0xf]
      %v279 = vld [vmem:[%s262 + $0x40] sm:$0xf]
      %v280 = vld [vmem:[%s262 + $0x44] sm:$0xf]
      %v281 = vld [vmem:[%s262 + $0x48] sm:$0xf]
      %v282 = vld [vmem:[%s262 + $0x4c] sm:$0xf]
      %v283 = vld [vmem:[%s262 + $0x50] sm:$0xf]
      %v284 = vld [vmem:[%s262 + $0x54] sm:$0xf]
      %v285 = vld [vmem:[%s262 + $0x58] sm:$0xf]
      %v286 = vld [vmem:[%s262 + $0x5c] sm:$0xf]
      %v287 = vld [vmem:[%s262 + $0x60] sm:$0xf]
      %v288 = vld [vmem:[%s262 + $0x64] sm:$0xf]
      %v289 = vld [vmem:[%s262 + $0x68] sm:$0xf]
      %v290 = vld [vmem:[%s262 + $0x6c] sm:$0xf]
      %v291 = vld [vmem:[%s262 + $0x70] sm:$0xf]
      %v292 = vld [vmem:[%s262 + $0x74] sm:$0xf]
      %v293 = vld [vmem:[%s262 + $0x78] sm:$0xf]
      %v294 = vld [vmem:[%s262 + $0x7c] sm:$0xf]
      %v295 = vld [vmem:[%s262 + $0x80] sm:$0xf]
      %v296 = vld [vmem:[%s262 + $0x84] sm:$0xf]
      %v297 = vld [vmem:[%s262 + $0x88] sm:$0xf]
      %v298 = vld [vmem:[%s262 + $0x8c] sm:$0xf]
      %v299 = vld [vmem:[%s262 + $0x90] sm:$0xf]
      %v300 = vld [vmem:[%s262 + $0x94] sm:$0xf]
      %v301 = vld [vmem:[%s262 + $0x98] sm:$0xf]
      %v302 = vld [vmem:[%s262 + $0x9c] sm:$0xf]
      %v303 = vld [vmem:[%s262 + $0xa0] sm:$0xf]
      %v304 = vld [vmem:[%s262 + $0xa4] sm:$0xf]
      %v305 = vld [vmem:[%s262 + $0xa8] sm:$0xf]
      %v306 = vld [vmem:[%s262 + $0xac] sm:$0xf]
      %v307 = vld [vmem:[%s262 + $0xb0] sm:$0xf]
      %v308 = vld [vmem:[%s262 + $0xb4] sm:$0xf]
      %v309 = vld [vmem:[%s262 + $0xb8] sm:$0xf]
      %v310 = vld [vmem:[%s262 + $0xbc] sm:$0xf]
      %v311 = vld [vmem:[%s262 + $0xc0] sm:$0xf]
      %v312 = vld [vmem:[%s262 + $0xc4] sm:$0xf]
      %v313 = vld [vmem:[%s262 + $0xc8] sm:$0xf]
      %v314 = vld [vmem:[%s262 + $0xcc] sm:$0xf]
      %v315 = vld [vmem:[%s262 + $0xd0] sm:$0xf]
      %v316 = vld [vmem:[%s262 + $0xd4] sm:$0xf]
      %v317 = vld [vmem:[%s262 + $0xd8] sm:$0xf]
      %v318 = vld [vmem:[%s262 + $0xdc] sm:$0xf]
      %v319 = vld [vmem:[%s262 + $0xe0] sm:$0xf]
      %v320 = vld [vmem:[%s262 + $0xe4] sm:$0xf]
      %v321 = vld [vmem:[%s262 + $0xe8] sm:$0xf]
      %v322 = vld [vmem:[%s262 + $0xec] sm:$0xf]
      %v323 = vld [vmem:[%s262 + $0xf0] sm:$0xf]
      %v324 = vld [vmem:[%s262 + $0xf4] sm:$0xf]
      %v325 = vld [vmem:[%s262 + $0xf8] sm:$0xf]
      %v326 = vld [vmem:[%s262 + $0xfc] sm:$0xf]
      %v327 = vld [vmem:[%s262 + $0x100] sm:$0xf]
      %v328 = vld [vmem:[%s262 + $0x104] sm:$0xf]
      %v329 = vld [vmem:[%s262 + $0x108] sm:$0xf]
      %v330 = vld [vmem:[%s262 + $0x10c] sm:$0xf]
      %v331 = vld [vmem:[%s262 + $0x110] sm:$0xf]
      %v332 = vld [vmem:[%s262 + $0x114] sm:$0xf]
      %v333 = vld [vmem:[%s262 + $0x118] sm:$0xf]
      %v334 = vld [vmem:[%s262 + $0x11c] sm:$0xf]
      %v335 = vld [vmem:[%s262 + $0x120] sm:$0xf]
      %v336 = vld [vmem:[%s262 + $0x124] sm:$0xf]
      %v337 = vld [vmem:[%s262 + $0x128] sm:$0xf]
      %v338 = vld [vmem:[%s262 + $0x12c] sm:$0xf]
      %v339 = vld [vmem:[%s262 + $0x130] sm:$0xf]
      %v340 = vld [vmem:[%s262 + $0x134] sm:$0xf]
      %v341 = vld [vmem:[%s262 + $0x138] sm:$0xf]
      %v342 = vld [vmem:[%s262 + $0x13c] sm:$0xf]
      %v343 = vld [vmem:[%s262 + $0x140] sm:$0xf]
      %v344 = vld [vmem:[%s262 + $0x144] sm:$0xf]
      %v345 = vld [vmem:[%s262 + $0x148] sm:$0xf]
      %v346 = vld [vmem:[%s262 + $0x14c] sm:$0xf]
      %v347 = vld [vmem:[%s262 + $0x150] sm:$0xf]
      %v348 = vld [vmem:[%s262 + $0x154] sm:$0xf]
      %v349 = vld [vmem:[%s262 + $0x158] sm:$0xf]
      %v350 = vld [vmem:[%s262 + $0x15c] sm:$0xf]
      %v351 = vld [vmem:[%s262 + $0x160] sm:$0xf]
      %v352 = vld [vmem:[%s262 + $0x164] sm:$0xf]
      %v353 = vld [vmem:[%s262 + $0x168] sm:$0xf]
      %v354 = vld [vmem:[%s262 + $0x16c] sm:$0xf]
      %v355 = vld [vmem:[%s262 + $0x170] sm:$0xf]
      %v356 = vld [vmem:[%s262 + $0x174] sm:$0xf]
      %v357 = vld [vmem:[%s262 + $0x178] sm:$0xf]
      %v358 = vld [vmem:[%s262 + $0x17c] sm:$0xf]
      %v359 = vld [vmem:[%s262 + $0x180] sm:$0xf]
      %v360 = vld [vmem:[%s262 + $0x184] sm:$0xf]
      %v361 = vld [vmem:[%s262 + $0x188] sm:$0xf]
      %v362 = vld [vmem:[%s262 + $0x18c] sm:$0xf]
      %v363 = vld [vmem:[%s262 + $0x190] sm:$0xf]
      %v364 = vld [vmem:[%s262 + $0x194] sm:$0xf]
      %v365 = vld [vmem:[%s262 + $0x198] sm:$0xf]
      %v366 = vld [vmem:[%s262 + $0x19c] sm:$0xf]
      %v367 = vld [vmem:[%s262 + $0x1a0] sm:$0xf]
      %v368 = vld [vmem:[%s262 + $0x1a4] sm:$0xf]
      %v369 = vld [vmem:[%s262 + $0x1a8] sm:$0xf]
      %v370 = vld [vmem:[%s262 + $0x1ac] sm:$0xf]
      %v371 = vld [vmem:[%s262 + $0x1b0] sm:$0xf]
      %v372 = vld [vmem:[%s262 + $0x1b4] sm:$0xf]
      %v373 = vld [vmem:[%s262 + $0x1b8] sm:$0xf]
      %v374 = vld [vmem:[%s262 + $0x1bc] sm:$0xf]
      %v375 = vld [vmem:[%s262 + $0x1c0] sm:$0xf]
      %v376 = vld [vmem:[%s262 + $0x1c4] sm:$0xf]
      %v377 = vld [vmem:[%s262 + $0x1c8] sm:$0xf]
      %v378 = vld [vmem:[%s262 + $0x1cc] sm:$0xf]
      %v379 = vld [vmem:[%s262 + $0x1d0] sm:$0xf]
      %v380 = vld [vmem:[%s262 + $0x1d4] sm:$0xf]
      %v381 = vld [vmem:[%s262 + $0x1d8] sm:$0xf]
      %v382 = vld [vmem:[%s262 + $0x1dc] sm:$0xf]
      %v383 = vld [vmem:[%s262 + $0x1e0] sm:$0xf]
      %v384 = vld [vmem:[%s262 + $0x1e4] sm:$0xf]
      %v385 = vld [vmem:[%s262 + $0x1e8] sm:$0xf]
      %v386 = vld [vmem:[%s262 + $0x1ec] sm:$0xf]
      %v387 = vld [vmem:[%s262 + $0x1f0] sm:$0xf]
      %v388 = vld [vmem:[%s262 + $0x1f4] sm:$0xf]
      %v389 = vld [vmem:[%s262 + $0x1f8] sm:$0xf]
      %v390 = vld [vmem:[%s262 + $0x1fc] sm:$0xf]
      %v391 = vld [vmem:[%s237] sm:$0xff]
      %v392 = vld [vmem:[%s237 + $0x8] sm:$0xff]
      %v393 = vld [vmem:[%s237 + $0x10] sm:$0xff]
      %v394 = vld [vmem:[%s237 + $0x18] sm:$0xff]
      %v395 = vld [vmem:[%s237 + $0x20] sm:$0xff]
      %v396 = vld [vmem:[%s237 + $0x28] sm:$0xff]
      %v397 = vld [vmem:[%s237 + $0x30] sm:$0xff]
      %v398 = vld [vmem:[%s237 + $0x38] sm:$0xff]
      %v399 = vld [vmem:[%s245] sm:$0x1]
      %v401 = vlaneseq
      %v402 = vshrl.u32 %v401, 7
      %v403 = vsub.s32 0, %v402
      %v404 = vrot.slane %v399, %v403
      %v414 = vunpack.c.l.b16 %v391
      %v415 = vunpack.c.h.b16 %v391
      %v416 = vunpack.c.l.b16 %v392
      %v417 = vunpack.c.h.b16 %v392
      %v418 = vunpack.c.l.b16 %v393
      %v419 = vunpack.c.h.b16 %v393
      %v420 = vunpack.c.l.b16 %v394
      %v421 = vunpack.c.h.b16 %v394
      %v422 = vunpack.c.l.b16 %v395
      %v423 = vunpack.c.h.b16 %v395
      %v424 = vunpack.c.l.b16 %v396
      %v425 = vunpack.c.h.b16 %v396
      %v426 = vunpack.c.l.b16 %v397
      %v427 = vunpack.c.h.b16 %v397
      %v428 = vunpack.c.l.b16 %v398
      %v429 = vunpack.c.h.b16 %v398
      %v430 = vpack.c.b16 %v422, %v414
      %v431 = vpack.c.b16 %v423, %v415
      %v432 = vpack.c.b16 %v424, %v416
      %v433 = vpack.c.b16 %v425, %v417
      %v434 = vpack.c.b16 %v426, %v418
      %v435 = vpack.c.b16 %v427, %v419
      %v436 = vpack.c.b16 %v428, %v420
      %v437 = vpack.c.b16 %v429, %v421
      %v574 = vunpack.c.l.b16 %v263
      %v575 = vunpack.c.l.b16 %v264
      %v576 = vunpack.c.l.b16 %v265
      %v577 = vunpack.c.l.b16 %v266
      %v578 = vunpack.c.l.b16 %v267
      %v579 = vunpack.c.l.b16 %v268
      %v580 = vunpack.c.l.b16 %v269
      %v581 = vunpack.c.l.b16 %v270
      %v582 = vunpack.c.l.b16 %v271
      %v583 = vunpack.c.l.b16 %v272
      %v584 = vunpack.c.l.b16 %v273
      %v585 = vunpack.c.l.b16 %v274
      %v586 = vunpack.c.l.b16 %v275
      %v587 = vunpack.c.l.b16 %v276
      %v588 = vunpack.c.l.b16 %v277
      %v589 = vunpack.c.l.b16 %v278
      %v590 = vunpack.c.l.b16 %v279
      %v591 = vunpack.c.l.b16 %v280
      %v592 = vunpack.c.l.b16 %v281
      %v593 = vunpack.c.l.b16 %v282
      %v594 = vunpack.c.l.b16 %v283
      %v595 = vunpack.c.l.b16 %v284
      %v596 = vunpack.c.l.b16 %v285
      %v597 = vunpack.c.l.b16 %v286
      %v598 = vunpack.c.l.b16 %v287
      %v599 = vunpack.c.l.b16 %v288
      %v600 = vunpack.c.l.b16 %v289
      %v601 = vunpack.c.l.b16 %v290
      %v602 = vunpack.c.l.b16 %v291
      %v603 = vunpack.c.l.b16 %v292
      %v604 = vunpack.c.l.b16 %v293
      %v605 = vunpack.c.l.b16 %v294
      %v606 = vunpack.c.l.b16 %v295
      %v607 = vunpack.c.l.b16 %v296
      %v608 = vunpack.c.l.b16 %v297
      %v609 = vunpack.c.l.b16 %v298
      %v610 = vunpack.c.l.b16 %v299
      %v611 = vunpack.c.l.b16 %v300
      %v612 = vunpack.c.l.b16 %v301
      %v613 = vunpack.c.l.b16 %v302
      %v614 = vunpack.c.l.b16 %v303
      %v615 = vunpack.c.l.b16 %v304
      %v616 = vunpack.c.l.b16 %v305
      %v617 = vunpack.c.l.b16 %v306
      %v618 = vunpack.c.l.b16 %v307
      %v619 = vunpack.c.l.b16 %v308
      %v620 = vunpack.c.l.b16 %v309
      %v621 = vunpack.c.l.b16 %v310
      %v622 = vunpack.c.l.b16 %v311
      %v623 = vunpack.c.l.b16 %v312
      %v624 = vunpack.c.l.b16 %v313
      %v625 = vunpack.c.l.b16 %v314
      %v626 = vunpack.c.l.b16 %v315
      %v627 = vunpack.c.l.b16 %v316
      %v628 = vunpack.c.l.b16 %v317
      %v629 = vunpack.c.l.b16 %v318
      %v630 = vunpack.c.l.b16 %v319
      %v631 = vunpack.c.l.b16 %v320
      %v632 = vunpack.c.l.b16 %v321
      %v633 = vunpack.c.l.b16 %v322
      %v634 = vunpack.c.l.b16 %v323
      %v635 = vunpack.c.l.b16 %v324
      %v636 = vunpack.c.l.b16 %v325
      %v637 = vunpack.c.l.b16 %v326
      %v638 = vunpack.c.l.b16 %v327
      %v639 = vunpack.c.l.b16 %v328
      %v640 = vunpack.c.l.b16 %v329
      %v641 = vunpack.c.l.b16 %v330
      %v642 = vunpack.c.l.b16 %v331
      %v643 = vunpack.c.l.b16 %v332
      %v644 = vunpack.c.l.b16 %v333
      %v645 = vunpack.c.l.b16 %v334
      %v646 = vunpack.c.l.b16 %v335
      %v647 = vunpack.c.l.b16 %v336
      %v648 = vunpack.c.l.b16 %v337
      %v649 = vunpack.c.l.b16 %v338
      %v650 = vunpack.c.l.b16 %v339
      %v651 = vunpack.c.l.b16 %v340
      %v652 = vunpack.c.l.b16 %v341
      %v653 = vunpack.c.l.b16 %v342
      %v654 = vunpack.c.l.b16 %v343
      %v655 = vunpack.c.l.b16 %v344
      %v656 = vunpack.c.l.b16 %v345
      %v657 = vunpack.c.l.b16 %v346
      %v658 = vunpack.c.l.b16 %v347
      %v659 = vunpack.c.l.b16 %v348
      %v660 = vunpack.c.l.b16 %v349
      %v661 = vunpack.c.l.b16 %v350
      %v662 = vunpack.c.l.b16 %v351
      %v663 = vunpack.c.l.b16 %v352
      %v664 = vunpack.c.l.b16 %v353
      %v665 = vunpack.c.l.b16 %v354
      %v666 = vunpack.c.l.b16 %v355
      %v667 = vunpack.c.l.b16 %v356
      %v668 = vunpack.c.l.b16 %v357
      %v669 = vunpack.c.l.b16 %v358
      %v670 = vunpack.c.l.b16 %v359
      %v671 = vunpack.c.l.b16 %v360
      %v672 = vunpack.c.l.b16 %v361
      %v673 = vunpack.c.l.b16 %v362
      %v674 = vunpack.c.l.b16 %v363
      %v675 = vunpack.c.l.b16 %v364
      %v676 = vunpack.c.l.b16 %v365
      %v677 = vunpack.c.l.b16 %v366
      %v678 = vunpack.c.l.b16 %v367
      %v679 = vunpack.c.l.b16 %v368
      %v680 = vunpack.c.l.b16 %v369
      %v681 = vunpack.c.l.b16 %v370
      %v682 = vunpack.c.l.b16 %v371
      %v683 = vunpack.c.l.b16 %v372
      %v684 = vunpack.c.l.b16 %v373
      %v685 = vunpack.c.l.b16 %v374
      %v686 = vunpack.c.l.b16 %v375
      %v687 = vunpack.c.l.b16 %v376
      %v688 = vunpack.c.l.b16 %v377
      %v689 = vunpack.c.l.b16 %v378
      %v690 = vunpack.c.l.b16 %v379
      %v691 = vunpack.c.l.b16 %v380
      %v692 = vunpack.c.l.b16 %v381
      %v693 = vunpack.c.l.b16 %v382
      %v694 = vunpack.c.l.b16 %v383
      %v695 = vunpack.c.l.b16 %v384
      %v696 = vunpack.c.l.b16 %v385
      %v697 = vunpack.c.l.b16 %v386
      %v698 = vunpack.c.l.b16 %v387
      %v699 = vunpack.c.l.b16 %v388
      %v700 = vunpack.c.l.b16 %v389
      %v701 = vunpack.c.l.b16 %v390
      %v702 = vpack.c.b16 %v575, %v574
      %v703 = vpack.c.b16 %v577, %v576
      %v704 = vpack.c.b16 %v579, %v578
      %v705 = vpack.c.b16 %v581, %v580
      %v706 = vpack.c.b16 %v583, %v582
      %v707 = vpack.c.b16 %v585, %v584
      %v708 = vpack.c.b16 %v587, %v586
      %v709 = vpack.c.b16 %v589, %v588
      %v710 = vpack.c.b16 %v591, %v590
      %v711 = vpack.c.b16 %v593, %v592
      %v712 = vpack.c.b16 %v595, %v594
      %v713 = vpack.c.b16 %v597, %v596
      %v714 = vpack.c.b16 %v599, %v598
      %v715 = vpack.c.b16 %v601, %v600
      %v716 = vpack.c.b16 %v603, %v602
      %v717 = vpack.c.b16 %v605, %v604
      %v718 = vpack.c.b16 %v607, %v606
      %v719 = vpack.c.b16 %v609, %v608
      %v720 = vpack.c.b16 %v611, %v610
      %v721 = vpack.c.b16 %v613, %v612
      %v722 = vpack.c.b16 %v615, %v614
      %v723 = vpack.c.b16 %v617, %v616
      %v724 = vpack.c.b16 %v619, %v618
      %v725 = vpack.c.b16 %v621, %v620
      %v726 = vpack.c.b16 %v623, %v622
      %v727 = vpack.c.b16 %v625, %v624
      %v728 = vpack.c.b16 %v627, %v626
      %v729 = vpack.c.b16 %v629, %v628
      %v730 = vpack.c.b16 %v631, %v630
      %v731 = vpack.c.b16 %v633, %v632
      %v732 = vpack.c.b16 %v635, %v634
      %v733 = vpack.c.b16 %v637, %v636
      %v734 = vpack.c.b16 %v639, %v638
      %v735 = vpack.c.b16 %v641, %v640
      %v736 = vpack.c.b16 %v643, %v642
      %v737 = vpack.c.b16 %v645, %v644
      %v738 = vpack.c.b16 %v647, %v646
      %v739 = vpack.c.b16 %v649, %v648
      %v740 = vpack.c.b16 %v651, %v650
      %v741 = vpack.c.b16 %v653, %v652
      %v742 = vpack.c.b16 %v655, %v654
      %v743 = vpack.c.b16 %v657, %v656
      %v744 = vpack.c.b16 %v659, %v658
      %v745 = vpack.c.b16 %v661, %v660
      %v746 = vpack.c.b16 %v663, %v662
      %v747 = vpack.c.b16 %v665, %v664
      %v748 = vpack.c.b16 %v667, %v666
      %v749 = vpack.c.b16 %v669, %v668
      %v750 = vpack.c.b16 %v671, %v670
      %v751 = vpack.c.b16 %v673, %v672
      %v752 = vpack.c.b16 %v675, %v674
      %v753 = vpack.c.b16 %v677, %v676
      %v754 = vpack.c.b16 %v679, %v678
      %v755 = vpack.c.b16 %v681, %v680
      %v756 = vpack.c.b16 %v683, %v682
      %v757 = vpack.c.b16 %v685, %v684
      %v758 = vpack.c.b16 %v687, %v686
      %v759 = vpack.c.b16 %v689, %v688
      %v760 = vpack.c.b16 %v691, %v690
      %v761 = vpack.c.b16 %v693, %v692
      %v762 = vpack.c.b16 %v695, %v694
      %v763 = vpack.c.b16 %v697, %v696
      %v764 = vpack.c.b16 %v699, %v698
      %v765 = vpack.c.b16 %v701, %v700
      %830 = vmatprep.subr.bf16.mxu0 0
      %831 = vmatpush1.bf16.msra.mxu0 %v709
      %832 = vmatprep.subr.bf16.mxu0 0
      %833 = vmatpush1.bf16.msra.mxu0 %v708
      %834 = vmatprep.subr.bf16.mxu0 0
      %835 = vmatpush1.bf16.msra.mxu0 %v707
      %836 = vmatprep.subr.bf16.mxu0 0
      %837 = vmatpush1.bf16.msra.mxu0 %v706
      %838 = vmatprep.subr.bf16.mxu0 0
      %839 = vmatpush1.bf16.msra.mxu0 %v705
      %840 = vmatprep.subr.bf16.mxu0 0
      %841 = vmatpush1.bf16.msra.mxu0 %v704
      %842 = vmatprep.subr.bf16.mxu0 0
      %843 = vmatpush1.bf16.msra.mxu0 %v703
      %844 = vmatprep.subr.bf16.mxu0 0
      %845 = vmatpush1.bf16.msra.mxu0 %v702
      %846 = vmatprep.subr.bf16.mxu0 0
      %847 = vmatpush2.bf16.msra.mxu0 %v717
      %848 = vmatprep.subr.bf16.mxu0 0
      %849 = vmatpush2.bf16.msra.mxu0 %v716
      %850 = vmatprep.subr.bf16.mxu0 0
      %851 = vmatpush2.bf16.msra.mxu0 %v715
      %852 = vmatprep.subr.bf16.mxu0 0
      %853 = vmatpush2.bf16.msra.mxu0 %v714
      %854 = vmatprep.subr.bf16.mxu0 0
      %855 = vmatpush2.bf16.msra.mxu0 %v713
      %856 = vmatprep.subr.bf16.mxu0 0
      %857 = vmatpush2.bf16.msra.mxu0 %v712
      %858 = vmatprep.subr.bf16.mxu0 0
      %859 = vmatpush2.bf16.msra.mxu0 %v711
      %860 = vmatprep.subr.bf16.mxu0 0
      %861 = vmatpush2.bf16.msra.mxu0 %v710
      %862 = vmatprep.mubr.bf16.mxu0 %v431
      %863 = vmatmul.mubr.bf16.gmra.mxu0 %v430
      %v864 = vpop.f32.mrf.mxu0
      %v865 = vadd.f32 %v404, %v864
      %v866 = vpop.f32.mrf.mxu0
      %v867 = vpop.f32.mrf.mxu0
      %v868 = vadd.f32 %v404, %v867
      %v869 = vpop.f32.mrf.mxu0
      %870 = vdwg.mxu0
      %871 = vmatprep.subr.bf16.mxu0 0
      %872 = vmatpush1.bf16.msra.mxu0 %v725
      %873 = vmatprep.subr.bf16.mxu0 0
      %874 = vmatpush1.bf16.msra.mxu0 %v724
      %875 = vmatprep.subr.bf16.mxu0 0
      %876 = vmatpush1.bf16.msra.mxu0 %v723
      %877 = vmatprep.subr.bf16.mxu0 0
      %878 = vmatpush1.bf16.msra.mxu0 %v722
      %879 = vmatprep.subr.bf16.mxu0 0
      %880 = vmatpush1.bf16.msra.mxu0 %v721
      %881 = vmatprep.subr.bf16.mxu0 0
      %882 = vmatpush1.bf16.msra.mxu0 %v720
      %883 = vmatprep.subr.bf16.mxu0 0
      %884 = vmatpush1.bf16.msra.mxu0 %v719
      %885 = vmatprep.subr.bf16.mxu0 0
      %886 = vmatpush1.bf16.msra.mxu0 %v718
      %887 = vmatprep.subr.bf16.mxu0 0
      %888 = vmatpush2.bf16.msra.mxu0 %v733
      %889 = vmatprep.subr.bf16.mxu0 0
      %890 = vmatpush2.bf16.msra.mxu0 %v732
      %891 = vmatprep.subr.bf16.mxu0 0
      %892 = vmatpush2.bf16.msra.mxu0 %v731
      %893 = vmatprep.subr.bf16.mxu0 0
      %894 = vmatpush2.bf16.msra.mxu0 %v730
      %895 = vmatprep.subr.bf16.mxu0 0
      %896 = vmatpush2.bf16.msra.mxu0 %v729
      %897 = vmatprep.subr.bf16.mxu0 0
      %898 = vmatpush2.bf16.msra.mxu0 %v728
      %899 = vmatprep.subr.bf16.mxu0 0
      %900 = vmatpush2.bf16.msra.mxu0 %v727
      %901 = vmatprep.subr.bf16.mxu0 0
      %902 = vmatpush2.bf16.msra.mxu0 %v726
      %903 = vmatprep.mubr.bf16.mxu0 %v433
      %904 = vmatmul.mubr.bf16.gmra.mxu0 %v432
      %v905 = vpop.f32.mrf.mxu0
      %v906 = vadd.f32 %v865, %v905
      %v907 = vpop.f32.mrf.mxu0
      %v908 = vpop.f32.mrf.mxu0
      %v909 = vadd.f32 %v868, %v908
      %v910 = vpop.f32.mrf.mxu0
      %911 = vdwg.mxu0
      %912 = vmatprep.subr.bf16.mxu0 0
      %913 = vmatpush1.bf16.msra.mxu0 %v741
      %914 = vmatprep.subr.bf16.mxu0 0
      %915 = vmatpush1.bf16.msra.mxu0 %v740
      %916 = vmatprep.subr.bf16.mxu0 0
      %917 = vmatpush1.bf16.msra.mxu0 %v739
      %918 = vmatprep.subr.bf16.mxu0 0
      %919 = vmatpush1.bf16.msra.mxu0 %v738
      %920 = vmatprep.subr.bf16.mxu0 0
      %921 = vmatpush1.bf16.msra.mxu0 %v737
      %922 = vmatprep.subr.bf16.mxu0 0
      %923 = vmatpush1.bf16.msra.mxu0 %v736
      %924 = vmatprep.subr.bf16.mxu0 0
      %925 = vmatpush1.bf16.msra.mxu0 %v735
      %926 = vmatprep.subr.bf16.mxu0 0
      %927 = vmatpush1.bf16.msra.mxu0 %v734
      %928 = vmatprep.subr.bf16.mxu0 0
      %929 = vmatpush2.bf16.msra.mxu0 %v749
      %930 = vmatprep.subr.bf16.mxu0 0
      %931 = vmatpush2.bf16.msra.mxu0 %v748
      %932 = vmatprep.subr.bf16.mxu0 0
      %933 = vmatpush2.bf16.msra.mxu0 %v747
      %934 = vmatprep.subr.bf16.mxu0 0
      %935 = vmatpush2.bf16.msra.mxu0 %v746
      %936 = vmatprep.subr.bf16.mxu0 0
      %937 = vmatpush2.bf16.msra.mxu0 %v745
      %938 = vmatprep.subr.bf16.mxu0 0
      %939 = vmatpush2.bf16.msra.mxu0 %v744
      %940 = vmatprep.subr.bf16.mxu0 0
      %941 = vmatpush2.bf16.msra.mxu0 %v743
      %942 = vmatprep.subr.bf16.mxu0 0
      %943 = vmatpush2.bf16.msra.mxu0 %v742
      %944 = vmatprep.mubr.bf16.mxu0 %v435
      %945 = vmatmul.mubr.bf16.gmra.mxu0 %v434
      %v946 = vpop.f32.mrf.mxu0
      %v947 = vadd.f32 %v906, %v946
      %v948 = vpop.f32.mrf.mxu0
      %v949 = vpop.f32.mrf.mxu0
      %v950 = vadd.f32 %v909, %v949
      %v951 = vpop.f32.mrf.mxu0
      %952 = vdwg.mxu0
      %953 = vmatprep.subr.bf16.mxu0 0
      %954 = vmatpush1.bf16.msra.mxu0 %v757
      %955 = vmatprep.subr.bf16.mxu0 0
      %956 = vmatpush1.bf16.msra.mxu0 %v756
      %957 = vmatprep.subr.bf16.mxu0 0
      %958 = vmatpush1.bf16.msra.mxu0 %v755
      %959 = vmatprep.subr.bf16.mxu0 0
      %960 = vmatpush1.bf16.msra.mxu0 %v754
      %961 = vmatprep.subr.bf16.mxu0 0
      %962 = vmatpush1.bf16.msra.mxu0 %v753
      %963 = vmatprep.subr.bf16.mxu0 0
      %964 = vmatpush1.bf16.msra.mxu0 %v752
      %965 = vmatprep.subr.bf16.mxu0 0
      %966 = vmatpush1.bf16.msra.mxu0 %v751
      %967 = vmatprep.subr.bf16.mxu0 0
      %968 = vmatpush1.bf16.msra.mxu0 %v750
      %969 = vmatprep.subr.bf16.mxu0 0
      %970 = vmatpush2.bf16.msra.mxu0 %v765
      %971 = vmatprep.subr.bf16.mxu0 0
      %972 = vmatpush2.bf16.msra.mxu0 %v764
      %973 = vmatprep.subr.bf16.mxu0 0
      %974 = vmatpush2.bf16.msra.mxu0 %v763
      %975 = vmatprep.subr.bf16.mxu0 0
      %976 = vmatpush2.bf16.msra.mxu0 %v762
      %977 = vmatprep.subr.bf16.mxu0 0
      %978 = vmatpush2.bf16.msra.mxu0 %v761
      %979 = vmatprep.subr.bf16.mxu0 0
      %980 = vmatpush2.bf16.msra.mxu0 %v760
      %981 = vmatprep.subr.bf16.mxu0 0
      %982 = vmatpush2.bf16.msra.mxu0 %v759
      %983 = vmatprep.subr.bf16.mxu0 0
      %984 = vmatpush2.bf16.msra.mxu0 %v758
      %985 = vmatprep.mubr.bf16.mxu0 %v437
      %986 = vmatmul.mubr.bf16.gmra.mxu0 %v436
      %v987 = vpop.f32.mrf.mxu0
      %v988 = vadd.f32 %v947, %v987
      %v989 = vpop.f32.mrf.mxu0
      %v990 = vpop.f32.mrf.mxu0
      %v991 = vadd.f32 %v950, %v990
      %v992 = vpop.f32.mrf.mxu0
      %993 = vdwg.mxu0
      %v994 = vmax.f32 %v988, 0.0
      %v995 = vmax.f32 %v991, 0.0
      %v996 = vpack.c.bf16 %v995, %v994
      %v998 = vunpack.c.l.b16 %v996
      %v999 = vunpack.c.h.b16 %v996
      %v1000 = vpack.c.b16 %v998, %v998
      %v1001 = vpack.c.b16 %v999, %v999
      %1004 = vst [vmem:[%s257] sm:$0xf] %v1000
      %1005 = vst [vmem:[%s257 + $0x4] sm:$0xf] %v1001
      %s1006 = smul.u32 2, %s20
      %p1007 = scmp.lt.s32.totalorder %s19, 3
      %s1008 = scalar_select %p1007, %s19, 3
      %p1009 = scmp.lt.s32.totalorder %s1006, 1
      %s1010 = scalar_select %p1009, %s1006, 1
      %p1011 = scmp.lt.s32.totalorder %s21, 0
      %s1012 = scalar_select %p1011, %s21, 0
      %s1013 = sadd.s32 %s1012, %s1010
      %s1014 = smul.addr %s1008, 2
      %s1015 = sadd.s32 %s1013, %s1014
      %s1016 = smul.addr %s1015, 4
      %s1017 = scalar_lea.vmem %s3, %s1016
      // Predicated region
      $region33: #{generator_forward.9} parent=31 // pred_check
        %p1018 = pneg %p135
      $region34: #{generator_forward.9} parent=31 // pred_check_branch
        %1020 = sbr.rel (%p1018) target = $region36
      $region35: #{generator_forward.9} parent=31 // pred_region
        %s1021 = smul.u32 2, %s20
      $region36: #{generator_forward.9} parent=31 // pred_fallthru
        _
    $region32: #{generator_forward.9} parent=5 // pred_fallthru
      _
    %p1022 = scmp.le.s32.totalorder 2, %s9
    // Predicated region
    $region37: #{generator_forward.9} parent=5 // pred_check
      %p1023 = pneg %p1022
    $region38: #{generator_forward.9} parent=5 // pred_check_branch
      %1025 = sbr.rel (%p1023) target = $region40
    $region39: #{generator_forward.9} parent=5 // pred_region
      %s1026 = ssub.s32 %s9, 2
      // Predicated region
      $region41: #{generator_forward.9} parent=39 // pred_check
        %p1027 = pneg %p141
      $region42: #{generator_forward.9} parent=39 // pred_check_branch
        %1029 = sbr.rel (%p1027) target = $region44
      $region43: #{generator_forward.9} parent=39 // pred_region
        %s1030 = smul.u32 2, %s23
        %p1031 = scmp.lt.s32.totalorder %s22, 3
        %s1032 = scalar_select %p1031, %s22, 3
        %p1033 = scmp.lt.s32.totalorder %s1030, 1
        %s1034 = scalar_select %p1033, %s1030, 1
        %p1035 = scmp.lt.s32.totalorder %s24, 0
        %s1036 = scalar_select %p1035, %s24, 0
        %s1037 = sadd.s32 %s1036, %s1034
        %s1038 = smul.addr %s1032, 2
        %s1039 = sadd.s32 %s1037, %s1038
        %s1040 = smul.addr %s1039, 4
        %s1041 = scalar_lea.vmem %s3, %s1040
      $region44: #{generator_forward.9} parent=39 // pred_fallthru
        _
    $region40: #{generator_forward.9} parent=5 // pred_fallthru
      _
  $region6: #{generator_forward.9} parent=0 // loop_footer
    %s13 = sadd.s32 1, %s9
  $region7: #{generator_forward.9} parent=0 // loop_footer_branch
    %8 = sbr.rel target = $region3
  $region8: #{generator_forward.9} parent=0 // loop_exit
    _

// kernel: generator_forward.10
$region0: #{generator_forward.10}
  #allocation0 [shape = 'u32[]', space=smem, size = 0x4, offset = 0x4, fixed_abs, tag = 'smem constant byte address 0x4 - core index']
  #allocation1 [shape = 'u32[144,128]{1,0:T(1,128)}', space=vmem, size = 0x12000, scoped, tag = 'internal scratch']
  %s0 = inlined_call_operand.vmem [shape: bf16[4,32,512], index: 0, kind: input, shape index: {}]
  %s1 = inlined_call_operand.vmem [shape: bf16[4,512,128], index: 1, kind: input, shape index: {}]
  %s2 = inlined_call_operand.vmem [shape: f32[1,128], index: 2, kind: input, shape index: {}]
  %s3 = inlined_call_operand.vmem [shape: bf16[4,32,128], index: 3, kind: output, shape index: {}]
  %s4 = sld [smem:[#allocation0]]
  $region45: #{generator_forward.10} parent=0
    _
  %s6 = ssub.s32 1, %s4
  %s7 = scalar_select 0, %s6, %s4
  loop: start=0, step=1, limit=6
  $region2: #{generator_forward.10} parent=0 // loop_pre_header
    _
  $region3: #{generator_forward.10} parent=0 // loop_header
    %s9 = sphi 0, %s13
    %p10 = scmp.ge.s32.totalorder %s9, 6
    %s16 = sphi 0, %s35
    %s17 = sphi 0, %s31
    %s18 = sphi 0, %s27
    %s19 = sphi 0, %s16
    %s20 = sphi 0, %s17
    %s21 = sphi 0, %s18
    %s22 = sphi 0, %s19
    %s23 = sphi 0, %s20
    %s24 = sphi 0, %s21
    %s40 = sphi 0, %s42
    %s43 = sphi 0, %s40
    %s44 = sphi 0, %s43
    %s60 = sphi 0, %s44
    %s66 = sphi 0, %s68
    %s69 = sphi 0, %s66
    %s70 = sphi 0, %s69
    %s86 = sphi 0, %s70
    %s92 = sphi 0, %s94
    %s95 = sphi 0, %s92
    %s96 = sphi 0, %s95
    %s112 = sphi 0, %s96
    %s122 = sphi 0, %s124
    %s125 = sphi 0, %s122
    %s126 = sphi 0, %s125
    %s142 = sphi 0, %s126
  $region4: #{generator_forward.10} parent=0 // loop_header_branch
    %12 = sbr.rel (%p10) target = $region8
  $region5: #{generator_forward.10} parent=0 // loop_body
    %s14 = ssub.s32 %s9, 1
    %s15 = ssub.s32 %s9, 2
    %s25 = sadd.s32 1, %s18
    %p26 = scmp.ge.s32.totalorder %s25, 1
    %s27 = scalar_select %p26, 0, %s25
    %s28 = sadd.s32 1, %s17
    %s29 = scalar_select %p26, %s28, %s17
    %p30 = scmp.ge.s32.totalorder %s29, 1
    %s31 = scalar_select %p30, 0, %s29
    %s32 = sadd.s32 1, %s16
    %s33 = scalar_select %p30, %s32, %s16
    %p34 = scmp.ge.s32.totalorder %s33, 4
    %s35 = scalar_select %p34, 0, %s33
    %s36 = ssub.s32 %s16, %s35
    %s37 = ssub.s32 %s17, %s31
    %s38 = sor.u32 %s36, %s37
    %p39 = scmp.eq.s32.totalorder %s38, 0
    %s41 = sadd.s32 %s40, 1
    %s42 = scalar_select %p39, %s40, %s41
    %p45 = pneg %p39
    %p46 = scmp.eq.s32.totalorder %s9, 3
    %p47 = por %p45, %p46
    %p48 = scmp.ne.s32.totalorder %s40, %s43
    %p49 = scmp.eq.s32.totalorder %s9, 0
    %p50 = por %p48, %p49
    %p51 = scmp.ne.s32.totalorder %s40, %s43
    %p52 = scmp.eq.s32.totalorder %s14, 3
    %p53 = por %p51, %p52
    %p54 = scmp.ne.s32.totalorder %s43, %s44
    %p55 = scmp.eq.s32.totalorder %s14, 0
    %p56 = por %p54, %p55
    %p57 = scmp.ne.s32.totalorder %s43, %s44
    %p58 = scmp.eq.s32.totalorder %s15, 3
    %p59 = por %p57, %p58
    %p61 = scmp.ne.s32.totalorder %s44, %s60
    %p62 = scmp.eq.s32.totalorder %s15, 0
    %p63 = por %p61, %p62
    %s64 = ssub.s32 %s18, %s27
    %p65 = scmp.eq.s32.totalorder %s64, 0
    %s67 = sadd.s32 %s66, 1
    %s68 = scalar_select %p65, %s66, %s67
    %p71 = pneg %p65
    %p72 = scmp.eq.s32.totalorder %s9, 3
    %p73 = por %p71, %p72
    %p74 = scmp.ne.s32.totalorder %s66, %s69
    %p75 = scmp.eq.s32.totalorder %s9, 0
    %p76 = por %p74, %p75
    %p77 = scmp.ne.s32.totalorder %s66, %s69
    %p78 = scmp.eq.s32.totalorder %s14, 3
    %p79 = por %p77, %p78
    %p80 = scmp.ne.s32.totalorder %s69, %s70
    %p81 = scmp.eq.s32.totalorder %s14, 0
    %p82 = por %p80, %p81
    %p83 = scmp.ne.s32.totalorder %s69, %s70
    %p84 = scmp.eq.s32.totalorder %s15, 3
    %p85 = por %p83, %p84
    %p87 = scmp.ne.s32.totalorder %s70, %s86
    %p88 = scmp.eq.s32.totalorder %s15, 0
    %p89 = por %p87, %p88
    %s90 = ssub.s32 %s18, %s27
    %p91 = scmp.eq.s32.totalorder %s90, 0
    %s93 = sadd.s32 %s92, 1
    %s94 = scalar_select %p91, %s92, %s93
    %p97 = pneg %p91
    %p98 = scmp.eq.s32.totalorder %s9, 3
    %p99 = por %p97, %p98
    %p100 = scmp.ne.s32.totalorder %s92, %s95
    %p101 = scmp.eq.s32.totalorder %s9, 0
    %p102 = por %p100, %p101
    %p103 = scmp.ne.s32.totalorder %s92, %s95
    %p104 = scmp.eq.s32.totalorder %s14, 3
    %p105 = por %p103, %p104
    %p106 = scmp.ne.s32.totalorder %s95, %s96
    %p107 = scmp.eq.s32.totalorder %s14, 0
    %p108 = por %p106, %p107
    %p109 = scmp.ne.s32.totalorder %s95, %s96
    %p110 = scmp.eq.s32.totalorder %s15, 3
    %p111 = por %p109, %p110
    %p113 = scmp.ne.s32.totalorder %s96, %s112
    %p114 = scmp.eq.s32.totalorder %s15, 0
    %p115 = por %p113, %p114
    %s116 = ssub.s32 %s16, %s35
    %s117 = ssub.s32 %s17, %s31
    %s118 = sor.u32 %s116, %s117
    %s119 = ssub.s32 %s18, %s27
    %s120 = sor.u32 %s118, %s119
    %p121 = scmp.eq.s32.totalorder %s120, 0
    %s123 = sadd.s32 %s122, 1
    %s124 = scalar_select %p121, %s122, %s123
    %p127 = pneg %p121
    %p128 = scmp.eq.s32.totalorder %s9, 3
    %p129 = por %p127, %p128
    %p130 = scmp.ne.s32.totalorder %s122, %s125
    %p131 = scmp.eq.s32.totalorder %s9, 0
    %p132 = por %p130, %p131
    %p133 = scmp.ne.s32.totalorder %s122, %s125
    %p134 = scmp.eq.s32.totalorder %s14, 3
    %p135 = por %p133, %p134
    %p136 = scmp.ne.s32.totalorder %s125, %s126
    %p137 = scmp.eq.s32.totalorder %s14, 0
    %p138 = por %p136, %p137
    %p139 = scmp.ne.s32.totalorder %s125, %s126
    %p140 = scmp.eq.s32.totalorder %s15, 3
    %p141 = por %p139, %p140
    %p143 = scmp.ne.s32.totalorder %s126, %s142
    %p144 = scmp.eq.s32.totalorder %s15, 0
    %p145 = por %p143, %p144
    %p146 = scmp.le.s32.totalorder 1, %s9
    %p147 = scmp.lt.s32.totalorder %s9, 5
    %p148 = pnand %p146, %p147
    %p149 = pneg %p148
    // Predicated region
    $region9: #{generator_forward.10} parent=5 // pred_check
      _
    $region10: #{generator_forward.10} parent=5 // pred_check_branch
      %151 = sbr.rel (%p148) target = $region12
    $region11: #{generator_forward.10} parent=5 // pred_region
      %s152 = ssub.s32 %s9, 1
      // Predicated region
      $region13: #{generator_forward.10} parent=11 // pred_check
        %p153 = pneg %p82
      $region14: #{generator_forward.10} parent=11 // pred_check_branch
        %155 = sbr.rel (%p153) target = $region16
      $region15: #{generator_forward.10} parent=11 // pred_region
        %p156 = scmp.lt.s32.totalorder %s21, 0
        %s157 = scalar_select %p156, %s21, 0
        %s158 = smul.addr %s157, 4
        %s159 = scalar_lea.vmem %s1, %s158
      $region16: #{generator_forward.10} parent=11 // pred_fallthru
        _
      // Predicated region
      $region17: #{generator_forward.10} parent=11 // pred_check
        %p160 = pneg %p108
      $region18: #{generator_forward.10} parent=11 // pred_check_branch
        %162 = sbr.rel (%p160) target = $region20
      $region19: #{generator_forward.10} parent=11 // pred_region
        %p163 = scmp.lt.s32.totalorder %s21, 0
        %s164 = scalar_select %p163, %s21, 0
        %s165 = scalar_lea.vmem %s2, %s164
      $region20: #{generator_forward.10} parent=11 // pred_fallthru
        _
    $region12: #{generator_forward.10} parent=5 // pred_fallthru
      _
    %p166 = scmp.lt.s32.totalorder %s9, 4
    // Predicated region
    $region21: #{generator_forward.10} parent=5 // pred_check
      %p167 = pneg %p166
    $region22: #{generator_forward.10} parent=5 // pred_check_branch
      %169 = sbr.rel (%p167) target = $region24
    $region23: #{generator_forward.10} parent=5 // pred_region
      // Predicated region
      $region25: #{generator_forward.10} parent=23 // pred_check
        %p170 = pneg %p50
      $region26: #{generator_forward.10} parent=23 // pred_check_branch
        %172 = sbr.rel (%p170) target = $region28
      $region27: #{generator_forward.10} parent=23 // pred_region
        %s173 = smul.u32 4, %s17
        %p174 = scmp.lt.s32.totalorder %s16, 3
        %s175 = scalar_select %p174, %s16, 3
        %p176 = scmp.lt.s32.totalorder %s173, 3
        %s177 = scalar_select %p176, %s173, 3
        %s178 = smul.addr %s177, 4
        %s179 = smul.addr %s175, 16
        %s180 = sadd.s32 %s178, %s179
        %s181 = smul.addr %s180, 4
        %s182 = scalar_lea.vmem %s0, %s181
        %s183 = smul.u32 4, %s17
      $region28: #{generator_forward.10} parent=23 // pred_fallthru
        _
    $region24: #{generator_forward.10} parent=5 // pred_fallthru
      _
    %p184 = scmp.le.s32.totalorder 1, %s9
    %p185 = scmp.lt.s32.totalorder %s9, 5
    %p186 = pnand %p184, %p185
    %p187 = pneg %p186
    // Predicated region
    $region29: #{generator_forward.10} parent=5 // pred_check
      _
    $region30: #{generator_forward.10} parent=5 // pred_check_branch
      %189 = sbr.rel (%p186) target = $region32
    $region31: #{generator_forward.10} parent=5 // pred_region
      %s190 = ssub.s32 %s9, 1
      %s191 = smul.u32 4, %s20
      %p192 = scmp.lt.s32.totalorder %s19, 3
      %s193 = scalar_select %p192, %s19, 3
      %p194 = scmp.lt.s32.totalorder %s191, 3
      %s195 = scalar_select %p194, %s191, 3
      %s196 = smul.addr %s195, 4
      %s197 = smul.addr %s193, 16
      %s198 = sadd.s32 %s196, %s197
      %s199 = smul.addr %s198, 4
      %s200 = scalar_lea.vmem %s0, %s199
      %p201 = pneg %p56
      %p202 = pneg %p53
      %p203 = scmp.lt.s32.totalorder %s21, 0
      %s204 = scalar_select %p203, %s21, 0
      %s205 = smul.addr %s204, 4
      %s206 = scalar_lea.vmem %s1, %s205
      %p207 = pneg %p82
      %p208 = pneg %p79
      %p209 = scmp.lt.s32.totalorder %s21, 0
      %s210 = scalar_select %p209, %s21, 0
      %s211 = scalar_lea.vmem %s2, %s210
      %p212 = pneg %p108
      %p213 = pneg %p105
      %p214 = pneg %p138
      %p215 = pneg %p135
      %s216 = smul.u32 4, %s20
      %p217 = scmp.lt.s32.totalorder %s19, 3
      %s218 = scalar_select %p217, %s19, 3
      %p219 = scmp.lt.s32.totalorder %s216, 3
      %s220 = scalar_select %p219, %s216, 3
      %p221 = scmp.lt.s32.totalorder %s21, 0
      %s222 = scalar_select %p221, %s21, 0
      %s223 = sadd.s32 %s222, %s220
      %s224 = smul.addr %s218, 4
      %s225 = sadd.s32 %s223, %s224
      %s226 = smul.addr %s225, 4
      %s227 = scalar_lea.vmem %s3, %s226
      %s228 = smul.u32 4, %s20
      %p229 = scmp.lt.s32.totalorder %s19, 3
      %s230 = scalar_select %p229, %s19, 3
      %p231 = scmp.lt.s32.totalorder %s228, 3
      %s232 = scalar_select %p231, %s228, 3
      %s233 = smul.addr %s232, 4
      %s234 = smul.addr %s230, 16
      %s235 = sadd.s32 %s233, %s234
      %s236 = smul.addr %s235, 4
      %s237 = scalar_lea.vmem %s0, %s236
      %s238 = smul.u32 4, %s20
      %p239 = scmp.lt.s32.totalorder %s21, 0
      %s240 = scalar_select %p239, %s21, 0
      %s241 = smul.addr %s240, 4
      %s242 = scalar_lea.vmem %s1, %s241
      %p243 = scmp.lt.s32.totalorder %s21, 0
      %s244 = scalar_select %p243, %s21, 0
      %s245 = scalar_lea.vmem %s2, %s244
      %s246 = smul.u32 4, %s20
      %p247 = scmp.lt.s32.totalorder %s19, 3
      %s248 = scalar_select %p247, %s19, 3
      %p249 = scmp.lt.s32.totalorder %s246, 3
      %s250 = scalar_select %p249, %s246, 3
      %p251 = scmp.lt.s32.totalorder %s21, 0
      %s252 = scalar_select %p251, %s21, 0
      %s253 = sadd.s32 %s252, %s250
      %s254 = smul.addr %s248, 4
      %s255 = sadd.s32 %s253, %s254
      %s256 = smul.addr %s255, 4
      %s257 = scalar_lea.vmem %s3, %s256
      %s258 = smul.u32 4, %s20
      %s260 = smul.u32 %s19, 64
      %s261 = smul.addr %s260, 4
      %s262 = scalar_lea.vmem %s242, %s261
      %v263 = vld [vmem:[%s262] sm:$0xf]
      %v264 = vld [vmem:[%s262 + $0x4] sm:$0xf]
      %v265 = vld [vmem:[%s262 + $0x8] sm:$0xf]
      %v266 = vld [vmem:[%s262 + $0xc] sm:$0xf]
      %v267 = vld [vmem:[%s262 + $0x10] sm:$0xf]
      %v268 = vld [vmem:[%s262 + $0x14] sm:$0xf]
      %v269 = vld [vmem:[%s262 + $0x18] sm:$0xf]
      %v270 = vld [vmem:[%s262 + $0x1c] sm:$0xf]
      %v271 = vld [vmem:[%s262 + $0x20] sm:$0xf]
      %v272 = vld [vmem:[%s262 + $0x24] sm:$0xf]
      %v273 = vld [vmem:[%s262 + $0x28] sm:$0xf]
      %v274 = vld [vmem:[%s262 + $0x2c] sm:$0xf]
      %v275 = vld [vmem:[%s262 + $0x30] sm:$0xf]
      %v276 = vld [vmem:[%s262 + $0x34] sm:$0xf]
      %v277 = vld [vmem:[%s262 + $0x38] sm:$0xf]
      %v278 = vld [vmem:[%s262 + $0x3c] sm:$0xf]
      %v279 = vld [vmem:[%s262 + $0x40] sm:$0xf]
      %v280 = vld [vmem:[%s262 + $0x44] sm:$0xf]
      %v281 = vld [vmem:[%s262 + $0x48] sm:$0xf]
      %v282 = vld [vmem:[%s262 + $0x4c] sm:$0xf]
      %v283 = vld [vmem:[%s262 + $0x50] sm:$0xf]
      %v284 = vld [vmem:[%s262 + $0x54] sm:$0xf]
      %v285 = vld [vmem:[%s262 + $0x58] sm:$0xf]
      %v286 = vld [vmem:[%s262 + $0x5c] sm:$0xf]
      %v287 = vld [vmem:[%s262 + $0x60] sm:$0xf]
      %v288 = vld [vmem:[%s262 + $0x64] sm:$0xf]
      %v289 = vld [vmem:[%s262 + $0x68] sm:$0xf]
      %v290 = vld [vmem:[%s262 + $0x6c] sm:$0xf]
      %v291 = vld [vmem:[%s262 + $0x70] sm:$0xf]
      %v292 = vld [vmem:[%s262 + $0x74] sm:$0xf]
      %v293 = vld [vmem:[%s262 + $0x78] sm:$0xf]
      %v294 = vld [vmem:[%s262 + $0x7c] sm:$0xf]
      %v295 = vld [vmem:[%s262 + $0x80] sm:$0xf]
      %v296 = vld [vmem:[%s262 + $0x84] sm:$0xf]
      %v297 = vld [vmem:[%s262 + $0x88] sm:$0xf]
      %v298 = vld [vmem:[%s262 + $0x8c] sm:$0xf]
      %v299 = vld [vmem:[%s262 + $0x90] sm:$0xf]
      %v300 = vld [vmem:[%s262 + $0x94] sm:$0xf]
      %v301 = vld [vmem:[%s262 + $0x98] sm:$0xf]
      %v302 = vld [vmem:[%s262 + $0x9c] sm:$0xf]
      %v303 = vld [vmem:[%s262 + $0xa0] sm:$0xf]
      %v304 = vld [vmem:[%s262 + $0xa4] sm:$0xf]
      %v305 = vld [vmem:[%s262 + $0xa8] sm:$0xf]
      %v306 = vld [vmem:[%s262 + $0xac] sm:$0xf]
      %v307 = vld [vmem:[%s262 + $0xb0] sm:$0xf]
      %v308 = vld [vmem:[%s262 + $0xb4] sm:$0xf]
      %v309 = vld [vmem:[%s262 + $0xb8] sm:$0xf]
      %v310 = vld [vmem:[%s262 + $0xbc] sm:$0xf]
      %v311 = vld [vmem:[%s262 + $0xc0] sm:$0xf]
      %v312 = vld [vmem:[%s262 + $0xc4] sm:$0xf]
      %v313 = vld [vmem:[%s262 + $0xc8] sm:$0xf]
      %v314 = vld [vmem:[%s262 + $0xcc] sm:$0xf]
      %v315 = vld [vmem:[%s262 + $0xd0] sm:$0xf]
      %v316 = vld [vmem:[%s262 + $0xd4] sm:$0xf]
      %v317 = vld [vmem:[%s262 + $0xd8] sm:$0xf]
      %v318 = vld [vmem:[%s262 + $0xdc] sm:$0xf]
      %v319 = vld [vmem:[%s262 + $0xe0] sm:$0xf]
      %v320 = vld [vmem:[%s262 + $0xe4] sm:$0xf]
      %v321 = vld [vmem:[%s262 + $0xe8] sm:$0xf]
      %v322 = vld [vmem:[%s262 + $0xec] sm:$0xf]
      %v323 = vld [vmem:[%s262 + $0xf0] sm:$0xf]
      %v324 = vld [vmem:[%s262 + $0xf4] sm:$0xf]
      %v325 = vld [vmem:[%s262 + $0xf8] sm:$0xf]
      %v326 = vld [vmem:[%s262 + $0xfc] sm:$0xf]
      %v327 = vld [vmem:[%s237] sm:$0xff]
      %v328 = vld [vmem:[%s237 + $0x8] sm:$0xff]
      %v329 = vld [vmem:[%s237 + $0x10] sm:$0xff]
      %v330 = vld [vmem:[%s237 + $0x18] sm:$0xff]
      %v331 = vld [vmem:[%s237 + $0x20] sm:$0xff]
      %v332 = vld [vmem:[%s237 + $0x28] sm:$0xff]
      %v333 = vld [vmem:[%s237 + $0x30] sm:$0xff]
      %v334 = vld [vmem:[%s237 + $0x38] sm:$0xff]
      %v335 = vld [vmem:[%s245] sm:$0x1]
      %v337 = vlaneseq
      %v338 = vshrl.u32 %v337, 7
      %v339 = vsub.s32 0, %v338
      %v340 = vrot.slane %v335, %v339
      %v350 = vunpack.c.l.b16 %v327
      %v351 = vunpack.c.h.b16 %v327
      %v352 = vunpack.c.l.b16 %v328
      %v353 = vunpack.c.h.b16 %v328
      %v354 = vunpack.c.l.b16 %v329
      %v355 = vunpack.c.h.b16 %v329
      %v356 = vunpack.c.l.b16 %v330
      %v357 = vunpack.c.h.b16 %v330
      %v358 = vunpack.c.l.b16 %v331
      %v359 = vunpack.c.h.b16 %v331
      %v360 = vunpack.c.l.b16 %v332
      %v361 = vunpack.c.h.b16 %v332
      %v362 = vunpack.c.l.b16 %v333
      %v363 = vunpack.c.h.b16 %v333
      %v364 = vunpack.c.l.b16 %v334
      %v365 = vunpack.c.h.b16 %v334
      %v366 = vpack.c.b16 %v354, %v350
      %v367 = vpack.c.b16 %v355, %v351
      %v368 = vpack.c.b16 %v356, %v352
      %v369 = vpack.c.b16 %v357, %v353
      %v370 = vpack.c.b16 %v362, %v358
      %v371 = vpack.c.b16 %v363, %v359
      %v372 = vpack.c.b16 %v364, %v360
      %v373 = vpack.c.b16 %v365, %v361
      %v446 = vunpack.c.l.b16 %v263
      %v447 = vunpack.c.l.b16 %v264
      %v448 = vunpack.c.l.b16 %v265
      %v449 = vunpack.c.l.b16 %v266
      %v450 = vunpack.c.l.b16 %v267
      %v451 = vunpack.c.l.b16 %v268
      %v452 = vunpack.c.l.b16 %v269
      %v453 = vunpack.c.l.b16 %v270
      %v454 = vunpack.c.l.b16 %v271
      %v455 = vunpack.c.l.b16 %v272
      %v456 = vunpack.c.l.b16 %v273
      %v457 = vunpack.c.l.b16 %v274
      %v458 = vunpack.c.l.b16 %v275
      %v459 = vunpack.c.l.b16 %v276
      %v460 = vunpack.c.l.b16 %v277
      %v461 = vunpack.c.l.b16 %v278
      %v462 = vunpack.c.l.b16 %v279
      %v463 = vunpack.c.l.b16 %v280
      %v464 = vunpack.c.l.b16 %v281
      %v465 = vunpack.c.l.b16 %v282
      %v466 = vunpack.c.l.b16 %v283
      %v467 = vunpack.c.l.b16 %v284
      %v468 = vunpack.c.l.b16 %v285
      %v469 = vunpack.c.l.b16 %v286
      %v470 = vunpack.c.l.b16 %v287
      %v471 = vunpack.c.l.b16 %v288
      %v472 = vunpack.c.l.b16 %v289
      %v473 = vunpack.c.l.b16 %v290
      %v474 = vunpack.c.l.b16 %v291
      %v475 = vunpack.c.l.b16 %v292
      %v476 = vunpack.c.l.b16 %v293
      %v477 = vunpack.c.l.b16 %v294
      %v478 = vunpack.c.l.b16 %v295
      %v479 = vunpack.c.l.b16 %v296
      %v480 = vunpack.c.l.b16 %v297
      %v481 = vunpack.c.l.b16 %v298
      %v482 = vunpack.c.l.b16 %v299
      %v483 = vunpack.c.l.b16 %v300
      %v484 = vunpack.c.l.b16 %v301
      %v485 = vunpack.c.l.b16 %v302
      %v486 = vunpack.c.l.b16 %v303
      %v487 = vunpack.c.l.b16 %v304
      %v488 = vunpack.c.l.b16 %v305
      %v489 = vunpack.c.l.b16 %v306
      %v490 = vunpack.c.l.b16 %v307
      %v491 = vunpack.c.l.b16 %v308
      %v492 = vunpack.c.l.b16 %v309
      %v493 = vunpack.c.l.b16 %v310
      %v494 = vunpack.c.l.b16 %v311
      %v495 = vunpack.c.l.b16 %v312
      %v496 = vunpack.c.l.b16 %v313
      %v497 = vunpack.c.l.b16 %v314
      %v498 = vunpack.c.l.b16 %v315
      %v499 = vunpack.c.l.b16 %v316
      %v500 = vunpack.c.l.b16 %v317
      %v501 = vunpack.c.l.b16 %v318
      %v502 = vunpack.c.l.b16 %v319
      %v503 = vunpack.c.l.b16 %v320
      %v504 = vunpack.c.l.b16 %v321
      %v505 = vunpack.c.l.b16 %v322
      %v506 = vunpack.c.l.b16 %v323
      %v507 = vunpack.c.l.b16 %v324
      %v508 = vunpack.c.l.b16 %v325
      %v509 = vunpack.c.l.b16 %v326
      %v510 = vpack.c.b16 %v447, %v446
      %v511 = vpack.c.b16 %v449, %v448
      %v512 = vpack.c.b16 %v451, %v450
      %v513 = vpack.c.b16 %v453, %v452
      %v514 = vpack.c.b16 %v455, %v454
      %v515 = vpack.c.b16 %v457, %v456
      %v516 = vpack.c.b16 %v459, %v458
      %v517 = vpack.c.b16 %v461, %v460
      %v518 = vpack.c.b16 %v463, %v462
      %v519 = vpack.c.b16 %v465, %v464
      %v520 = vpack.c.b16 %v467, %v466
      %v521 = vpack.c.b16 %v469, %v468
      %v522 = vpack.c.b16 %v471, %v470
      %v523 = vpack.c.b16 %v473, %v472
      %v524 = vpack.c.b16 %v475, %v474
      %v525 = vpack.c.b16 %v477, %v476
      %v526 = vpack.c.b16 %v479, %v478
      %v527 = vpack.c.b16 %v481, %v480
      %v528 = vpack.c.b16 %v483, %v482
      %v529 = vpack.c.b16 %v485, %v484
      %v530 = vpack.c.b16 %v487, %v486
      %v531 = vpack.c.b16 %v489, %v488
      %v532 = vpack.c.b16 %v491, %v490
      %v533 = vpack.c.b16 %v493, %v492
      %v534 = vpack.c.b16 %v495, %v494
      %v535 = vpack.c.b16 %v497, %v496
      %v536 = vpack.c.b16 %v499, %v498
      %v537 = vpack.c.b16 %v501, %v500
      %v538 = vpack.c.b16 %v503, %v502
      %v539 = vpack.c.b16 %v505, %v504
      %v540 = vpack.c.b16 %v507, %v506
      %v541 = vpack.c.b16 %v509, %v508
      %574 = vmatprep.subr.bf16.mxu0 0
      %575 = vmatpush1.bf16.msra.mxu0 %v517
      %576 = vmatprep.subr.bf16.mxu0 0
      %577 = vmatpush1.bf16.msra.mxu0 %v516
      %578 = vmatprep.subr.bf16.mxu0 0
      %579 = vmatpush1.bf16.msra.mxu0 %v515
      %580 = vmatprep.subr.bf16.mxu0 0
      %581 = vmatpush1.bf16.msra.mxu0 %v514
      %582 = vmatprep.subr.bf16.mxu0 0
      %583 = vmatpush1.bf16.msra.mxu0 %v513
      %584 = vmatprep.subr.bf16.mxu0 0
      %585 = vmatpush1.bf16.msra.mxu0 %v512
      %586 = vmatprep.subr.bf16.mxu0 0
      %587 = vmatpush1.bf16.msra.mxu0 %v511
      %588 = vmatprep.subr.bf16.mxu0 0
      %589 = vmatpush1.bf16.msra.mxu0 %v510
      %590 = vmatprep.subr.bf16.mxu0 0
      %591 = vmatpush2.bf16.msra.mxu0 %v525
      %592 = vmatprep.subr.bf16.mxu0 0
      %593 = vmatpush2.bf16.msra.mxu0 %v524
      %594 = vmatprep.subr.bf16.mxu0 0
      %595 = vmatpush2.bf16.msra.mxu0 %v523
      %596 = vmatprep.subr.bf16.mxu0 0
      %597 = vmatpush2.bf16.msra.mxu0 %v522
      %598 = vmatprep.subr.bf16.mxu0 0
      %599 = vmatpush2.bf16.msra.mxu0 %v521
      %600 = vmatprep.subr.bf16.mxu0 0
      %601 = vmatpush2.bf16.msra.mxu0 %v520
      %602 = vmatprep.subr.bf16.mxu0 0
      %603 = vmatpush2.bf16.msra.mxu0 %v519
      %604 = vmatprep.subr.bf16.mxu0 0
      %605 = vmatpush2.bf16.msra.mxu0 %v518
      %606 = vmatprep.mubr.bf16.mxu0 %v367
      %607 = vmatmul.mubr.bf16.gmra.mxu0 %v366
      %v608 = vpop.f32.mrf.mxu0
      %v609 = vadd.f32 %v340, %v608
      %v610 = vpop.f32.mrf.mxu0
      %v611 = vpop.f32.mrf.mxu0
      %v612 = vadd.f32 %v340, %v611
      %v613 = vpop.f32.mrf.mxu0
      %614 = vmatprep.mubr.bf16.mxu0 %v371
      %615 = vmatmul.mubr.bf16.gmra.mxu0 %v370
      %v616 = vpop.f32.mrf.mxu0
      %v617 = vadd.f32 %v340, %v616
      %v618 = vpop.f32.mrf.mxu0
      %v619 = vpop.f32.mrf.mxu0
      %v620 = vadd.f32 %v340, %v619
      %v621 = vpop.f32.mrf.mxu0
      %622 = vdwg.mxu0
      %623 = vmatprep.subr.bf16.mxu0 0
      %624 = vmatpush1.bf16.msra.mxu0 %v533
      %625 = vmatprep.subr.bf16.mxu0 0
      %626 = vmatpush1.bf16.msra.mxu0 %v532
      %627 = vmatprep.subr.bf16.mxu0 0
      %628 = vmatpush1.bf16.msra.mxu0 %v531
      %629 = vmatprep.subr.bf16.mxu0 0
      %630 = vmatpush1.bf16.msra.mxu0 %v530
      %631 = vmatprep.subr.bf16.mxu0 0
      %632 = vmatpush1.bf16.msra.mxu0 %v529
      %633 = vmatprep.subr.bf16.mxu0 0
      %634 = vmatpush1.bf16.msra.mxu0 %v528
      %635 = vmatprep.subr.bf16.mxu0 0
      %636 = vmatpush1.bf16.msra.mxu0 %v527
      %637 = vmatprep.subr.bf16.mxu0 0
      %638 = vmatpush1.bf16.msra.mxu0 %v526
      %639 = vmatprep.subr.bf16.mxu0 0
      %640 = vmatpush2.bf16.msra.mxu0 %v541
      %641 = vmatprep.subr.bf16.mxu0 0
      %642 = vmatpush2.bf16.msra.mxu0 %v540
      %643 = vmatprep.subr.bf16.mxu0 0
      %644 = vmatpush2.bf16.msra.mxu0 %v539
      %645 = vmatprep.subr.bf16.mxu0 0
      %646 = vmatpush2.bf16.msra.mxu0 %v538
      %647 = vmatprep.subr.bf16.mxu0 0
      %648 = vmatpush2.bf16.msra.mxu0 %v537
      %649 = vmatprep.subr.bf16.mxu0 0
      %650 = vmatpush2.bf16.msra.mxu0 %v536
      %651 = vmatprep.subr.bf16.mxu0 0
      %652 = vmatpush2.bf16.msra.mxu0 %v535
      %653 = vmatprep.subr.bf16.mxu0 0
      %654 = vmatpush2.bf16.msra.mxu0 %v534
      %655 = vmatprep.mubr.bf16.mxu0 %v369
      %656 = vmatmul.mubr.bf16.gmra.mxu0 %v368
      %v657 = vpop.f32.mrf.mxu0
      %v658 = vadd.f32 %v609, %v657
      %v659 = vpop.f32.mrf.mxu0
      %v660 = vpop.f32.mrf.mxu0
      %v661 = vadd.f32 %v612, %v660
      %v662 = vpop.f32.mrf.mxu0
      %663 = vmatprep.mubr.bf16.mxu0 %v373
      %664 = vmatmul.mubr.bf16.gmra.mxu0 %v372
      %v665 = vpop.f32.mrf.mxu0
      %v666 = vadd.f32 %v617, %v665
      %v667 = vpop.f32.mrf.mxu0
      %v668 = vpop.f32.mrf.mxu0
      %v669 = vadd.f32 %v620, %v668
      %v670 = vpop.f32.mrf.mxu0
      %671 = vdwg.mxu0
      %v672 = vmax.f32 %v658, 0.0
      %v673 = vmax.f32 %v661, 0.0
      %v674 = vmax.f32 %v666, 0.0
      %v675 = vmax.f32 %v669, 0.0
      %v676 = vpack.c.bf16 %v673, %v672
      %v677 = vpack.c.bf16 %v675, %v674
      %v680 = vunpack.c.l.b16 %v676
      %v681 = vunpack.c.h.b16 %v676
      %v682 = vunpack.c.l.b16 %v677
      %v683 = vunpack.c.h.b16 %v677
      %v684 = vpack.c.b16 %v680, %v680
      %v685 = vpack.c.b16 %v681, %v681
      %v686 = vpack.c.b16 %v682, %v682
      %v687 = vpack.c.b16 %v683, %v683
      %692 = vst [vmem:[%s257] sm:$0xf] %v684
      %693 = vst [vmem:[%s257 + $0x4] sm:$0xf] %v685
      %694 = vst [vmem:[%s257 + $0x8] sm:$0xf] %v686
      %695 = vst [vmem:[%s257 + $0xc] sm:$0xf] %v687
      %s696 = smul.u32 4, %s20
      %p697 = scmp.lt.s32.totalorder %s19, 3
      %s698 = scalar_select %p697, %s19, 3
      %p699 = scmp.lt.s32.totalorder %s696, 3
      %s700 = scalar_select %p699, %s696, 3
      %p701 = scmp.lt.s32.totalorder %s21, 0
      %s702 = scalar_select %p701, %s21, 0
      %s703 = sadd.s32 %s702, %s700
      %s704 = smul.addr %s698, 4
      %s705 = sadd.s32 %s703, %s704
      %s706 = smul.addr %s705, 4
      %s707 = scalar_lea.vmem %s3, %s706
      // Predicated region
      $region33: #{generator_forward.10} parent=31 // pred_check
        %p708 = pneg %p135
      $region34: #{generator_forward.10} parent=31 // pred_check_branch
        %710 = sbr.rel (%p708) target = $region36
      $region35: #{generator_forward.10} parent=31 // pred_region
        %s711 = smul.u32 4, %s20
      $region36: #{generator_forward.10} parent=31 // pred_fallthru
        _
    $region32: #{generator_forward.10} parent=5 // pred_fallthru
      _
    %p712 = scmp.le.s32.totalorder 2, %s9
    // Predicated region
    $region37: #{generator_forward.10} parent=5 // pred_check
      %p713 = pneg %p712
    $region38: #{generator_forward.10} parent=5 // pred_check_branch
      %715 = sbr.rel (%p713) target = $region40
    $region39: #{generator_forward.10} parent=5 // pred_region
      %s716 = ssub.s32 %s9, 2
      // Predicated region
      $region41: #{generator_forward.10} parent=39 // pred_check
        %p717 = pneg %p141
      $region42: #{generator_forward.10} parent=39 // pred_check_branch
        %719 = sbr.rel (%p717) target = $region44
      $region43: #{generator_forward.10} parent=39 // pred_region
        %s720 = smul.u32 4, %s23
        %p721 = scmp.lt.s32.totalorder %s22, 3
        %s722 = scalar_select %p721, %s22, 3
        %p723 = scmp.lt.s32.totalorder %s720, 3
        %s724 = scalar_select %p723, %s720, 3
        %p725 = scmp.lt.s32.totalorder %s24, 0
        %s726 = scalar_select %p725, %s24, 0
        %s727 = sadd.s32 %s726, %s724
        %s728 = smul.addr %s722, 4
        %s729 = sadd.s32 %s727, %s728
        %s730 = smul.addr %s729, 4
        %s731 = scalar_lea.vmem %s3, %s730
      $region44: #{generator_forward.10} parent=39 // pred_fallthru
        _
    $region40: #{generator_forward.10} parent=5 // pred_fallthru
      _
  $region6: #{generator_forward.10} parent=0 // loop_footer
    %s13 = sadd.s32 1, %s9
  $region7: #{generator_forward.10} parent=0 // loop_footer_branch
    %8 = sbr.rel target = $region3
  $region8: #{generator_forward.10} parent=0 // loop_exit
    _

// kernel: generator_forward.8
$region0: #{generator_forward.8}
  #allocation0 [shape = 'u32[]', space=smem, size = 0x4, offset = 0x4, fixed_abs, tag = 'smem constant byte address 0x4 - core index']
  #allocation1 [shape = 'u32[144,128]{1,0:T(1,128)}', space=vmem, size = 0x12000, scoped, tag = 'internal scratch']
  %s0 = inlined_call_operand.vmem [shape: bf16[1,16,2048], index: 0, kind: input, shape index: {}]
  %s1 = inlined_call_operand.vmem [shape: bf16[1,2048,256], index: 1, kind: input, shape index: {}]
  %s2 = inlined_call_operand.vmem [shape: f32[1,256], index: 2, kind: input, shape index: {}]
  %s3 = inlined_call_operand.vmem [shape: bf16[1,16,256], index: 3, kind: output, shape index: {}]
  %s4 = sld [smem:[#allocation0]]
  $region123: #{generator_forward.8} parent=0
    _
  %s6 = ssub.s32 1, %s4
  %s7 = scalar_select 0, %s6, %s4
  $region1: #{generator_forward.8} parent=0
    #allocation2 [shape = 'u8[1048576]{0}', space=vmem, size = 0x100000, scoped, tag = 'input window, operand 1']
    #allocation3 [shape = 'u8[8192]{0}', space=vmem, size = 0x2000, scoped, tag = 'output window, operand 0']
    loop: start=0, step=1, limit=4
    $region2: #{generator_forward.8} parent=1 // loop_pre_header
      _
    $region3: #{generator_forward.8} parent=1 // loop_header
      %s9 = sphi 0, %s13
      %p10 = scmp.ge.s32.totalorder %s9, 4
      %s16 = sphi 0, %s35
      %s17 = sphi 0, %s31
      %s18 = sphi 0, %s27
      %s19 = sphi 0, %s16
      %s20 = sphi 0, %s17
      %s21 = sphi 0, %s18
      %s22 = sphi 0, %s19
      %s23 = sphi 0, %s20
      %s24 = sphi 0, %s21
      %s40 = sphi 0, %s42
      %s43 = sphi 0, %s40
      %s44 = sphi 0, %s43
      %s60 = sphi 0, %s44
      %s66 = sphi 0, %s68
      %s69 = sphi 0, %s66
      %s70 = sphi 0, %s69
      %s86 = sphi 0, %s70
      %s92 = sphi 0, %s94
      %s95 = sphi 0, %s92
      %s96 = sphi 0, %s95
      %s112 = sphi 0, %s96
      %s122 = sphi 0, %s124
      %s125 = sphi 0, %s122
      %s126 = sphi 0, %s125
      %s142 = sphi 0, %s126
    $region4: #{generator_forward.8} parent=1 // loop_header_branch
      %12 = sbr.rel (%p10) target = $region8
    $region5: #{generator_forward.8} parent=1 // loop_body
      %s14 = ssub.s32 %s9, 1
      %s15 = ssub.s32 %s9, 2
      %s25 = sadd.s32 1, %s18
      %p26 = scmp.ge.s32.totalorder %s25, 2
      %s27 = scalar_select %p26, 0, %s25
      %s28 = sadd.s32 1, %s17
      %s29 = scalar_select %p26, %s28, %s17
      %p30 = scmp.ge.s32.totalorder %s29, 1
      %s31 = scalar_select %p30, 0, %s29
      %s32 = sadd.s32 1, %s16
      %s33 = scalar_select %p30, %s32, %s16
      %p34 = scmp.ge.s32.totalorder %s33, 1
      %s35 = scalar_select %p34, 0, %s33
      %s36 = ssub.s32 %s16, %s35
      %s37 = ssub.s32 %s17, %s31
      %s38 = sor.u32 %s36, %s37
      %p39 = scmp.eq.s32.totalorder %s38, 0
      %s41 = sadd.s32 %s40, 1
      %s42 = scalar_select %p39, %s40, %s41
      %p45 = pneg %p39
      %p46 = scmp.eq.s32.totalorder %s9, 1
      %p47 = por %p45, %p46
      %p48 = scmp.ne.s32.totalorder %s40, %s43
      %p49 = scmp.eq.s32.totalorder %s9, 0
      %p50 = por %p48, %p49
      %p51 = scmp.ne.s32.totalorder %s40, %s43
      %p52 = scmp.eq.s32.totalorder %s14, 1
      %p53 = por %p51, %p52
      %p54 = scmp.ne.s32.totalorder %s43, %s44
      %p55 = scmp.eq.s32.totalorder %s14, 0
      %p56 = por %p54, %p55
      %p57 = scmp.ne.s32.totalorder %s43, %s44
      %p58 = scmp.eq.s32.totalorder %s15, 1
      %p59 = por %p57, %p58
      %p61 = scmp.ne.s32.totalorder %s44, %s60
      %p62 = scmp.eq.s32.totalorder %s15, 0
      %p63 = por %p61, %p62
      %s64 = ssub.s32 %s18, %s27
      %p65 = scmp.eq.s32.totalorder %s64, 0
      %s67 = sadd.s32 %s66, 1
      %s68 = scalar_select %p65, %s66, %s67
      %p71 = pneg %p65
      %p72 = scmp.eq.s32.totalorder %s9, 1
      %p73 = por %p71, %p72
      %p74 = scmp.ne.s32.totalorder %s66, %s69
      %p75 = scmp.eq.s32.totalorder %s9, 0
      %p76 = por %p74, %p75
      %p77 = scmp.ne.s32.totalorder %s66, %s69
      %p78 = scmp.eq.s32.totalorder %s14, 1
      %p79 = por %p77, %p78
      %p80 = scmp.ne.s32.totalorder %s69, %s70
      %p81 = scmp.eq.s32.totalorder %s14, 0
      %p82 = por %p80, %p81
      %p83 = scmp.ne.s32.totalorder %s69, %s70
      %p84 = scmp.eq.s32.totalorder %s15, 1
      %p85 = por %p83, %p84
      %p87 = scmp.ne.s32.totalorder %s70, %s86
      %p88 = scmp.eq.s32.totalorder %s15, 0
      %p89 = por %p87, %p88
      %s90 = ssub.s32 %s18, %s27
      %p91 = scmp.eq.s32.totalorder %s90, 0
      %s93 = sadd.s32 %s92, 1
      %s94 = scalar_select %p91, %s92, %s93
      %p97 = pneg %p91
      %p98 = scmp.eq.s32.totalorder %s9, 1
      %p99 = por %p97, %p98
      %p100 = scmp.ne.s32.totalorder %s92, %s95
      %p101 = scmp.eq.s32.totalorder %s9, 0
      %p102 = por %p100, %p101
      %p103 = scmp.ne.s32.totalorder %s92, %s95
      %p104 = scmp.eq.s32.totalorder %s14, 1
      %p105 = por %p103, %p104
      %p106 = scmp.ne.s32.totalorder %s95, %s96
      %p107 = scmp.eq.s32.totalorder %s14, 0
      %p108 = por %p106, %p107
      %p109 = scmp.ne.s32.totalorder %s95, %s96
      %p110 = scmp.eq.s32.totalorder %s15, 1
      %p111 = por %p109, %p110
      %p113 = scmp.ne.s32.totalorder %s96, %s112
      %p114 = scmp.eq.s32.totalorder %s15, 0
      %p115 = por %p113, %p114
      %s116 = ssub.s32 %s16, %s35
      %s117 = ssub.s32 %s17, %s31
      %s118 = sor.u32 %s116, %s117
      %s119 = ssub.s32 %s18, %s27
      %s120 = sor.u32 %s118, %s119
      %p121 = scmp.eq.s32.totalorder %s120, 0
      %s123 = sadd.s32 %s122, 1
      %s124 = scalar_select %p121, %s122, %s123
      %p127 = pneg %p121
      %p128 = scmp.eq.s32.totalorder %s9, 1
      %p129 = por %p127, %p128
      %p130 = scmp.ne.s32.totalorder %s122, %s125
      %p131 = scmp.eq.s32.totalorder %s9, 0
      %p132 = por %p130, %p131
      %p133 = scmp.ne.s32.totalorder %s122, %s125
      %p134 = scmp.eq.s32.totalorder %s14, 1
      %p135 = por %p133, %p134
      %p136 = scmp.ne.s32.totalorder %s125, %s126
      %p137 = scmp.eq.s32.totalorder %s14, 0
      %p138 = por %p136, %p137
      %p139 = scmp.ne.s32.totalorder %s125, %s126
      %p140 = scmp.eq.s32.totalorder %s15, 1
      %p141 = por %p139, %p140
      %p143 = scmp.ne.s32.totalorder %s126, %s142
      %p144 = scmp.eq.s32.totalorder %s15, 0
      %p145 = por %p143, %p144
      %p146 = scmp.le.s32.totalorder 1, %s9
      %p147 = scmp.lt.s32.totalorder %s9, 3
      %p148 = pnand %p146, %p147
      %p149 = pneg %p148
      // Predicated region
      $region9: #{generator_forward.8} parent=5 // pred_check
        _
      $region10: #{generator_forward.8} parent=5 // pred_check_branch
        %151 = sbr.rel (%p148) target = $region12
      $region11: #{generator_forward.8} parent=5 // pred_region
        %s152 = ssub.s32 %s9, 1
        // Predicated region
        $region13: #{generator_forward.8} parent=11 // pred_check
          %p153 = pneg %p56
        $region14: #{generator_forward.8} parent=11 // pred_check_branch
          %155 = sbr.rel (%p153) target = $region16
        $region15: #{generator_forward.8} parent=11 // pred_region
          %s156 = smul.u32 2, %s20
          %p157 = scmp.lt.s32.totalorder %s19, 0
          %s158 = scalar_select %p157, %s19, 0
          %p159 = scmp.lt.s32.totalorder %s156, 1
          %s160 = scalar_select %p159, %s156, 1
          %s161 = smul.addr %s160, 16
          %s162 = smul.addr %s158, 32
          %s163 = sadd.s32 %s161, %s162
          %s164 = smul.addr %s163, 4
          %s165 = scalar_lea.vmem %s0, %s164
          %s166 = smul.u32 2, %s20
        $region16: #{generator_forward.8} parent=11 // pred_fallthru
          _
      $region12: #{generator_forward.8} parent=5 // pred_fallthru
        _
      %p167 = scmp.lt.s32.totalorder %s9, 2
      // Predicated region
      $region17: #{generator_forward.8} parent=5 // pred_check
        %p168 = pneg %p167
      $region18: #{generator_forward.8} parent=5 // pred_check_branch
        %170 = sbr.rel (%p168) target = $region20
      $region19: #{generator_forward.8} parent=5 // pred_region
        // Predicated region
        $region21: #{generator_forward.8} parent=19 // pred_check
          %p171 = pneg %p76
        $region22: #{generator_forward.8} parent=19 // pred_check_branch
          %173 = sbr.rel (%p171) target = $region24
        $region23: #{generator_forward.8} parent=19 // pred_region
          %s174 = sand.u32 %s66, 1
          %s175 = sand.u32 %s66, 1
          %s176 = smul.addr %s175, 1024
          %s177 = scalar_lea.vmem [#allocation2], %s176
          %s178 = smul.addr %s18, 4
          %s179 = scalar_lea.vmem %s1, %s178
          // Predicated region
          $region25: #{generator_forward.8} parent=23 // pred_check
            _
          $region26: #{generator_forward.8} parent=23 // pred_check_branch
            %181 = sbr.rel (0) target = $region28
          $region27: #{generator_forward.8} parent=23 // pred_region
            // Predicated region
            $region29: #{generator_forward.8} parent=27 // pred_check
              _
            $region30: #{generator_forward.8} parent=27 // pred_check_branch
              %183 = sbr.rel target = $region32
            $region31: #{generator_forward.8} parent=27 // pred_region
              // Predicated region
              $region44: #{generator_forward.8} parent=31 // pred_check
                _
              $region45: #{generator_forward.8} parent=31 // pred_check_branch
                %709 = sbr.rel (0) target = $region47
              $region46: #{generator_forward.8} parent=31 // pred_region
                loop: start=0, step=1, limit=1
                $region48: #{generator_forward.8} parent=46 // loop_pre_header
                  _
                $region49: #{generator_forward.8} parent=46 // loop_header
                  %s711 = sphi 0, %s715
                  %p712 = scmp.ge.s32.totalorder %s711, 1
                  %s716 = sphi %s179, %s179
                  %s717 = sphi %s177, %s177
                $region50: #{generator_forward.8} parent=46 // loop_header_branch
                  %714 = sbr.rel (%p712) target = $region54
                $region51: #{generator_forward.8} parent=46 // loop_body
                  _
                $region52: #{generator_forward.8} parent=46 // loop_footer
                  %s715 = sadd.s32 1, %s711
                $region53: #{generator_forward.8} parent=46 // loop_footer_branch
                  %710 = sbr.rel target = $region49
                $region54: #{generator_forward.8} parent=46 // loop_exit
                  _
                %s719 = ssub.s32 16, 1
                loop: start=0, step=1, limit=1
                $region55: #{generator_forward.8} parent=46 // loop_pre_header
                  _
                $region56: #{generator_forward.8} parent=46 // loop_header
                  %s721 = sphi 0, %s725
                  %p722 = scmp.ge.s32.totalorder %s721, 1
                  %s726 = sphi %s179, %s179
                  %s727 = sphi %s177, %s177
                $region57: #{generator_forward.8} parent=46 // loop_header_branch
                  %724 = sbr.rel (%p722) target = $region61
                $region58: #{generator_forward.8} parent=46 // loop_body
                  %v728 = vld [vmem:[%s726] sm:%s719]
                  %729 = vst [vmem:[%s727] sm:%s719] %v728
                  %v730 = vld [vmem:[%s726 + $0x8] sm:%s719]
                  %731 = vst [vmem:[%s727 + $0x4] sm:%s719] %v730
                  %v732 = vld [vmem:[%s726 + $0x10] sm:%s719]
                  %733 = vst [vmem:[%s727 + $0x8] sm:%s719] %v732
                  %v734 = vld [vmem:[%s726 + $0x18] sm:%s719]
                  %735 = vst [vmem:[%s727 + $0xc] sm:%s719] %v734
                  %v736 = vld [vmem:[%s726 + $0x20] sm:%s719]
                  %737 = vst [vmem:[%s727 + $0x10] sm:%s719] %v736
                  %v738 = vld [vmem:[%s726 + $0x28] sm:%s719]
                  %739 = vst [vmem:[%s727 + $0x14] sm:%s719] %v738
                  %v740 = vld [vmem:[%s726 + $0x30] sm:%s719]
                  %741 = vst [vmem:[%s727 + $0x18] sm:%s719] %v740
                  %v742 = vld [vmem:[%s726 + $0x38] sm:%s719]
                  %743 = vst [vmem:[%s727 + $0x1c] sm:%s719] %v742
                  %v744 = vld [vmem:[%s726 + $0x40] sm:%s719]
                  %745 = vst [vmem:[%s727 + $0x20] sm:%s719] %v744
                  %v746 = vld [vmem:[%s726 + $0x48] sm:%s719]
                  %747 = vst [vmem:[%s727 + $0x24] sm:%s719] %v746
                  %v748 = vld [vmem:[%s726 + $0x50] sm:%s719]
                  %749 = vst [vmem:[%s727 + $0x28] sm:%s719] %v748
                  %v750 = vld [vmem:[%s726 + $0x58] sm:%s719]
                  %751 = vst [vmem:[%s727 + $0x2c] sm:%s719] %v750
                  %v752 = vld [vmem:[%s726 + $0x60] sm:%s719]
                  %753 = vst [vmem:[%s727 + $0x30] sm:%s719] %v752
                  %v754 = vld [vmem:[%s726 + $0x68] sm:%s719]
                  %755 = vst [vmem:[%s727 + $0x34] sm:%s719] %v754
                  %v756 = vld [vmem:[%s726 + $0x70] sm:%s719]
                  %757 = vst [vmem:[%s727 + $0x38] sm:%s719] %v756
                  %v758 = vld [vmem:[%s726 + $0x78] sm:%s719]
                  %759 = vst [vmem:[%s727 + $0x3c] sm:%s719] %v758
                  %v760 = vld [vmem:[%s726 + $0x80] sm:%s719]
                  %761 = vst [vmem:[%s727 + $0x40] sm:%s719] %v760
                  %v762 = vld [vmem:[%s726 + $0x88] sm:%s719]
                  %763 = vst [vmem:[%s727 + $0x44] sm:%s719] %v762
                  %v764 = vld [vmem:[%s726 + $0x90] sm:%s719]
                  %765 = vst [vmem:[%s727 + $0x48] sm:%s719] %v764
                  %v766 = vld [vmem:[%s726 + $0x98] sm:%s719]
                  %767 = vst [vmem:[%s727 + $0x4c] sm:%s719] %v766
                  %v768 = vld [vmem:[%s726 + $0xa0] sm:%s719]
                  %769 = vst [vmem:[%s727 + $0x50] sm:%s719] %v768
                  %v770 = vld [vmem:[%s726 + $0xa8] sm:%s719]
                  %771 = vst [vmem:[%s727 + $0x54] sm:%s719] %v770
                  %v772 = vld [vmem:[%s726 + $0xb0] sm:%s719]
                  %773 = vst [vmem:[%s727 + $0x58] sm:%s719] %v772
                  %v774 = vld [vmem:[%s726 + $0xb8] sm:%s719]
                  %775 = vst [vmem:[%s727 + $0x5c] sm:%s719] %v774
                  %v776 = vld [vmem:[%s726 + $0xc0] sm:%s719]
                  %777 = vst [vmem:[%s727 + $0x60] sm:%s719] %v776
                  %v778 = vld [vmem:[%s726 + $0xc8] sm:%s719]
                  %779 = vst [vmem:[%s727 + $0x64] sm:%s719] %v778
                  %v780 = vld [vmem:[%s726 + $0xd0] sm:%s719]
                  %781 = vst [vmem:[%s727 + $0x68] sm:%s719] %v780
                  %v782 = vld [vmem:[%s726 + $0xd8] sm:%s719]
                  %783 = vst [vmem:[%s727 + $0x6c] sm:%s719] %v782
                  %v784 = vld [vmem:[%s726 + $0xe0] sm:%s719]
                  %785 = vst [vmem:[%s727 + $0x70] sm:%s719] %v784
                  %v786 = vld [vmem:[%s726 + $0xe8] sm:%s719]
                  %787 = vst [vmem:[%s727 + $0x74] sm:%s719] %v786
                  %v788 = vld [vmem:[%s726 + $0xf0] sm:%s719]
                  %789 = vst [vmem:[%s727 + $0x78] sm:%s719] %v788
                  %v790 = vld [vmem:[%s726 + $0xf8] sm:%s719]
                  %791 = vst [vmem:[%s727 + $0x7c] sm:%s719] %v790
                  %v792 = vld [vmem:[%s726 + $0x100] sm:%s719]
                  %793 = vst [vmem:[%s727 + $0x80] sm:%s719] %v792
                  %v794 = vld [vmem:[%s726 + $0x108] sm:%s719]
                  %795 = vst [vmem:[%s727 + $0x84] sm:%s719] %v794
                  %v796 = vld [vmem:[%s726 + $0x110] sm:%s719]
                  %797 = vst [vmem:[%s727 + $0x88] sm:%s719] %v796
                  %v798 = vld [vmem:[%s726 + $0x118] sm:%s719]
                  %799 = vst [vmem:[%s727 + $0x8c] sm:%s719] %v798
                  %v800 = vld [vmem:[%s726 + $0x120] sm:%s719]
                  %801 = vst [vmem:[%s727 + $0x90] sm:%s719] %v800
                  %v802 = vld [vmem:[%s726 + $0x128] sm:%s719]
                  %803 = vst [vmem:[%s727 + $0x94] sm:%s719] %v802
                  %v804 = vld [vmem:[%s726 + $0x130] sm:%s719]
                  %805 = vst [vmem:[%s727 + $0x98] sm:%s719] %v804
                  %v806 = vld [vmem:[%s726 + $0x138] sm:%s719]
                  %807 = vst [vmem:[%s727 + $0x9c] sm:%s719] %v806
                  %v808 = vld [vmem:[%s726 + $0x140] sm:%s719]
                  %809 = vst [vmem:[%s727 + $0xa0] sm:%s719] %v808
                  %v810 = vld [vmem:[%s726 + $0x148] sm:%s719]
                  %811 = vst [vmem:[%s727 + $0xa4] sm:%s719] %v810
                  %v812 = vld [vmem:[%s726 + $0x150] sm:%s719]
                  %813 = vst [vmem:[%s727 + $0xa8] sm:%s719] %v812
                  %v814 = vld [vmem:[%s726 + $0x158] sm:%s719]
                  %815 = vst [vmem:[%s727 + $0xac] sm:%s719] %v814
                  %v816 = vld [vmem:[%s726 + $0x160] sm:%s719]
                  %817 = vst [vmem:[%s727 + $0xb0] sm:%s719] %v816
                  %v818 = vld [vmem:[%s726 + $0x168] sm:%s719]
                  %819 = vst [vmem:[%s727 + $0xb4] sm:%s719] %v818
                  %v820 = vld [vmem:[%s726 + $0x170] sm:%s719]
                  %821 = vst [vmem:[%s727 + $0xb8] sm:%s719] %v820
                  %v822 = vld [vmem:[%s726 + $0x178] sm:%s719]
                  %823 = vst [vmem:[%s727 + $0xbc] sm:%s719] %v822
                  %v824 = vld [vmem:[%s726 + $0x180] sm:%s719]
                  %825 = vst [vmem:[%s727 + $0xc0] sm:%s719] %v824
                  %v826 = vld [vmem:[%s726 + $0x188] sm:%s719]
                  %827 = vst [vmem:[%s727 + $0xc4] sm:%s719] %v826
                  %v828 = vld [vmem:[%s726 + $0x190] sm:%s719]
                  %829 = vst [vmem:[%s727 + $0xc8] sm:%s719] %v828
                  %v830 = vld [vmem:[%s726 + $0x198] sm:%s719]
                  %831 = vst [vmem:[%s727 + $0xcc] sm:%s719] %v830
                  %v832 = vld [vmem:[%s726 + $0x1a0] sm:%s719]
                  %833 = vst [vmem:[%s727 + $0xd0] sm:%s719] %v832
                  %v834 = vld [vmem:[%s726 + $0x1a8] sm:%s719]
                  %835 = vst [vmem:[%s727 + $0xd4] sm:%s719] %v834
                  %v836 = vld [vmem:[%s726 + $0x1b0] sm:%s719]
                  %837 = vst [vmem:[%s727 + $0xd8] sm:%s719] %v836
                  %v838 = vld [vmem:[%s726 + $0x1b8] sm:%s719]
                  %839 = vst [vmem:[%s727 + $0xdc] sm:%s719] %v838
                  %v840 = vld [vmem:[%s726 + $0x1c0] sm:%s719]
                  %841 = vst [vmem:[%s727 + $0xe0] sm:%s719] %v840
                  %v842 = vld [vmem:[%s726 + $0x1c8] sm:%s719]
                  %843 = vst [vmem:[%s727 + $0xe4] sm:%s719] %v842
                  %v844 = vld [vmem:[%s726 + $0x1d0] sm:%s719]
                  %845 = vst [vmem:[%s727 + $0xe8] sm:%s719] %v844
                  %v846 = vld [vmem:[%s726 + $0x1d8] sm:%s719]
                  %847 = vst [vmem:[%s727 + $0xec] sm:%s719] %v846
                  %v848 = vld [vmem:[%s726 + $0x1e0] sm:%s719]
                  %849 = vst [vmem:[%s727 + $0xf0] sm:%s719] %v848
                  %v850 = vld [vmem:[%s726 + $0x1e8] sm:%s719]
                  %851 = vst [vmem:[%s727 + $0xf4] sm:%s719] %v850
                  %v852 = vld [vmem:[%s726 + $0x1f0] sm:%s719]
                  %853 = vst [vmem:[%s727 + $0xf8] sm:%s719] %v852
                  %v854 = vld [vmem:[%s726 + $0x1f8] sm:%s719]
                  %855 = vst [vmem:[%s727 + $0xfc] sm:%s719] %v854
                  %v856 = vld [vmem:[%s726 + $0x200] sm:%s719]
                  %857 = vst [vmem:[%s727 + $0x100] sm:%s719] %v856
                  %v858 = vld [vmem:[%s726 + $0x208] sm:%s719]
                  %859 = vst [vmem:[%s727 + $0x104] sm:%s719] %v858
                  %v860 = vld [vmem:[%s726 + $0x210] sm:%s719]
                  %861 = vst [vmem:[%s727 + $0x108] sm:%s719] %v860
                  %v862 = vld [vmem:[%s726 + $0x218] sm:%s719]
                  %863 = vst [vmem:[%s727 + $0x10c] sm:%s719] %v862
                  %v864 = vld [vmem:[%s726 + $0x220] sm:%s719]
                  %865 = vst [vmem:[%s727 + $0x110] sm:%s719] %v864
                  %v866 = vld [vmem:[%s726 + $0x228] sm:%s719]
                  %867 = vst [vmem:[%s727 + $0x114] sm:%s719] %v866
                  %v868 = vld [vmem:[%s726 + $0x230] sm:%s719]
                  %869 = vst [vmem:[%s727 + $0x118] sm:%s719] %v868
                  %v870 = vld [vmem:[%s726 + $0x238] sm:%s719]
                  %871 = vst [vmem:[%s727 + $0x11c] sm:%s719] %v870
                  %v872 = vld [vmem:[%s726 + $0x240] sm:%s719]
                  %873 = vst [vmem:[%s727 + $0x120] sm:%s719] %v872
                  %v874 = vld [vmem:[%s726 + $0x248] sm:%s719]
                  %875 = vst [vmem:[%s727 + $0x124] sm:%s719] %v874
                  %v876 = vld [vmem:[%s726 + $0x250] sm:%s719]
                  %877 = vst [vmem:[%s727 + $0x128] sm:%s719] %v876
                  %v878 = vld [vmem:[%s726 + $0x258] sm:%s719]
                  %879 = vst [vmem:[%s727 + $0x12c] sm:%s719] %v878
                  %v880 = vld [vmem:[%s726 + $0x260] sm:%s719]
                  %881 = vst [vmem:[%s727 + $0x130] sm:%s719] %v880
                  %v882 = vld [vmem:[%s726 + $0x268] sm:%s719]
                  %883 = vst [vmem:[%s727 + $0x134] sm:%s719] %v882
                  %v884 = vld [vmem:[%s726 + $0x270] sm:%s719]
                  %885 = vst [vmem:[%s727 + $0x138] sm:%s719] %v884
                  %v886 = vld [vmem:[%s726 + $0x278] sm:%s719]
                  %887 = vst [vmem:[%s727 + $0x13c] sm:%s719] %v886
                  %v888 = vld [vmem:[%s726 + $0x280] sm:%s719]
                  %889 = vst [vmem:[%s727 + $0x140] sm:%s719] %v888
                  %v890 = vld [vmem:[%s726 + $0x288] sm:%s719]
                  %891 = vst [vmem:[%s727 + $0x144] sm:%s719] %v890
                  %v892 = vld [vmem:[%s726 + $0x290] sm:%s719]
                  %893 = vst [vmem:[%s727 + $0x148] sm:%s719] %v892
                  %v894 = vld [vmem:[%s726 + $0x298] sm:%s719]
                  %895 = vst [vmem:[%s727 + $0x14c] sm:%s719] %v894
                  %v896 = vld [vmem:[%s726 + $0x2a0] sm:%s719]
                  %897 = vst [vmem:[%s727 + $0x150] sm:%s719] %v896
                  %v898 = vld [vmem:[%s726 + $0x2a8] sm:%s719]
                  %899 = vst [vmem:[%s727 + $0x154] sm:%s719] %v898
                  %v900 = vld [vmem:[%s726 + $0x2b0] sm:%s719]
                  %901 = vst [vmem:[%s727 + $0x158] sm:%s719] %v900
                  %v902 = vld [vmem:[%s726 + $0x2b8] sm:%s719]
                  %903 = vst [vmem:[%s727 + $0x15c] sm:%s719] %v902
                  %v904 = vld [vmem:[%s726 + $0x2c0] sm:%s719]
                  %905 = vst [vmem:[%s727 + $0x160] sm:%s719] %v904
                  %v906 = vld [vmem:[%s726 + $0x2c8] sm:%s719]
                  %907 = vst [vmem:[%s727 + $0x164] sm:%s719] %v906
                  %v908 = vld [vmem:[%s726 + $0x2d0] sm:%s719]
                  %909 = vst [vmem:[%s727 + $0x168] sm:%s719] %v908
                  %v910 = vld [vmem:[%s726 + $0x2d8] sm:%s719]
                  %911 = vst [vmem:[%s727 + $0x16c] sm:%s719] %v910
                  %v912 = vld [vmem:[%s726 + $0x2e0] sm:%s719]
                  %913 = vst [vmem:[%s727 + $0x170] sm:%s719] %v912
                  %v914 = vld [vmem:[%s726 + $0x2e8] sm:%s719]
                  %915 = vst [vmem:[%s727 + $0x174] sm:%s719] %v914
                  %v916 = vld [vmem:[%s726 + $0x2f0] sm:%s719]
                  %917 = vst [vmem:[%s727 + $0x178] sm:%s719] %v916
                  %v918 = vld [vmem:[%s726 + $0x2f8] sm:%s719]
                  %919 = vst [vmem:[%s727 + $0x17c] sm:%s719] %v918
                  %v920 = vld [vmem:[%s726 + $0x300] sm:%s719]
                  %921 = vst [vmem:[%s727 + $0x180] sm:%s719] %v920
                  %v922 = vld [vmem:[%s726 + $0x308] sm:%s719]
                  %923 = vst [vmem:[%s727 + $0x184] sm:%s719] %v922
                  %v924 = vld [vmem:[%s726 + $0x310] sm:%s719]
                  %925 = vst [vmem:[%s727 + $0x188] sm:%s719] %v924
                  %v926 = vld [vmem:[%s726 + $0x318] sm:%s719]
                  %927 = vst [vmem:[%s727 + $0x18c] sm:%s719] %v926
                  %v928 = vld [vmem:[%s726 + $0x320] sm:%s719]
                  %929 = vst [vmem:[%s727 + $0x190] sm:%s719] %v928
                  %v930 = vld [vmem:[%s726 + $0x328] sm:%s719]
                  %931 = vst [vmem:[%s727 + $0x194] sm:%s719] %v930
                  %v932 = vld [vmem:[%s726 + $0x330] sm:%s719]
                  %933 = vst [vmem:[%s727 + $0x198] sm:%s719] %v932
                  %v934 = vld [vmem:[%s726 + $0x338] sm:%s719]
                  %935 = vst [vmem:[%s727 + $0x19c] sm:%s719] %v934
                  %v936 = vld [vmem:[%s726 + $0x340] sm:%s719]
                  %937 = vst [vmem:[%s727 + $0x1a0] sm:%s719] %v936
                  %v938 = vld [vmem:[%s726 + $0x348] sm:%s719]
                  %939 = vst [vmem:[%s727 + $0x1a4] sm:%s719] %v938
                  %v940 = vld [vmem:[%s726 + $0x350] sm:%s719]
                  %941 = vst [vmem:[%s727 + $0x1a8] sm:%s719] %v940
                  %v942 = vld [vmem:[%s726 + $0x358] sm:%s719]
                  %943 = vst [vmem:[%s727 + $0x1ac] sm:%s719] %v942
                  %v944 = vld [vmem:[%s726 + $0x360] sm:%s719]
                  %945 = vst [vmem:[%s727 + $0x1b0] sm:%s719] %v944
                  %v946 = vld [vmem:[%s726 + $0x368] sm:%s719]
                  %947 = vst [vmem:[%s727 + $0x1b4] sm:%s719] %v946
                  %v948 = vld [vmem:[%s726 + $0x370] sm:%s719]
                  %949 = vst [vmem:[%s727 + $0x1b8] sm:%s719] %v948
                  %v950 = vld [vmem:[%s726 + $0x378] sm:%s719]
                  %951 = vst [vmem:[%s727 + $0x1bc] sm:%s719] %v950
                  %v952 = vld [vmem:[%s726 + $0x380] sm:%s719]
                  %953 = vst [vmem:[%s727 + $0x1c0] sm:%s719] %v952
                  %v954 = vld [vmem:[%s726 + $0x388] sm:%s719]
                  %955 = vst [vmem:[%s727 + $0x1c4] sm:%s719] %v954
                  %v956 = vld [vmem:[%s726 + $0x390] sm:%s719]
                  %957 = vst [vmem:[%s727 + $0x1c8] sm:%s719] %v956
                  %v958 = vld [vmem:[%s726 + $0x398] sm:%s719]
                  %959 = vst [vmem:[%s727 + $0x1cc] sm:%s719] %v958
                  %v960 = vld [vmem:[%s726 + $0x3a0] sm:%s719]
                  %961 = vst [vmem:[%s727 + $0x1d0] sm:%s719] %v960
                  %v962 = vld [vmem:[%s726 + $0x3a8] sm:%s719]
                  %963 = vst [vmem:[%s727 + $0x1d4] sm:%s719] %v962
                  %v964 = vld [vmem:[%s726 + $0x3b0] sm:%s719]
                  %965 = vst [vmem:[%s727 + $0x1d8] sm:%s719] %v964
                  %v966 = vld [vmem:[%s726 + $0x3b8] sm:%s719]
                  %967 = vst [vmem:[%s727 + $0x1dc] sm:%s719] %v966
                  %v968 = vld [vmem:[%s726 + $0x3c0] sm:%s719]
                  %969 = vst [vmem:[%s727 + $0x1e0] sm:%s719] %v968
                  %v970 = vld [vmem:[%s726 + $0x3c8] sm:%s719]
                  %971 = vst [vmem:[%s727 + $0x1e4] sm:%s719] %v970
                  %v972 = vld [vmem:[%s726 + $0x3d0] sm:%s719]
                  %973 = vst [vmem:[%s727 + $0x1e8] sm:%s719] %v972
                  %v974 = vld [vmem:[%s726 + $0x3d8] sm:%s719]
                  %975 = vst [vmem:[%s727 + $0x1ec] sm:%s719] %v974
                  %v976 = vld [vmem:[%s726 + $0x3e0] sm:%s719]
                  %977 = vst [vmem:[%s727 + $0x1f0] sm:%s719] %v976
                  %v978 = vld [vmem:[%s726 + $0x3e8] sm:%s719]
                  %979 = vst [vmem:[%s727 + $0x1f4] sm:%s719] %v978
                  %v980 = vld [vmem:[%s726 + $0x3f0] sm:%s719]
                  %981 = vst [vmem:[%s727 + $0x1f8] sm:%s719] %v980
                  %v982 = vld [vmem:[%s726 + $0x3f8] sm:%s719]
                  %983 = vst [vmem:[%s727 + $0x1fc] sm:%s719] %v982
                  %v984 = vld [vmem:[%s726 + $0x400] sm:%s719]
                  %985 = vst [vmem:[%s727 + $0x200] sm:%s719] %v984
                  %v986 = vld [vmem:[%s726 + $0x408] sm:%s719]
                  %987 = vst [vmem:[%s727 + $0x204] sm:%s719] %v986
                  %v988 = vld [vmem:[%s726 + $0x410] sm:%s719]
                  %989 = vst [vmem:[%s727 + $0x208] sm:%s719] %v988
                  %v990 = vld [vmem:[%s726 + $0x418] sm:%s719]
                  %991 = vst [vmem:[%s727 + $0x20c] sm:%s719] %v990
                  %v992 = vld [vmem:[%s726 + $0x420] sm:%s719]
                  %993 = vst [vmem:[%s727 + $0x210] sm:%s719] %v992
                  %v994 = vld [vmem:[%s726 + $0x428] sm:%s719]
                  %995 = vst [vmem:[%s727 + $0x214] sm:%s719] %v994
                  %v996 = vld [vmem:[%s726 + $0x430] sm:%s719]
                  %997 = vst [vmem:[%s727 + $0x218] sm:%s719] %v996
                  %v998 = vld [vmem:[%s726 + $0x438] sm:%s719]
                  %999 = vst [vmem:[%s727 + $0x21c] sm:%s719] %v998
                  %v1000 = vld [vmem:[%s726 + $0x440] sm:%s719]
                  %1001 = vst [vmem:[%s727 + $0x220] sm:%s719] %v1000
                  %v1002 = vld [vmem:[%s726 + $0x448] sm:%s719]
                  %1003 = vst [vmem:[%s727 + $0x224] sm:%s719] %v1002
                  %v1004 = vld [vmem:[%s726 + $0x450] sm:%s719]
                  %1005 = vst [vmem:[%s727 + $0x228] sm:%s719] %v1004
                  %v1006 = vld [vmem:[%s726 + $0x458] sm:%s719]
                  %1007 = vst [vmem:[%s727 + $0x22c] sm:%s719] %v1006
                  %v1008 = vld [vmem:[%s726 + $0x460] sm:%s719]
                  %1009 = vst [vmem:[%s727 + $0x230] sm:%s719] %v1008
                  %v1010 = vld [vmem:[%s726 + $0x468] sm:%s719]
                  %1011 = vst [vmem:[%s727 + $0x234] sm:%s719] %v1010
                  %v1012 = vld [vmem:[%s726 + $0x470] sm:%s719]
                  %1013 = vst [vmem:[%s727 + $0x238] sm:%s719] %v1012
                  %v1014 = vld [vmem:[%s726 + $0x478] sm:%s719]
                  %1015 = vst [vmem:[%s727 + $0x23c] sm:%s719] %v1014
                  %v1016 = vld [vmem:[%s726 + $0x480] sm:%s719]
                  %1017 = vst [vmem:[%s727 + $0x240] sm:%s719] %v1016
                  %v1018 = vld [vmem:[%s726 + $0x488] sm:%s719]
                  %1019 = vst [vmem:[%s727 + $0x244] sm:%s719] %v1018
                  %v1020 = vld [vmem:[%s726 + $0x490] sm:%s719]
                  %1021 = vst [vmem:[%s727 + $0x248] sm:%s719] %v1020
                  %v1022 = vld [vmem:[%s726 + $0x498] sm:%s719]
                  %1023 = vst [vmem:[%s727 + $0x24c] sm:%s719] %v1022
                  %v1024 = vld [vmem:[%s726 + $0x4a0] sm:%s719]
                  %1025 = vst [vmem:[%s727 + $0x250] sm:%s719] %v1024
                  %v1026 = vld [vmem:[%s726 + $0x4a8] sm:%s719]
                  %1027 = vst [vmem:[%s727 + $0x254] sm:%s719] %v1026
                  %v1028 = vld [vmem:[%s726 + $0x4b0] sm:%s719]
                  %1029 = vst [vmem:[%s727 + $0x258] sm:%s719] %v1028
                  %v1030 = vld [vmem:[%s726 + $0x4b8] sm:%s719]
                  %1031 = vst [vmem:[%s727 + $0x25c] sm:%s719] %v1030
                  %v1032 = vld [vmem:[%s726 + $0x4c0] sm:%s719]
                  %1033 = vst [vmem:[%s727 + $0x260] sm:%s719] %v1032
                  %v1034 = vld [vmem:[%s726 + $0x4c8] sm:%s719]
                  %1035 = vst [vmem:[%s727 + $0x264] sm:%s719] %v1034
                  %v1036 = vld [vmem:[%s726 + $0x4d0] sm:%s719]
                  %1037 = vst [vmem:[%s727 + $0x268] sm:%s719] %v1036
                  %v1038 = vld [vmem:[%s726 + $0x4d8] sm:%s719]
                  %1039 = vst [vmem:[%s727 + $0x26c] sm:%s719] %v1038
                  %v1040 = vld [vmem:[%s726 + $0x4e0] sm:%s719]
                  %1041 = vst [vmem:[%s727 + $0x270] sm:%s719] %v1040
                  %v1042 = vld [vmem:[%s726 + $0x4e8] sm:%s719]
                  %1043 = vst [vmem:[%s727 + $0x274] sm:%s719] %v1042
                  %v1044 = vld [vmem:[%s726 + $0x4f0] sm:%s719]
                  %1045 = vst [vmem:[%s727 + $0x278] sm:%s719] %v1044
                  %v1046 = vld [vmem:[%s726 + $0x4f8] sm:%s719]
                  %1047 = vst [vmem:[%s727 + $0x27c] sm:%s719] %v1046
                  %v1048 = vld [vmem:[%s726 + $0x500] sm:%s719]
                  %1049 = vst [vmem:[%s727 + $0x280] sm:%s719] %v1048
                  %v1050 = vld [vmem:[%s726 + $0x508] sm:%s719]
                  %1051 = vst [vmem:[%s727 + $0x284] sm:%s719] %v1050
                  %v1052 = vld [vmem:[%s726 + $0x510] sm:%s719]
                  %1053 = vst [vmem:[%s727 + $0x288] sm:%s719] %v1052
                  %v1054 = vld [vmem:[%s726 + $0x518] sm:%s719]
                  %1055 = vst [vmem:[%s727 + $0x28c] sm:%s719] %v1054
                  %v1056 = vld [vmem:[%s726 + $0x520] sm:%s719]
                  %1057 = vst [vmem:[%s727 + $0x290] sm:%s719] %v1056
                  %v1058 = vld [vmem:[%s726 + $0x528] sm:%s719]
                  %1059 = vst [vmem:[%s727 + $0x294] sm:%s719] %v1058
                  %v1060 = vld [vmem:[%s726 + $0x530] sm:%s719]
                  %1061 = vst [vmem:[%s727 + $0x298] sm:%s719] %v1060
                  %v1062 = vld [vmem:[%s726 + $0x538] sm:%s719]
                  %1063 = vst [vmem:[%s727 + $0x29c] sm:%s719] %v1062
                  %v1064 = vld [vmem:[%s726 + $0x540] sm:%s719]
                  %1065 = vst [vmem:[%s727 + $0x2a0] sm:%s719] %v1064
                  %v1066 = vld [vmem:[%s726 + $0x548] sm:%s719]
                  %1067 = vst [vmem:[%s727 + $0x2a4] sm:%s719] %v1066
                  %v1068 = vld [vmem:[%s726 + $0x550] sm:%s719]
                  %1069 = vst [vmem:[%s727 + $0x2a8] sm:%s719] %v1068
                  %v1070 = vld [vmem:[%s726 + $0x558] sm:%s719]
                  %1071 = vst [vmem:[%s727 + $0x2ac] sm:%s719] %v1070
                  %v1072 = vld [vmem:[%s726 + $0x560] sm:%s719]
                  %1073 = vst [vmem:[%s727 + $0x2b0] sm:%s719] %v1072
                  %v1074 = vld [vmem:[%s726 + $0x568] sm:%s719]
                  %1075 = vst [vmem:[%s727 + $0x2b4] sm:%s719] %v1074
                  %v1076 = vld [vmem:[%s726 + $0x570] sm:%s719]
                  %1077 = vst [vmem:[%s727 + $0x2b8] sm:%s719] %v1076
                  %v1078 = vld [vmem:[%s726 + $0x578] sm:%s719]
                  %1079 = vst [vmem:[%s727 + $0x2bc] sm:%s719] %v1078
                  %v1080 = vld [vmem:[%s726 + $0x580] sm:%s719]
                  %1081 = vst [vmem:[%s727 + $0x2c0] sm:%s719] %v1080
                  %v1082 = vld [vmem:[%s726 + $0x588] sm:%s719]
                  %1083 = vst [vmem:[%s727 + $0x2c4] sm:%s719] %v1082
                  %v1084 = vld [vmem:[%s726 + $0x590] sm:%s719]
                  %1085 = vst [vmem:[%s727 + $0x2c8] sm:%s719] %v1084
                  %v1086 = vld [vmem:[%s726 + $0x598] sm:%s719]
                  %1087 = vst [vmem:[%s727 + $0x2cc] sm:%s719] %v1086
                  %v1088 = vld [vmem:[%s726 + $0x5a0] sm:%s719]
                  %1089 = vst [vmem:[%s727 + $0x2d0] sm:%s719] %v1088
                  %v1090 = vld [vmem:[%s726 + $0x5a8] sm:%s719]
                  %1091 = vst [vmem:[%s727 + $0x2d4] sm:%s719] %v1090
                  %v1092 = vld [vmem:[%s726 + $0x5b0] sm:%s719]
                  %1093 = vst [vmem:[%s727 + $0x2d8] sm:%s719] %v1092
                  %v1094 = vld [vmem:[%s726 + $0x5b8] sm:%s719]
                  %1095 = vst [vmem:[%s727 + $0x2dc] sm:%s719] %v1094
                  %v1096 = vld [vmem:[%s726 + $0x5c0] sm:%s719]
                  %1097 = vst [vmem:[%s727 + $0x2e0] sm:%s719] %v1096
                  %v1098 = vld [vmem:[%s726 + $0x5c8] sm:%s719]
                  %1099 = vst [vmem:[%s727 + $0x2e4] sm:%s719] %v1098
                  %v1100 = vld [vmem:[%s726 + $0x5d0] sm:%s719]
                  %1101 = vst [vmem:[%s727 + $0x2e8] sm:%s719] %v1100
                  %v1102 = vld [vmem:[%s726 + $0x5d8] sm:%s719]
                  %1103 = vst [vmem:[%s727 + $0x2ec] sm:%s719] %v1102
                  %v1104 = vld [vmem:[%s726 + $0x5e0] sm:%s719]
                  %1105 = vst [vmem:[%s727 + $0x2f0] sm:%s719] %v1104
                  %v1106 = vld [vmem:[%s726 + $0x5e8] sm:%s719]
                  %1107 = vst [vmem:[%s727 + $0x2f4] sm:%s719] %v1106
                  %v1108 = vld [vmem:[%s726 + $0x5f0] sm:%s719]
                  %1109 = vst [vmem:[%s727 + $0x2f8] sm:%s719] %v1108
                  %v1110 = vld [vmem:[%s726 + $0x5f8] sm:%s719]
                  %1111 = vst [vmem:[%s727 + $0x2fc] sm:%s719] %v1110
                  %v1112 = vld [vmem:[%s726 + $0x600] sm:%s719]
                  %1113 = vst [vmem:[%s727 + $0x300] sm:%s719] %v1112
                  %v1114 = vld [vmem:[%s726 + $0x608] sm:%s719]
                  %1115 = vst [vmem:[%s727 + $0x304] sm:%s719] %v1114
                  %v1116 = vld [vmem:[%s726 + $0x610] sm:%s719]
                  %1117 = vst [vmem:[%s727 + $0x308] sm:%s719] %v1116
                  %v1118 = vld [vmem:[%s726 + $0x618] sm:%s719]
                  %1119 = vst [vmem:[%s727 + $0x30c] sm:%s719] %v1118
                  %v1120 = vld [vmem:[%s726 + $0x620] sm:%s719]
                  %1121 = vst [vmem:[%s727 + $0x310] sm:%s719] %v1120
                  %v1122 = vld [vmem:[%s726 + $0x628] sm:%s719]
                  %1123 = vst [vmem:[%s727 + $0x314] sm:%s719] %v1122
                  %v1124 = vld [vmem:[%s726 + $0x630] sm:%s719]
                  %1125 = vst [vmem:[%s727 + $0x318] sm:%s719] %v1124
                  %v1126 = vld [vmem:[%s726 + $0x638] sm:%s719]
                  %1127 = vst [vmem:[%s727 + $0x31c] sm:%s719] %v1126
                  %v1128 = vld [vmem:[%s726 + $0x640] sm:%s719]
                  %1129 = vst [vmem:[%s727 + $0x320] sm:%s719] %v1128
                  %v1130 = vld [vmem:[%s726 + $0x648] sm:%s719]
                  %1131 = vst [vmem:[%s727 + $0x324] sm:%s719] %v1130
                  %v1132 = vld [vmem:[%s726 + $0x650] sm:%s719]
                  %1133 = vst [vmem:[%s727 + $0x328] sm:%s719] %v1132
                  %v1134 = vld [vmem:[%s726 + $0x658] sm:%s719]
                  %1135 = vst [vmem:[%s727 + $0x32c] sm:%s719] %v1134
                  %v1136 = vld [vmem:[%s726 + $0x660] sm:%s719]
                  %1137 = vst [vmem:[%s727 + $0x330] sm:%s719] %v1136
                  %v1138 = vld [vmem:[%s726 + $0x668] sm:%s719]
                  %1139 = vst [vmem:[%s727 + $0x334] sm:%s719] %v1138
                  %v1140 = vld [vmem:[%s726 + $0x670] sm:%s719]
                  %1141 = vst [vmem:[%s727 + $0x338] sm:%s719] %v1140
                  %v1142 = vld [vmem:[%s726 + $0x678] sm:%s719]
                  %1143 = vst [vmem:[%s727 + $0x33c] sm:%s719] %v1142
                  %v1144 = vld [vmem:[%s726 + $0x680] sm:%s719]
                  %1145 = vst [vmem:[%s727 + $0x340] sm:%s719] %v1144
                  %v1146 = vld [vmem:[%s726 + $0x688] sm:%s719]
                  %1147 = vst [vmem:[%s727 + $0x344] sm:%s719] %v1146
                  %v1148 = vld [vmem:[%s726 + $0x690] sm:%s719]
                  %1149 = vst [vmem:[%s727 + $0x348] sm:%s719] %v1148
                  %v1150 = vld [vmem:[%s726 + $0x698] sm:%s719]
                  %1151 = vst [vmem:[%s727 + $0x34c] sm:%s719] %v1150
                  %v1152 = vld [vmem:[%s726 + $0x6a0] sm:%s719]
                  %1153 = vst [vmem:[%s727 + $0x350] sm:%s719] %v1152
                  %v1154 = vld [vmem:[%s726 + $0x6a8] sm:%s719]
                  %1155 = vst [vmem:[%s727 + $0x354] sm:%s719] %v1154
                  %v1156 = vld [vmem:[%s726 + $0x6b0] sm:%s719]
                  %1157 = vst [vmem:[%s727 + $0x358] sm:%s719] %v1156
                  %v1158 = vld [vmem:[%s726 + $0x6b8] sm:%s719]
                  %1159 = vst [vmem:[%s727 + $0x35c] sm:%s719] %v1158
                  %v1160 = vld [vmem:[%s726 + $0x6c0] sm:%s719]
                  %1161 = vst [vmem:[%s727 + $0x360] sm:%s719] %v1160
                  %v1162 = vld [vmem:[%s726 + $0x6c8] sm:%s719]
                  %1163 = vst [vmem:[%s727 + $0x364] sm:%s719] %v1162
                  %v1164 = vld [vmem:[%s726 + $0x6d0] sm:%s719]
                  %1165 = vst [vmem:[%s727 + $0x368] sm:%s719] %v1164
                  %v1166 = vld [vmem:[%s726 + $0x6d8] sm:%s719]
                  %1167 = vst [vmem:[%s727 + $0x36c] sm:%s719] %v1166
                  %v1168 = vld [vmem:[%s726 + $0x6e0] sm:%s719]
                  %1169 = vst [vmem:[%s727 + $0x370] sm:%s719] %v1168
                  %v1170 = vld [vmem:[%s726 + $0x6e8] sm:%s719]
                  %1171 = vst [vmem:[%s727 + $0x374] sm:%s719] %v1170
                  %v1172 = vld [vmem:[%s726 + $0x6f0] sm:%s719]
                  %1173 = vst [vmem:[%s727 + $0x378] sm:%s719] %v1172
                  %v1174 = vld [vmem:[%s726 + $0x6f8] sm:%s719]
                  %1175 = vst [vmem:[%s727 + $0x37c] sm:%s719] %v1174
                  %v1176 = vld [vmem:[%s726 + $0x700] sm:%s719]
                  %1177 = vst [vmem:[%s727 + $0x380] sm:%s719] %v1176
                  %v1178 = vld [vmem:[%s726 + $0x708] sm:%s719]
                  %1179 = vst [vmem:[%s727 + $0x384] sm:%s719] %v1178
                  %v1180 = vld [vmem:[%s726 + $0x710] sm:%s719]
                  %1181 = vst [vmem:[%s727 + $0x388] sm:%s719] %v1180
                  %v1182 = vld [vmem:[%s726 + $0x718] sm:%s719]
                  %1183 = vst [vmem:[%s727 + $0x38c] sm:%s719] %v1182
                  %v1184 = vld [vmem:[%s726 + $0x720] sm:%s719]
                  %1185 = vst [vmem:[%s727 + $0x390] sm:%s719] %v1184
                  %v1186 = vld [vmem:[%s726 + $0x728] sm:%s719]
                  %1187 = vst [vmem:[%s727 + $0x394] sm:%s719] %v1186
                  %v1188 = vld [vmem:[%s726 + $0x730] sm:%s719]
                  %1189 = vst [vmem:[%s727 + $0x398] sm:%s719] %v1188
                  %v1190 = vld [vmem:[%s726 + $0x738] sm:%s719]
                  %1191 = vst [vmem:[%s727 + $0x39c] sm:%s719] %v1190
                  %v1192 = vld [vmem:[%s726 + $0x740] sm:%s719]
                  %1193 = vst [vmem:[%s727 + $0x3a0] sm:%s719] %v1192
                  %v1194 = vld [vmem:[%s726 + $0x748] sm:%s719]
                  %1195 = vst [vmem:[%s727 + $0x3a4] sm:%s719] %v1194
                  %v1196 = vld [vmem:[%s726 + $0x750] sm:%s719]
                  %1197 = vst [vmem:[%s727 + $0x3a8] sm:%s719] %v1196
                  %v1198 = vld [vmem:[%s726 + $0x758] sm:%s719]
                  %1199 = vst [vmem:[%s727 + $0x3ac] sm:%s719] %v1198
                  %v1200 = vld [vmem:[%s726 + $0x760] sm:%s719]
                  %1201 = vst [vmem:[%s727 + $0x3b0] sm:%s719] %v1200
                  %v1202 = vld [vmem:[%s726 + $0x768] sm:%s719]
                  %1203 = vst [vmem:[%s727 + $0x3b4] sm:%s719] %v1202
                  %v1204 = vld [vmem:[%s726 + $0x770] sm:%s719]
                  %1205 = vst [vmem:[%s727 + $0x3b8] sm:%s719] %v1204
                  %v1206 = vld [vmem:[%s726 + $0x778] sm:%s719]
                  %1207 = vst [vmem:[%s727 + $0x3bc] sm:%s719] %v1206
                  %v1208 = vld [vmem:[%s726 + $0x780] sm:%s719]
                  %1209 = vst [vmem:[%s727 + $0x3c0] sm:%s719] %v1208
                  %v1210 = vld [vmem:[%s726 + $0x788] sm:%s719]
                  %1211 = vst [vmem:[%s727 + $0x3c4] sm:%s719] %v1210
                  %v1212 = vld [vmem:[%s726 + $0x790] sm:%s719]
                  %1213 = vst [vmem:[%s727 + $0x3c8] sm:%s719] %v1212
                  %v1214 = vld [vmem:[%s726 + $0x798] sm:%s719]
                  %1215 = vst [vmem:[%s727 + $0x3cc] sm:%s719] %v1214
                  %v1216 = vld [vmem:[%s726 + $0x7a0] sm:%s719]
                  %1217 = vst [vmem:[%s727 + $0x3d0] sm:%s719] %v1216
                  %v1218 = vld [vmem:[%s726 + $0x7a8] sm:%s719]
                  %1219 = vst [vmem:[%s727 + $0x3d4] sm:%s719] %v1218
                  %v1220 = vld [vmem:[%s726 + $0x7b0] sm:%s719]
                  %1221 = vst [vmem:[%s727 + $0x3d8] sm:%s719] %v1220
                  %v1222 = vld [vmem:[%s726 + $0x7b8] sm:%s719]
                  %1223 = vst [vmem:[%s727 + $0x3dc] sm:%s719] %v1222
                  %v1224 = vld [vmem:[%s726 + $0x7c0] sm:%s719]
                  %1225 = vst [vmem:[%s727 + $0x3e0] sm:%s719] %v1224
                  %v1226 = vld [vmem:[%s726 + $0x7c8] sm:%s719]
                  %1227 = vst [vmem:[%s727 + $0x3e4] sm:%s719] %v1226
                  %v1228 = vld [vmem:[%s726 + $0x7d0] sm:%s719]
                  %1229 = vst [vmem:[%s727 + $0x3e8] sm:%s719] %v1228
                  %v1230 = vld [vmem:[%s726 + $0x7d8] sm:%s719]
                  %1231 = vst [vmem:[%s727 + $0x3ec] sm:%s719] %v1230
                  %v1232 = vld [vmem:[%s726 + $0x7e0] sm:%s719]
                  %1233 = vst [vmem:[%s727 + $0x3f0] sm:%s719] %v1232
                  %v1234 = vld [vmem:[%s726 + $0x7e8] sm:%s719]
                  %1235 = vst [vmem:[%s727 + $0x3f4] sm:%s719] %v1234
                  %v1236 = vld [vmem:[%s726 + $0x7f0] sm:%s719]
                  %1237 = vst [vmem:[%s727 + $0x3f8] sm:%s719] %v1236
                  %v1238 = vld [vmem:[%s726 + $0x7f8] sm:%s719]
                  %1239 = vst [vmem:[%s727 + $0x3fc] sm:%s719] %v1238
                $region59: #{generator_forward.8} parent=46 // loop_footer
                  %s725 = sadd.s32 1, %s721
                $region60: #{generator_forward.8} parent=46 // loop_footer_branch
                  %720 = sbr.rel target = $region56
                $region61: #{generator_forward.8} parent=46 // loop_exit
                  _
              $region47: #{generator_forward.8} parent=31 // pred_fallthru
                _
            $region32: #{generator_forward.8} parent=27 // pred_fallthru
              _
            // Predicated region
            $region33: #{generator_forward.8} parent=27 // pred_check
              _
            $region34: #{generator_forward.8} parent=27 // pred_check_branch
              %185 = sbr.rel (0) target = $region36
            $region35: #{generator_forward.8} parent=27 // pred_region
              %s187 = ssub.s32 16, 1
              loop: start=0, step=1, limit=1
              $region37: #{generator_forward.8} parent=35 // loop_pre_header
                _
              $region38: #{generator_forward.8} parent=35 // loop_header
                %s189 = sphi 0, %s193
                %p190 = scmp.ge.s32.totalorder %s189, 1
                %s194 = sphi %s179, %s179
                %s195 = sphi %s177, %s177
              $region39: #{generator_forward.8} parent=35 // loop_header_branch
                %192 = sbr.rel (%p190) target = $region43
              $region40: #{generator_forward.8} parent=35 // loop_body
                %v196 = vld [vmem:[%s194] sm:%s187]
                %197 = vst [vmem:[%s195] sm:%s187] %v196
                %v198 = vld [vmem:[%s194 + $0x8] sm:%s187]
                %199 = vst [vmem:[%s195 + $0x4] sm:%s187] %v198
                %v200 = vld [vmem:[%s194 + $0x10] sm:%s187]
                %201 = vst [vmem:[%s195 + $0x8] sm:%s187] %v200
                %v202 = vld [vmem:[%s194 + $0x18] sm:%s187]
                %203 = vst [vmem:[%s195 + $0xc] sm:%s187] %v202
                %v204 = vld [vmem:[%s194 + $0x20] sm:%s187]
                %205 = vst [vmem:[%s195 + $0x10] sm:%s187] %v204
                %v206 = vld [vmem:[%s194 + $0x28] sm:%s187]
                %207 = vst [vmem:[%s195 + $0x14] sm:%s187] %v206
                %v208 = vld [vmem:[%s194 + $0x30] sm:%s187]
                %209 = vst [vmem:[%s195 + $0x18] sm:%s187] %v208
                %v210 = vld [vmem:[%s194 + $0x38] sm:%s187]
                %211 = vst [vmem:[%s195 + $0x1c] sm:%s187] %v210
                %v212 = vld [vmem:[%s194 + $0x40] sm:%s187]
                %213 = vst [vmem:[%s195 + $0x20] sm:%s187] %v212
                %v214 = vld [vmem:[%s194 + $0x48] sm:%s187]
                %215 = vst [vmem:[%s195 + $0x24] sm:%s187] %v214
                %v216 = vld [vmem:[%s194 + $0x50] sm:%s187]
                %217 = vst [vmem:[%s195 + $0x28] sm:%s187] %v216
                %v218 = vld [vmem:[%s194 + $0x58] sm:%s187]
                %219 = vst [vmem:[%s195 + $0x2c] sm:%s187] %v218
                %v220 = vld [vmem:[%s194 + $0x60] sm:%s187]
                %221 = vst [vmem:[%s195 + $0x30] sm:%s187] %v220
                %v222 = vld [vmem:[%s194 + $0x68] sm:%s187]
                %223 = vst [vmem:[%s195 + $0x34] sm:%s187] %v222
                %v224 = vld [vmem:[%s194 + $0x70] sm:%s187]
                %225 = vst [vmem:[%s195 + $0x38] sm:%s187] %v224
                %v226 = vld [vmem:[%s194 + $0x78] sm:%s187]
                %227 = vst [vmem:[%s195 + $0x3c] sm:%s187] %v226
                %v228 = vld [vmem:[%s194 + $0x80] sm:%s187]
                %229 = vst [vmem:[%s195 + $0x40] sm:%s187] %v228
                %v230 = vld [vmem:[%s194 + $0x88] sm:%s187]
                %231 = vst [vmem:[%s195 + $0x44] sm:%s187] %v230
                %v232 = vld [vmem:[%s194 + $0x90] sm:%s187]
                %233 = vst [vmem:[%s195 + $0x48] sm:%s187] %v232
                %v234 = vld [vmem:[%s194 + $0x98] sm:%s187]
                %235 = vst [vmem:[%s195 + $0x4c] sm:%s187] %v234
                %v236 = vld [vmem:[%s194 + $0xa0] sm:%s187]
                %237 = vst [vmem:[%s195 + $0x50] sm:%s187] %v236
                %v238 = vld [vmem:[%s194 + $0xa8] sm:%s187]
                %239 = vst [vmem:[%s195 + $0x54] sm:%s187] %v238
                %v240 = vld [vmem:[%s194 + $0xb0] sm:%s187]
                %241 = vst [vmem:[%s195 + $0x58] sm:%s187] %v240
                %v242 = vld [vmem:[%s194 + $0xb8] sm:%s187]
                %243 = vst [vmem:[%s195 + $0x5c] sm:%s187] %v242
                %v244 = vld [vmem:[%s194 + $0xc0] sm:%s187]
                %245 = vst [vmem:[%s195 + $0x60] sm:%s187] %v244
                %v246 = vld [vmem:[%s194 + $0xc8] sm:%s187]
                %247 = vst [vmem:[%s195 + $0x64] sm:%s187] %v246
                %v248 = vld [vmem:[%s194 + $0xd0] sm:%s187]
                %249 = vst [vmem:[%s195 + $0x68] sm:%s187] %v248
                %v250 = vld [vmem:[%s194 + $0xd8] sm:%s187]
                %251 = vst [vmem:[%s195 + $0x6c] sm:%s187] %v250
                %v252 = vld [vmem:[%s194 + $0xe0] sm:%s187]
                %253 = vst [vmem:[%s195 + $0x70] sm:%s187] %v252
                %v254 = vld [vmem:[%s194 + $0xe8] sm:%s187]
                %255 = vst [vmem:[%s195 + $0x74] sm:%s187] %v254
                %v256 = vld [vmem:[%s194 + $0xf0] sm:%s187]
                %257 = vst [vmem:[%s195 + $0x78] sm:%s187] %v256
                %v258 = vld [vmem:[%s194 + $0xf8] sm:%s187]
                %259 = vst [vmem:[%s195 + $0x7c] sm:%s187] %v258
                %v260 = vld [vmem:[%s194 + $0x100] sm:%s187]
                %261 = vst [vmem:[%s195 + $0x80] sm:%s187] %v260
                %v262 = vld [vmem:[%s194 + $0x108] sm:%s187]
                %263 = vst [vmem:[%s195 + $0x84] sm:%s187] %v262
                %v264 = vld [vmem:[%s194 + $0x110] sm:%s187]
                %265 = vst [vmem:[%s195 + $0x88] sm:%s187] %v264
                %v266 = vld [vmem:[%s194 + $0x118] sm:%s187]
                %267 = vst [vmem:[%s195 + $0x8c] sm:%s187] %v266
                %v268 = vld [vmem:[%s194 + $0x120] sm:%s187]
                %269 = vst [vmem:[%s195 + $0x90] sm:%s187] %v268
                %v270 = vld [vmem:[%s194 + $0x128] sm:%s187]
                %271 = vst [vmem:[%s195 + $0x94] sm:%s187] %v270
                %v272 = vld [vmem:[%s194 + $0x130] sm:%s187]
                %273 = vst [vmem:[%s195 + $0x98] sm:%s187] %v272
                %v274 = vld [vmem:[%s194 + $0x138] sm:%s187]
                %275 = vst [vmem:[%s195 + $0x9c] sm:%s187] %v274
                %v276 = vld [vmem:[%s194 + $0x140] sm:%s187]
                %277 = vst [vmem:[%s195 + $0xa0] sm:%s187] %v276
                %v278 = vld [vmem:[%s194 + $0x148] sm:%s187]
                %279 = vst [vmem:[%s195 + $0xa4] sm:%s187] %v278
                %v280 = vld [vmem:[%s194 + $0x150] sm:%s187]
                %281 = vst [vmem:[%s195 + $0xa8] sm:%s187] %v280
                %v282 = vld [vmem:[%s194 + $0x158] sm:%s187]
                %283 = vst [vmem:[%s195 + $0xac] sm:%s187] %v282
                %v284 = vld [vmem:[%s194 + $0x160] sm:%s187]
                %285 = vst [vmem:[%s195 + $0xb0] sm:%s187] %v284
                %v286 = vld [vmem:[%s194 + $0x168] sm:%s187]
                %287 = vst [vmem:[%s195 + $0xb4] sm:%s187] %v286
                %v288 = vld [vmem:[%s194 + $0x170] sm:%s187]
                %289 = vst [vmem:[%s195 + $0xb8] sm:%s187] %v288
                %v290 = vld [vmem:[%s194 + $0x178] sm:%s187]
                %291 = vst [vmem:[%s195 + $0xbc] sm:%s187] %v290
                %v292 = vld [vmem:[%s194 + $0x180] sm:%s187]
                %293 = vst [vmem:[%s195 + $0xc0] sm:%s187] %v292
                %v294 = vld [vmem:[%s194 + $0x188] sm:%s187]
                %295 = vst [vmem:[%s195 + $0xc4] sm:%s187] %v294
                %v296 = vld [vmem:[%s194 + $0x190] sm:%s187]
                %297 = vst [vmem:[%s195 + $0xc8] sm:%s187] %v296
                %v298 = vld [vmem:[%s194 + $0x198] sm:%s187]
                %299 = vst [vmem:[%s195 + $0xcc] sm:%s187] %v298
                %v300 = vld [vmem:[%s194 + $0x1a0] sm:%s187]
                %301 = vst [vmem:[%s195 + $0xd0] sm:%s187] %v300
                %v302 = vld [vmem:[%s194 + $0x1a8] sm:%s187]
                %303 = vst [vmem:[%s195 + $0xd4] sm:%s187] %v302
                %v304 = vld [vmem:[%s194 + $0x1b0] sm:%s187]
                %305 = vst [vmem:[%s195 + $0xd8] sm:%s187] %v304
                %v306 = vld [vmem:[%s194 + $0x1b8] sm:%s187]
                %307 = vst [vmem:[%s195 + $0xdc] sm:%s187] %v306
                %v308 = vld [vmem:[%s194 + $0x1c0] sm:%s187]
                %309 = vst [vmem:[%s195 + $0xe0] sm:%s187] %v308
                %v310 = vld [vmem:[%s194 + $0x1c8] sm:%s187]
                %311 = vst [vmem:[%s195 + $0xe4] sm:%s187] %v310
                %v312 = vld [vmem:[%s194 + $0x1d0] sm:%s187]
                %313 = vst [vmem:[%s195 + $0xe8] sm:%s187] %v312
                %v314 = vld [vmem:[%s194 + $0x1d8] sm:%s187]
                %315 = vst [vmem:[%s195 + $0xec] sm:%s187] %v314
                %v316 = vld [vmem:[%s194 + $0x1e0] sm:%s187]
                %317 = vst [vmem:[%s195 + $0xf0] sm:%s187] %v316
                %v318 = vld [vmem:[%s194 + $0x1e8] sm:%s187]
                %319 = vst [vmem:[%s195 + $0xf4] sm:%s187] %v318
                %v320 = vld [vmem:[%s194 + $0x1f0] sm:%s187]
                %321 = vst [vmem:[%s195 + $0xf8] sm:%s187] %v320
                %v322 = vld [vmem:[%s194 + $0x1f8] sm:%s187]
                %323 = vst [vmem:[%s195 + $0xfc] sm:%s187] %v322
                %v324 = vld [vmem:[%s194 + $0x200] sm:%s187]
                %325 = vst [vmem:[%s195 + $0x100] sm:%s187] %v324
                %v326 = vld [vmem:[%s194 + $0x208] sm:%s187]
                %327 = vst [vmem:[%s195 + $0x104] sm:%s187] %v326
                %v328 = vld [vmem:[%s194 + $0x210] sm:%s187]
                %329 = vst [vmem:[%s195 + $0x108] sm:%s187] %v328
                %v330 = vld [vmem:[%s194 + $0x218] sm:%s187]
                %331 = vst [vmem:[%s195 + $0x10c] sm:%s187] %v330
                %v332 = vld [vmem:[%s194 + $0x220] sm:%s187]
                %333 = vst [vmem:[%s195 + $0x110] sm:%s187] %v332
                %v334 = vld [vmem:[%s194 + $0x228] sm:%s187]
                %335 = vst [vmem:[%s195 + $0x114] sm:%s187] %v334
                %v336 = vld [vmem:[%s194 + $0x230] sm:%s187]
                %337 = vst [vmem:[%s195 + $0x118] sm:%s187] %v336
                %v338 = vld [vmem:[%s194 + $0x238] sm:%s187]
                %339 = vst [vmem:[%s195 + $0x11c] sm:%s187] %v338
                %v340 = vld [vmem:[%s194 + $0x240] sm:%s187]
                %341 = vst [vmem:[%s195 + $0x120] sm:%s187] %v340
                %v342 = vld [vmem:[%s194 + $0x248] sm:%s187]
                %343 = vst [vmem:[%s195 + $0x124] sm:%s187] %v342
                %v344 = vld [vmem:[%s194 + $0x250] sm:%s187]
                %345 = vst [vmem:[%s195 + $0x128] sm:%s187] %v344
                %v346 = vld [vmem:[%s194 + $0x258] sm:%s187]
                %347 = vst [vmem:[%s195 + $0x12c] sm:%s187] %v346
                %v348 = vld [vmem:[%s194 + $0x260] sm:%s187]
                %349 = vst [vmem:[%s195 + $0x130] sm:%s187] %v348
                %v350 = vld [vmem:[%s194 + $0x268] sm:%s187]
                %351 = vst [vmem:[%s195 + $0x134] sm:%s187] %v350
                %v352 = vld [vmem:[%s194 + $0x270] sm:%s187]
                %353 = vst [vmem:[%s195 + $0x138] sm:%s187] %v352
                %v354 = vld [vmem:[%s194 + $0x278] sm:%s187]
                %355 = vst [vmem:[%s195 + $0x13c] sm:%s187] %v354
                %v356 = vld [vmem:[%s194 + $0x280] sm:%s187]
                %357 = vst [vmem:[%s195 + $0x140] sm:%s187] %v356
                %v358 = vld [vmem:[%s194 + $0x288] sm:%s187]
                %359 = vst [vmem:[%s195 + $0x144] sm:%s187] %v358
                %v360 = vld [vmem:[%s194 + $0x290] sm:%s187]
                %361 = vst [vmem:[%s195 + $0x148] sm:%s187] %v360
                %v362 = vld [vmem:[%s194 + $0x298] sm:%s187]
                %363 = vst [vmem:[%s195 + $0x14c] sm:%s187] %v362
                %v364 = vld [vmem:[%s194 + $0x2a0] sm:%s187]
                %365 = vst [vmem:[%s195 + $0x150] sm:%s187] %v364
                %v366 = vld [vmem:[%s194 + $0x2a8] sm:%s187]
                %367 = vst [vmem:[%s195 + $0x154] sm:%s187] %v366
                %v368 = vld [vmem:[%s194 + $0x2b0] sm:%s187]
                %369 = vst [vmem:[%s195 + $0x158] sm:%s187] %v368
                %v370 = vld [vmem:[%s194 + $0x2b8] sm:%s187]
                %371 = vst [vmem:[%s195 + $0x15c] sm:%s187] %v370
                %v372 = vld [vmem:[%s194 + $0x2c0] sm:%s187]
                %373 = vst [vmem:[%s195 + $0x160] sm:%s187] %v372
                %v374 = vld [vmem:[%s194 + $0x2c8] sm:%s187]
                %375 = vst [vmem:[%s195 + $0x164] sm:%s187] %v374
                %v376 = vld [vmem:[%s194 + $0x2d0] sm:%s187]
                %377 = vst [vmem:[%s195 + $0x168] sm:%s187] %v376
                %v378 = vld [vmem:[%s194 + $0x2d8] sm:%s187]
                %379 = vst [vmem:[%s195 + $0x16c] sm:%s187] %v378
                %v380 = vld [vmem:[%s194 + $0x2e0] sm:%s187]
                %381 = vst [vmem:[%s195 + $0x170] sm:%s187] %v380
                %v382 = vld [vmem:[%s194 + $0x2e8] sm:%s187]
                %383 = vst [vmem:[%s195 + $0x174] sm:%s187] %v382
                %v384 = vld [vmem:[%s194 + $0x2f0] sm:%s187]
                %385 = vst [vmem:[%s195 + $0x178] sm:%s187] %v384
                %v386 = vld [vmem:[%s194 + $0x2f8] sm:%s187]
                %387 = vst [vmem:[%s195 + $0x17c] sm:%s187] %v386
                %v388 = vld [vmem:[%s194 + $0x300] sm:%s187]
                %389 = vst [vmem:[%s195 + $0x180] sm:%s187] %v388
                %v390 = vld [vmem:[%s194 + $0x308] sm:%s187]
                %391 = vst [vmem:[%s195 + $0x184] sm:%s187] %v390
                %v392 = vld [vmem:[%s194 + $0x310] sm:%s187]
                %393 = vst [vmem:[%s195 + $0x188] sm:%s187] %v392
                %v394 = vld [vmem:[%s194 + $0x318] sm:%s187]
                %395 = vst [vmem:[%s195 + $0x18c] sm:%s187] %v394
                %v396 = vld [vmem:[%s194 + $0x320] sm:%s187]
                %397 = vst [vmem:[%s195 + $0x190] sm:%s187] %v396
                %v398 = vld [vmem:[%s194 + $0x328] sm:%s187]
                %399 = vst [vmem:[%s195 + $0x194] sm:%s187] %v398
                %v400 = vld [vmem:[%s194 + $0x330] sm:%s187]
                %401 = vst [vmem:[%s195 + $0x198] sm:%s187] %v400
                %v402 = vld [vmem:[%s194 + $0x338] sm:%s187]
                %403 = vst [vmem:[%s195 + $0x19c] sm:%s187] %v402
                %v404 = vld [vmem:[%s194 + $0x340] sm:%s187]
                %405 = vst [vmem:[%s195 + $0x1a0] sm:%s187] %v404
                %v406 = vld [vmem:[%s194 + $0x348] sm:%s187]
                %407 = vst [vmem:[%s195 + $0x1a4] sm:%s187] %v406
                %v408 = vld [vmem:[%s194 + $0x350] sm:%s187]
                %409 = vst [vmem:[%s195 + $0x1a8] sm:%s187] %v408
                %v410 = vld [vmem:[%s194 + $0x358] sm:%s187]
                %411 = vst [vmem:[%s195 + $0x1ac] sm:%s187] %v410
                %v412 = vld [vmem:[%s194 + $0x360] sm:%s187]
                %413 = vst [vmem:[%s195 + $0x1b0] sm:%s187] %v412
                %v414 = vld [vmem:[%s194 + $0x368] sm:%s187]
                %415 = vst [vmem:[%s195 + $0x1b4] sm:%s187] %v414
                %v416 = vld [vmem:[%s194 + $0x370] sm:%s187]
                %417 = vst [vmem:[%s195 + $0x1b8] sm:%s187] %v416
                %v418 = vld [vmem:[%s194 + $0x378] sm:%s187]
                %419 = vst [vmem:[%s195 + $0x1bc] sm:%s187] %v418
                %v420 = vld [vmem:[%s194 + $0x380] sm:%s187]
                %421 = vst [vmem:[%s195 + $0x1c0] sm:%s187] %v420
                %v422 = vld [vmem:[%s194 + $0x388] sm:%s187]
                %423 = vst [vmem:[%s195 + $0x1c4] sm:%s187] %v422
                %v424 = vld [vmem:[%s194 + $0x390] sm:%s187]
                %425 = vst [vmem:[%s195 + $0x1c8] sm:%s187] %v424
                %v426 = vld [vmem:[%s194 + $0x398] sm:%s187]
                %427 = vst [vmem:[%s195 + $0x1cc] sm:%s187] %v426
                %v428 = vld [vmem:[%s194 + $0x3a0] sm:%s187]
                %429 = vst [vmem:[%s195 + $0x1d0] sm:%s187] %v428
                %v430 = vld [vmem:[%s194 + $0x3a8] sm:%s187]
                %431 = vst [vmem:[%s195 + $0x1d4] sm:%s187] %v430
                %v432 = vld [vmem:[%s194 + $0x3b0] sm:%s187]
                %433 = vst [vmem:[%s195 + $0x1d8] sm:%s187] %v432
                %v434 = vld [vmem:[%s194 + $0x3b8] sm:%s187]
                %435 = vst [vmem:[%s195 + $0x1dc] sm:%s187] %v434
                %v436 = vld [vmem:[%s194 + $0x3c0] sm:%s187]
                %437 = vst [vmem:[%s195 + $0x1e0] sm:%s187] %v436
                %v438 = vld [vmem:[%s194 + $0x3c8] sm:%s187]
                %439 = vst [vmem:[%s195 + $0x1e4] sm:%s187] %v438
                %v440 = vld [vmem:[%s194 + $0x3d0] sm:%s187]
                %441 = vst [vmem:[%s195 + $0x1e8] sm:%s187] %v440
                %v442 = vld [vmem:[%s194 + $0x3d8] sm:%s187]
                %443 = vst [vmem:[%s195 + $0x1ec] sm:%s187] %v442
                %v444 = vld [vmem:[%s194 + $0x3e0] sm:%s187]
                %445 = vst [vmem:[%s195 + $0x1f0] sm:%s187] %v444
                %v446 = vld [vmem:[%s194 + $0x3e8] sm:%s187]
                %447 = vst [vmem:[%s195 + $0x1f4] sm:%s187] %v446
                %v448 = vld [vmem:[%s194 + $0x3f0] sm:%s187]
                %449 = vst [vmem:[%s195 + $0x1f8] sm:%s187] %v448
                %v450 = vld [vmem:[%s194 + $0x3f8] sm:%s187]
                %451 = vst [vmem:[%s195 + $0x1fc] sm:%s187] %v450
                %v452 = vld [vmem:[%s194 + $0x400] sm:%s187]
                %453 = vst [vmem:[%s195 + $0x200] sm:%s187] %v452
                %v454 = vld [vmem:[%s194 + $0x408] sm:%s187]
                %455 = vst [vmem:[%s195 + $0x204] sm:%s187] %v454
                %v456 = vld [vmem:[%s194 + $0x410] sm:%s187]
                %457 = vst [vmem:[%s195 + $0x208] sm:%s187] %v456
                %v458 = vld [vmem:[%s194 + $0x418] sm:%s187]
                %459 = vst [vmem:[%s195 + $0x20c] sm:%s187] %v458
                %v460 = vld [vmem:[%s194 + $0x420] sm:%s187]
                %461 = vst [vmem:[%s195 + $0x210] sm:%s187] %v460
                %v462 = vld [vmem:[%s194 + $0x428] sm:%s187]
                %463 = vst [vmem:[%s195 + $0x214] sm:%s187] %v462
                %v464 = vld [vmem:[%s194 + $0x430] sm:%s187]
                %465 = vst [vmem:[%s195 + $0x218] sm:%s187] %v464
                %v466 = vld [vmem:[%s194 + $0x438] sm:%s187]
                %467 = vst [vmem:[%s195 + $0x21c] sm:%s187] %v466
                %v468 = vld [vmem:[%s194 + $0x440] sm:%s187]
                %469 = vst [vmem:[%s195 + $0x220] sm:%s187] %v468
                %v470 = vld [vmem:[%s194 + $0x448] sm:%s187]
                %471 = vst [vmem:[%s195 + $0x224] sm:%s187] %v470
                %v472 = vld [vmem:[%s194 + $0x450] sm:%s187]
                %473 = vst [vmem:[%s195 + $0x228] sm:%s187] %v472
                %v474 = vld [vmem:[%s194 + $0x458] sm:%s187]
                %475 = vst [vmem:[%s195 + $0x22c] sm:%s187] %v474
                %v476 = vld [vmem:[%s194 + $0x460] sm:%s187]
                %477 = vst [vmem:[%s195 + $0x230] sm:%s187] %v476
                %v478 = vld [vmem:[%s194 + $0x468] sm:%s187]
                %479 = vst [vmem:[%s195 + $0x234] sm:%s187] %v478
                %v480 = vld [vmem:[%s194 + $0x470] sm:%s187]
                %481 = vst [vmem:[%s195 + $0x238] sm:%s187] %v480
                %v482 = vld [vmem:[%s194 + $0x478] sm:%s187]
                %483 = vst [vmem:[%s195 + $0x23c] sm:%s187] %v482
                %v484 = vld [vmem:[%s194 + $0x480] sm:%s187]
                %485 = vst [vmem:[%s195 + $0x240] sm:%s187] %v484
                %v486 = vld [vmem:[%s194 + $0x488] sm:%s187]
                %487 = vst [vmem:[%s195 + $0x244] sm:%s187] %v486
                %v488 = vld [vmem:[%s194 + $0x490] sm:%s187]
                %489 = vst [vmem:[%s195 + $0x248] sm:%s187] %v488
                %v490 = vld [vmem:[%s194 + $0x498] sm:%s187]
                %491 = vst [vmem:[%s195 + $0x24c] sm:%s187] %v490
                %v492 = vld [vmem:[%s194 + $0x4a0] sm:%s187]
                %493 = vst [vmem:[%s195 + $0x250] sm:%s187] %v492
                %v494 = vld [vmem:[%s194 + $0x4a8] sm:%s187]
                %495 = vst [vmem:[%s195 + $0x254] sm:%s187] %v494
                %v496 = vld [vmem:[%s194 + $0x4b0] sm:%s187]
                %497 = vst [vmem:[%s195 + $0x258] sm:%s187] %v496
                %v498 = vld [vmem:[%s194 + $0x4b8] sm:%s187]
                %499 = vst [vmem:[%s195 + $0x25c] sm:%s187] %v498
                %v500 = vld [vmem:[%s194 + $0x4c0] sm:%s187]
                %501 = vst [vmem:[%s195 + $0x260] sm:%s187] %v500
                %v502 = vld [vmem:[%s194 + $0x4c8] sm:%s187]
                %503 = vst [vmem:[%s195 + $0x264] sm:%s187] %v502
                %v504 = vld [vmem:[%s194 + $0x4d0] sm:%s187]
                %505 = vst [vmem:[%s195 + $0x268] sm:%s187] %v504
                %v506 = vld [vmem:[%s194 + $0x4d8] sm:%s187]
                %507 = vst [vmem:[%s195 + $0x26c] sm:%s187] %v506
                %v508 = vld [vmem:[%s194 + $0x4e0] sm:%s187]
                %509 = vst [vmem:[%s195 + $0x270] sm:%s187] %v508
                %v510 = vld [vmem:[%s194 + $0x4e8] sm:%s187]
                %511 = vst [vmem:[%s195 + $0x274] sm:%s187] %v510
                %v512 = vld [vmem:[%s194 + $0x4f0] sm:%s187]
                %513 = vst [vmem:[%s195 + $0x278] sm:%s187] %v512
                %v514 = vld [vmem:[%s194 + $0x4f8] sm:%s187]
                %515 = vst [vmem:[%s195 + $0x27c] sm:%s187] %v514
                %v516 = vld [vmem:[%s194 + $0x500] sm:%s187]
                %517 = vst [vmem:[%s195 + $0x280] sm:%s187] %v516
                %v518 = vld [vmem:[%s194 + $0x508] sm:%s187]
                %519 = vst [vmem:[%s195 + $0x284] sm:%s187] %v518
                %v520 = vld [vmem:[%s194 + $0x510] sm:%s187]
                %521 = vst [vmem:[%s195 + $0x288] sm:%s187] %v520
                %v522 = vld [vmem:[%s194 + $0x518] sm:%s187]
                %523 = vst [vmem:[%s195 + $0x28c] sm:%s187] %v522
                %v524 = vld [vmem:[%s194 + $0x520] sm:%s187]
                %525 = vst [vmem:[%s195 + $0x290] sm:%s187] %v524
                %v526 = vld [vmem:[%s194 + $0x528] sm:%s187]
                %527 = vst [vmem:[%s195 + $0x294] sm:%s187] %v526
                %v528 = vld [vmem:[%s194 + $0x530] sm:%s187]
                %529 = vst [vmem:[%s195 + $0x298] sm:%s187] %v528
                %v530 = vld [vmem:[%s194 + $0x538] sm:%s187]
                %531 = vst [vmem:[%s195 + $0x29c] sm:%s187] %v530
                %v532 = vld [vmem:[%s194 + $0x540] sm:%s187]
                %533 = vst [vmem:[%s195 + $0x2a0] sm:%s187] %v532
                %v534 = vld [vmem:[%s194 + $0x548] sm:%s187]
                %535 = vst [vmem:[%s195 + $0x2a4] sm:%s187] %v534
                %v536 = vld [vmem:[%s194 + $0x550] sm:%s187]
                %537 = vst [vmem:[%s195 + $0x2a8] sm:%s187] %v536
                %v538 = vld [vmem:[%s194 + $0x558] sm:%s187]
                %539 = vst [vmem:[%s195 + $0x2ac] sm:%s187] %v538
                %v540 = vld [vmem:[%s194 + $0x560] sm:%s187]
                %541 = vst [vmem:[%s195 + $0x2b0] sm:%s187] %v540
                %v542 = vld [vmem:[%s194 + $0x568] sm:%s187]
                %543 = vst [vmem:[%s195 + $0x2b4] sm:%s187] %v542
                %v544 = vld [vmem:[%s194 + $0x570] sm:%s187]
                %545 = vst [vmem:[%s195 + $0x2b8] sm:%s187] %v544
                %v546 = vld [vmem:[%s194 + $0x578] sm:%s187]
                %547 = vst [vmem:[%s195 + $0x2bc] sm:%s187] %v546
                %v548 = vld [vmem:[%s194 + $0x580] sm:%s187]
                %549 = vst [vmem:[%s195 + $0x2c0] sm:%s187] %v548
                %v550 = vld [vmem:[%s194 + $0x588] sm:%s187]
                %551 = vst [vmem:[%s195 + $0x2c4] sm:%s187] %v550
                %v552 = vld [vmem:[%s194 + $0x590] sm:%s187]
                %553 = vst [vmem:[%s195 + $0x2c8] sm:%s187] %v552
                %v554 = vld [vmem:[%s194 + $0x598] sm:%s187]
                %555 = vst [vmem:[%s195 + $0x2cc] sm:%s187] %v554
                %v556 = vld [vmem:[%s194 + $0x5a0] sm:%s187]
                %557 = vst [vmem:[%s195 + $0x2d0] sm:%s187] %v556
                %v558 = vld [vmem:[%s194 + $0x5a8] sm:%s187]
                %559 = vst [vmem:[%s195 + $0x2d4] sm:%s187] %v558
                %v560 = vld [vmem:[%s194 + $0x5b0] sm:%s187]
                %561 = vst [vmem:[%s195 + $0x2d8] sm:%s187] %v560
                %v562 = vld [vmem:[%s194 + $0x5b8] sm:%s187]
                %563 = vst [vmem:[%s195 + $0x2dc] sm:%s187] %v562
                %v564 = vld [vmem:[%s194 + $0x5c0] sm:%s187]
                %565 = vst [vmem:[%s195 + $0x2e0] sm:%s187] %v564
                %v566 = vld [vmem:[%s194 + $0x5c8] sm:%s187]
                %567 = vst [vmem:[%s195 + $0x2e4] sm:%s187] %v566
                %v568 = vld [vmem:[%s194 + $0x5d0] sm:%s187]
                %569 = vst [vmem:[%s195 + $0x2e8] sm:%s187] %v568
                %v570 = vld [vmem:[%s194 + $0x5d8] sm:%s187]
                %571 = vst [vmem:[%s195 + $0x2ec] sm:%s187] %v570
                %v572 = vld [vmem:[%s194 + $0x5e0] sm:%s187]
                %573 = vst [vmem:[%s195 + $0x2f0] sm:%s187] %v572
                %v574 = vld [vmem:[%s194 + $0x5e8] sm:%s187]
                %575 = vst [vmem:[%s195 + $0x2f4] sm:%s187] %v574
                %v576 = vld [vmem:[%s194 + $0x5f0] sm:%s187]
                %577 = vst [vmem:[%s195 + $0x2f8] sm:%s187] %v576
                %v578 = vld [vmem:[%s194 + $0x5f8] sm:%s187]
                %579 = vst [vmem:[%s195 + $0x2fc] sm:%s187] %v578
                %v580 = vld [vmem:[%s194 + $0x600] sm:%s187]
                %581 = vst [vmem:[%s195 + $0x300] sm:%s187] %v580
                %v582 = vld [vmem:[%s194 + $0x608] sm:%s187]
                %583 = vst [vmem:[%s195 + $0x304] sm:%s187] %v582
                %v584 = vld [vmem:[%s194 + $0x610] sm:%s187]
                %585 = vst [vmem:[%s195 + $0x308] sm:%s187] %v584
                %v586 = vld [vmem:[%s194 + $0x618] sm:%s187]
                %587 = vst [vmem:[%s195 + $0x30c] sm:%s187] %v586
                %v588 = vld [vmem:[%s194 + $0x620] sm:%s187]
                %589 = vst [vmem:[%s195 + $0x310] sm:%s187] %v588
                %v590 = vld [vmem:[%s194 + $0x628] sm:%s187]
                %591 = vst [vmem:[%s195 + $0x314] sm:%s187] %v590
                %v592 = vld [vmem:[%s194 + $0x630] sm:%s187]
                %593 = vst [vmem:[%s195 + $0x318] sm:%s187] %v592
                %v594 = vld [vmem:[%s194 + $0x638] sm:%s187]
                %595 = vst [vmem:[%s195 + $0x31c] sm:%s187] %v594
                %v596 = vld [vmem:[%s194 + $0x640] sm:%s187]
                %597 = vst [vmem:[%s195 + $0x320] sm:%s187] %v596
                %v598 = vld [vmem:[%s194 + $0x648] sm:%s187]
                %599 = vst [vmem:[%s195 + $0x324] sm:%s187] %v598
                %v600 = vld [vmem:[%s194 + $0x650] sm:%s187]
                %601 = vst [vmem:[%s195 + $0x328] sm:%s187] %v600
                %v602 = vld [vmem:[%s194 + $0x658] sm:%s187]
                %603 = vst [vmem:[%s195 + $0x32c] sm:%s187] %v602
                %v604 = vld [vmem:[%s194 + $0x660] sm:%s187]
                %605 = vst [vmem:[%s195 + $0x330] sm:%s187] %v604
                %v606 = vld [vmem:[%s194 + $0x668] sm:%s187]
                %607 = vst [vmem:[%s195 + $0x334] sm:%s187] %v606
                %v608 = vld [vmem:[%s194 + $0x670] sm:%s187]
                %609 = vst [vmem:[%s195 + $0x338] sm:%s187] %v608
                %v610 = vld [vmem:[%s194 + $0x678] sm:%s187]
                %611 = vst [vmem:[%s195 + $0x33c] sm:%s187] %v610
                %v612 = vld [vmem:[%s194 + $0x680] sm:%s187]
                %613 = vst [vmem:[%s195 + $0x340] sm:%s187] %v612
                %v614 = vld [vmem:[%s194 + $0x688] sm:%s187]
                %615 = vst [vmem:[%s195 + $0x344] sm:%s187] %v614
                %v616 = vld [vmem:[%s194 + $0x690] sm:%s187]
                %617 = vst [vmem:[%s195 + $0x348] sm:%s187] %v616
                %v618 = vld [vmem:[%s194 + $0x698] sm:%s187]
                %619 = vst [vmem:[%s195 + $0x34c] sm:%s187] %v618
                %v620 = vld [vmem:[%s194 + $0x6a0] sm:%s187]
                %621 = vst [vmem:[%s195 + $0x350] sm:%s187] %v620
                %v622 = vld [vmem:[%s194 + $0x6a8] sm:%s187]
                %623 = vst [vmem:[%s195 + $0x354] sm:%s187] %v622
                %v624 = vld [vmem:[%s194 + $0x6b0] sm:%s187]
                %625 = vst [vmem:[%s195 + $0x358] sm:%s187] %v624
                %v626 = vld [vmem:[%s194 + $0x6b8] sm:%s187]
                %627 = vst [vmem:[%s195 + $0x35c] sm:%s187] %v626
                %v628 = vld [vmem:[%s194 + $0x6c0] sm:%s187]
                %629 = vst [vmem:[%s195 + $0x360] sm:%s187] %v628
                %v630 = vld [vmem:[%s194 + $0x6c8] sm:%s187]
                %631 = vst [vmem:[%s195 + $0x364] sm:%s187] %v630
                %v632 = vld [vmem:[%s194 + $0x6d0] sm:%s187]
                %633 = vst [vmem:[%s195 + $0x368] sm:%s187] %v632
                %v634 = vld [vmem:[%s194 + $0x6d8] sm:%s187]
                %635 = vst [vmem:[%s195 + $0x36c] sm:%s187] %v634
                %v636 = vld [vmem:[%s194 + $0x6e0] sm:%s187]
                %637 = vst [vmem:[%s195 + $0x370] sm:%s187] %v636
                %v638 = vld [vmem:[%s194 + $0x6e8] sm:%s187]
                %639 = vst [vmem:[%s195 + $0x374] sm:%s187] %v638
                %v640 = vld [vmem:[%s194 + $0x6f0] sm:%s187]
                %641 = vst [vmem:[%s195 + $0x378] sm:%s187] %v640
                %v642 = vld [vmem:[%s194 + $0x6f8] sm:%s187]
                %643 = vst [vmem:[%s195 + $0x37c] sm:%s187] %v642
                %v644 = vld [vmem:[%s194 + $0x700] sm:%s187]
                %645 = vst [vmem:[%s195 + $0x380] sm:%s187] %v644
                %v646 = vld [vmem:[%s194 + $0x708] sm:%s187]
                %647 = vst [vmem:[%s195 + $0x384] sm:%s187] %v646
                %v648 = vld [vmem:[%s194 + $0x710] sm:%s187]
                %649 = vst [vmem:[%s195 + $0x388] sm:%s187] %v648
                %v650 = vld [vmem:[%s194 + $0x718] sm:%s187]
                %651 = vst [vmem:[%s195 + $0x38c] sm:%s187] %v650
                %v652 = vld [vmem:[%s194 + $0x720] sm:%s187]
                %653 = vst [vmem:[%s195 + $0x390] sm:%s187] %v652
                %v654 = vld [vmem:[%s194 + $0x728] sm:%s187]
                %655 = vst [vmem:[%s195 + $0x394] sm:%s187] %v654
                %v656 = vld [vmem:[%s194 + $0x730] sm:%s187]
                %657 = vst [vmem:[%s195 + $0x398] sm:%s187] %v656
                %v658 = vld [vmem:[%s194 + $0x738] sm:%s187]
                %659 = vst [vmem:[%s195 + $0x39c] sm:%s187] %v658
                %v660 = vld [vmem:[%s194 + $0x740] sm:%s187]
                %661 = vst [vmem:[%s195 + $0x3a0] sm:%s187] %v660
                %v662 = vld [vmem:[%s194 + $0x748] sm:%s187]
                %663 = vst [vmem:[%s195 + $0x3a4] sm:%s187] %v662
                %v664 = vld [vmem:[%s194 + $0x750] sm:%s187]
                %665 = vst [vmem:[%s195 + $0x3a8] sm:%s187] %v664
                %v666 = vld [vmem:[%s194 + $0x758] sm:%s187]
                %667 = vst [vmem:[%s195 + $0x3ac] sm:%s187] %v666
                %v668 = vld [vmem:[%s194 + $0x760] sm:%s187]
                %669 = vst [vmem:[%s195 + $0x3b0] sm:%s187] %v668
                %v670 = vld [vmem:[%s194 + $0x768] sm:%s187]
                %671 = vst [vmem:[%s195 + $0x3b4] sm:%s187] %v670
                %v672 = vld [vmem:[%s194 + $0x770] sm:%s187]
                %673 = vst [vmem:[%s195 + $0x3b8] sm:%s187] %v672
                %v674 = vld [vmem:[%s194 + $0x778] sm:%s187]
                %675 = vst [vmem:[%s195 + $0x3bc] sm:%s187] %v674
                %v676 = vld [vmem:[%s194 + $0x780] sm:%s187]
                %677 = vst [vmem:[%s195 + $0x3c0] sm:%s187] %v676
                %v678 = vld [vmem:[%s194 + $0x788] sm:%s187]
                %679 = vst [vmem:[%s195 + $0x3c4] sm:%s187] %v678
                %v680 = vld [vmem:[%s194 + $0x790] sm:%s187]
                %681 = vst [vmem:[%s195 + $0x3c8] sm:%s187] %v680
                %v682 = vld [vmem:[%s194 + $0x798] sm:%s187]
                %683 = vst [vmem:[%s195 + $0x3cc] sm:%s187] %v682
                %v684 = vld [vmem:[%s194 + $0x7a0] sm:%s187]
                %685 = vst [vmem:[%s195 + $0x3d0] sm:%s187] %v684
                %v686 = vld [vmem:[%s194 + $0x7a8] sm:%s187]
                %687 = vst [vmem:[%s195 + $0x3d4] sm:%s187] %v686
                %v688 = vld [vmem:[%s194 + $0x7b0] sm:%s187]
                %689 = vst [vmem:[%s195 + $0x3d8] sm:%s187] %v688
                %v690 = vld [vmem:[%s194 + $0x7b8] sm:%s187]
                %691 = vst [vmem:[%s195 + $0x3dc] sm:%s187] %v690
                %v692 = vld [vmem:[%s194 + $0x7c0] sm:%s187]
                %693 = vst [vmem:[%s195 + $0x3e0] sm:%s187] %v692
                %v694 = vld [vmem:[%s194 + $0x7c8] sm:%s187]
                %695 = vst [vmem:[%s195 + $0x3e4] sm:%s187] %v694
                %v696 = vld [vmem:[%s194 + $0x7d0] sm:%s187]
                %697 = vst [vmem:[%s195 + $0x3e8] sm:%s187] %v696
                %v698 = vld [vmem:[%s194 + $0x7d8] sm:%s187]
                %699 = vst [vmem:[%s195 + $0x3ec] sm:%s187] %v698
                %v700 = vld [vmem:[%s194 + $0x7e0] sm:%s187]
                %701 = vst [vmem:[%s195 + $0x3f0] sm:%s187] %v700
                %v702 = vld [vmem:[%s194 + $0x7e8] sm:%s187]
                %703 = vst [vmem:[%s195 + $0x3f4] sm:%s187] %v702
                %v704 = vld [vmem:[%s194 + $0x7f0] sm:%s187]
                %705 = vst [vmem:[%s195 + $0x3f8] sm:%s187] %v704
                %v706 = vld [vmem:[%s194 + $0x7f8] sm:%s187]
                %707 = vst [vmem:[%s195 + $0x3fc] sm:%s187] %v706
              $region41: #{generator_forward.8} parent=35 // loop_footer
                %s193 = sadd.s32 1, %s189
              $region42: #{generator_forward.8} parent=35 // loop_footer_branch
                %188 = sbr.rel target = $region38
              $region43: #{generator_forward.8} parent=35 // loop_exit
                _
            $region36: #{generator_forward.8} parent=27 // pred_fallthru
              _
          $region28: #{generator_forward.8} parent=23 // pred_fallthru
            _
          %1240 = vnop
        $region24: #{generator_forward.8} parent=19 // pred_fallthru
          _
        // Predicated region
        $region62: #{generator_forward.8} parent=19 // pred_check
          %p1241 = pneg %p102
        $region63: #{generator_forward.8} parent=19 // pred_check_branch
          %1243 = sbr.rel (%p1241) target = $region65
        $region64: #{generator_forward.8} parent=19 // pred_region
          %p1244 = scmp.lt.s32.totalorder %s18, 1
          %s1245 = scalar_select %p1244, %s18, 1
          %s1246 = scalar_lea.vmem %s2, %s1245
        $region65: #{generator_forward.8} parent=19 // pred_fallthru
          _
      $region20: #{generator_forward.8} parent=5 // pred_fallthru
        _
      %p1247 = scmp.le.s32.totalorder 1, %s9
      %p1248 = scmp.lt.s32.totalorder %s9, 3
      %p1249 = pnand %p1247, %p1248
      %p1250 = pneg %p1249
      // Predicated region
      $region66: #{generator_forward.8} parent=5 // pred_check
        _
      $region67: #{generator_forward.8} parent=5 // pred_check_branch
        %1252 = sbr.rel (%p1249) target = $region69
      $region68: #{generator_forward.8} parent=5 // pred_region
        %s1253 = ssub.s32 %s9, 1
        %s1254 = sand.u32 %s69, 1
        %s1255 = sand.u32 %s69, 1
        %s1256 = smul.addr %s1255, 1024
        %s1257 = scalar_lea.vmem [#allocation2], %s1256
        // Predicated region
        $region70: #{generator_forward.8} parent=68 // pred_check
          %p1258 = pneg %p82
        $region71: #{generator_forward.8} parent=68 // pred_check_branch
          %1260 = sbr.rel (%p1258) target = $region73
        $region72: #{generator_forward.8} parent=68 // pred_region
          _
        $region73: #{generator_forward.8} parent=68 // pred_fallthru
          _
        %s1261 = smul.u32 2, %s20
        %p1262 = scmp.lt.s32.totalorder %s19, 0
        %s1263 = scalar_select %p1262, %s19, 0
        %p1264 = scmp.lt.s32.totalorder %s1261, 1
        %s1265 = scalar_select %p1264, %s1261, 1
        %s1266 = smul.addr %s1265, 16
        %s1267 = smul.addr %s1263, 32
        %s1268 = sadd.s32 %s1266, %s1267
        %s1269 = smul.addr %s1268, 4
        %s1270 = scalar_lea.vmem %s0, %s1269
        %p1271 = pneg %p56
        %p1272 = pneg %p53
        %s1273 = sand.u32 %s69, 1
        %s1274 = sand.u32 %s69, 1
        %s1275 = smul.addr %s1274, 1024
        %s1276 = scalar_lea.vmem [#allocation2], %s1275
        %p1277 = pneg %p82
        %p1278 = pneg %p79
        %p1279 = scmp.lt.s32.totalorder %s21, 1
        %s1280 = scalar_select %p1279, %s21, 1
        %s1281 = scalar_lea.vmem %s2, %s1280
        %p1282 = pneg %p108
        %p1283 = pneg %p105
        %p1284 = pneg %p138
        %p1285 = pneg %p135
        %s1286 = sand.u32 %s125, 1
        %s1287 = sand.u32 %s125, 1
        %s1288 = smul.addr %s1287, 8
        %s1289 = scalar_lea.vmem [#allocation3], %s1288
        %s1290 = smul.u32 2, %s20
        %p1291 = scmp.lt.s32.totalorder %s19, 0
        %s1292 = scalar_select %p1291, %s19, 0
        %p1293 = scmp.lt.s32.totalorder %s1290, 1
        %s1294 = scalar_select %p1293, %s1290, 1
        %s1295 = smul.addr %s1294, 16
        %s1296 = smul.addr %s1292, 32
        %s1297 = sadd.s32 %s1295, %s1296
        %s1298 = smul.addr %s1297, 4
        %s1299 = scalar_lea.vmem %s0, %s1298
        %s1300 = smul.u32 2, %s20
        %p1301 = scmp.lt.s32.totalorder %s21, 1
        %s1302 = scalar_select %p1301, %s21, 1
        %s1303 = scalar_lea.vmem %s2, %s1302
        %s1304 = smul.u32 2, %s20
        %s1306 = smul.u32 %s19, 256
        %s1307 = smul.addr %s1306, 4
        %s1308 = scalar_lea.vmem %s1257, %s1307 [#allocation2]
        %v1309 = vld [vmem:[%s1308] sm:$0xf]
        %v1310 = vld [vmem:[%s1308 + $0x4] sm:$0xf]
        %v1311 = vld [vmem:[%s1308 + $0x8] sm:$0xf]
        %v1312 = vld [vmem:[%s1308 + $0xc] sm:$0xf]
        %v1313 = vld [vmem:[%s1308 + $0x10] sm:$0xf]
        %v1314 = vld [vmem:[%s1308 + $0x14] sm:$0xf]
        %v1315 = vld [vmem:[%s1308 + $0x18] sm:$0xf]
        %v1316 = vld [vmem:[%s1308 + $0x1c] sm:$0xf]
        %v1317 = vld [vmem:[%s1308 + $0x20] sm:$0xf]
        %v1318 = vld [vmem:[%s1308 + $0x24] sm:$0xf]
        %v1319 = vld [vmem:[%s1308 + $0x28] sm:$0xf]
        %v1320 = vld [vmem:[%s1308 + $0x2c] sm:$0xf]
        %v1321 = vld [vmem:[%s1308 + $0x30] sm:$0xf]
        %v1322 = vld [vmem:[%s1308 + $0x34] sm:$0xf]
        %v1323 = vld [vmem:[%s1308 + $0x38] sm:$0xf]
        %v1324 = vld [vmem:[%s1308 + $0x3c] sm:$0xf]
        %v1325 = vld [vmem:[%s1308 + $0x40] sm:$0xf]
        %v1326 = vld [vmem:[%s1308 + $0x44] sm:$0xf]
        %v1327 = vld [vmem:[%s1308 + $0x48] sm:$0xf]
        %v1328 = vld [vmem:[%s1308 + $0x4c] sm:$0xf]
        %v1329 = vld [vmem:[%s1308 + $0x50] sm:$0xf]
        %v1330 = vld [vmem:[%s1308 + $0x54] sm:$0xf]
        %v1331 = vld [vmem:[%s1308 + $0x58] sm:$0xf]
        %v1332 = vld [vmem:[%s1308 + $0x5c] sm:$0xf]
        %v1333 = vld [vmem:[%s1308 + $0x60] sm:$0xf]
        %v1334 = vld [vmem:[%s1308 + $0x64] sm:$0xf]
        %v1335 = vld [vmem:[%s1308 + $0x68] sm:$0xf]
        %v1336 = vld [vmem:[%s1308 + $0x6c] sm:$0xf]
        %v1337 = vld [vmem:[%s1308 + $0x70] sm:$0xf]
        %v1338 = vld [vmem:[%s1308 + $0x74] sm:$0xf]
        %v1339 = vld [vmem:[%s1308 + $0x78] sm:$0xf]
        %v1340 = vld [vmem:[%s1308 + $0x7c] sm:$0xf]
        %v1341 = vld [vmem:[%s1308 + $0x80] sm:$0xf]
        %v1342 = vld [vmem:[%s1308 + $0x84] sm:$0xf]
        %v1343 = vld [vmem:[%s1308 + $0x88] sm:$0xf]
        %v1344 = vld [vmem:[%s1308 + $0x8c] sm:$0xf]
        %v1345 = vld [vmem:[%s1308 + $0x90] sm:$0xf]
        %v1346 = vld [vmem:[%s1308 + $0x94] sm:$0xf]
        %v1347 = vld [vmem:[%s1308 + $0x98] sm:$0xf]
        %v1348 = vld [vmem:[%s1308 + $0x9c] sm:$0xf]
        %v1349 = vld [vmem:[%s1308 + $0xa0] sm:$0xf]
        %v1350 = vld [vmem:[%s1308 + $0xa4] sm:$0xf]
        %v1351 = vld [vmem:[%s1308 + $0xa8] sm:$0xf]
        %v1352 = vld [vmem:[%s1308 + $0xac] sm:$0xf]
        %v1353 = vld [vmem:[%s1308 + $0xb0] sm:$0xf]
        %v1354 = vld [vmem:[%s1308 + $0xb4] sm:$0xf]
        %v1355 = vld [vmem:[%s1308 + $0xb8] sm:$0xf]
        %v1356 = vld [vmem:[%s1308 + $0xbc] sm:$0xf]
        %v1357 = vld [vmem:[%s1308 + $0xc0] sm:$0xf]
        %v1358 = vld [vmem:[%s1308 + $0xc4] sm:$0xf]
        %v1359 = vld [vmem:[%s1308 + $0xc8] sm:$0xf]
        %v1360 = vld [vmem:[%s1308 + $0xcc] sm:$0xf]
        %v1361 = vld [vmem:[%s1308 + $0xd0] sm:$0xf]
        %v1362 = vld [vmem:[%s1308 + $0xd4] sm:$0xf]
        %v1363 = vld [vmem:[%s1308 + $0xd8] sm:$0xf]
        %v1364 = vld [vmem:[%s1308 + $0xdc] sm:$0xf]
        %v1365 = vld [vmem:[%s1308 + $0xe0] sm:$0xf]
        %v1366 = vld [vmem:[%s1308 + $0xe4] sm:$0xf]
        %v1367 = vld [vmem:[%s1308 + $0xe8] sm:$0xf]
        %v1368 = vld [vmem:[%s1308 + $0xec] sm:$0xf]
        %v1369 = vld [vmem:[%s1308 + $0xf0] sm:$0xf]
        %v1370 = vld [vmem:[%s1308 + $0xf4] sm:$0xf]
        %v1371 = vld [vmem:[%s1308 + $0xf8] sm:$0xf]
        %v1372 = vld [vmem:[%s1308 + $0xfc] sm:$0xf]
        %v1373 = vld [vmem:[%s1308 + $0x100] sm:$0xf]
        %v1374 = vld [vmem:[%s1308 + $0x104] sm:$0xf]
        %v1375 = vld [vmem:[%s1308 + $0x108] sm:$0xf]
        %v1376 = vld [vmem:[%s1308 + $0x10c] sm:$0xf]
        %v1377 = vld [vmem:[%s1308 + $0x110] sm:$0xf]
        %v1378 = vld [vmem:[%s1308 + $0x114] sm:$0xf]
        %v1379 = vld [vmem:[%s1308 + $0x118] sm:$0xf]
        %v1380 = vld [vmem:[%s1308 + $0x11c] sm:$0xf]
        %v1381 = vld [vmem:[%s1308 + $0x120] sm:$0xf]
        %v1382 = vld [vmem:[%s1308 + $0x124] sm:$0xf]
        %v1383 = vld [vmem:[%s1308 + $0x128] sm:$0xf]
        %v1384 = vld [vmem:[%s1308 + $0x12c] sm:$0xf]
        %v1385 = vld [vmem:[%s1308 + $0x130] sm:$0xf]
        %v1386 = vld [vmem:[%s1308 + $0x134] sm:$0xf]
        %v1387 = vld [vmem:[%s1308 + $0x138] sm:$0xf]
        %v1388 = vld [vmem:[%s1308 + $0x13c] sm:$0xf]
        %v1389 = vld [vmem:[%s1308 + $0x140] sm:$0xf]
        %v1390 = vld [vmem:[%s1308 + $0x144] sm:$0xf]
        %v1391 = vld [vmem:[%s1308 + $0x148] sm:$0xf]
        %v1392 = vld [vmem:[%s1308 + $0x14c] sm:$0xf]
        %v1393 = vld [vmem:[%s1308 + $0x150] sm:$0xf]
        %v1394 = vld [vmem:[%s1308 + $0x154] sm:$0xf]
        %v1395 = vld [vmem:[%s1308 + $0x158] sm:$0xf]
        %v1396 = vld [vmem:[%s1308 + $0x15c] sm:$0xf]
        %v1397 = vld [vmem:[%s1308 + $0x160] sm:$0xf]
        %v1398 = vld [vmem:[%s1308 + $0x164] sm:$0xf]
        %v1399 = vld [vmem:[%s1308 + $0x168] sm:$0xf]
        %v1400 = vld [vmem:[%s1308 + $0x16c] sm:$0xf]
        %v1401 = vld [vmem:[%s1308 + $0x170] sm:$0xf]
        %v1402 = vld [vmem:[%s1308 + $0x174] sm:$0xf]
        %v1403 = vld [vmem:[%s1308 + $0x178] sm:$0xf]
        %v1404 = vld [vmem:[%s1308 + $0x17c] sm:$0xf]
        %v1405 = vld [vmem:[%s1308 + $0x180] sm:$0xf]
        %v1406 = vld [vmem:[%s1308 + $0x184] sm:$0xf]
        %v1407 = vld [vmem:[%s1308 + $0x188] sm:$0xf]
        %v1408 = vld [vmem:[%s1308 + $0x18c] sm:$0xf]
        %v1409 = vld [vmem:[%s1308 + $0x190] sm:$0xf]
        %v1410 = vld [vmem:[%s1308 + $0x194] sm:$0xf]
        %v1411 = vld [vmem:[%s1308 + $0x198] sm:$0xf]
        %v1412 = vld [vmem:[%s1308 + $0x19c] sm:$0xf]
        %v1413 = vld [vmem:[%s1308 + $0x1a0] sm:$0xf]
        %v1414 = vld [vmem:[%s1308 + $0x1a4] sm:$0xf]
        %v1415 = vld [vmem:[%s1308 + $0x1a8] sm:$0xf]
        %v1416 = vld [vmem:[%s1308 + $0x1ac] sm:$0xf]
        %v1417 = vld [vmem:[%s1308 + $0x1b0] sm:$0xf]
        %v1418 = vld [vmem:[%s1308 + $0x1b4] sm:$0xf]
        %v1419 = vld [vmem:[%s1308 + $0x1b8] sm:$0xf]
        %v1420 = vld [vmem:[%s1308 + $0x1bc] sm:$0xf]
        %v1421 = vld [vmem:[%s1308 + $0x1c0] sm:$0xf]
        %v1422 = vld [vmem:[%s1308 + $0x1c4] sm:$0xf]
        %v1423 = vld [vmem:[%s1308 + $0x1c8] sm:$0xf]
        %v1424 = vld [vmem:[%s1308 + $0x1cc] sm:$0xf]
        %v1425 = vld [vmem:[%s1308 + $0x1d0] sm:$0xf]
        %v1426 = vld [vmem:[%s1308 + $0x1d4] sm:$0xf]
        %v1427 = vld [vmem:[%s1308 + $0x1d8] sm:$0xf]
        %v1428 = vld [vmem:[%s1308 + $0x1dc] sm:$0xf]
        %v1429 = vld [vmem:[%s1308 + $0x1e0] sm:$0xf]
        %v1430 = vld [vmem:[%s1308 + $0x1e4] sm:$0xf]
        %v1431 = vld [vmem:[%s1308 + $0x1e8] sm:$0xf]
        %v1432 = vld [vmem:[%s1308 + $0x1ec] sm:$0xf]
        %v1433 = vld [vmem:[%s1308 + $0x1f0] sm:$0xf]
        %v1434 = vld [vmem:[%s1308 + $0x1f4] sm:$0xf]
        %v1435 = vld [vmem:[%s1308 + $0x1f8] sm:$0xf]
        %v1436 = vld [vmem:[%s1308 + $0x1fc] sm:$0xf]
        %v1437 = vld [vmem:[%s1308 + $0x200] sm:$0xf]
        %v1438 = vld [vmem:[%s1308 + $0x204] sm:$0xf]
        %v1439 = vld [vmem:[%s1308 + $0x208] sm:$0xf]
        %v1440 = vld [vmem:[%s1308 + $0x20c] sm:$0xf]
        %v1441 = vld [vmem:[%s1308 + $0x210] sm:$0xf]
        %v1442 = vld [vmem:[%s1308 + $0x214] sm:$0xf]
        %v1443 = vld [vmem:[%s1308 + $0x218] sm:$0xf]
        %v1444 = vld [vmem:[%s1308 + $0x21c] sm:$0xf]
        %v1445 = vld [vmem:[%s1308 + $0x220] sm:$0xf]
        %v1446 = vld [vmem:[%s1308 + $0x224] sm:$0xf]
        %v1447 = vld [vmem:[%s1308 + $0x228] sm:$0xf]
        %v1448 = vld [vmem:[%s1308 + $0x22c] sm:$0xf]
        %v1449 = vld [vmem:[%s1308 + $0x230] sm:$0xf]
        %v1450 = vld [vmem:[%s1308 + $0x234] sm:$0xf]
        %v1451 = vld [vmem:[%s1308 + $0x238] sm:$0xf]
        %v1452 = vld [vmem:[%s1308 + $0x23c] sm:$0xf]
        %v1453 = vld [vmem:[%s1308 + $0x240] sm:$0xf]
        %v1454 = vld [vmem:[%s1308 + $0x244] sm:$0xf]
        %v1455 = vld [vmem:[%s1308 + $0x248] sm:$0xf]
        %v1456 = vld [vmem:[%s1308 + $0x24c] sm:$0xf]
        %v1457 = vld [vmem:[%s1308 + $0x250] sm:$0xf]
        %v1458 = vld [vmem:[%s1308 + $0x254] sm:$0xf]
        %v1459 = vld [vmem:[%s1308 + $0x258] sm:$0xf]
        %v1460 = vld [vmem:[%s1308 + $0x25c] sm:$0xf]
        %v1461 = vld [vmem:[%s1308 + $0x260] sm:$0xf]
        %v1462 = vld [vmem:[%s1308 + $0x264] sm:$0xf]
        %v1463 = vld [vmem:[%s1308 + $0x268] sm:$0xf]
        %v1464 = vld [vmem:[%s1308 + $0x26c] sm:$0xf]
        %v1465 = vld [vmem:[%s1308 + $0x270] sm:$0xf]
        %v1466 = vld [vmem:[%s1308 + $0x274] sm:$0xf]
        %v1467 = vld [vmem:[%s1308 + $0x278] sm:$0xf]
        %v1468 = vld [vmem:[%s1308 + $0x27c] sm:$0xf]
        %v1469 = vld [vmem:[%s1308 + $0x280] sm:$0xf]
        %v1470 = vld [vmem:[%s1308 + $0x284] sm:$0xf]
        %v1471 = vld [vmem:[%s1308 + $0x288] sm:$0xf]
        %v1472 = vld [vmem:[%s1308 + $0x28c] sm:$0xf]
        %v1473 = vld [vmem:[%s1308 + $0x290] sm:$0xf]
        %v1474 = vld [vmem:[%s1308 + $0x294] sm:$0xf]
        %v1475 = vld [vmem:[%s1308 + $0x298] sm:$0xf]
        %v1476 = vld [vmem:[%s1308 + $0x29c] sm:$0xf]
        %v1477 = vld [vmem:[%s1308 + $0x2a0] sm:$0xf]
        %v1478 = vld [vmem:[%s1308 + $0x2a4] sm:$0xf]
        %v1479 = vld [vmem:[%s1308 + $0x2a8] sm:$0xf]
        %v1480 = vld [vmem:[%s1308 + $0x2ac] sm:$0xf]
        %v1481 = vld [vmem:[%s1308 + $0x2b0] sm:$0xf]
        %v1482 = vld [vmem:[%s1308 + $0x2b4] sm:$0xf]
        %v1483 = vld [vmem:[%s1308 + $0x2b8] sm:$0xf]
        %v1484 = vld [vmem:[%s1308 + $0x2bc] sm:$0xf]
        %v1485 = vld [vmem:[%s1308 + $0x2c0] sm:$0xf]
        %v1486 = vld [vmem:[%s1308 + $0x2c4] sm:$0xf]
        %v1487 = vld [vmem:[%s1308 + $0x2c8] sm:$0xf]
        %v1488 = vld [vmem:[%s1308 + $0x2cc] sm:$0xf]
        %v1489 = vld [vmem:[%s1308 + $0x2d0] sm:$0xf]
        %v1490 = vld [vmem:[%s1308 + $0x2d4] sm:$0xf]
        %v1491 = vld [vmem:[%s1308 + $0x2d8] sm:$0xf]
        %v1492 = vld [vmem:[%s1308 + $0x2dc] sm:$0xf]
        %v1493 = vld [vmem:[%s1308 + $0x2e0] sm:$0xf]
        %v1494 = vld [vmem:[%s1308 + $0x2e4] sm:$0xf]
        %v1495 = vld [vmem:[%s1308 + $0x2e8] sm:$0xf]
        %v1496 = vld [vmem:[%s1308 + $0x2ec] sm:$0xf]
        %v1497 = vld [vmem:[%s1308 + $0x2f0] sm:$0xf]
        %v1498 = vld [vmem:[%s1308 + $0x2f4] sm:$0xf]
        %v1499 = vld [vmem:[%s1308 + $0x2f8] sm:$0xf]
        %v1500 = vld [vmem:[%s1308 + $0x2fc] sm:$0xf]
        %v1501 = vld [vmem:[%s1308 + $0x300] sm:$0xf]
        %v1502 = vld [vmem:[%s1308 + $0x304] sm:$0xf]
        %v1503 = vld [vmem:[%s1308 + $0x308] sm:$0xf]
        %v1504 = vld [vmem:[%s1308 + $0x30c] sm:$0xf]
        %v1505 = vld [vmem:[%s1308 + $0x310] sm:$0xf]
        %v1506 = vld [vmem:[%s1308 + $0x314] sm:$0xf]
        %v1507 = vld [vmem:[%s1308 + $0x318] sm:$0xf]
        %v1508 = vld [vmem:[%s1308 + $0x31c] sm:$0xf]
        %v1509 = vld [vmem:[%s1308 + $0x320] sm:$0xf]
        %v1510 = vld [vmem:[%s1308 + $0x324] sm:$0xf]
        %v1511 = vld [vmem:[%s1308 + $0x328] sm:$0xf]
        %v1512 = vld [vmem:[%s1308 + $0x32c] sm:$0xf]
        %v1513 = vld [vmem:[%s1308 + $0x330] sm:$0xf]
        %v1514 = vld [vmem:[%s1308 + $0x334] sm:$0xf]
        %v1515 = vld [vmem:[%s1308 + $0x338] sm:$0xf]
        %v1516 = vld [vmem:[%s1308 + $0x33c] sm:$0xf]
        %v1517 = vld [vmem:[%s1308 + $0x340] sm:$0xf]
        %v1518 = vld [vmem:[%s1308 + $0x344] sm:$0xf]
        %v1519 = vld [vmem:[%s1308 + $0x348] sm:$0xf]
        %v1520 = vld [vmem:[%s1308 + $0x34c] sm:$0xf]
        %v1521 = vld [vmem:[%s1308 + $0x350] sm:$0xf]
        %v1522 = vld [vmem:[%s1308 + $0x354] sm:$0xf]
        %v1523 = vld [vmem:[%s1308 + $0x358] sm:$0xf]
        %v1524 = vld [vmem:[%s1308 + $0x35c] sm:$0xf]
        %v1525 = vld [vmem:[%s1308 + $0x360] sm:$0xf]
        %v1526 = vld [vmem:[%s1308 + $0x364] sm:$0xf]
        %v1527 = vld [vmem:[%s1308 + $0x368] sm:$0xf]
        %v1528 = vld [vmem:[%s1308 + $0x36c] sm:$0xf]
        %v1529 = vld [vmem:[%s1308 + $0x370] sm:$0xf]
        %v1530 = vld [vmem:[%s1308 + $0x374] sm:$0xf]
        %v1531 = vld [vmem:[%s1308 + $0x378] sm:$0xf]
        %v1532 = vld [vmem:[%s1308 + $0x37c] sm:$0xf]
        %v1533 = vld [vmem:[%s1308 + $0x380] sm:$0xf]
        %v1534 = vld [vmem:[%s1308 + $0x384] sm:$0xf]
        %v1535 = vld [vmem:[%s1308 + $0x388] sm:$0xf]
        %v1536 = vld [vmem:[%s1308 + $0x38c] sm:$0xf]
        %v1537 = vld [vmem:[%s1308 + $0x390] sm:$0xf]
        %v1538 = vld [vmem:[%s1308 + $0x394] sm:$0xf]
        %v1539 = vld [vmem:[%s1308 + $0x398] sm:$0xf]
        %v1540 = vld [vmem:[%s1308 + $0x39c] sm:$0xf]
        %v1541 = vld [vmem:[%s1308 + $0x3a0] sm:$0xf]
        %v1542 = vld [vmem:[%s1308 + $0x3a4] sm:$0xf]
        %v1543 = vld [vmem:[%s1308 + $0x3a8] sm:$0xf]
        %v1544 = vld [vmem:[%s1308 + $0x3ac] sm:$0xf]
        %v1545 = vld [vmem:[%s1308 + $0x3b0] sm:$0xf]
        %v1546 = vld [vmem:[%s1308 + $0x3b4] sm:$0xf]
        %v1547 = vld [vmem:[%s1308 + $0x3b8] sm:$0xf]
        %v1548 = vld [vmem:[%s1308 + $0x3bc] sm:$0xf]
        %v1549 = vld [vmem:[%s1308 + $0x3c0] sm:$0xf]
        %v1550 = vld [vmem:[%s1308 + $0x3c4] sm:$0xf]
        %v1551 = vld [vmem:[%s1308 + $0x3c8] sm:$0xf]
        %v1552 = vld [vmem:[%s1308 + $0x3cc] sm:$0xf]
        %v1553 = vld [vmem:[%s1308 + $0x3d0] sm:$0xf]
        %v1554 = vld [vmem:[%s1308 + $0x3d4] sm:$0xf]
        %v1555 = vld [vmem:[%s1308 + $0x3d8] sm:$0xf]
        %v1556 = vld [vmem:[%s1308 + $0x3dc] sm:$0xf]
        %v1557 = vld [vmem:[%s1308 + $0x3e0] sm:$0xf]
        %v1558 = vld [vmem:[%s1308 + $0x3e4] sm:$0xf]
        %v1559 = vld [vmem:[%s1308 + $0x3e8] sm:$0xf]
        %v1560 = vld [vmem:[%s1308 + $0x3ec] sm:$0xf]
        %v1561 = vld [vmem:[%s1308 + $0x3f0] sm:$0xf]
        %v1562 = vld [vmem:[%s1308 + $0x3f4] sm:$0xf]
        %v1563 = vld [vmem:[%s1308 + $0x3f8] sm:$0xf]
        %v1564 = vld [vmem:[%s1308 + $0x3fc] sm:$0xf]
        %v1565 = vld [vmem:[%s1299] sm:$0xff]
        %v1566 = vld [vmem:[%s1299 + $0x8] sm:$0xff]
        %v1567 = vld [vmem:[%s1299 + $0x10] sm:$0xff]
        %v1568 = vld [vmem:[%s1299 + $0x18] sm:$0xff]
        %v1569 = vld [vmem:[%s1299 + $0x20] sm:$0xff]
        %v1570 = vld [vmem:[%s1299 + $0x28] sm:$0xff]
        %v1571 = vld [vmem:[%s1299 + $0x30] sm:$0xff]
        %v1572 = vld [vmem:[%s1299 + $0x38] sm:$0xff]
        %v1573 = vld [vmem:[%s1299 + $0x40] sm:$0xff]
        %v1574 = vld [vmem:[%s1299 + $0x48] sm:$0xff]
        %v1575 = vld [vmem:[%s1299 + $0x50] sm:$0xff]
        %v1576 = vld [vmem:[%s1299 + $0x58] sm:$0xff]
        %v1577 = vld [vmem:[%s1299 + $0x60] sm:$0xff]
        %v1578 = vld [vmem:[%s1299 + $0x68] sm:$0xff]
        %v1579 = vld [vmem:[%s1299 + $0x70] sm:$0xff]
        %v1580 = vld [vmem:[%s1299 + $0x78] sm:$0xff]
        %v1581 = vld [vmem:[%s1303] sm:$0x1]
        %v1583 = vlaneseq
        %v1584 = vshrl.u32 %v1583, 7
        %v1585 = vsub.s32 0, %v1584
        %v1586 = vrot.slane %v1581, %v1585
        %v1604 = vunpack.c.l.b16 %v1565
        %v1605 = vunpack.c.h.b16 %v1565
        %v1606 = vunpack.c.l.b16 %v1566
        %v1607 = vunpack.c.h.b16 %v1566
        %v1608 = vunpack.c.l.b16 %v1567
        %v1609 = vunpack.c.h.b16 %v1567
        %v1610 = vunpack.c.l.b16 %v1568
        %v1611 = vunpack.c.h.b16 %v1568
        %v1612 = vunpack.c.l.b16 %v1569
        %v1613 = vunpack.c.h.b16 %v1569
        %v1614 = vunpack.c.l.b16 %v1570
        %v1615 = vunpack.c.h.b16 %v1570
        %v1616 = vunpack.c.l.b16 %v1571
        %v1617 = vunpack.c.h.b16 %v1571
        %v1618 = vunpack.c.l.b16 %v1572
        %v1619 = vunpack.c.h.b16 %v1572
        %v1620 = vunpack.c.l.b16 %v1573
        %v1621 = vunpack.c.h.b16 %v1573
        %v1622 = vunpack.c.l.b16 %v1574
        %v1623 = vunpack.c.h.b16 %v1574
        %v1624 = vunpack.c.l.b16 %v1575
        %v1625 = vunpack.c.h.b16 %v1575
        %v1626 = vunpack.c.l.b16 %v1576
        %v1627 = vunpack.c.h.b16 %v1576
        %v1628 = vunpack.c.l.b16 %v1577
        %v1629 = vunpack.c.h.b16 %v1577
        %v1630 = vunpack.c.l.b16 %v1578
        %v1631 = vunpack.c.h.b16 %v1578
        %v1632 = vunpack.c.l.b16 %v1579
        %v1633 = vunpack.c.h.b16 %v1579
        %v1634 = vunpack.c.l.b16 %v1580
        %v1635 = vunpack.c.h.b16 %v1580
        %v1636 = vpack.c.b16 %v1620, %v1604
        %v1637 = vpack.c.b16 %v1621, %v1605
        %v1638 = vpack.c.b16 %v1622, %v1606
        %v1639 = vpack.c.b16 %v1623, %v1607
        %v1640 = vpack.c.b16 %v1624, %v1608
        %v1641 = vpack.c.b16 %v1625, %v1609
        %v1642 = vpack.c.b16 %v1626, %v1610
        %v1643 = vpack.c.b16 %v1627, %v1611
        %v1644 = vpack.c.b16 %v1628, %v1612
        %v1645 = vpack.c.b16 %v1629, %v1613
        %v1646 = vpack.c.b16 %v1630, %v1614
        %v1647 = vpack.c.b16 %v1631, %v1615
        %v1648 = vpack.c.b16 %v1632, %v1616
        %v1649 = vpack.c.b16 %v1633, %v1617
        %v1650 = vpack.c.b16 %v1634, %v1618
        %v1651 = vpack.c.b16 %v1635, %v1619
        %v1924 = vunpack.c.l.b16 %v1309
        %v1925 = vunpack.c.l.b16 %v1310
        %v1926 = vunpack.c.l.b16 %v1311
        %v1927 = vunpack.c.l.b16 %v1312
        %v1928 = vunpack.c.l.b16 %v1313
        %v1929 = vunpack.c.l.b16 %v1314
        %v1930 = vunpack.c.l.b16 %v1315
        %v1931 = vunpack.c.l.b16 %v1316
        %v1932 = vunpack.c.l.b16 %v1317
        %v1933 = vunpack.c.l.b16 %v1318
        %v1934 = vunpack.c.l.b16 %v1319
        %v1935 = vunpack.c.l.b16 %v1320
        %v1936 = vunpack.c.l.b16 %v1321
        %v1937 = vunpack.c.l.b16 %v1322
        %v1938 = vunpack.c.l.b16 %v1323
        %v1939 = vunpack.c.l.b16 %v1324
        %v1940 = vunpack.c.l.b16 %v1325
        %v1941 = vunpack.c.l.b16 %v1326
        %v1942 = vunpack.c.l.b16 %v1327
        %v1943 = vunpack.c.l.b16 %v1328
        %v1944 = vunpack.c.l.b16 %v1329
        %v1945 = vunpack.c.l.b16 %v1330
        %v1946 = vunpack.c.l.b16 %v1331
        %v1947 = vunpack.c.l.b16 %v1332
        %v1948 = vunpack.c.l.b16 %v1333
        %v1949 = vunpack.c.l.b16 %v1334
        %v1950 = vunpack.c.l.b16 %v1335
        %v1951 = vunpack.c.l.b16 %v1336
        %v1952 = vunpack.c.l.b16 %v1337
        %v1953 = vunpack.c.l.b16 %v1338
        %v1954 = vunpack.c.l.b16 %v1339
        %v1955 = vunpack.c.l.b16 %v1340
        %v1956 = vunpack.c.l.b16 %v1341
        %v1957 = vunpack.c.l.b16 %v1342
        %v1958 = vunpack.c.l.b16 %v1343
        %v1959 = vunpack.c.l.b16 %v1344
        %v1960 = vunpack.c.l.b16 %v1345
        %v1961 = vunpack.c.l.b16 %v1346
        %v1962 = vunpack.c.l.b16 %v1347
        %v1963 = vunpack.c.l.b16 %v1348
        %v1964 = vunpack.c.l.b16 %v1349
        %v1965 = vunpack.c.l.b16 %v1350
        %v1966 = vunpack.c.l.b16 %v1351
        %v1967 = vunpack.c.l.b16 %v1352
        %v1968 = vunpack.c.l.b16 %v1353
        %v1969 = vunpack.c.l.b16 %v1354
        %v1970 = vunpack.c.l.b16 %v1355
        %v1971 = vunpack.c.l.b16 %v1356
        %v1972 = vunpack.c.l.b16 %v1357
        %v1973 = vunpack.c.l.b16 %v1358
        %v1974 = vunpack.c.l.b16 %v1359
        %v1975 = vunpack.c.l.b16 %v1360
        %v1976 = vunpack.c.l.b16 %v1361
        %v1977 = vunpack.c.l.b16 %v1362
        %v1978 = vunpack.c.l.b16 %v1363
        %v1979 = vunpack.c.l.b16 %v1364
        %v1980 = vunpack.c.l.b16 %v1365
        %v1981 = vunpack.c.l.b16 %v1366
        %v1982 = vunpack.c.l.b16 %v1367
        %v1983 = vunpack.c.l.b16 %v1368
        %v1984 = vunpack.c.l.b16 %v1369
        %v1985 = vunpack.c.l.b16 %v1370
        %v1986 = vunpack.c.l.b16 %v1371
        %v1987 = vunpack.c.l.b16 %v1372
        %v1988 = vunpack.c.l.b16 %v1373
        %v1989 = vunpack.c.l.b16 %v1374
        %v1990 = vunpack.c.l.b16 %v1375
        %v1991 = vunpack.c.l.b16 %v1376
        %v1992 = vunpack.c.l.b16 %v1377
        %v1993 = vunpack.c.l.b16 %v1378
        %v1994 = vunpack.c.l.b16 %v1379
        %v1995 = vunpack.c.l.b16 %v1380
        %v1996 = vunpack.c.l.b16 %v1381
        %v1997 = vunpack.c.l.b16 %v1382
        %v1998 = vunpack.c.l.b16 %v1383
        %v1999 = vunpack.c.l.b16 %v1384
        %v2000 = vunpack.c.l.b16 %v1385
        %v2001 = vunpack.c.l.b16 %v1386
        %v2002 = vunpack.c.l.b16 %v1387
        %v2003 = vunpack.c.l.b16 %v1388
        %v2004 = vunpack.c.l.b16 %v1389
        %v2005 = vunpack.c.l.b16 %v1390
        %v2006 = vunpack.c.l.b16 %v1391
        %v2007 = vunpack.c.l.b16 %v1392
        %v2008 = vunpack.c.l.b16 %v1393
        %v2009 = vunpack.c.l.b16 %v1394
        %v2010 = vunpack.c.l.b16 %v1395
        %v2011 = vunpack.c.l.b16 %v1396
        %v2012 = vunpack.c.l.b16 %v1397
        %v2013 = vunpack.c.l.b16 %v1398
        %v2014 = vunpack.c.l.b16 %v1399
        %v2015 = vunpack.c.l.b16 %v1400
        %v2016 = vunpack.c.l.b16 %v1401
        %v2017 = vunpack.c.l.b16 %v1402
        %v2018 = vunpack.c.l.b16 %v1403
        %v2019 = vunpack.c.l.b16 %v1404
        %v2020 = vunpack.c.l.b16 %v1405
        %v2021 = vunpack.c.l.b16 %v1406
        %v2022 = vunpack.c.l.b16 %v1407
        %v2023 = vunpack.c.l.b16 %v1408
        %v2024 = vunpack.c.l.b16 %v1409
        %v2025 = vunpack.c.l.b16 %v1410
        %v2026 = vunpack.c.l.b16 %v1411
        %v2027 = vunpack.c.l.b16 %v1412
        %v2028 = vunpack.c.l.b16 %v1413
        %v2029 = vunpack.c.l.b16 %v1414
        %v2030 = vunpack.c.l.b16 %v1415
        %v2031 = vunpack.c.l.b16 %v1416
        %v2032 = vunpack.c.l.b16 %v1417
        %v2033 = vunpack.c.l.b16 %v1418
        %v2034 = vunpack.c.l.b16 %v1419
        %v2035 = vunpack.c.l.b16 %v1420
        %v2036 = vunpack.c.l.b16 %v1421
        %v2037 = vunpack.c.l.b16 %v1422
        %v2038 = vunpack.c.l.b16 %v1423
        %v2039 = vunpack.c.l.b16 %v1424
        %v2040 = vunpack.c.l.b16 %v1425
        %v2041 = vunpack.c.l.b16 %v1426
        %v2042 = vunpack.c.l.b16 %v1427
        %v2043 = vunpack.c.l.b16 %v1428
        %v2044 = vunpack.c.l.b16 %v1429
        %v2045 = vunpack.c.l.b16 %v1430
        %v2046 = vunpack.c.l.b16 %v1431
        %v2047 = vunpack.c.l.b16 %v1432
        %v2048 = vunpack.c.l.b16 %v1433
        %v2049 = vunpack.c.l.b16 %v1434
        %v2050 = vunpack.c.l.b16 %v1435
        %v2051 = vunpack.c.l.b16 %v1436
        %v2052 = vunpack.c.l.b16 %v1437
        %v2053 = vunpack.c.l.b16 %v1438
        %v2054 = vunpack.c.l.b16 %v1439
        %v2055 = vunpack.c.l.b16 %v1440
        %v2056 = vunpack.c.l.b16 %v1441
        %v2057 = vunpack.c.l.b16 %v1442
        %v2058 = vunpack.c.l.b16 %v1443
        %v2059 = vunpack.c.l.b16 %v1444
        %v2060 = vunpack.c.l.b16 %v1445
        %v2061 = vunpack.c.l.b16 %v1446
        %v2062 = vunpack.c.l.b16 %v1447
        %v2063 = vunpack.c.l.b16 %v1448
        %v2064 = vunpack.c.l.b16 %v1449
        %v2065 = vunpack.c.l.b16 %v1450
        %v2066 = vunpack.c.l.b16 %v1451
        %v2067 = vunpack.c.l.b16 %v1452
        %v2068 = vunpack.c.l.b16 %v1453
        %v2069 = vunpack.c.l.b16 %v1454
        %v2070 = vunpack.c.l.b16 %v1455
        %v2071 = vunpack.c.l.b16 %v1456
        %v2072 = vunpack.c.l.b16 %v1457
        %v2073 = vunpack.c.l.b16 %v1458
        %v2074 = vunpack.c.l.b16 %v1459
        %v2075 = vunpack.c.l.b16 %v1460
        %v2076 = vunpack.c.l.b16 %v1461
        %v2077 = vunpack.c.l.b16 %v1462
        %v2078 = vunpack.c.l.b16 %v1463
        %v2079 = vunpack.c.l.b16 %v1464
        %v2080 = vunpack.c.l.b16 %v1465
        %v2081 = vunpack.c.l.b16 %v1466
        %v2082 = vunpack.c.l.b16 %v1467
        %v2083 = vunpack.c.l.b16 %v1468
        %v2084 = vunpack.c.l.b16 %v1469
        %v2085 = vunpack.c.l.b16 %v1470
        %v2086 = vunpack.c.l.b16 %v1471
        %v2087 = vunpack.c.l.b16 %v1472
        %v2088 = vunpack.c.l.b16 %v1473
        %v2089 = vunpack.c.l.b16 %v1474
        %v2090 = vunpack.c.l.b16 %v1475
        %v2091 = vunpack.c.l.b16 %v1476
        %v2092 = vunpack.c.l.b16 %v1477
        %v2093 = vunpack.c.l.b16 %v1478
        %v2094 = vunpack.c.l.b16 %v1479
        %v2095 = vunpack.c.l.b16 %v1480
        %v2096 = vunpack.c.l.b16 %v1481
        %v2097 = vunpack.c.l.b16 %v1482
        %v2098 = vunpack.c.l.b16 %v1483
        %v2099 = vunpack.c.l.b16 %v1484
        %v2100 = vunpack.c.l.b16 %v1485
        %v2101 = vunpack.c.l.b16 %v1486
        %v2102 = vunpack.c.l.b16 %v1487
        %v2103 = vunpack.c.l.b16 %v1488
        %v2104 = vunpack.c.l.b16 %v1489
        %v2105 = vunpack.c.l.b16 %v1490
        %v2106 = vunpack.c.l.b16 %v1491
        %v2107 = vunpack.c.l.b16 %v1492
        %v2108 = vunpack.c.l.b16 %v1493
        %v2109 = vunpack.c.l.b16 %v1494
        %v2110 = vunpack.c.l.b16 %v1495
        %v2111 = vunpack.c.l.b16 %v1496
        %v2112 = vunpack.c.l.b16 %v1497
        %v2113 = vunpack.c.l.b16 %v1498
        %v2114 = vunpack.c.l.b16 %v1499
        %v2115 = vunpack.c.l.b16 %v1500
        %v2116 = vunpack.c.l.b16 %v1501
        %v2117 = vunpack.c.l.b16 %v1502
        %v2118 = vunpack.c.l.b16 %v1503
        %v2119 = vunpack.c.l.b16 %v1504
        %v2120 = vunpack.c.l.b16 %v1505
        %v2121 = vunpack.c.l.b16 %v1506
        %v2122 = vunpack.c.l.b16 %v1507
        %v2123 = vunpack.c.l.b16 %v1508
        %v2124 = vunpack.c.l.b16 %v1509
        %v2125 = vunpack.c.l.b16 %v1510
        %v2126 = vunpack.c.l.b16 %v1511
        %v2127 = vunpack.c.l.b16 %v1512
        %v2128 = vunpack.c.l.b16 %v1513
        %v2129 = vunpack.c.l.b16 %v1514
        %v2130 = vunpack.c.l.b16 %v1515
        %v2131 = vunpack.c.l.b16 %v1516
        %v2132 = vunpack.c.l.b16 %v1517
        %v2133 = vunpack.c.l.b16 %v1518
        %v2134 = vunpack.c.l.b16 %v1519
        %v2135 = vunpack.c.l.b16 %v1520
        %v2136 = vunpack.c.l.b16 %v1521
        %v2137 = vunpack.c.l.b16 %v1522
        %v2138 = vunpack.c.l.b16 %v1523
        %v2139 = vunpack.c.l.b16 %v1524
        %v2140 = vunpack.c.l.b16 %v1525
        %v2141 = vunpack.c.l.b16 %v1526
        %v2142 = vunpack.c.l.b16 %v1527
        %v2143 = vunpack.c.l.b16 %v1528
        %v2144 = vunpack.c.l.b16 %v1529
        %v2145 = vunpack.c.l.b16 %v1530
        %v2146 = vunpack.c.l.b16 %v1531
        %v2147 = vunpack.c.l.b16 %v1532
        %v2148 = vunpack.c.l.b16 %v1533
        %v2149 = vunpack.c.l.b16 %v1534
        %v2150 = vunpack.c.l.b16 %v1535
        %v2151 = vunpack.c.l.b16 %v1536
        %v2152 = vunpack.c.l.b16 %v1537
        %v2153 = vunpack.c.l.b16 %v1538
        %v2154 = vunpack.c.l.b16 %v1539
        %v2155 = vunpack.c.l.b16 %v1540
        %v2156 = vunpack.c.l.b16 %v1541
        %v2157 = vunpack.c.l.b16 %v1542
        %v2158 = vunpack.c.l.b16 %v1543
        %v2159 = vunpack.c.l.b16 %v1544
        %v2160 = vunpack.c.l.b16 %v1545
        %v2161 = vunpack.c.l.b16 %v1546
        %v2162 = vunpack.c.l.b16 %v1547
        %v2163 = vunpack.c.l.b16 %v1548
        %v2164 = vunpack.c.l.b16 %v1549
        %v2165 = vunpack.c.l.b16 %v1550
        %v2166 = vunpack.c.l.b16 %v1551
        %v2167 = vunpack.c.l.b16 %v1552
        %v2168 = vunpack.c.l.b16 %v1553
        %v2169 = vunpack.c.l.b16 %v1554
        %v2170 = vunpack.c.l.b16 %v1555
        %v2171 = vunpack.c.l.b16 %v1556
        %v2172 = vunpack.c.l.b16 %v1557
        %v2173 = vunpack.c.l.b16 %v1558
        %v2174 = vunpack.c.l.b16 %v1559
        %v2175 = vunpack.c.l.b16 %v1560
        %v2176 = vunpack.c.l.b16 %v1561
        %v2177 = vunpack.c.l.b16 %v1562
        %v2178 = vunpack.c.l.b16 %v1563
        %v2179 = vunpack.c.l.b16 %v1564
        %v2180 = vpack.c.b16 %v1925, %v1924
        %v2181 = vpack.c.b16 %v1927, %v1926
        %v2182 = vpack.c.b16 %v1929, %v1928
        %v2183 = vpack.c.b16 %v1931, %v1930
        %v2184 = vpack.c.b16 %v1933, %v1932
        %v2185 = vpack.c.b16 %v1935, %v1934
        %v2186 = vpack.c.b16 %v1937, %v1936
        %v2187 = vpack.c.b16 %v1939, %v1938
        %v2188 = vpack.c.b16 %v1941, %v1940
        %v2189 = vpack.c.b16 %v1943, %v1942
        %v2190 = vpack.c.b16 %v1945, %v1944
        %v2191 = vpack.c.b16 %v1947, %v1946
        %v2192 = vpack.c.b16 %v1949, %v1948
        %v2193 = vpack.c.b16 %v1951, %v1950
        %v2194 = vpack.c.b16 %v1953, %v1952
        %v2195 = vpack.c.b16 %v1955, %v1954
        %v2196 = vpack.c.b16 %v1957, %v1956
        %v2197 = vpack.c.b16 %v1959, %v1958
        %v2198 = vpack.c.b16 %v1961, %v1960
        %v2199 = vpack.c.b16 %v1963, %v1962
        %v2200 = vpack.c.b16 %v1965, %v1964
        %v2201 = vpack.c.b16 %v1967, %v1966
        %v2202 = vpack.c.b16 %v1969, %v1968
        %v2203 = vpack.c.b16 %v1971, %v1970
        %v2204 = vpack.c.b16 %v1973, %v1972
        %v2205 = vpack.c.b16 %v1975, %v1974
        %v2206 = vpack.c.b16 %v1977, %v1976
        %v2207 = vpack.c.b16 %v1979, %v1978
        %v2208 = vpack.c.b16 %v1981, %v1980
        %v2209 = vpack.c.b16 %v1983, %v1982
        %v2210 = vpack.c.b16 %v1985, %v1984
        %v2211 = vpack.c.b16 %v1987, %v1986
        %v2212 = vpack.c.b16 %v1989, %v1988
        %v2213 = vpack.c.b16 %v1991, %v1990
        %v2214 = vpack.c.b16 %v1993, %v1992
        %v2215 = vpack.c.b16 %v1995, %v1994
        %v2216 = vpack.c.b16 %v1997, %v1996
        %v2217 = vpack.c.b16 %v1999, %v1998
        %v2218 = vpack.c.b16 %v2001, %v2000
        %v2219 = vpack.c.b16 %v2003, %v2002
        %v2220 = vpack.c.b16 %v2005, %v2004
        %v2221 = vpack.c.b16 %v2007, %v2006
        %v2222 = vpack.c.b16 %v2009, %v2008
        %v2223 = vpack.c.b16 %v2011, %v2010
        %v2224 = vpack.c.b16 %v2013, %v2012
        %v2225 = vpack.c.b16 %v2015, %v2014
        %v2226 = vpack.c.b16 %v2017, %v2016
        %v2227 = vpack.c.b16 %v2019, %v2018
        %v2228 = vpack.c.b16 %v2021, %v2020
        %v2229 = vpack.c.b16 %v2023, %v2022
        %v2230 = vpack.c.b16 %v2025, %v2024
        %v2231 = vpack.c.b16 %v2027, %v2026
        %v2232 = vpack.c.b16 %v2029, %v2028
        %v2233 = vpack.c.b16 %v2031, %v2030
        %v2234 = vpack.c.b16 %v2033, %v2032
        %v2235 = vpack.c.b16 %v2035, %v2034
        %v2236 = vpack.c.b16 %v2037, %v2036
        %v2237 = vpack.c.b16 %v2039, %v2038
        %v2238 = vpack.c.b16 %v2041, %v2040
        %v2239 = vpack.c.b16 %v2043, %v2042
        %v2240 = vpack.c.b16 %v2045, %v2044
        %v2241 = vpack.c.b16 %v2047, %v2046
        %v2242 = vpack.c.b16 %v2049, %v2048
        %v2243 = vpack.c.b16 %v2051, %v2050
        %v2244 = vpack.c.b16 %v2053, %v2052
        %v2245 = vpack.c.b16 %v2055, %v2054
        %v2246 = vpack.c.b16 %v2057, %v2056
        %v2247 = vpack.c.b16 %v2059, %v2058
        %v2248 = vpack.c.b16 %v2061, %v2060
        %v2249 = vpack.c.b16 %v2063, %v2062
        %v2250 = vpack.c.b16 %v2065, %v2064
        %v2251 = vpack.c.b16 %v2067, %v2066
        %v2252 = vpack.c.b16 %v2069, %v2068
        %v2253 = vpack.c.b16 %v2071, %v2070
        %v2254 = vpack.c.b16 %v2073, %v2072
        %v2255 = vpack.c.b16 %v2075, %v2074
        %v2256 = vpack.c.b16 %v2077, %v2076
        %v2257 = vpack.c.b16 %v2079, %v2078
        %v2258 = vpack.c.b16 %v2081, %v2080
        %v2259 = vpack.c.b16 %v2083, %v2082
        %v2260 = vpack.c.b16 %v2085, %v2084
        %v2261 = vpack.c.b16 %v2087, %v2086
        %v2262 = vpack.c.b16 %v2089, %v2088
        %v2263 = vpack.c.b16 %v2091, %v2090
        %v2264 = vpack.c.b16 %v2093, %v2092
        %v2265 = vpack.c.b16 %v2095, %v2094
        %v2266 = vpack.c.b16 %v2097, %v2096
        %v2267 = vpack.c.b16 %v2099, %v2098
        %v2268 = vpack.c.b16 %v2101, %v2100
        %v2269 = vpack.c.b16 %v2103, %v2102
        %v2270 = vpack.c.b16 %v2105, %v2104
        %v2271 = vpack.c.b16 %v2107, %v2106
        %v2272 = vpack.c.b16 %v2109, %v2108
        %v2273 = vpack.c.b16 %v2111, %v2110
        %v2274 = vpack.c.b16 %v2113, %v2112
        %v2275 = vpack.c.b16 %v2115, %v2114
        %v2276 = vpack.c.b16 %v2117, %v2116
        %v2277 = vpack.c.b16 %v2119, %v2118
        %v2278 = vpack.c.b16 %v2121, %v2120
        %v2279 = vpack.c.b16 %v2123, %v2122
        %v2280 = vpack.c.b16 %v2125, %v2124
        %v2281 = vpack.c.b16 %v2127, %v2126
        %v2282 = vpack.c.b16 %v2129, %v2128
        %v2283 = vpack.c.b16 %v2131, %v2130
        %v2284 = vpack.c.b16 %v2133, %v2132
        %v2285 = vpack.c.b16 %v2135, %v2134
        %v2286 = vpack.c.b16 %v2137, %v2136
        %v2287 = vpack.c.b16 %v2139, %v2138
        %v2288 = vpack.c.b16 %v2141, %v2140
        %v2289 = vpack.c.b16 %v2143, %v2142
        %v2290 = vpack.c.b16 %v2145, %v2144
        %v2291 = vpack.c.b16 %v2147, %v2146
        %v2292 = vpack.c.b16 %v2149, %v2148
        %v2293 = vpack.c.b16 %v2151, %v2150
        %v2294 = vpack.c.b16 %v2153, %v2152
        %v2295 = vpack.c.b16 %v2155, %v2154
        %v2296 = vpack.c.b16 %v2157, %v2156
        %v2297 = vpack.c.b16 %v2159, %v2158
        %v2298 = vpack.c.b16 %v2161, %v2160
        %v2299 = vpack.c.b16 %v2163, %v2162
        %v2300 = vpack.c.b16 %v2165, %v2164
        %v2301 = vpack.c.b16 %v2167, %v2166
        %v2302 = vpack.c.b16 %v2169, %v2168
        %v2303 = vpack.c.b16 %v2171, %v2170
        %v2304 = vpack.c.b16 %v2173, %v2172
        %v2305 = vpack.c.b16 %v2175, %v2174
        %v2306 = vpack.c.b16 %v2177, %v2176
        %v2307 = vpack.c.b16 %v2179, %v2178
        %2436 = vmatprep.subr.bf16.mxu0 0
        %2437 = vmatpush1.bf16.msra.mxu0 %v2187
        %2438 = vmatprep.subr.bf16.mxu0 0
        %2439 = vmatpush1.bf16.msra.mxu0 %v2186
        %2440 = vmatprep.subr.bf16.mxu0 0
        %2441 = vmatpush1.bf16.msra.mxu0 %v2185
        %2442 = vmatprep.subr.bf16.mxu0 0
        %2443 = vmatpush1.bf16.msra.mxu0 %v2184
        %2444 = vmatprep.subr.bf16.mxu0 0
        %2445 = vmatpush1.bf16.msra.mxu0 %v2183
        %2446 = vmatprep.subr.bf16.mxu0 0
        %2447 = vmatpush1.bf16.msra.mxu0 %v2182
        %2448 = vmatprep.subr.bf16.mxu0 0
        %2449 = vmatpush1.bf16.msra.mxu0 %v2181
        %2450 = vmatprep.subr.bf16.mxu0 0
        %2451 = vmatpush1.bf16.msra.mxu0 %v2180
        %2452 = vmatprep.subr.bf16.mxu0 0
        %2453 = vmatpush2.bf16.msra.mxu0 %v2195
        %2454 = vmatprep.subr.bf16.mxu0 0
        %2455 = vmatpush2.bf16.msra.mxu0 %v2194
        %2456 = vmatprep.subr.bf16.mxu0 0
        %2457 = vmatpush2.bf16.msra.mxu0 %v2193
        %2458 = vmatprep.subr.bf16.mxu0 0
        %2459 = vmatpush2.bf16.msra.mxu0 %v2192
        %2460 = vmatprep.subr.bf16.mxu0 0
        %2461 = vmatpush2.bf16.msra.mxu0 %v2191
        %2462 = vmatprep.subr.bf16.mxu0 0
        %2463 = vmatpush2.bf16.msra.mxu0 %v2190
        %2464 = vmatprep.subr.bf16.mxu0 0
        %2465 = vmatpush2.bf16.msra.mxu0 %v2189
        %2466 = vmatprep.subr.bf16.mxu0 0
        %2467 = vmatpush2.bf16.msra.mxu0 %v2188
        %2468 = vmatprep.mubr.bf16.mxu0 %v1637
        %2469 = vmatmul.mubr.bf16.gmra.mxu0 %v1636
        %v2470 = vpop.f32.mrf.mxu0
        %v2471 = vadd.f32 %v1586, %v2470
        %v2472 = vpop.f32.mrf.mxu0
        %v2473 = vpop.f32.mrf.mxu0
        %v2474 = vadd.f32 %v1586, %v2473
        %v2475 = vpop.f32.mrf.mxu0
        %2476 = vdwg.mxu0
        %2477 = vmatprep.subr.bf16.mxu0 0
        %2478 = vmatpush1.bf16.msra.mxu0 %v2203
        %2479 = vmatprep.subr.bf16.mxu0 0
        %2480 = vmatpush1.bf16.msra.mxu0 %v2202
        %2481 = vmatprep.subr.bf16.mxu0 0
        %2482 = vmatpush1.bf16.msra.mxu0 %v2201
        %2483 = vmatprep.subr.bf16.mxu0 0
        %2484 = vmatpush1.bf16.msra.mxu0 %v2200
        %2485 = vmatprep.subr.bf16.mxu0 0
        %2486 = vmatpush1.bf16.msra.mxu0 %v2199
        %2487 = vmatprep.subr.bf16.mxu0 0
        %2488 = vmatpush1.bf16.msra.mxu0 %v2198
        %2489 = vmatprep.subr.bf16.mxu0 0
        %2490 = vmatpush1.bf16.msra.mxu0 %v2197
        %2491 = vmatprep.subr.bf16.mxu0 0
        %2492 = vmatpush1.bf16.msra.mxu0 %v2196
        %2493 = vmatprep.subr.bf16.mxu0 0
        %2494 = vmatpush2.bf16.msra.mxu0 %v2211
        %2495 = vmatprep.subr.bf16.mxu0 0
        %2496 = vmatpush2.bf16.msra.mxu0 %v2210
        %2497 = vmatprep.subr.bf16.mxu0 0
        %2498 = vmatpush2.bf16.msra.mxu0 %v2209
        %2499 = vmatprep.subr.bf16.mxu0 0
        %2500 = vmatpush2.bf16.msra.mxu0 %v2208
        %2501 = vmatprep.subr.bf16.mxu0 0
        %2502 = vmatpush2.bf16.msra.mxu0 %v2207
        %2503 = vmatprep.subr.bf16.mxu0 0
        %2504 = vmatpush2.bf16.msra.mxu0 %v2206
        %2505 = vmatprep.subr.bf16.mxu0 0
        %2506 = vmatpush2.bf16.msra.mxu0 %v2205
        %2507 = vmatprep.subr.bf16.mxu0 0
        %2508 = vmatpush2.bf16.msra.mxu0 %v2204
        %2509 = vmatprep.mubr.bf16.mxu0 %v1639
        %2510 = vmatmul.mubr.bf16.gmra.mxu0 %v1638
        %v2511 = vpop.f32.mrf.mxu0
        %v2512 = vadd.f32 %v2471, %v2511
        %v2513 = vpop.f32.mrf.mxu0
        %v2514 = vpop.f32.mrf.mxu0
        %v2515 = vadd.f32 %v2474, %v2514
        %v2516 = vpop.f32.mrf.mxu0
        %2517 = vdwg.mxu0
        %2518 = vmatprep.subr.bf16.mxu0 0
        %2519 = vmatpush1.bf16.msra.mxu0 %v2219
        %2520 = vmatprep.subr.bf16.mxu0 0
        %2521 = vmatpush1.bf16.msra.mxu0 %v2218
        %2522 = vmatprep.subr.bf16.mxu0 0
        %2523 = vmatpush1.bf16.msra.mxu0 %v2217
        %2524 = vmatprep.subr.bf16.mxu0 0
        %2525 = vmatpush1.bf16.msra.mxu0 %v2216
        %2526 = vmatprep.subr.bf16.mxu0 0
        %2527 = vmatpush1.bf16.msra.mxu0 %v2215
        %2528 = vmatprep.subr.bf16.mxu0 0
        %2529 = vmatpush1.bf16.msra.mxu0 %v2214
        %2530 = vmatprep.subr.bf16.mxu0 0
        %2531 = vmatpush1.bf16.msra.mxu0 %v2213
        %2532 = vmatprep.subr.bf16.mxu0 0
        %2533 = vmatpush1.bf16.msra.mxu0 %v2212
        %2534 = vmatprep.subr.bf16.mxu0 0
        %2535 = vmatpush2.bf16.msra.mxu0 %v2227
        %2536 = vmatprep.subr.bf16.mxu0 0
        %2537 = vmatpush2.bf16.msra.mxu0 %v2226
        %2538 = vmatprep.subr.bf16.mxu0 0
        %2539 = vmatpush2.bf16.msra.mxu0 %v2225
        %2540 = vmatprep.subr.bf16.mxu0 0
        %2541 = vmatpush2.bf16.msra.mxu0 %v2224
        %2542 = vmatprep.subr.bf16.mxu0 0
        %2543 = vmatpush2.bf16.msra.mxu0 %v2223
        %2544 = vmatprep.subr.bf16.mxu0 0
        %2545 = vmatpush2.bf16.msra.mxu0 %v2222
        %2546 = vmatprep.subr.bf16.mxu0 0
        %2547 = vmatpush2.bf16.msra.mxu0 %v2221
        %2548 = vmatprep.subr.bf16.mxu0 0
        %2549 = vmatpush2.bf16.msra.mxu0 %v2220
        %2550 = vmatprep.mubr.bf16.mxu0 %v1641
        %2551 = vmatmul.mubr.bf16.gmra.mxu0 %v1640
        %v2552 = vpop.f32.mrf.mxu0
        %v2553 = vadd.f32 %v2512, %v2552
        %v2554 = vpop.f32.mrf.mxu0
        %v2555 = vpop.f32.mrf.mxu0
        %v2556 = vadd.f32 %v2515, %v2555
        %v2557 = vpop.f32.mrf.mxu0
        %2558 = vdwg.mxu0
        %2559 = vmatprep.subr.bf16.mxu0 0
        %2560 = vmatpush1.bf16.msra.mxu0 %v2235
        %2561 = vmatprep.subr.bf16.mxu0 0
        %2562 = vmatpush1.bf16.msra.mxu0 %v2234
        %2563 = vmatprep.subr.bf16.mxu0 0
        %2564 = vmatpush1.bf16.msra.mxu0 %v2233
        %2565 = vmatprep.subr.bf16.mxu0 0
        %2566 = vmatpush1.bf16.msra.mxu0 %v2232
        %2567 = vmatprep.subr.bf16.mxu0 0
        %2568 = vmatpush1.bf16.msra.mxu0 %v2231
        %2569 = vmatprep.subr.bf16.mxu0 0
        %2570 = vmatpush1.bf16.msra.mxu0 %v2230
        %2571 = vmatprep.subr.bf16.mxu0 0
        %2572 = vmatpush1.bf16.msra.mxu0 %v2229
        %2573 = vmatprep.subr.bf16.mxu0 0
        %2574 = vmatpush1.bf16.msra.mxu0 %v2228
        %2575 = vmatprep.subr.bf16.mxu0 0
        %2576 = vmatpush2.bf16.msra.mxu0 %v2243
        %2577 = vmatprep.subr.bf16.mxu0 0
        %2578 = vmatpush2.bf16.msra.mxu0 %v2242
        %2579 = vmatprep.subr.bf16.mxu0 0
        %2580 = vmatpush2.bf16.msra.mxu0 %v2241
        %2581 = vmatprep.subr.bf16.mxu0 0
        %2582 = vmatpush2.bf16.msra.mxu0 %v2240
        %2583 = vmatprep.subr.bf16.mxu0 0
        %2584 = vmatpush2.bf16.msra.mxu0 %v2239
        %2585 = vmatprep.subr.bf16.mxu0 0
        %2586 = vmatpush2.bf16.msra.mxu0 %v2238
        %2587 = vmatprep.subr.bf16.mxu0 0
        %2588 = vmatpush2.bf16.msra.mxu0 %v2237
        %2589 = vmatprep.subr.bf16.mxu0 0
        %2590 = vmatpush2.bf16.msra.mxu0 %v2236
        %2591 = vmatprep.mubr.bf16.mxu0 %v1643
        %2592 = vmatmul.mubr.bf16.gmra.mxu0 %v1642
        %v2593 = vpop.f32.mrf.mxu0
        %v2594 = vadd.f32 %v2553, %v2593
        %v2595 = vpop.f32.mrf.mxu0
        %v2596 = vpop.f32.mrf.mxu0
        %v2597 = vadd.f32 %v2556, %v2596
        %v2598 = vpop.f32.mrf.mxu0
        %2599 = vdwg.mxu0
        %2600 = vmatprep.subr.bf16.mxu0 0
        %2601 = vmatpush1.bf16.msra.mxu0 %v2251
        %2602 = vmatprep.subr.bf16.mxu0 0
        %2603 = vmatpush1.bf16.msra.mxu0 %v2250
        %2604 = vmatprep.subr.bf16.mxu0 0
        %2605 = vmatpush1.bf16.msra.mxu0 %v2249
        %2606 = vmatprep.subr.bf16.mxu0 0
        %2607 = vmatpush1.bf16.msra.mxu0 %v2248
        %2608 = vmatprep.subr.bf16.mxu0 0
        %2609 = vmatpush1.bf16.msra.mxu0 %v2247
        %2610 = vmatprep.subr.bf16.mxu0 0
        %2611 = vmatpush1.bf16.msra.mxu0 %v2246
        %2612 = vmatprep.subr.bf16.mxu0 0
        %2613 = vmatpush1.bf16.msra.mxu0 %v2245
        %2614 = vmatprep.subr.bf16.mxu0 0
        %2615 = vmatpush1.bf16.msra.mxu0 %v2244
        %2616 = vmatprep.subr.bf16.mxu0 0
        %2617 = vmatpush2.bf16.msra.mxu0 %v2259
        %2618 = vmatprep.subr.bf16.mxu0 0
        %2619 = vmatpush2.bf16.msra.mxu0 %v2258
        %2620 = vmatprep.subr.bf16.mxu0 0
        %2621 = vmatpush2.bf16.msra.mxu0 %v2257
        %2622 = vmatprep.subr.bf16.mxu0 0
        %2623 = vmatpush2.bf16.msra.mxu0 %v2256
        %2624 = vmatprep.subr.bf16.mxu0 0
        %2625 = vmatpush2.bf16.msra.mxu0 %v2255
        %2626 = vmatprep.subr.bf16.mxu0 0
        %2627 = vmatpush2.bf16.msra.mxu0 %v2254
        %2628 = vmatprep.subr.bf16.mxu0 0
        %2629 = vmatpush2.bf16.msra.mxu0 %v2253
        %2630 = vmatprep.subr.bf16.mxu0 0
        %2631 = vmatpush2.bf16.msra.mxu0 %v2252
        %2632 = vmatprep.mubr.bf16.mxu0 %v1645
        %2633 = vmatmul.mubr.bf16.gmra.mxu0 %v1644
        %v2634 = vpop.f32.mrf.mxu0
        %v2635 = vadd.f32 %v2594, %v2634
        %v2636 = vpop.f32.mrf.mxu0
        %v2637 = vpop.f32.mrf.mxu0
        %v2638 = vadd.f32 %v2597, %v2637
        %v2639 = vpop.f32.mrf.mxu0
        %2640 = vdwg.mxu0
        %2641 = vmatprep.subr.bf16.mxu0 0
        %2642 = vmatpush1.bf16.msra.mxu0 %v2267
        %2643 = vmatprep.subr.bf16.mxu0 0
        %2644 = vmatpush1.bf16.msra.mxu0 %v2266
        %2645 = vmatprep.subr.bf16.mxu0 0
        %2646 = vmatpush1.bf16.msra.mxu0 %v2265
        %2647 = vmatprep.subr.bf16.mxu0 0
        %2648 = vmatpush1.bf16.msra.mxu0 %v2264
        %2649 = vmatprep.subr.bf16.mxu0 0
        %2650 = vmatpush1.bf16.msra.mxu0 %v2263
        %2651 = vmatprep.subr.bf16.mxu0 0
        %2652 = vmatpush1.bf16.msra.mxu0 %v2262
        %2653 = vmatprep.subr.bf16.mxu0 0
        %2654 = vmatpush1.bf16.msra.mxu0 %v2261
        %2655 = vmatprep.subr.bf16.mxu0 0
        %2656 = vmatpush1.bf16.msra.mxu0 %v2260
        %2657 = vmatprep.subr.bf16.mxu0 0
        %2658 = vmatpush2.bf16.msra.mxu0 %v2275
        %2659 = vmatprep.subr.bf16.mxu0 0
        %2660 = vmatpush2.bf16.msra.mxu0 %v2274
        %2661 = vmatprep.subr.bf16.mxu0 0
        %2662 = vmatpush2.bf16.msra.mxu0 %v2273
        %2663 = vmatprep.subr.bf16.mxu0 0
        %2664 = vmatpush2.bf16.msra.mxu0 %v2272
        %2665 = vmatprep.subr.bf16.mxu0 0
        %2666 = vmatpush2.bf16.msra.mxu0 %v2271
        %2667 = vmatprep.subr.bf16.mxu0 0
        %2668 = vmatpush2.bf16.msra.mxu0 %v2270
        %2669 = vmatprep.subr.bf16.mxu0 0
        %2670 = vmatpush2.bf16.msra.mxu0 %v2269
        %2671 = vmatprep.subr.bf16.mxu0 0
        %2672 = vmatpush2.bf16.msra.mxu0 %v2268
        %2673 = vmatprep.mubr.bf16.mxu0 %v1647
        %2674 = vmatmul.mubr.bf16.gmra.mxu0 %v1646
        %v2675 = vpop.f32.mrf.mxu0
        %v2676 = vadd.f32 %v2635, %v2675
        %v2677 = vpop.f32.mrf.mxu0
        %v2678 = vpop.f32.mrf.mxu0
        %v2679 = vadd.f32 %v2638, %v2678
        %v2680 = vpop.f32.mrf.mxu0
        %2681 = vdwg.mxu0
        %2682 = vmatprep.subr.bf16.mxu0 0
        %2683 = vmatpush1.bf16.msra.mxu0 %v2283
        %2684 = vmatprep.subr.bf16.mxu0 0
        %2685 = vmatpush1.bf16.msra.mxu0 %v2282
        %2686 = vmatprep.subr.bf16.mxu0 0
        %2687 = vmatpush1.bf16.msra.mxu0 %v2281
        %2688 = vmatprep.subr.bf16.mxu0 0
        %2689 = vmatpush1.bf16.msra.mxu0 %v2280
        %2690 = vmatprep.subr.bf16.mxu0 0
        %2691 = vmatpush1.bf16.msra.mxu0 %v2279
        %2692 = vmatprep.subr.bf16.mxu0 0
        %2693 = vmatpush1.bf16.msra.mxu0 %v2278
        %2694 = vmatprep.subr.bf16.mxu0 0
        %2695 = vmatpush1.bf16.msra.mxu0 %v2277
        %2696 = vmatprep.subr.bf16.mxu0 0
        %2697 = vmatpush1.bf16.msra.mxu0 %v2276
        %2698 = vmatprep.subr.bf16.mxu0 0
        %2699 = vmatpush2.bf16.msra.mxu0 %v2291
        %2700 = vmatprep.subr.bf16.mxu0 0
        %2701 = vmatpush2.bf16.msra.mxu0 %v2290
        %2702 = vmatprep.subr.bf16.mxu0 0
        %2703 = vmatpush2.bf16.msra.mxu0 %v2289
        %2704 = vmatprep.subr.bf16.mxu0 0
        %2705 = vmatpush2.bf16.msra.mxu0 %v2288
        %2706 = vmatprep.subr.bf16.mxu0 0
        %2707 = vmatpush2.bf16.msra.mxu0 %v2287
        %2708 = vmatprep.subr.bf16.mxu0 0
        %2709 = vmatpush2.bf16.msra.mxu0 %v2286
        %2710 = vmatprep.subr.bf16.mxu0 0
        %2711 = vmatpush2.bf16.msra.mxu0 %v2285
        %2712 = vmatprep.subr.bf16.mxu0 0
        %2713 = vmatpush2.bf16.msra.mxu0 %v2284
        %2714 = vmatprep.mubr.bf16.mxu0 %v1649
        %2715 = vmatmul.mubr.bf16.gmra.mxu0 %v1648
        %v2716 = vpop.f32.mrf.mxu0
        %v2717 = vadd.f32 %v2676, %v2716
        %v2718 = vpop.f32.mrf.mxu0
        %v2719 = vpop.f32.mrf.mxu0
        %v2720 = vadd.f32 %v2679, %v2719
        %v2721 = vpop.f32.mrf.mxu0
        %2722 = vdwg.mxu0
        %2723 = vmatprep.subr.bf16.mxu0 0
        %2724 = vmatpush1.bf16.msra.mxu0 %v2299
        %2725 = vmatprep.subr.bf16.mxu0 0
        %2726 = vmatpush1.bf16.msra.mxu0 %v2298
        %2727 = vmatprep.subr.bf16.mxu0 0
        %2728 = vmatpush1.bf16.msra.mxu0 %v2297
        %2729 = vmatprep.subr.bf16.mxu0 0
        %2730 = vmatpush1.bf16.msra.mxu0 %v2296
        %2731 = vmatprep.subr.bf16.mxu0 0
        %2732 = vmatpush1.bf16.msra.mxu0 %v2295
        %2733 = vmatprep.subr.bf16.mxu0 0
        %2734 = vmatpush1.bf16.msra.mxu0 %v2294
        %2735 = vmatprep.subr.bf16.mxu0 0
        %2736 = vmatpush1.bf16.msra.mxu0 %v2293
        %2737 = vmatprep.subr.bf16.mxu0 0
        %2738 = vmatpush1.bf16.msra.mxu0 %v2292
        %2739 = vmatprep.subr.bf16.mxu0 0
        %2740 = vmatpush2.bf16.msra.mxu0 %v2307
        %2741 = vmatprep.subr.bf16.mxu0 0
        %2742 = vmatpush2.bf16.msra.mxu0 %v2306
        %2743 = vmatprep.subr.bf16.mxu0 0
        %2744 = vmatpush2.bf16.msra.mxu0 %v2305
        %2745 = vmatprep.subr.bf16.mxu0 0
        %2746 = vmatpush2.bf16.msra.mxu0 %v2304
        %2747 = vmatprep.subr.bf16.mxu0 0
        %2748 = vmatpush2.bf16.msra.mxu0 %v2303
        %2749 = vmatprep.subr.bf16.mxu0 0
        %2750 = vmatpush2.bf16.msra.mxu0 %v2302
        %2751 = vmatprep.subr.bf16.mxu0 0
        %2752 = vmatpush2.bf16.msra.mxu0 %v2301
        %2753 = vmatprep.subr.bf16.mxu0 0
        %2754 = vmatpush2.bf16.msra.mxu0 %v2300
        %2755 = vmatprep.mubr.bf16.mxu0 %v1651
        %2756 = vmatmul.mubr.bf16.gmra.mxu0 %v1650
        %v2757 = vpop.f32.mrf.mxu0
        %v2758 = vadd.f32 %v2717, %v2757
        %v2759 = vpop.f32.mrf.mxu0
        %v2760 = vpop.f32.mrf.mxu0
        %v2761 = vadd.f32 %v2720, %v2760
        %v2762 = vpop.f32.mrf.mxu0
        %2763 = vdwg.mxu0
        %v2764 = vmax.f32 %v2758, 0.0
        %v2765 = vmax.f32 %v2761, 0.0
        %v2766 = vpack.c.bf16 %v2765, %v2764
        %v2768 = vunpack.c.l.b16 %v2766
        %v2769 = vunpack.c.h.b16 %v2766
        %v2770 = vpack.c.b16 %v2768, %v2768
        %v2771 = vpack.c.b16 %v2769, %v2769
        %2774 = vst [vmem:[%s1289] sm:$0xf] %v2770
        %2775 = vst [vmem:[%s1289 + $0x4] sm:$0xf] %v2771
        %s2776 = sand.u32 %s125, 1
        %s2777 = sand.u32 %s125, 1
        %s2778 = smul.addr %s2777, 8
        %s2779 = scalar_lea.vmem [#allocation3], %s2778
        // Predicated region
        $region74: #{generator_forward.8} parent=68 // pred_check
          %p2780 = pneg %p135
        $region75: #{generator_forward.8} parent=68 // pred_check_branch
          %2782 = sbr.rel (%p2780) target = $region77
        $region76: #{generator_forward.8} parent=68 // pred_region
          %s2783 = smul.u32 2, %s20
          %s2784 = smul.addr %s2783, 2
          %s2785 = sadd.s32 %s21, %s2784
          %s2786 = smul.addr %s19, 4
          %s2787 = sadd.s32 %s2785, %s2786
          %s2788 = smul.addr %s2787, 4
          %s2789 = scalar_lea.vmem %s3, %s2788
          // Predicated region
          $region78: #{generator_forward.8} parent=76 // pred_check
            _
          $region79: #{generator_forward.8} parent=76 // pred_check_branch
            %2791 = sbr.rel (0) target = $region81
          $region80: #{generator_forward.8} parent=76 // pred_region
            // Predicated region
            $region82: #{generator_forward.8} parent=80 // pred_check
              _
            $region83: #{generator_forward.8} parent=80 // pred_check_branch
              %2793 = sbr.rel target = $region85
            $region84: #{generator_forward.8} parent=80 // pred_region
              // Predicated region
              $region97: #{generator_forward.8} parent=84 // pred_check
                _
              $region98: #{generator_forward.8} parent=84 // pred_check_branch
                %2811 = sbr.rel (0) target = $region100
              $region99: #{generator_forward.8} parent=84 // pred_region
                loop: start=0, step=1, limit=1
                $region101: #{generator_forward.8} parent=99 // loop_pre_header
                  _
                $region102: #{generator_forward.8} parent=99 // loop_header
                  %s2813 = sphi 0, %s2817
                  %p2814 = scmp.ge.s32.totalorder %s2813, 1
                  %s2818 = sphi %s2779, %s2779
                  %s2819 = sphi %s2789, %s2789
                $region103: #{generator_forward.8} parent=99 // loop_header_branch
                  %2816 = sbr.rel (%p2814) target = $region107
                $region104: #{generator_forward.8} parent=99 // loop_body
                  _
                $region105: #{generator_forward.8} parent=99 // loop_footer
                  %s2817 = sadd.s32 1, %s2813
                $region106: #{generator_forward.8} parent=99 // loop_footer_branch
                  %2812 = sbr.rel target = $region102
                $region107: #{generator_forward.8} parent=99 // loop_exit
                  _
                %s2821 = ssub.s32 16, 1
                loop: start=0, step=1, limit=1
                $region108: #{generator_forward.8} parent=99 // loop_pre_header
                  _
                $region109: #{generator_forward.8} parent=99 // loop_header
                  %s2823 = sphi 0, %s2827
                  %p2824 = scmp.ge.s32.totalorder %s2823, 1
                  %s2828 = sphi %s2779, %s2779
                  %s2829 = sphi %s2789, %s2789
                $region110: #{generator_forward.8} parent=99 // loop_header_branch
                  %2826 = sbr.rel (%p2824) target = $region114
                $region111: #{generator_forward.8} parent=99 // loop_body
                  %v2830 = vld [vmem:[%s2828] sm:%s2821]
                  %2831 = vst [vmem:[%s2829] sm:%s2821] %v2830
                  %v2832 = vld [vmem:[%s2828 + $0x4] sm:%s2821]
                  %2833 = vst [vmem:[%s2829 + $0x8] sm:%s2821] %v2832
                $region112: #{generator_forward.8} parent=99 // loop_footer
                  %s2827 = sadd.s32 1, %s2823
                $region113: #{generator_forward.8} parent=99 // loop_footer_branch
                  %2822 = sbr.rel target = $region109
                $region114: #{generator_forward.8} parent=99 // loop_exit
                  _
              $region100: #{generator_forward.8} parent=84 // pred_fallthru
                _
            $region85: #{generator_forward.8} parent=80 // pred_fallthru
              _
            // Predicated region
            $region86: #{generator_forward.8} parent=80 // pred_check
              _
            $region87: #{generator_forward.8} parent=80 // pred_check_branch
              %2795 = sbr.rel (0) target = $region89
            $region88: #{generator_forward.8} parent=80 // pred_region
              %s2797 = ssub.s32 16, 1
              loop: start=0, step=1, limit=1
              $region90: #{generator_forward.8} parent=88 // loop_pre_header
                _
              $region91: #{generator_forward.8} parent=88 // loop_header
                %s2799 = sphi 0, %s2803
                %p2800 = scmp.ge.s32.totalorder %s2799, 1
                %s2804 = sphi %s2779, %s2779
                %s2805 = sphi %s2789, %s2789
              $region92: #{generator_forward.8} parent=88 // loop_header_branch
                %2802 = sbr.rel (%p2800) target = $region96
              $region93: #{generator_forward.8} parent=88 // loop_body
                %v2806 = vld [vmem:[%s2804] sm:%s2797]
                %2807 = vst [vmem:[%s2805] sm:%s2797] %v2806
                %v2808 = vld [vmem:[%s2804 + $0x4] sm:%s2797]
                %2809 = vst [vmem:[%s2805 + $0x8] sm:%s2797] %v2808
              $region94: #{generator_forward.8} parent=88 // loop_footer
                %s2803 = sadd.s32 1, %s2799
              $region95: #{generator_forward.8} parent=88 // loop_footer_branch
                %2798 = sbr.rel target = $region91
              $region96: #{generator_forward.8} parent=88 // loop_exit
                _
            $region89: #{generator_forward.8} parent=80 // pred_fallthru
              _
          $region81: #{generator_forward.8} parent=76 // pred_fallthru
            _
          %2834 = vnop
        $region77: #{generator_forward.8} parent=68 // pred_fallthru
          _
      $region69: #{generator_forward.8} parent=5 // pred_fallthru
        _
      %p2835 = scmp.le.s32.totalorder 2, %s9
      // Predicated region
      $region115: #{generator_forward.8} parent=5 // pred_check
        %p2836 = pneg %p2835
      $region116: #{generator_forward.8} parent=5 // pred_check_branch
        %2838 = sbr.rel (%p2836) target = $region118
      $region117: #{generator_forward.8} parent=5 // pred_region
        %s2839 = ssub.s32 %s9, 2
        // Predicated region
        $region119: #{generator_forward.8} parent=117 // pred_check
          %p2840 = pneg %p141
        $region120: #{generator_forward.8} parent=117 // pred_check_branch
          %2842 = sbr.rel (%p2840) target = $region122
        $region121: #{generator_forward.8} parent=117 // pred_region
          %s2843 = sand.u32 %s126, 1
          %s2844 = sand.u32 %s126, 1
          %s2845 = smul.addr %s2844, 8
          %s2846 = scalar_lea.vmem [#allocation3], %s2845
        $region122: #{generator_forward.8} parent=117 // pred_fallthru
          _
      $region118: #{generator_forward.8} parent=5 // pred_fallthru
        _
    $region6: #{generator_forward.8} parent=1 // loop_footer
      %s13 = sadd.s32 1, %s9
    $region7: #{generator_forward.8} parent=1 // loop_footer_branch
      %8 = sbr.rel target = $region3
    $region8: #{generator_forward.8} parent=1 // loop_exit
      _

// kernel: generator_forward.11
$region0: #{generator_forward.11}
  #allocation0 [shape = 'u32[]', space=smem, size = 0x4, offset = 0x4, fixed_abs, tag = 'smem constant byte address 0x4 - core index']
  #allocation1 [shape = 'u32[144,128]{1,0:T(1,128)}', space=vmem, size = 0x12000, scoped, tag = 'internal scratch']
  %s0 = inlined_call_operand.vmem [shape: bf16[4,128,256], index: 0, kind: input, shape index: {}]
  %s1 = inlined_call_operand.vmem [shape: bf16[4,256,128], index: 1, kind: input, shape index: {}]
  %s2 = inlined_call_operand.vmem [shape: f32[1,128], index: 2, kind: input, shape index: {}]
  %s3 = inlined_call_operand.vmem [shape: f32[4,128,128], index: 3, kind: output, shape index: {}]
  %s4 = sld [smem:[#allocation0]]
  $region45: #{generator_forward.11} parent=0
    _
  %s6 = ssub.s32 1, %s4
  %s7 = scalar_select 0, %s6, %s4
  loop: start=0, step=1, limit=6
  $region2: #{generator_forward.11} parent=0 // loop_pre_header
    _
  $region3: #{generator_forward.11} parent=0 // loop_header
    %s9 = sphi 0, %s13
    %p10 = scmp.ge.s32.totalorder %s9, 6
    %s16 = sphi 0, %s35
    %s17 = sphi 0, %s31
    %s18 = sphi 0, %s27
    %s19 = sphi 0, %s16
    %s20 = sphi 0, %s17
    %s21 = sphi 0, %s18
    %s22 = sphi 0, %s19
    %s23 = sphi 0, %s20
    %s24 = sphi 0, %s21
    %s40 = sphi 0, %s42
    %s43 = sphi 0, %s40
    %s44 = sphi 0, %s43
    %s60 = sphi 0, %s44
    %s66 = sphi 0, %s68
    %s69 = sphi 0, %s66
    %s70 = sphi 0, %s69
    %s86 = sphi 0, %s70
    %s92 = sphi 0, %s94
    %s95 = sphi 0, %s92
    %s96 = sphi 0, %s95
    %s112 = sphi 0, %s96
    %s122 = sphi 0, %s124
    %s125 = sphi 0, %s122
    %s126 = sphi 0, %s125
    %s142 = sphi 0, %s126
  $region4: #{generator_forward.11} parent=0 // loop_header_branch
    %12 = sbr.rel (%p10) target = $region8
  $region5: #{generator_forward.11} parent=0 // loop_body
    %s14 = ssub.s32 %s9, 1
    %s15 = ssub.s32 %s9, 2
    %s25 = sadd.s32 1, %s18
    %p26 = scmp.ge.s32.totalorder %s25, 1
    %s27 = scalar_select %p26, 0, %s25
    %s28 = sadd.s32 1, %s17
    %s29 = scalar_select %p26, %s28, %s17
    %p30 = scmp.ge.s32.totalorder %s29, 1
    %s31 = scalar_select %p30, 0, %s29
    %s32 = sadd.s32 1, %s16
    %s33 = scalar_select %p30, %s32, %s16
    %p34 = scmp.ge.s32.totalorder %s33, 4
    %s35 = scalar_select %p34, 0, %s33
    %s36 = ssub.s32 %s16, %s35
    %s37 = ssub.s32 %s17, %s31
    %s38 = sor.u32 %s36, %s37
    %p39 = scmp.eq.s32.totalorder %s38, 0
    %s41 = sadd.s32 %s40, 1
    %s42 = scalar_select %p39, %s40, %s41
    %p45 = pneg %p39
    %p46 = scmp.eq.s32.totalorder %s9, 3
    %p47 = por %p45, %p46
    %p48 = scmp.ne.s32.totalorder %s40, %s43
    %p49 = scmp.eq.s32.totalorder %s9, 0
    %p50 = por %p48, %p49
    %p51 = scmp.ne.s32.totalorder %s40, %s43
    %p52 = scmp.eq.s32.totalorder %s14, 3
    %p53 = por %p51, %p52
    %p54 = scmp.ne.s32.totalorder %s43, %s44
    %p55 = scmp.eq.s32.totalorder %s14, 0
    %p56 = por %p54, %p55
    %p57 = scmp.ne.s32.totalorder %s43, %s44
    %p58 = scmp.eq.s32.totalorder %s15, 3
    %p59 = por %p57, %p58
    %p61 = scmp.ne.s32.totalorder %s44, %s60
    %p62 = scmp.eq.s32.totalorder %s15, 0
    %p63 = por %p61, %p62
    %s64 = ssub.s32 %s18, %s27
    %p65 = scmp.eq.s32.totalorder %s64, 0
    %s67 = sadd.s32 %s66, 1
    %s68 = scalar_select %p65, %s66, %s67
    %p71 = pneg %p65
    %p72 = scmp.eq.s32.totalorder %s9, 3
    %p73 = por %p71, %p72
    %p74 = scmp.ne.s32.totalorder %s66, %s69
    %p75 = scmp.eq.s32.totalorder %s9, 0
    %p76 = por %p74, %p75
    %p77 = scmp.ne.s32.totalorder %s66, %s69
    %p78 = scmp.eq.s32.totalorder %s14, 3
    %p79 = por %p77, %p78
    %p80 = scmp.ne.s32.totalorder %s69, %s70
    %p81 = scmp.eq.s32.totalorder %s14, 0
    %p82 = por %p80, %p81
    %p83 = scmp.ne.s32.totalorder %s69, %s70
    %p84 = scmp.eq.s32.totalorder %s15, 3
    %p85 = por %p83, %p84
    %p87 = scmp.ne.s32.totalorder %s70, %s86
    %p88 = scmp.eq.s32.totalorder %s15, 0
    %p89 = por %p87, %p88
    %s90 = ssub.s32 %s18, %s27
    %p91 = scmp.eq.s32.totalorder %s90, 0
    %s93 = sadd.s32 %s92, 1
    %s94 = scalar_select %p91, %s92, %s93
    %p97 = pneg %p91
    %p98 = scmp.eq.s32.totalorder %s9, 3
    %p99 = por %p97, %p98
    %p100 = scmp.ne.s32.totalorder %s92, %s95
    %p101 = scmp.eq.s32.totalorder %s9, 0
    %p102 = por %p100, %p101
    %p103 = scmp.ne.s32.totalorder %s92, %s95
    %p104 = scmp.eq.s32.totalorder %s14, 3
    %p105 = por %p103, %p104
    %p106 = scmp.ne.s32.totalorder %s95, %s96
    %p107 = scmp.eq.s32.totalorder %s14, 0
    %p108 = por %p106, %p107
    %p109 = scmp.ne.s32.totalorder %s95, %s96
    %p110 = scmp.eq.s32.totalorder %s15, 3
    %p111 = por %p109, %p110
    %p113 = scmp.ne.s32.totalorder %s96, %s112
    %p114 = scmp.eq.s32.totalorder %s15, 0
    %p115 = por %p113, %p114
    %s116 = ssub.s32 %s16, %s35
    %s117 = ssub.s32 %s17, %s31
    %s118 = sor.u32 %s116, %s117
    %s119 = ssub.s32 %s18, %s27
    %s120 = sor.u32 %s118, %s119
    %p121 = scmp.eq.s32.totalorder %s120, 0
    %s123 = sadd.s32 %s122, 1
    %s124 = scalar_select %p121, %s122, %s123
    %p127 = pneg %p121
    %p128 = scmp.eq.s32.totalorder %s9, 3
    %p129 = por %p127, %p128
    %p130 = scmp.ne.s32.totalorder %s122, %s125
    %p131 = scmp.eq.s32.totalorder %s9, 0
    %p132 = por %p130, %p131
    %p133 = scmp.ne.s32.totalorder %s122, %s125
    %p134 = scmp.eq.s32.totalorder %s14, 3
    %p135 = por %p133, %p134
    %p136 = scmp.ne.s32.totalorder %s125, %s126
    %p137 = scmp.eq.s32.totalorder %s14, 0
    %p138 = por %p136, %p137
    %p139 = scmp.ne.s32.totalorder %s125, %s126
    %p140 = scmp.eq.s32.totalorder %s15, 3
    %p141 = por %p139, %p140
    %p143 = scmp.ne.s32.totalorder %s126, %s142
    %p144 = scmp.eq.s32.totalorder %s15, 0
    %p145 = por %p143, %p144
    %p146 = scmp.le.s32.totalorder 1, %s9
    %p147 = scmp.lt.s32.totalorder %s9, 5
    %p148 = pnand %p146, %p147
    %p149 = pneg %p148
    // Predicated region
    $region9: #{generator_forward.11} parent=5 // pred_check
      _
    $region10: #{generator_forward.11} parent=5 // pred_check_branch
      %151 = sbr.rel (%p148) target = $region12
    $region11: #{generator_forward.11} parent=5 // pred_region
      %s152 = ssub.s32 %s9, 1
      // Predicated region
      $region13: #{generator_forward.11} parent=11 // pred_check
        %p153 = pneg %p82
      $region14: #{generator_forward.11} parent=11 // pred_check_branch
        %155 = sbr.rel (%p153) target = $region16
      $region15: #{generator_forward.11} parent=11 // pred_region
        %p156 = scmp.lt.s32.totalorder %s21, 0
        %s157 = scalar_select %p156, %s21, 0
        %s158 = smul.addr %s157, 4
        %s159 = scalar_lea.vmem %s1, %s158
      $region16: #{generator_forward.11} parent=11 // pred_fallthru
        _
      // Predicated region
      $region17: #{generator_forward.11} parent=11 // pred_check
        %p160 = pneg %p108
      $region18: #{generator_forward.11} parent=11 // pred_check_branch
        %162 = sbr.rel (%p160) target = $region20
      $region19: #{generator_forward.11} parent=11 // pred_region
        %p163 = scmp.lt.s32.totalorder %s21, 0
        %s164 = scalar_select %p163, %s21, 0
        %s165 = scalar_lea.vmem %s2, %s164
      $region20: #{generator_forward.11} parent=11 // pred_fallthru
        _
    $region12: #{generator_forward.11} parent=5 // pred_fallthru
      _
    %p166 = scmp.lt.s32.totalorder %s9, 4
    // Predicated region
    $region21: #{generator_forward.11} parent=5 // pred_check
      %p167 = pneg %p166
    $region22: #{generator_forward.11} parent=5 // pred_check_branch
      %169 = sbr.rel (%p167) target = $region24
    $region23: #{generator_forward.11} parent=5 // pred_region
      // Predicated region
      $region25: #{generator_forward.11} parent=23 // pred_check
        %p170 = pneg %p50
      $region26: #{generator_forward.11} parent=23 // pred_check_branch
        %172 = sbr.rel (%p170) target = $region28
      $region27: #{generator_forward.11} parent=23 // pred_region
        %s173 = smul.u32 16, %s17
        %p174 = scmp.lt.s32.totalorder %s16, 3
        %s175 = scalar_select %p174, %s16, 3
        %p176 = scmp.lt.s32.totalorder %s173, 15
        %s177 = scalar_select %p176, %s173, 15
        %s178 = smul.addr %s177, 2
        %s179 = smul.addr %s175, 32
        %s180 = sadd.s32 %s178, %s179
        %s181 = smul.addr %s180, 4
        %s182 = scalar_lea.vmem %s0, %s181
        %s183 = smul.u32 16, %s17
      $region28: #{generator_forward.11} parent=23 // pred_fallthru
        _
    $region24: #{generator_forward.11} parent=5 // pred_fallthru
      _
    %p184 = scmp.le.s32.totalorder 1, %s9
    %p185 = scmp.lt.s32.totalorder %s9, 5
    %p186 = pnand %p184, %p185
    %p187 = pneg %p186
    // Predicated region
    $region29: #{generator_forward.11} parent=5 // pred_check
      _
    $region30: #{generator_forward.11} parent=5 // pred_check_branch
      %189 = sbr.rel (%p186) target = $region32
    $region31: #{generator_forward.11} parent=5 // pred_region
      %s190 = ssub.s32 %s9, 1
      %s191 = smul.u32 16, %s20
      %p192 = scmp.lt.s32.totalorder %s19, 3
      %s193 = scalar_select %p192, %s19, 3
      %p194 = scmp.lt.s32.totalorder %s191, 15
      %s195 = scalar_select %p194, %s191, 15
      %s196 = smul.addr %s195, 2
      %s197 = smul.addr %s193, 32
      %s198 = sadd.s32 %s196, %s197
      %s199 = smul.addr %s198, 4
      %s200 = scalar_lea.vmem %s0, %s199
      %p201 = pneg %p56
      %p202 = pneg %p53
      %p203 = scmp.lt.s32.totalorder %s21, 0
      %s204 = scalar_select %p203, %s21, 0
      %s205 = smul.addr %s204, 4
      %s206 = scalar_lea.vmem %s1, %s205
      %p207 = pneg %p82
      %p208 = pneg %p79
      %p209 = scmp.lt.s32.totalorder %s21, 0
      %s210 = scalar_select %p209, %s21, 0
      %s211 = scalar_lea.vmem %s2, %s210
      %p212 = pneg %p108
      %p213 = pneg %p105
      %p214 = pneg %p138
      %p215 = pneg %p135
      %s216 = smul.u32 16, %s20
      %p217 = scmp.lt.s32.totalorder %s19, 3
      %s218 = scalar_select %p217, %s19, 3
      %p219 = scmp.lt.s32.totalorder %s216, 15
      %s220 = scalar_select %p219, %s216, 15
      %p221 = scmp.lt.s32.totalorder %s21, 0
      %s222 = scalar_select %p221, %s21, 0
      %s223 = sadd.s32 %s222, %s220
      %s224 = smul.addr %s218, 16
      %s225 = sadd.s32 %s223, %s224
      %s226 = smul.addr %s225, 8
      %s227 = scalar_lea.vmem %s3, %s226
      %s228 = smul.u32 16, %s20
      %p229 = scmp.lt.s32.totalorder %s19, 3
      %s230 = scalar_select %p229, %s19, 3
      %p231 = scmp.lt.s32.totalorder %s228, 15
      %s232 = scalar_select %p231, %s228, 15
      %s233 = smul.addr %s232, 2
      %s234 = smul.addr %s230, 32
      %s235 = sadd.s32 %s233, %s234
      %s236 = smul.addr %s235, 4
      %s237 = scalar_lea.vmem %s0, %s236
      %s238 = smul.u32 16, %s20
      %p239 = scmp.lt.s32.totalorder %s21, 0
      %s240 = scalar_select %p239, %s21, 0
      %s241 = smul.addr %s240, 4
      %s242 = scalar_lea.vmem %s1, %s241
      %p243 = scmp.lt.s32.totalorder %s21, 0
      %s244 = scalar_select %p243, %s21, 0
      %s245 = scalar_lea.vmem %s2, %s244
      %s246 = smul.u32 16, %s20
      %p247 = scmp.lt.s32.totalorder %s19, 3
      %s248 = scalar_select %p247, %s19, 3
      %p249 = scmp.lt.s32.totalorder %s246, 15
      %s250 = scalar_select %p249, %s246, 15
      %p251 = scmp.lt.s32.totalorder %s21, 0
      %s252 = scalar_select %p251, %s21, 0
      %s253 = sadd.s32 %s252, %s250
      %s254 = smul.addr %s248, 16
      %s255 = sadd.s32 %s253, %s254
      %s256 = smul.addr %s255, 8
      %s257 = scalar_lea.vmem %s3, %s256
      %s258 = smul.u32 16, %s20
      %s260 = smul.u32 %s19, 32
      %s261 = smul.addr %s260, 4
      %s262 = scalar_lea.vmem %s242, %s261
      %v263 = vld [vmem:[%s262] sm:$0xf]
      %v264 = vld [vmem:[%s262 + $0x4] sm:$0xf]
      %v265 = vld [vmem:[%s262 + $0x8] sm:$0xf]
      %v266 = vld [vmem:[%s262 + $0xc] sm:$0xf]
      %v267 = vld [vmem:[%s262 + $0x10] sm:$0xf]
      %v268 = vld [vmem:[%s262 + $0x14] sm:$0xf]
      %v269 = vld [vmem:[%s262 + $0x18] sm:$0xf]
      %v270 = vld [vmem:[%s262 + $0x1c] sm:$0xf]
      %v271 = vld [vmem:[%s262 + $0x20] sm:$0xf]
      %v272 = vld [vmem:[%s262 + $0x24] sm:$0xf]
      %v273 = vld [vmem:[%s262 + $0x28] sm:$0xf]
      %v274 = vld [vmem:[%s262 + $0x2c] sm:$0xf]
      %v275 = vld [vmem:[%s262 + $0x30] sm:$0xf]
      %v276 = vld [vmem:[%s262 + $0x34] sm:$0xf]
      %v277 = vld [vmem:[%s262 + $0x38] sm:$0xf]
      %v278 = vld [vmem:[%s262 + $0x3c] sm:$0xf]
      %v279 = vld [vmem:[%s262 + $0x40] sm:$0xf]
      %v280 = vld [vmem:[%s262 + $0x44] sm:$0xf]
      %v281 = vld [vmem:[%s262 + $0x48] sm:$0xf]
      %v282 = vld [vmem:[%s262 + $0x4c] sm:$0xf]
      %v283 = vld [vmem:[%s262 + $0x50] sm:$0xf]
      %v284 = vld [vmem:[%s262 + $0x54] sm:$0xf]
      %v285 = vld [vmem:[%s262 + $0x58] sm:$0xf]
      %v286 = vld [vmem:[%s262 + $0x5c] sm:$0xf]
      %v287 = vld [vmem:[%s262 + $0x60] sm:$0xf]
      %v288 = vld [vmem:[%s262 + $0x64] sm:$0xf]
      %v289 = vld [vmem:[%s262 + $0x68] sm:$0xf]
      %v290 = vld [vmem:[%s262 + $0x6c] sm:$0xf]
      %v291 = vld [vmem:[%s262 + $0x70] sm:$0xf]
      %v292 = vld [vmem:[%s262 + $0x74] sm:$0xf]
      %v293 = vld [vmem:[%s262 + $0x78] sm:$0xf]
      %v294 = vld [vmem:[%s262 + $0x7c] sm:$0xf]
      %v295 = vld [vmem:[%s237] sm:$0xff]
      %v296 = vld [vmem:[%s237 + $0x8] sm:$0xff]
      %v297 = vld [vmem:[%s237 + $0x10] sm:$0xff]
      %v298 = vld [vmem:[%s237 + $0x18] sm:$0xff]
      %v299 = vld [vmem:[%s237 + $0x20] sm:$0xff]
      %v300 = vld [vmem:[%s237 + $0x28] sm:$0xff]
      %v301 = vld [vmem:[%s237 + $0x30] sm:$0xff]
      %v302 = vld [vmem:[%s237 + $0x38] sm:$0xff]
      %v303 = vld [vmem:[%s237 + $0x40] sm:$0xff]
      %v304 = vld [vmem:[%s237 + $0x48] sm:$0xff]
      %v305 = vld [vmem:[%s237 + $0x50] sm:$0xff]
      %v306 = vld [vmem:[%s237 + $0x58] sm:$0xff]
      %v307 = vld [vmem:[%s237 + $0x60] sm:$0xff]
      %v308 = vld [vmem:[%s237 + $0x68] sm:$0xff]
      %v309 = vld [vmem:[%s237 + $0x70] sm:$0xff]
      %v310 = vld [vmem:[%s237 + $0x78] sm:$0xff]
      %v311 = vld [vmem:[%s245] sm:$0x1]
      %v313 = vlaneseq
      %v314 = vshrl.u32 %v313, 7
      %v315 = vsub.s32 0, %v314
      %v316 = vrot.slane %v311, %v315
      %v334 = vunpack.c.l.b16 %v295
      %v335 = vunpack.c.h.b16 %v295
      %v336 = vunpack.c.l.b16 %v296
      %v337 = vunpack.c.h.b16 %v296
      %v338 = vunpack.c.l.b16 %v297
      %v339 = vunpack.c.h.b16 %v297
      %v340 = vunpack.c.l.b16 %v298
      %v341 = vunpack.c.h.b16 %v298
      %v342 = vunpack.c.l.b16 %v299
      %v343 = vunpack.c.h.b16 %v299
      %v344 = vunpack.c.l.b16 %v300
      %v345 = vunpack.c.h.b16 %v300
      %v346 = vunpack.c.l.b16 %v301
      %v347 = vunpack.c.h.b16 %v301
      %v348 = vunpack.c.l.b16 %v302
      %v349 = vunpack.c.h.b16 %v302
      %v350 = vunpack.c.l.b16 %v303
      %v351 = vunpack.c.h.b16 %v303
      %v352 = vunpack.c.l.b16 %v304
      %v353 = vunpack.c.h.b16 %v304
      %v354 = vunpack.c.l.b16 %v305
      %v355 = vunpack.c.h.b16 %v305
      %v356 = vunpack.c.l.b16 %v306
      %v357 = vunpack.c.h.b16 %v306
      %v358 = vunpack.c.l.b16 %v307
      %v359 = vunpack.c.h.b16 %v307
      %v360 = vunpack.c.l.b16 %v308
      %v361 = vunpack.c.h.b16 %v308
      %v362 = vunpack.c.l.b16 %v309
      %v363 = vunpack.c.h.b16 %v309
      %v364 = vunpack.c.l.b16 %v310
      %v365 = vunpack.c.h.b16 %v310
      %v366 = vpack.c.b16 %v336, %v334
      %v367 = vpack.c.b16 %v337, %v335
      %v368 = vpack.c.b16 %v340, %v338
      %v369 = vpack.c.b16 %v341, %v339
      %v370 = vpack.c.b16 %v344, %v342
      %v371 = vpack.c.b16 %v345, %v343
      %v372 = vpack.c.b16 %v348, %v346
      %v373 = vpack.c.b16 %v349, %v347
      %v374 = vpack.c.b16 %v352, %v350
      %v375 = vpack.c.b16 %v353, %v351
      %v376 = vpack.c.b16 %v356, %v354
      %v377 = vpack.c.b16 %v357, %v355
      %v378 = vpack.c.b16 %v360, %v358
      %v379 = vpack.c.b16 %v361, %v359
      %v380 = vpack.c.b16 %v364, %v362
      %v381 = vpack.c.b16 %v365, %v363
      %v430 = vunpack.c.l.b16 %v263
      %v431 = vunpack.c.l.b16 %v264
      %v432 = vunpack.c.l.b16 %v265
      %v433 = vunpack.c.l.b16 %v266
      %v434 = vunpack.c.l.b16 %v267
      %v435 = vunpack.c.l.b16 %v268
      %v436 = vunpack.c.l.b16 %v269
      %v437 = vunpack.c.l.b16 %v270
      %v438 = vunpack.c.l.b16 %v271
      %v439 = vunpack.c.l.b16 %v272
      %v440 = vunpack.c.l.b16 %v273
      %v441 = vunpack.c.l.b16 %v274
      %v442 = vunpack.c.l.b16 %v275
      %v443 = vunpack.c.l.b16 %v276
      %v444 = vunpack.c.l.b16 %v277
      %v445 = vunpack.c.l.b16 %v278
      %v446 = vunpack.c.l.b16 %v279
      %v447 = vunpack.c.l.b16 %v280
      %v448 = vunpack.c.l.b16 %v281
      %v449 = vunpack.c.l.b16 %v282
      %v450 = vunpack.c.l.b16 %v283
      %v451 = vunpack.c.l.b16 %v284
      %v452 = vunpack.c.l.b16 %v285
      %v453 = vunpack.c.l.b16 %v286
      %v454 = vunpack.c.l.b16 %v287
      %v455 = vunpack.c.l.b16 %v288
      %v456 = vunpack.c.l.b16 %v289
      %v457 = vunpack.c.l.b16 %v290
      %v458 = vunpack.c.l.b16 %v291
      %v459 = vunpack.c.l.b16 %v292
      %v460 = vunpack.c.l.b16 %v293
      %v461 = vunpack.c.l.b16 %v294
      %v462 = vpack.c.b16 %v431, %v430
      %v463 = vpack.c.b16 %v433, %v432
      %v464 = vpack.c.b16 %v435, %v434
      %v465 = vpack.c.b16 %v437, %v436
      %v466 = vpack.c.b16 %v439, %v438
      %v467 = vpack.c.b16 %v441, %v440
      %v468 = vpack.c.b16 %v443, %v442
      %v469 = vpack.c.b16 %v445, %v444
      %v470 = vpack.c.b16 %v447, %v446
      %v471 = vpack.c.b16 %v449, %v448
      %v472 = vpack.c.b16 %v451, %v450
      %v473 = vpack.c.b16 %v453, %v452
      %v474 = vpack.c.b16 %v455, %v454
      %v475 = vpack.c.b16 %v457, %v456
      %v476 = vpack.c.b16 %v459, %v458
      %v477 = vpack.c.b16 %v461, %v460
      %494 = vmatprep.subr.bf16.mxu0 0
      %495 = vmatpush1.bf16.msra.mxu0 %v469
      %496 = vmatprep.subr.bf16.mxu0 0
      %497 = vmatpush1.bf16.msra.mxu0 %v468
      %498 = vmatprep.subr.bf16.mxu0 0
      %499 = vmatpush1.bf16.msra.mxu0 %v467
      %500 = vmatprep.subr.bf16.mxu0 0
      %501 = vmatpush1.bf16.msra.mxu0 %v466
      %502 = vmatprep.subr.bf16.mxu0 0
      %503 = vmatpush1.bf16.msra.mxu0 %v465
      %504 = vmatprep.subr.bf16.mxu0 0
      %505 = vmatpush1.bf16.msra.mxu0 %v464
      %506 = vmatprep.subr.bf16.mxu0 0
      %507 = vmatpush1.bf16.msra.mxu0 %v463
      %508 = vmatprep.subr.bf16.mxu0 0
      %509 = vmatpush1.bf16.msra.mxu0 %v462
      %510 = vmatprep.subr.bf16.mxu0 0
      %511 = vmatpush2.bf16.msra.mxu0 %v477
      %512 = vmatprep.subr.bf16.mxu0 0
      %513 = vmatpush2.bf16.msra.mxu0 %v476
      %514 = vmatprep.subr.bf16.mxu0 0
      %515 = vmatpush2.bf16.msra.mxu0 %v475
      %516 = vmatprep.subr.bf16.mxu0 0
      %517 = vmatpush2.bf16.msra.mxu0 %v474
      %518 = vmatprep.subr.bf16.mxu0 0
      %519 = vmatpush2.bf16.msra.mxu0 %v473
      %520 = vmatprep.subr.bf16.mxu0 0
      %521 = vmatpush2.bf16.msra.mxu0 %v472
      %522 = vmatprep.subr.bf16.mxu0 0
      %523 = vmatpush2.bf16.msra.mxu0 %v471
      %524 = vmatprep.subr.bf16.mxu0 0
      %525 = vmatpush2.bf16.msra.mxu0 %v470
      %526 = vmatprep.mubr.bf16.mxu0 %v367
      %527 = vmatmul.mubr.bf16.gmra.mxu0 %v366
      %v528 = vpop.f32.mrf.mxu0
      %v529 = vadd.f32 %v316, %v528
      %v530 = vpop.f32.mrf.mxu0
      %v531 = vpop.f32.mrf.mxu0
      %v532 = vadd.f32 %v316, %v531
      %v533 = vpop.f32.mrf.mxu0
      %534 = vmatprep.mubr.bf16.mxu0 %v369
      %535 = vmatmul.mubr.bf16.gmra.mxu0 %v368
      %v536 = vpop.f32.mrf.mxu0
      %v537 = vadd.f32 %v316, %v536
      %v538 = vpop.f32.mrf.mxu0
      %v539 = vpop.f32.mrf.mxu0
      %v540 = vadd.f32 %v316, %v539
      %v541 = vpop.f32.mrf.mxu0
      %542 = vmatprep.mubr.bf16.mxu0 %v371
      %543 = vmatmul.mubr.bf16.gmra.mxu0 %v370
      %v544 = vpop.f32.mrf.mxu0
      %v545 = vadd.f32 %v316, %v544
      %v546 = vpop.f32.mrf.mxu0
      %v547 = vpop.f32.mrf.mxu0
      %v548 = vadd.f32 %v316, %v547
      %v549 = vpop.f32.mrf.mxu0
      %550 = vmatprep.mubr.bf16.mxu0 %v373
      %551 = vmatmul.mubr.bf16.gmra.mxu0 %v372
      %v552 = vpop.f32.mrf.mxu0
      %v553 = vadd.f32 %v316, %v552
      %v554 = vpop.f32.mrf.mxu0
      %v555 = vpop.f32.mrf.mxu0
      %v556 = vadd.f32 %v316, %v555
      %v557 = vpop.f32.mrf.mxu0
      %558 = vmatprep.mubr.bf16.mxu0 %v375
      %559 = vmatmul.mubr.bf16.gmra.mxu0 %v374
      %v560 = vpop.f32.mrf.mxu0
      %v561 = vadd.f32 %v316, %v560
      %v562 = vpop.f32.mrf.mxu0
      %v563 = vpop.f32.mrf.mxu0
      %v564 = vadd.f32 %v316, %v563
      %v565 = vpop.f32.mrf.mxu0
      %566 = vmatprep.mubr.bf16.mxu0 %v377
      %567 = vmatmul.mubr.bf16.gmra.mxu0 %v376
      %v568 = vpop.f32.mrf.mxu0
      %v569 = vadd.f32 %v316, %v568
      %v570 = vpop.f32.mrf.mxu0
      %v571 = vpop.f32.mrf.mxu0
      %v572 = vadd.f32 %v316, %v571
      %v573 = vpop.f32.mrf.mxu0
      %574 = vmatprep.mubr.bf16.mxu0 %v379
      %575 = vmatmul.mubr.bf16.gmra.mxu0 %v378
      %v576 = vpop.f32.mrf.mxu0
      %v577 = vadd.f32 %v316, %v576
      %v578 = vpop.f32.mrf.mxu0
      %v579 = vpop.f32.mrf.mxu0
      %v580 = vadd.f32 %v316, %v579
      %v581 = vpop.f32.mrf.mxu0
      %582 = vmatprep.mubr.bf16.mxu0 %v381
      %583 = vmatmul.mubr.bf16.gmra.mxu0 %v380
      %v584 = vpop.f32.mrf.mxu0
      %v585 = vadd.f32 %v316, %v584
      %v586 = vpop.f32.mrf.mxu0
      %v587 = vpop.f32.mrf.mxu0
      %v588 = vadd.f32 %v316, %v587
      %v589 = vpop.f32.mrf.mxu0
      %590 = vdwg.mxu0
      %v591 = vtanh.pop %v529
      %v592 = vtanh.pop %v532
      %v593 = vtanh.pop %v537
      %v594 = vtanh.pop %v540
      %v595 = vtanh.pop %v545
      %v596 = vtanh.pop %v548
      %v597 = vtanh.pop %v553
      %v598 = vtanh.pop %v556
      %v599 = vtanh.pop %v561
      %v600 = vtanh.pop %v564
      %v601 = vtanh.pop %v569
      %v602 = vtanh.pop %v572
      %v603 = vtanh.pop %v577
      %v604 = vtanh.pop %v580
      %v605 = vtanh.pop %v585
      %v606 = vtanh.pop %v588
      %607 = vst [vmem:[%s257] sm:$0xff] %v591
      %608 = vst [vmem:[%s257 + $0x8] sm:$0xff] %v592
      %609 = vst [vmem:[%s257 + $0x10] sm:$0xff] %v593
      %610 = vst [vmem:[%s257 + $0x18] sm:$0xff] %v594
      %611 = vst [vmem:[%s257 + $0x20] sm:$0xff] %v595
      %612 = vst [vmem:[%s257 + $0x28] sm:$0xff] %v596
      %613 = vst [vmem:[%s257 + $0x30] sm:$0xff] %v597
      %614 = vst [vmem:[%s257 + $0x38] sm:$0xff] %v598
      %615 = vst [vmem:[%s257 + $0x40] sm:$0xff] %v599
      %616 = vst [vmem:[%s257 + $0x48] sm:$0xff] %v600
      %617 = vst [vmem:[%s257 + $0x50] sm:$0xff] %v601
      %618 = vst [vmem:[%s257 + $0x58] sm:$0xff] %v602
      %619 = vst [vmem:[%s257 + $0x60] sm:$0xff] %v603
      %620 = vst [vmem:[%s257 + $0x68] sm:$0xff] %v604
      %621 = vst [vmem:[%s257 + $0x70] sm:$0xff] %v605
      %622 = vst [vmem:[%s257 + $0x78] sm:$0xff] %v606
      %s623 = smul.u32 16, %s20
      %p624 = scmp.lt.s32.totalorder %s19, 3
      %s625 = scalar_select %p624, %s19, 3
      %p626 = scmp.lt.s32.totalorder %s623, 15
      %s627 = scalar_select %p626, %s623, 15
      %p628 = scmp.lt.s32.totalorder %s21, 0
      %s629 = scalar_select %p628, %s21, 0
      %s630 = sadd.s32 %s629, %s627
      %s631 = smul.addr %s625, 16
      %s632 = sadd.s32 %s630, %s631
      %s633 = smul.addr %s632, 8
      %s634 = scalar_lea.vmem %s3, %s633
      // Predicated region
      $region33: #{generator_forward.11} parent=31 // pred_check
        %p635 = pneg %p135
      $region34: #{generator_forward.11} parent=31 // pred_check_branch
        %637 = sbr.rel (%p635) target = $region36
      $region35: #{generator_forward.11} parent=31 // pred_region
        %s638 = smul.u32 16, %s20
      $region36: #{generator_forward.11} parent=31 // pred_fallthru
        _
    $region32: #{generator_forward.11} parent=5 // pred_fallthru
      _
    %p639 = scmp.le.s32.totalorder 2, %s9
    // Predicated region
    $region37: #{generator_forward.11} parent=5 // pred_check
      %p640 = pneg %p639
    $region38: #{generator_forward.11} parent=5 // pred_check_branch
      %642 = sbr.rel (%p640) target = $region40
    $region39: #{generator_forward.11} parent=5 // pred_region
      %s643 = ssub.s32 %s9, 2
      // Predicated region
      $region41: #{generator_forward.11} parent=39 // pred_check
        %p644 = pneg %p141
      $region42: #{generator_forward.11} parent=39 // pred_check_branch
        %646 = sbr.rel (%p644) target = $region44
      $region43: #{generator_forward.11} parent=39 // pred_region
        %s647 = smul.u32 16, %s23
        %p648 = scmp.lt.s32.totalorder %s22, 3
        %s649 = scalar_select %p648, %s22, 3
        %p650 = scmp.lt.s32.totalorder %s647, 15
        %s651 = scalar_select %p650, %s647, 15
        %p652 = scmp.lt.s32.totalorder %s24, 0
        %s653 = scalar_select %p652, %s24, 0
        %s654 = sadd.s32 %s653, %s651
        %s655 = smul.addr %s649, 16
        %s656 = sadd.s32 %s654, %s655
        %s657 = smul.addr %s656, 8
        %s658 = scalar_lea.vmem %s3, %s657
      $region44: #{generator_forward.11} parent=39 // pred_fallthru
        _
    $region40: #{generator_forward.11} parent=5 // pred_fallthru
      _
  $region6: #{generator_forward.11} parent=0 // loop_footer
    %s13 = sadd.s32 1, %s9
  $region7: #{generator_forward.11} parent=0 // loop_footer_branch
    %8 = sbr.rel target = $region3
  $region8: #{generator_forward.11} parent=0 // loop_exit
    _

</llo_original>
